<compile_context>
chip_gen: v7x
topology: tpu7x:2x2x1
jax: 0.10.0
libtpu: 0.0.40
codegen_flags: <defaults>
</compile_context>

<pallas_src>
import math
from functools import partial

import jax
import jax.numpy as jnp
from jax.experimental import pallas as pl
from jax.experimental.pallas import tpu as pltpu


# c2nl / OpenNMT LayerNorm uses eps=1e-6 (torch nn.LayerNorm default is 1e-5).
# TODO(synk): flip to 1e-5 if the reference checkpoint used default LayerNorm.
LN_EPS = 1e-6
NEG_BIAS = -1e9


# ---------------------------------------------------------------------------
# Fused per-layer Pallas kernel
# ---------------------------------------------------------------------------

def _decoder_layer_kernel(
    # per-batch activations / mask biases
    x_ref, mem_ref, sub_ref, dec_bias_ref, src_bias_ref,
    # self-attention (fused qkv) + LN1
    wqkv_s_ref, bqkv_s_ref, wo_s_ref, bo_s_ref, ln1_g_ref, ln1_b_ref,
    # subtree (RvNN serial) cross-attention + LNs
    wq_t_ref, bq_t_ref, wkv_t_ref, bkv_t_ref, wo_t_ref, bo_t_ref,
    lns_g_ref, lns_b_ref,
    # memory cross-attention + LN2
    wq_c_ref, bq_c_ref, wkv_c_ref, bkv_c_ref, wo_c_ref, bo_c_ref,
    ln2_g_ref, ln2_b_ref,
    # position-wise FFN (pre-LN)
    lnf_g_ref, lnf_b_ref, w1_ref, b1_ref, w2_ref, b2_ref,
    # outputs
    out_ref, attn_ref,
    *, heads, d_k, d_v, scale, eps):

    f32 = jnp.float32
    bf16 = jnp.bfloat16

    def mm(a, w):
        # bf16 at the MXU, f32 accumulation.
        return jnp.dot(a.astype(bf16), w.astype(bf16),
                       preferred_element_type=f32)

    def ln(v, g_ref, b_ref):
        mu = jnp.mean(v, axis=-1, keepdims=True)
        var = jnp.mean(jnp.square(v - mu), axis=-1, keepdims=True)
        return (v - mu) * jax.lax.rsqrt(var + eps) * g_ref[...] + b_ref[...]

    # contracting dims: last dim of q against last dim of k (no transpose op)
    _qk_dims = (((1,), (1,)), ((), ()))

    def attend(q, k, v, bias, want_probs):
        """q:(Tq,H*dk) k:(Tk,H*dk) v:(Tk,H*dv) bias:(Tq|1,Tk) additive."""
        ctx_heads = []
        probs_sum = None
        for h in range(heads):
            qh = q[:, h * d_k:(h + 1) * d_k] * scale
            kh = k[:, h * d_k:(h + 1) * d_k]
            vh = v[:, h * d_v:(h + 1) * d_v]
            s = jax.lax.dot_general(qh.astype(bf16), kh.astype(bf16),
                                    _qk_dims, preferred_element_type=f32)
            if bias is not None:
                s = s + bias
            m = jnp.max(s, axis=-1, keepdims=True)
            e = jnp.exp(s - m)
            inv = pl.reciprocal(jnp.sum(e, axis=-1, keepdims=True),
                                approx=True)
            p = e * inv
            ctx_heads.append(jnp.dot(p.astype(bf16), vh.astype(bf16),
                                     preferred_element_type=f32))
            if want_probs:
                probs_sum = p if probs_sum is None else probs_sum + p
        ctx = jnp.concatenate(ctx_heads, axis=-1)          # (Tq, H*dv)
        probs = probs_sum * (1.0 / heads) if want_probs else None
        return ctx, probs

    x = x_ref[0]                   # (T, D)
    mem = mem_ref[0]               # (S, D)
    sub = sub_ref[0]               # (R, D)
    dec_bias = dec_bias_ref[0]     # (T, T)
    src_bias = src_bias_ref[0]     # (1, S)

    h_dk = heads * d_k

    # --- 1) masked self-attention (fused QKV projection) ---
    qkv = mm(x, wqkv_s_ref[...]) + bqkv_s_ref[...]
    ctx_s, _ = attend(qkv[:, :h_dk], qkv[:, h_dk:2 * h_dk],
                      qkv[:, 2 * h_dk:], dec_bias, False)
    a_s = mm(ctx_s, wo_s_ref[...]) + bo_s_ref[...]
    h1 = ln(a_s + x, ln1_g_ref, ln1_b_ref)

    # --- 2) serial subtree (RvNN) cross-attention (no key padding mask) ---
    q_t = mm(h1, wq_t_ref[...]) + bq_t_ref[...]
    kv_t = mm(sub, wkv_t_ref[...]) + bkv_t_ref[...]
    ctx_t, _ = attend(q_t, kv_t[:, :h_dk], kv_t[:, h_dk:], None, False)
    a_t = mm(ctx_t, wo_t_ref[...]) + bo_t_ref[...]
    h2 = ln(a_t + h1, lns_g_ref, lns_b_ref)

    # --- 3) memory cross-attention (masked by memory_len) ---
    q_c = mm(h2, wq_c_ref[...]) + bq_c_ref[...]
    kv_c = mm(mem, wkv_c_ref[...]) + bkv_c_ref[...]
    ctx_c, probs = attend(q_c, kv_c[:, :h_dk], kv_c[:, h_dk:], src_bias, True)
    a_c = mm(ctx_c, wo_c_ref[...]) + bo_c_ref[...]
    h3 = ln(a_c + h2, ln2_g_ref, ln2_b_ref)

    # --- 4) position-wise FFN (pre-LN, ReLU) + residual ---
    hf = ln(h3, lnf_g_ref, lnf_b_ref)
    ff = jnp.maximum(mm(hf, w1_ref[...]) + b1_ref[...], 0.0)
    ff = mm(ff, w2_ref[...]) + b2_ref[...]

    out_ref[0] = h3 + ff
    # head-averaged memory attention (matches previous behavior)
    attn_ref[0] = probs


def decoder_layer_pallas(x, memory, subtree, dec_bias, src_bias, p,
                         *, heads, d_k, d_v, eps=LN_EPS):
    B, T, D = x.shape
    S = memory.shape[1]
    R = subtree.shape[1]
    scale = 1.0 / math.sqrt(d_k)

    def batched(L, W):
        return pl.BlockSpec((1, L, W), lambda b: (b, 0, 0))

    def resident(arr):
        return pl.BlockSpec(arr.shape, lambda b: (0, 0))

    weight_arrays = [
        p["wqkv_s"], p["bqkv_s"], p["wo_s"], p["bo_s"], p["ln1_g"], p["ln1_b"],
        p["wq_t"], p["bq_t"], p["wkv_t"], p["bkv_t"], p["wo_t"], p["bo_t"],
        p["lns_g"], p["lns_b"],
        p["wq_c"], p["bq_c"], p["wkv_c"], p["bkv_c"], p["wo_c"], p["bo_c"],
        p["ln2_g"], p["ln2_b"],
        p["lnf_g"], p["lnf_b"], p["w1"], p["b1"], p["w2"], p["b2"],
    ]

    in_specs = [
        batched(T, D),          # x
        batched(S, D),          # memory
        batched(R, D),          # subtree
        batched(T, T),          # dec_bias
        batched(1, S),          # src_bias
    ] + [resident(a) for a in weight_arrays]

    out_shape = (jax.ShapeDtypeStruct((B, T, D), jnp.float32),
                 jax.ShapeDtypeStruct((B, T, S), jnp.float32))
    out_specs = (batched(T, D), batched(T, S))

    return pl.pallas_call(
        partial(_decoder_layer_kernel, heads=heads, d_k=d_k, d_v=d_v,
                scale=scale, eps=eps),
        out_shape=out_shape,
        grid=(B,),
        in_specs=in_specs,
        out_specs=out_specs,
        compiler_params=pltpu.CompilerParams(
            dimension_semantics=("parallel",)),
    )(x, memory, subtree, dec_bias, src_bias, *weight_arrays)


# ---------------------------------------------------------------------------
# Decoder forward (equivalent of Decoder.forward, non-split path, eval mode)
# ---------------------------------------------------------------------------

def decoder_forward(params, memory_bank, memory_len, subtree_emb,
                    tgt_pad_mask, tgt_emb, *, heads, d_k, d_v):
    B, S, D = memory_bank.shape
    T = tgt_emb.shape[1]

    # additive mask biases: 0 = attend, NEG_BIAS = masked out
    causal = jnp.triu(jnp.ones((T, T), dtype=jnp.bool_), k=1)      # future
    dec_mask = jnp.logical_or(causal[None, :, :],
                              tgt_pad_mask[:, None, :])            # (B,T,T)
    dec_bias = jnp.where(dec_mask, NEG_BIAS, 0.0).astype(jnp.float32)
    src_mask = jnp.arange(S)[None, :] >= memory_len[:, None]       # (B,S)
    src_bias = jnp.where(src_mask, NEG_BIAS, 0.0).astype(
        jnp.float32)[:, None, :]                                   # (B,1,S)
    # subtree attention has no key-padding mask (matches reference usage)

    x = tgt_emb
    attns = []
    for p in params["layers"]:
        x, attn = decoder_layer_pallas(x, memory_bank, subtree_emb,
                                       dec_bias, src_bias, p,
                                       heads=heads, d_k=d_k, d_v=d_v)
        attns.append(attn)
    return x, attns


# ---------------------------------------------------------------------------
# Deterministic parameter construction (bf16 weight matrices, f32 vectors)
# ---------------------------------------------------------------------------

def _self_attn_params(key, d_model, heads, d_k, d_v):
    ks = jax.random.split(key, 4)
    std = 0.02
    wq = std * jax.random.normal(ks[0], (d_model, heads * d_k), jnp.float32)
    wk = std * jax.random.normal(ks[1], (d_model, heads * d_k), jnp.float32)
    wv = std * jax.random.normal(ks[2], (d_model, heads * d_v), jnp.float32)
    wo = std * jax.random.normal(ks[3], (heads * d_v, d_model), jnp.float32)
    return {
        "wqkv": jnp.concatenate([wq, wk, wv], axis=1).astype(jnp.bfloat16),
        "bqkv": jnp.zeros((1, heads * (2 * d_k + d_v)), jnp.float32),
        "wo": wo.astype(jnp.bfloat16),
        "bo": jnp.zeros((1, d_model), jnp.float32),
    }


def _cross_attn_params(key, d_model, heads, d_k, d_v):
    ks = jax.random.split(key, 4)
    std = 0.02
    wq = std * jax.random.normal(ks[0], (d_model, heads * d_k), jnp.float32)
    wk = std * jax.random.normal(ks[1], (d_model, heads * d_k), jnp.float32)
    wv = std * jax.random.normal(ks[2], (d_model, heads * d_v), jnp.float32)
    wo = std * jax.random.normal(ks[3], (heads * d_v, d_model), jnp.float32)
    return {
        "wq": wq.astype(jnp.bfloat16),
        "bq": jnp.zeros((1, heads * d_k), jnp.float32),
        "wkv": jnp.concatenate([wk, wv], axis=1).astype(jnp.bfloat16),
        "bkv": jnp.zeros((1, heads * (d_k + d_v)), jnp.float32),
        "wo": wo.astype(jnp.bfloat16),
        "bo": jnp.zeros((1, d_model), jnp.float32),
    }


def make_params(key, num_layers, d_model, heads, d_k, d_v, d_ff):
    layers = []
    for _ in range(num_layers):
        key, k0, k1, k2, k3, k4 = jax.random.split(key, 6)
        std = 0.02
        sa = _self_attn_params(k0, d_model, heads, d_k, d_v)
        ta = _cross_attn_params(k1, d_model, heads, d_k, d_v)
        ca = _cross_attn_params(k2, d_model, heads, d_k, d_v)
        ones = jnp.ones((1, d_model), jnp.float32)
        zeros = jnp.zeros((1, d_model), jnp.float32)
        layers.append({
            # self-attention
            "wqkv_s": sa["wqkv"], "bqkv_s": sa["bqkv"],
            "wo_s": sa["wo"], "bo_s": sa["bo"],
            "ln1_g": ones, "ln1_b": zeros,
            # subtree attention
            "wq_t": ta["wq"], "bq_t": ta["bq"],
            "wkv_t": ta["wkv"], "bkv_t": ta["bkv"],
            "wo_t": ta["wo"], "bo_t": ta["bo"],
            "lns_g": ones, "lns_b": zeros,
            # memory attention
            "wq_c": ca["wq"], "bq_c": ca["bq"],
            "wkv_c": ca["wkv"], "bkv_c": ca["bkv"],
            "wo_c": ca["wo"], "bo_c": ca["bo"],
            "ln2_g": ones, "ln2_b": zeros,
            # FFN
            "lnf_g": ones, "lnf_b": zeros,
            "w1": (std * jax.random.normal(k3, (d_model, d_ff), jnp.float32)
                   ).astype(jnp.bfloat16),
            "b1": jnp.zeros((1, d_ff), jnp.float32),
            "w2": (std * jax.random.normal(k4, (d_ff, d_model), jnp.float32)
                   ).astype(jnp.bfloat16),
            "b2": jnp.zeros((1, d_model), jnp.float32),
        })
    return {"layers": layers}


# ---------------------------------------------------------------------------
# Main
# ---------------------------------------------------------------------------

if __name__ == "__main__":
    # small shapes consistent with the module
    B, T, S, R = 2, 8, 16, 8          # batch, tgt len, src len, subtree len
    D, H, DK, DV, DFF = 32, 4, 8, 8, 64
    NUM_LAYERS = 2

    key = jax.random.PRNGKey(0)
    kp, k1, k2, k3 = jax.random.split(key, 4)

    params = make_params(kp, NUM_LAYERS, D, H, DK, DV, DFF)

    memory_bank = jax.random.normal(k1, (B, S, D), jnp.float32)
    memory_len = jnp.array([S, 11], jnp.int32)
    subtree_emb = jax.random.normal(k2, (B, R, D), jnp.float32)
    tgt_emb = jax.random.normal(k3, (B, T, D), jnp.float32)
    # True = padded target position (lens: [8, 6])
    tgt_pad_mask = jnp.array(
        [[False] * T, [False] * 6 + [True] * 2], dtype=jnp.bool_)

    fwd = jax.jit(partial(decoder_forward, heads=H, d_k=DK, d_v=DV))
    decoder_outputs, attns = fwd(params, memory_bank, memory_len,
                                 subtree_emb, tgt_pad_mask, tgt_emb)

    jax.block_until_ready(decoder_outputs)
    jax.block_until_ready(attns)

    assert decoder_outputs.shape == (B, T, D)
    assert all(a.shape == (B, T, S) for a in attns)
    assert bool(jnp.all(jnp.isfinite(decoder_outputs)))
    print("KERNEL_OK")
</pallas_src>

<mosaic_0001>
module attributes {stable_mosaic.version = 11 : i64} {
  func.func @_decoder_layer_kernel(%arg0: i32, %arg1: memref<1x8x32xf32, #tpu.memory_space<vmem>>, %arg2: memref<1x16x32xf32, #tpu.memory_space<vmem>>, %arg3: memref<1x8x32xf32, #tpu.memory_space<vmem>>, %arg4: memref<1x8x8xf32, #tpu.memory_space<vmem>>, %arg5: memref<1x1x16xf32, #tpu.memory_space<vmem>>, %arg6: memref<32x96xbf16, #tpu.memory_space<vmem>>, %arg7: memref<1x96xf32, #tpu.memory_space<vmem>>, %arg8: memref<32x32xbf16, #tpu.memory_space<vmem>>, %arg9: memref<1x32xf32, #tpu.memory_space<vmem>>, %arg10: memref<1x32xf32, #tpu.memory_space<vmem>>, %arg11: memref<1x32xf32, #tpu.memory_space<vmem>>, %arg12: memref<32x32xbf16, #tpu.memory_space<vmem>>, %arg13: memref<1x32xf32, #tpu.memory_space<vmem>>, %arg14: memref<32x64xbf16, #tpu.memory_space<vmem>>, %arg15: memref<1x64xf32, #tpu.memory_space<vmem>>, %arg16: memref<32x32xbf16, #tpu.memory_space<vmem>>, %arg17: memref<1x32xf32, #tpu.memory_space<vmem>>, %arg18: memref<1x32xf32, #tpu.memory_space<vmem>>, %arg19: memref<1x32xf32, #tpu.memory_space<vmem>>, %arg20: memref<32x32xbf16, #tpu.memory_space<vmem>>, %arg21: memref<1x32xf32, #tpu.memory_space<vmem>>, %arg22: memref<32x64xbf16, #tpu.memory_space<vmem>>, %arg23: memref<1x64xf32, #tpu.memory_space<vmem>>, %arg24: memref<32x32xbf16, #tpu.memory_space<vmem>>, %arg25: memref<1x32xf32, #tpu.memory_space<vmem>>, %arg26: memref<1x32xf32, #tpu.memory_space<vmem>>, %arg27: memref<1x32xf32, #tpu.memory_space<vmem>>, %arg28: memref<1x32xf32, #tpu.memory_space<vmem>>, %arg29: memref<1x32xf32, #tpu.memory_space<vmem>>, %arg30: memref<32x64xbf16, #tpu.memory_space<vmem>>, %arg31: memref<1x64xf32, #tpu.memory_space<vmem>>, %arg32: memref<64x32xbf16, #tpu.memory_space<vmem>>, %arg33: memref<1x32xf32, #tpu.memory_space<vmem>>, %arg34: memref<1x8x32xf32, #tpu.memory_space<vmem>>, %arg35: memref<1x8x16xf32, #tpu.memory_space<vmem>>) attributes {dimension_semantics = [#tpu.dimension_semantics<parallel>], iteration_bounds = array<i64: 2>, scalar_prefetch = 0 : i64, scratch_operands = 0 : i64, tpu.core_type = #tpu.core_type<tc>, window_params = [{transform_indices = @transform_0, window_bounds = array<i64: 1, 8, 32>}, {transform_indices = @transform_1, window_bounds = array<i64: 1, 16, 32>}, {transform_indices = @transform_2, window_bounds = array<i64: 1, 8, 32>}, {transform_indices = @transform_3, window_bounds = array<i64: 1, 8, 8>}, {transform_indices = @transform_4, window_bounds = array<i64: 1, 1, 16>}, {pipeline_mode = #tpu.pipeline_mode<synchronous>, transform_indices = @transform_5, window_bounds = array<i64: 32, 96>}, {pipeline_mode = #tpu.pipeline_mode<synchronous>, transform_indices = @transform_6, window_bounds = array<i64: 1, 96>}, {pipeline_mode = #tpu.pipeline_mode<synchronous>, transform_indices = @transform_7, window_bounds = array<i64: 32, 32>}, {pipeline_mode = #tpu.pipeline_mode<synchronous>, transform_indices = @transform_8, window_bounds = array<i64: 1, 32>}, {pipeline_mode = #tpu.pipeline_mode<synchronous>, transform_indices = @transform_9, window_bounds = array<i64: 1, 32>}, {pipeline_mode = #tpu.pipeline_mode<synchronous>, transform_indices = @transform_10, window_bounds = array<i64: 1, 32>}, {pipeline_mode = #tpu.pipeline_mode<synchronous>, transform_indices = @transform_11, window_bounds = array<i64: 32, 32>}, {pipeline_mode = #tpu.pipeline_mode<synchronous>, transform_indices = @transform_12, window_bounds = array<i64: 1, 32>}, {pipeline_mode = #tpu.pipeline_mode<synchronous>, transform_indices = @transform_13, window_bounds = array<i64: 32, 64>}, {pipeline_mode = #tpu.pipeline_mode<synchronous>, transform_indices = @transform_14, window_bounds = array<i64: 1, 64>}, {pipeline_mode = #tpu.pipeline_mode<synchronous>, transform_indices = @transform_15, window_bounds = array<i64: 32, 32>}, {pipeline_mode = #tpu.pipeline_mode<synchronous>, transform_indices = @transform_16, window_bounds = array<i64: 1, 32>}, {pipeline_mode = #tpu.pipeline_mode<synchronous>, transform_indices = @transform_17, window_bounds = array<i64: 1, 32>}, {pipeline_mode = #tpu.pipeline_mode<synchronous>, transform_indices = @transform_18, window_bounds = array<i64: 1, 32>}, {pipeline_mode = #tpu.pipeline_mode<synchronous>, transform_indices = @transform_19, window_bounds = array<i64: 32, 32>}, {pipeline_mode = #tpu.pipeline_mode<synchronous>, transform_indices = @transform_20, window_bounds = array<i64: 1, 32>}, {pipeline_mode = #tpu.pipeline_mode<synchronous>, transform_indices = @transform_21, window_bounds = array<i64: 32, 64>}, {pipeline_mode = #tpu.pipeline_mode<synchronous>, transform_indices = @transform_22, window_bounds = array<i64: 1, 64>}, {pipeline_mode = #tpu.pipeline_mode<synchronous>, transform_indices = @transform_23, window_bounds = array<i64: 32, 32>}, {pipeline_mode = #tpu.pipeline_mode<synchronous>, transform_indices = @transform_24, window_bounds = array<i64: 1, 32>}, {pipeline_mode = #tpu.pipeline_mode<synchronous>, transform_indices = @transform_25, window_bounds = array<i64: 1, 32>}, {pipeline_mode = #tpu.pipeline_mode<synchronous>, transform_indices = @transform_26, window_bounds = array<i64: 1, 32>}, {pipeline_mode = #tpu.pipeline_mode<synchronous>, transform_indices = @transform_27, window_bounds = array<i64: 1, 32>}, {pipeline_mode = #tpu.pipeline_mode<synchronous>, transform_indices = @transform_28, window_bounds = array<i64: 1, 32>}, {pipeline_mode = #tpu.pipeline_mode<synchronous>, transform_indices = @transform_29, window_bounds = array<i64: 32, 64>}, {pipeline_mode = #tpu.pipeline_mode<synchronous>, transform_indices = @transform_30, window_bounds = array<i64: 1, 64>}, {pipeline_mode = #tpu.pipeline_mode<synchronous>, transform_indices = @transform_31, window_bounds = array<i64: 64, 32>}, {pipeline_mode = #tpu.pipeline_mode<synchronous>, transform_indices = @transform_32, window_bounds = array<i64: 1, 32>}, {transform_indices = @transform_33, window_bounds = array<i64: 1, 8, 32>}, {transform_indices = @transform_34, window_bounds = array<i64: 1, 8, 16>}]} {
    %c0 = arith.constant 0 : index
    %c0_0 = arith.constant 0 : index
    %c0_1 = arith.constant 0 : index
    %0 = vector.load %arg1[%c0, %c0_0, %c0_1] : memref<1x8x32xf32, #tpu.memory_space<vmem>>, vector<1x8x32xf32>
    %1 = vector.shape_cast %0 : vector<1x8x32xf32> to vector<8x32xf32>
    %c0_2 = arith.constant 0 : index
    %c0_3 = arith.constant 0 : index
    %c0_4 = arith.constant 0 : index
    %2 = vector.load %arg2[%c0_2, %c0_3, %c0_4] : memref<1x16x32xf32, #tpu.memory_space<vmem>>, vector<1x16x32xf32>
    %3 = vector.shape_cast %2 : vector<1x16x32xf32> to vector<16x32xf32>
    %c0_5 = arith.constant 0 : index
    %c0_6 = arith.constant 0 : index
    %c0_7 = arith.constant 0 : index
    %4 = vector.load %arg3[%c0_5, %c0_6, %c0_7] : memref<1x8x32xf32, #tpu.memory_space<vmem>>, vector<1x8x32xf32>
    %5 = vector.shape_cast %4 : vector<1x8x32xf32> to vector<8x32xf32>
    %c0_8 = arith.constant 0 : index
    %c0_9 = arith.constant 0 : index
    %c0_10 = arith.constant 0 : index
    %6 = vector.load %arg4[%c0_8, %c0_9, %c0_10] : memref<1x8x8xf32, #tpu.memory_space<vmem>>, vector<1x8x8xf32>
    %7 = vector.shape_cast %6 : vector<1x8x8xf32> to vector<8x8xf32>
    %c0_11 = arith.constant 0 : index
    %c0_12 = arith.constant 0 : index
    %c0_13 = arith.constant 0 : index
    %8 = vector.load %arg5[%c0_11, %c0_12, %c0_13] : memref<1x1x16xf32, #tpu.memory_space<vmem>>, vector<1x1x16xf32>
    %9 = vector.shape_cast %8 : vector<1x1x16xf32> to vector<1x16xf32>
    %c0_14 = arith.constant 0 : index
    %c0_15 = arith.constant 0 : index
    %10 = vector.load %arg6[%c0_14, %c0_15] : memref<32x96xbf16, #tpu.memory_space<vmem>>, vector<32x96xbf16>
    %11 = arith.truncf %1 : vector<8x32xf32> to vector<8x32xbf16>
    %cst = arith.constant dense<0.000000e+00> : vector<8x96xf32>
    %12 = tpu.matmul %11, %10, %cst {dimension_numbers = #tpu.dot_dimension_numbers<[1], [0], [0], [1], [0, 0, 1, 1], [], []>} : vector<8x32xbf16>, vector<32x96xbf16>, vector<8x96xf32> -> vector<8x96xf32>
    %c0_16 = arith.constant 0 : index
    %c0_17 = arith.constant 0 : index
    %13 = vector.load %arg7[%c0_16, %c0_17] : memref<1x96xf32, #tpu.memory_space<vmem>>, vector<1x96xf32>
    %14 = vector.broadcast %13 : vector<1x96xf32> to vector<8x96xf32>
    %15 = arith.addf %12, %14 : vector<8x96xf32>
    %16 = vector.extract_strided_slice %15 {offsets = [0, 0], sizes = [8, 32], strides = [1, 1]} : vector<8x96xf32> to vector<8x32xf32>
    %17 = vector.extract_strided_slice %15 {offsets = [0, 32], sizes = [8, 32], strides = [1, 1]} : vector<8x96xf32> to vector<8x32xf32>
    %18 = vector.extract_strided_slice %15 {offsets = [0, 64], sizes = [8, 32], strides = [1, 1]} : vector<8x96xf32> to vector<8x32xf32>
    %19 = vector.extract_strided_slice %16 {offsets = [0, 0], sizes = [8, 8], strides = [1, 1]} : vector<8x32xf32> to vector<8x8xf32>
    %cst_18 = arith.constant 0.353553385 : f32
    %20 = vector.broadcast %cst_18 : f32 to vector<8x8xf32>
    %21 = arith.mulf %19, %20 : vector<8x8xf32>
    %22 = vector.extract_strided_slice %17 {offsets = [0, 0], sizes = [8, 8], strides = [1, 1]} : vector<8x32xf32> to vector<8x8xf32>
    %23 = vector.extract_strided_slice %18 {offsets = [0, 0], sizes = [8, 8], strides = [1, 1]} : vector<8x32xf32> to vector<8x8xf32>
    %24 = arith.truncf %21 : vector<8x8xf32> to vector<8x8xbf16>
    %25 = arith.truncf %22 : vector<8x8xf32> to vector<8x8xbf16>
    %cst_19 = arith.constant dense<0.000000e+00> : vector<8x8xf32>
    %26 = tpu.matmul %24, %25, %cst_19 {dimension_numbers = #tpu.dot_dimension_numbers<[1], [1], [0], [0], [0, 0, 1, 0], [], []>} : vector<8x8xbf16>, vector<8x8xbf16>, vector<8x8xf32> -> vector<8x8xf32>
    %27 = arith.addf %26, %7 : vector<8x8xf32>
    %cst_20 = arith.constant dense<0xFF800000> : vector<8xf32>
    %28 = vector.multi_reduction <maximumf>, %27, %cst_20 [1] : vector<8x8xf32> to vector<8xf32>
    %29 = vector.shape_cast %28 : vector<8xf32> to vector<8x1xf32>
    %30 = vector.broadcast %29 : vector<8x1xf32> to vector<8x8xf32>
    %31 = arith.subf %27, %30 : vector<8x8xf32>
    %32 = math.exp %31 : vector<8x8xf32>
    %cst_21 = arith.constant dense<0.000000e+00> : vector<8xf32>
    %33 = vector.multi_reduction <add>, %32, %cst_21 [1] : vector<8x8xf32> to vector<8xf32>
    %34 = vector.shape_cast %33 : vector<8xf32> to vector<8x1xf32>
    %35 = tpu.reciprocal %34 {approx = true} : vector<8x1xf32> -> vector<8x1xf32>
    %36 = vector.broadcast %35 : vector<8x1xf32> to vector<8x8xf32>
    %37 = arith.mulf %32, %36 : vector<8x8xf32>
    %38 = arith.truncf %37 : vector<8x8xf32> to vector<8x8xbf16>
    %39 = arith.truncf %23 : vector<8x8xf32> to vector<8x8xbf16>
    %cst_22 = arith.constant dense<0.000000e+00> : vector<8x8xf32>
    %40 = tpu.matmul %38, %39, %cst_22 {dimension_numbers = #tpu.dot_dimension_numbers<[1], [0], [0], [1], [0, 0, 1, 1], [], []>} : vector<8x8xbf16>, vector<8x8xbf16>, vector<8x8xf32> -> vector<8x8xf32>
    %41 = vector.extract_strided_slice %16 {offsets = [0, 8], sizes = [8, 8], strides = [1, 1]} : vector<8x32xf32> to vector<8x8xf32>
    %cst_23 = arith.constant 0.353553385 : f32
    %42 = vector.broadcast %cst_23 : f32 to vector<8x8xf32>
    %43 = arith.mulf %41, %42 : vector<8x8xf32>
    %44 = vector.extract_strided_slice %17 {offsets = [0, 8], sizes = [8, 8], strides = [1, 1]} : vector<8x32xf32> to vector<8x8xf32>
    %45 = vector.extract_strided_slice %18 {offsets = [0, 8], sizes = [8, 8], strides = [1, 1]} : vector<8x32xf32> to vector<8x8xf32>
    %46 = arith.truncf %43 : vector<8x8xf32> to vector<8x8xbf16>
    %47 = arith.truncf %44 : vector<8x8xf32> to vector<8x8xbf16>
    %cst_24 = arith.constant dense<0.000000e+00> : vector<8x8xf32>
    %48 = tpu.matmul %46, %47, %cst_24 {dimension_numbers = #tpu.dot_dimension_numbers<[1], [1], [0], [0], [0, 0, 1, 0], [], []>} : vector<8x8xbf16>, vector<8x8xbf16>, vector<8x8xf32> -> vector<8x8xf32>
    %49 = arith.addf %48, %7 : vector<8x8xf32>
    %cst_25 = arith.constant dense<0xFF800000> : vector<8xf32>
    %50 = vector.multi_reduction <maximumf>, %49, %cst_25 [1] : vector<8x8xf32> to vector<8xf32>
    %51 = vector.shape_cast %50 : vector<8xf32> to vector<8x1xf32>
    %52 = vector.broadcast %51 : vector<8x1xf32> to vector<8x8xf32>
    %53 = arith.subf %49, %52 : vector<8x8xf32>
    %54 = math.exp %53 : vector<8x8xf32>
    %cst_26 = arith.constant dense<0.000000e+00> : vector<8xf32>
    %55 = vector.multi_reduction <add>, %54, %cst_26 [1] : vector<8x8xf32> to vector<8xf32>
    %56 = vector.shape_cast %55 : vector<8xf32> to vector<8x1xf32>
    %57 = tpu.reciprocal %56 {approx = true} : vector<8x1xf32> -> vector<8x1xf32>
    %58 = vector.broadcast %57 : vector<8x1xf32> to vector<8x8xf32>
    %59 = arith.mulf %54, %58 : vector<8x8xf32>
    %60 = arith.truncf %59 : vector<8x8xf32> to vector<8x8xbf16>
    %61 = arith.truncf %45 : vector<8x8xf32> to vector<8x8xbf16>
    %cst_27 = arith.constant dense<0.000000e+00> : vector<8x8xf32>
    %62 = tpu.matmul %60, %61, %cst_27 {dimension_numbers = #tpu.dot_dimension_numbers<[1], [0], [0], [1], [0, 0, 1, 1], [], []>} : vector<8x8xbf16>, vector<8x8xbf16>, vector<8x8xf32> -> vector<8x8xf32>
    %63 = vector.extract_strided_slice %16 {offsets = [0, 16], sizes = [8, 8], strides = [1, 1]} : vector<8x32xf32> to vector<8x8xf32>
    %cst_28 = arith.constant 0.353553385 : f32
    %64 = vector.broadcast %cst_28 : f32 to vector<8x8xf32>
    %65 = arith.mulf %63, %64 : vector<8x8xf32>
    %66 = vector.extract_strided_slice %17 {offsets = [0, 16], sizes = [8, 8], strides = [1, 1]} : vector<8x32xf32> to vector<8x8xf32>
    %67 = vector.extract_strided_slice %18 {offsets = [0, 16], sizes = [8, 8], strides = [1, 1]} : vector<8x32xf32> to vector<8x8xf32>
    %68 = arith.truncf %65 : vector<8x8xf32> to vector<8x8xbf16>
    %69 = arith.truncf %66 : vector<8x8xf32> to vector<8x8xbf16>
    %cst_29 = arith.constant dense<0.000000e+00> : vector<8x8xf32>
    %70 = tpu.matmul %68, %69, %cst_29 {dimension_numbers = #tpu.dot_dimension_numbers<[1], [1], [0], [0], [0, 0, 1, 0], [], []>} : vector<8x8xbf16>, vector<8x8xbf16>, vector<8x8xf32> -> vector<8x8xf32>
    %71 = arith.addf %70, %7 : vector<8x8xf32>
    %cst_30 = arith.constant dense<0xFF800000> : vector<8xf32>
    %72 = vector.multi_reduction <maximumf>, %71, %cst_30 [1] : vector<8x8xf32> to vector<8xf32>
    %73 = vector.shape_cast %72 : vector<8xf32> to vector<8x1xf32>
    %74 = vector.broadcast %73 : vector<8x1xf32> to vector<8x8xf32>
    %75 = arith.subf %71, %74 : vector<8x8xf32>
    %76 = math.exp %75 : vector<8x8xf32>
    %cst_31 = arith.constant dense<0.000000e+00> : vector<8xf32>
    %77 = vector.multi_reduction <add>, %76, %cst_31 [1] : vector<8x8xf32> to vector<8xf32>
    %78 = vector.shape_cast %77 : vector<8xf32> to vector<8x1xf32>
    %79 = tpu.reciprocal %78 {approx = true} : vector<8x1xf32> -> vector<8x1xf32>
    %80 = vector.broadcast %79 : vector<8x1xf32> to vector<8x8xf32>
    %81 = arith.mulf %76, %80 : vector<8x8xf32>
    %82 = arith.truncf %81 : vector<8x8xf32> to vector<8x8xbf16>
    %83 = arith.truncf %67 : vector<8x8xf32> to vector<8x8xbf16>
    %cst_32 = arith.constant dense<0.000000e+00> : vector<8x8xf32>
    %84 = tpu.matmul %82, %83, %cst_32 {dimension_numbers = #tpu.dot_dimension_numbers<[1], [0], [0], [1], [0, 0, 1, 1], [], []>} : vector<8x8xbf16>, vector<8x8xbf16>, vector<8x8xf32> -> vector<8x8xf32>
    %85 = vector.extract_strided_slice %16 {offsets = [0, 24], sizes = [8, 8], strides = [1, 1]} : vector<8x32xf32> to vector<8x8xf32>
    %cst_33 = arith.constant 0.353553385 : f32
    %86 = vector.broadcast %cst_33 : f32 to vector<8x8xf32>
    %87 = arith.mulf %85, %86 : vector<8x8xf32>
    %88 = vector.extract_strided_slice %17 {offsets = [0, 24], sizes = [8, 8], strides = [1, 1]} : vector<8x32xf32> to vector<8x8xf32>
    %89 = vector.extract_strided_slice %18 {offsets = [0, 24], sizes = [8, 8], strides = [1, 1]} : vector<8x32xf32> to vector<8x8xf32>
    %90 = arith.truncf %87 : vector<8x8xf32> to vector<8x8xbf16>
    %91 = arith.truncf %88 : vector<8x8xf32> to vector<8x8xbf16>
    %cst_34 = arith.constant dense<0.000000e+00> : vector<8x8xf32>
    %92 = tpu.matmul %90, %91, %cst_34 {dimension_numbers = #tpu.dot_dimension_numbers<[1], [1], [0], [0], [0, 0, 1, 0], [], []>} : vector<8x8xbf16>, vector<8x8xbf16>, vector<8x8xf32> -> vector<8x8xf32>
    %93 = arith.addf %92, %7 : vector<8x8xf32>
    %cst_35 = arith.constant dense<0xFF800000> : vector<8xf32>
    %94 = vector.multi_reduction <maximumf>, %93, %cst_35 [1] : vector<8x8xf32> to vector<8xf32>
    %95 = vector.shape_cast %94 : vector<8xf32> to vector<8x1xf32>
    %96 = vector.broadcast %95 : vector<8x1xf32> to vector<8x8xf32>
    %97 = arith.subf %93, %96 : vector<8x8xf32>
    %98 = math.exp %97 : vector<8x8xf32>
    %cst_36 = arith.constant dense<0.000000e+00> : vector<8xf32>
    %99 = vector.multi_reduction <add>, %98, %cst_36 [1] : vector<8x8xf32> to vector<8xf32>
    %100 = vector.shape_cast %99 : vector<8xf32> to vector<8x1xf32>
    %101 = tpu.reciprocal %100 {approx = true} : vector<8x1xf32> -> vector<8x1xf32>
    %102 = vector.broadcast %101 : vector<8x1xf32> to vector<8x8xf32>
    %103 = arith.mulf %98, %102 : vector<8x8xf32>
    %104 = arith.truncf %103 : vector<8x8xf32> to vector<8x8xbf16>
    %105 = arith.truncf %89 : vector<8x8xf32> to vector<8x8xbf16>
    %cst_37 = arith.constant dense<0.000000e+00> : vector<8x8xf32>
    %106 = tpu.matmul %104, %105, %cst_37 {dimension_numbers = #tpu.dot_dimension_numbers<[1], [0], [0], [1], [0, 0, 1, 1], [], []>} : vector<8x8xbf16>, vector<8x8xbf16>, vector<8x8xf32> -> vector<8x8xf32>
    %107 = tpu.concatenate %40, %62, %84, %106 in 1 : vector<8x8xf32>, vector<8x8xf32>, vector<8x8xf32>, vector<8x8xf32> -> vector<8x32xf32>
    %c0_38 = arith.constant 0 : index
    %c0_39 = arith.constant 0 : index
    %108 = vector.load %arg8[%c0_38, %c0_39] : memref<32x32xbf16, #tpu.memory_space<vmem>>, vector<32x32xbf16>
    %109 = arith.truncf %107 : vector<8x32xf32> to vector<8x32xbf16>
    %cst_40 = arith.constant dense<0.000000e+00> : vector<8x32xf32>
    %110 = tpu.matmul %109, %108, %cst_40 {dimension_numbers = #tpu.dot_dimension_numbers<[1], [0], [0], [1], [0, 0, 1, 1], [], []>} : vector<8x32xbf16>, vector<32x32xbf16>, vector<8x32xf32> -> vector<8x32xf32>
    %c0_41 = arith.constant 0 : index
    %c0_42 = arith.constant 0 : index
    %111 = vector.load %arg9[%c0_41, %c0_42] : memref<1x32xf32, #tpu.memory_space<vmem>>, vector<1x32xf32>
    %112 = vector.broadcast %111 : vector<1x32xf32> to vector<8x32xf32>
    %113 = arith.addf %110, %112 : vector<8x32xf32>
    %114 = arith.addf %113, %1 : vector<8x32xf32>
    %cst_43 = arith.constant dense<0.000000e+00> : vector<8xf32>
    %115 = vector.multi_reduction <add>, %114, %cst_43 [1] : vector<8x32xf32> to vector<8xf32>
    %116 = vector.shape_cast %115 : vector<8xf32> to vector<8x1xf32>
    %cst_44 = arith.constant 3.200000e+01 : f32
    %117 = vector.broadcast %cst_44 : f32 to vector<8x1xf32>
    %118 = arith.divf %116, %117 : vector<8x1xf32>
    %119 = vector.broadcast %118 : vector<8x1xf32> to vector<8x32xf32>
    %120 = arith.subf %114, %119 : vector<8x32xf32>
    %121 = arith.mulf %120, %120 : vector<8x32xf32>
    %cst_45 = arith.constant dense<0.000000e+00> : vector<8xf32>
    %122 = vector.multi_reduction <add>, %121, %cst_45 [1] : vector<8x32xf32> to vector<8xf32>
    %123 = vector.shape_cast %122 : vector<8xf32> to vector<8x1xf32>
    %cst_46 = arith.constant 3.200000e+01 : f32
    %124 = vector.broadcast %cst_46 : f32 to vector<8x1xf32>
    %125 = arith.divf %123, %124 : vector<8x1xf32>
    %126 = vector.broadcast %118 : vector<8x1xf32> to vector<8x32xf32>
    %127 = arith.subf %114, %126 : vector<8x32xf32>
    %cst_47 = arith.constant 9.99999997E-7 : f32
    %128 = vector.broadcast %cst_47 : f32 to vector<8x1xf32>
    %129 = arith.addf %125, %128 : vector<8x1xf32>
    %130 = math.rsqrt %129 : vector<8x1xf32>
    %131 = vector.broadcast %130 : vector<8x1xf32> to vector<8x32xf32>
    %132 = arith.mulf %127, %131 : vector<8x32xf32>
    %c0_48 = arith.constant 0 : index
    %c0_49 = arith.constant 0 : index
    %133 = vector.load %arg10[%c0_48, %c0_49] : memref<1x32xf32, #tpu.memory_space<vmem>>, vector<1x32xf32>
    %134 = vector.broadcast %133 : vector<1x32xf32> to vector<8x32xf32>
    %135 = arith.mulf %132, %134 : vector<8x32xf32>
    %c0_50 = arith.constant 0 : index
    %c0_51 = arith.constant 0 : index
    %136 = vector.load %arg11[%c0_50, %c0_51] : memref<1x32xf32, #tpu.memory_space<vmem>>, vector<1x32xf32>
    %137 = vector.broadcast %136 : vector<1x32xf32> to vector<8x32xf32>
    %138 = arith.addf %135, %137 : vector<8x32xf32>
    %c0_52 = arith.constant 0 : index
    %c0_53 = arith.constant 0 : index
    %139 = vector.load %arg12[%c0_52, %c0_53] : memref<32x32xbf16, #tpu.memory_space<vmem>>, vector<32x32xbf16>
    %140 = arith.truncf %138 : vector<8x32xf32> to vector<8x32xbf16>
    %cst_54 = arith.constant dense<0.000000e+00> : vector<8x32xf32>
    %141 = tpu.matmul %140, %139, %cst_54 {dimension_numbers = #tpu.dot_dimension_numbers<[1], [0], [0], [1], [0, 0, 1, 1], [], []>} : vector<8x32xbf16>, vector<32x32xbf16>, vector<8x32xf32> -> vector<8x32xf32>
    %c0_55 = arith.constant 0 : index
    %c0_56 = arith.constant 0 : index
    %142 = vector.load %arg13[%c0_55, %c0_56] : memref<1x32xf32, #tpu.memory_space<vmem>>, vector<1x32xf32>
    %143 = vector.broadcast %142 : vector<1x32xf32> to vector<8x32xf32>
    %144 = arith.addf %141, %143 : vector<8x32xf32>
    %c0_57 = arith.constant 0 : index
    %c0_58 = arith.constant 0 : index
    %145 = vector.load %arg14[%c0_57, %c0_58] : memref<32x64xbf16, #tpu.memory_space<vmem>>, vector<32x64xbf16>
    %146 = arith.truncf %5 : vector<8x32xf32> to vector<8x32xbf16>
    %cst_59 = arith.constant dense<0.000000e+00> : vector<8x64xf32>
    %147 = tpu.matmul %146, %145, %cst_59 {dimension_numbers = #tpu.dot_dimension_numbers<[1], [0], [0], [1], [0, 0, 1, 1], [], []>} : vector<8x32xbf16>, vector<32x64xbf16>, vector<8x64xf32> -> vector<8x64xf32>
    %c0_60 = arith.constant 0 : index
    %c0_61 = arith.constant 0 : index
    %148 = vector.load %arg15[%c0_60, %c0_61] : memref<1x64xf32, #tpu.memory_space<vmem>>, vector<1x64xf32>
    %149 = vector.broadcast %148 : vector<1x64xf32> to vector<8x64xf32>
    %150 = arith.addf %147, %149 : vector<8x64xf32>
    %151 = vector.extract_strided_slice %150 {offsets = [0, 0], sizes = [8, 32], strides = [1, 1]} : vector<8x64xf32> to vector<8x32xf32>
    %152 = vector.extract_strided_slice %150 {offsets = [0, 32], sizes = [8, 32], strides = [1, 1]} : vector<8x64xf32> to vector<8x32xf32>
    %153 = vector.extract_strided_slice %144 {offsets = [0, 0], sizes = [8, 8], strides = [1, 1]} : vector<8x32xf32> to vector<8x8xf32>
    %cst_62 = arith.constant 0.353553385 : f32
    %154 = vector.broadcast %cst_62 : f32 to vector<8x8xf32>
    %155 = arith.mulf %153, %154 : vector<8x8xf32>
    %156 = vector.extract_strided_slice %151 {offsets = [0, 0], sizes = [8, 8], strides = [1, 1]} : vector<8x32xf32> to vector<8x8xf32>
    %157 = vector.extract_strided_slice %152 {offsets = [0, 0], sizes = [8, 8], strides = [1, 1]} : vector<8x32xf32> to vector<8x8xf32>
    %158 = arith.truncf %155 : vector<8x8xf32> to vector<8x8xbf16>
    %159 = arith.truncf %156 : vector<8x8xf32> to vector<8x8xbf16>
    %cst_63 = arith.constant dense<0.000000e+00> : vector<8x8xf32>
    %160 = tpu.matmul %158, %159, %cst_63 {dimension_numbers = #tpu.dot_dimension_numbers<[1], [1], [0], [0], [0, 0, 1, 0], [], []>} : vector<8x8xbf16>, vector<8x8xbf16>, vector<8x8xf32> -> vector<8x8xf32>
    %cst_64 = arith.constant dense<0xFF800000> : vector<8xf32>
    %161 = vector.multi_reduction <maximumf>, %160, %cst_64 [1] : vector<8x8xf32> to vector<8xf32>
    %162 = vector.shape_cast %161 : vector<8xf32> to vector<8x1xf32>
    %163 = vector.broadcast %162 : vector<8x1xf32> to vector<8x8xf32>
    %164 = arith.subf %160, %163 : vector<8x8xf32>
    %165 = math.exp %164 : vector<8x8xf32>
    %cst_65 = arith.constant dense<0.000000e+00> : vector<8xf32>
    %166 = vector.multi_reduction <add>, %165, %cst_65 [1] : vector<8x8xf32> to vector<8xf32>
    %167 = vector.shape_cast %166 : vector<8xf32> to vector<8x1xf32>
    %168 = tpu.reciprocal %167 {approx = true} : vector<8x1xf32> -> vector<8x1xf32>
    %169 = vector.broadcast %168 : vector<8x1xf32> to vector<8x8xf32>
    %170 = arith.mulf %165, %169 : vector<8x8xf32>
    %171 = arith.truncf %170 : vector<8x8xf32> to vector<8x8xbf16>
    %172 = arith.truncf %157 : vector<8x8xf32> to vector<8x8xbf16>
    %cst_66 = arith.constant dense<0.000000e+00> : vector<8x8xf32>
    %173 = tpu.matmul %171, %172, %cst_66 {dimension_numbers = #tpu.dot_dimension_numbers<[1], [0], [0], [1], [0, 0, 1, 1], [], []>} : vector<8x8xbf16>, vector<8x8xbf16>, vector<8x8xf32> -> vector<8x8xf32>
    %174 = vector.extract_strided_slice %144 {offsets = [0, 8], sizes = [8, 8], strides = [1, 1]} : vector<8x32xf32> to vector<8x8xf32>
    %cst_67 = arith.constant 0.353553385 : f32
    %175 = vector.broadcast %cst_67 : f32 to vector<8x8xf32>
    %176 = arith.mulf %174, %175 : vector<8x8xf32>
    %177 = vector.extract_strided_slice %151 {offsets = [0, 8], sizes = [8, 8], strides = [1, 1]} : vector<8x32xf32> to vector<8x8xf32>
    %178 = vector.extract_strided_slice %152 {offsets = [0, 8], sizes = [8, 8], strides = [1, 1]} : vector<8x32xf32> to vector<8x8xf32>
    %179 = arith.truncf %176 : vector<8x8xf32> to vector<8x8xbf16>
    %180 = arith.truncf %177 : vector<8x8xf32> to vector<8x8xbf16>
    %cst_68 = arith.constant dense<0.000000e+00> : vector<8x8xf32>
    %181 = tpu.matmul %179, %180, %cst_68 {dimension_numbers = #tpu.dot_dimension_numbers<[1], [1], [0], [0], [0, 0, 1, 0], [], []>} : vector<8x8xbf16>, vector<8x8xbf16>, vector<8x8xf32> -> vector<8x8xf32>
    %cst_69 = arith.constant dense<0xFF800000> : vector<8xf32>
    %182 = vector.multi_reduction <maximumf>, %181, %cst_69 [1] : vector<8x8xf32> to vector<8xf32>
    %183 = vector.shape_cast %182 : vector<8xf32> to vector<8x1xf32>
    %184 = vector.broadcast %183 : vector<8x1xf32> to vector<8x8xf32>
    %185 = arith.subf %181, %184 : vector<8x8xf32>
    %186 = math.exp %185 : vector<8x8xf32>
    %cst_70 = arith.constant dense<0.000000e+00> : vector<8xf32>
    %187 = vector.multi_reduction <add>, %186, %cst_70 [1] : vector<8x8xf32> to vector<8xf32>
    %188 = vector.shape_cast %187 : vector<8xf32> to vector<8x1xf32>
    %189 = tpu.reciprocal %188 {approx = true} : vector<8x1xf32> -> vector<8x1xf32>
    %190 = vector.broadcast %189 : vector<8x1xf32> to vector<8x8xf32>
    %191 = arith.mulf %186, %190 : vector<8x8xf32>
    %192 = arith.truncf %191 : vector<8x8xf32> to vector<8x8xbf16>
    %193 = arith.truncf %178 : vector<8x8xf32> to vector<8x8xbf16>
    %cst_71 = arith.constant dense<0.000000e+00> : vector<8x8xf32>
    %194 = tpu.matmul %192, %193, %cst_71 {dimension_numbers = #tpu.dot_dimension_numbers<[1], [0], [0], [1], [0, 0, 1, 1], [], []>} : vector<8x8xbf16>, vector<8x8xbf16>, vector<8x8xf32> -> vector<8x8xf32>
    %195 = vector.extract_strided_slice %144 {offsets = [0, 16], sizes = [8, 8], strides = [1, 1]} : vector<8x32xf32> to vector<8x8xf32>
    %cst_72 = arith.constant 0.353553385 : f32
    %196 = vector.broadcast %cst_72 : f32 to vector<8x8xf32>
    %197 = arith.mulf %195, %196 : vector<8x8xf32>
    %198 = vector.extract_strided_slice %151 {offsets = [0, 16], sizes = [8, 8], strides = [1, 1]} : vector<8x32xf32> to vector<8x8xf32>
    %199 = vector.extract_strided_slice %152 {offsets = [0, 16], sizes = [8, 8], strides = [1, 1]} : vector<8x32xf32> to vector<8x8xf32>
    %200 = arith.truncf %197 : vector<8x8xf32> to vector<8x8xbf16>
    %201 = arith.truncf %198 : vector<8x8xf32> to vector<8x8xbf16>
    %cst_73 = arith.constant dense<0.000000e+00> : vector<8x8xf32>
    %202 = tpu.matmul %200, %201, %cst_73 {dimension_numbers = #tpu.dot_dimension_numbers<[1], [1], [0], [0], [0, 0, 1, 0], [], []>} : vector<8x8xbf16>, vector<8x8xbf16>, vector<8x8xf32> -> vector<8x8xf32>
    %cst_74 = arith.constant dense<0xFF800000> : vector<8xf32>
    %203 = vector.multi_reduction <maximumf>, %202, %cst_74 [1] : vector<8x8xf32> to vector<8xf32>
    %204 = vector.shape_cast %203 : vector<8xf32> to vector<8x1xf32>
    %205 = vector.broadcast %204 : vector<8x1xf32> to vector<8x8xf32>
    %206 = arith.subf %202, %205 : vector<8x8xf32>
    %207 = math.exp %206 : vector<8x8xf32>
    %cst_75 = arith.constant dense<0.000000e+00> : vector<8xf32>
    %208 = vector.multi_reduction <add>, %207, %cst_75 [1] : vector<8x8xf32> to vector<8xf32>
    %209 = vector.shape_cast %208 : vector<8xf32> to vector<8x1xf32>
    %210 = tpu.reciprocal %209 {approx = true} : vector<8x1xf32> -> vector<8x1xf32>
    %211 = vector.broadcast %210 : vector<8x1xf32> to vector<8x8xf32>
    %212 = arith.mulf %207, %211 : vector<8x8xf32>
    %213 = arith.truncf %212 : vector<8x8xf32> to vector<8x8xbf16>
    %214 = arith.truncf %199 : vector<8x8xf32> to vector<8x8xbf16>
    %cst_76 = arith.constant dense<0.000000e+00> : vector<8x8xf32>
    %215 = tpu.matmul %213, %214, %cst_76 {dimension_numbers = #tpu.dot_dimension_numbers<[1], [0], [0], [1], [0, 0, 1, 1], [], []>} : vector<8x8xbf16>, vector<8x8xbf16>, vector<8x8xf32> -> vector<8x8xf32>
    %216 = vector.extract_strided_slice %144 {offsets = [0, 24], sizes = [8, 8], strides = [1, 1]} : vector<8x32xf32> to vector<8x8xf32>
    %cst_77 = arith.constant 0.353553385 : f32
    %217 = vector.broadcast %cst_77 : f32 to vector<8x8xf32>
    %218 = arith.mulf %216, %217 : vector<8x8xf32>
    %219 = vector.extract_strided_slice %151 {offsets = [0, 24], sizes = [8, 8], strides = [1, 1]} : vector<8x32xf32> to vector<8x8xf32>
    %220 = vector.extract_strided_slice %152 {offsets = [0, 24], sizes = [8, 8], strides = [1, 1]} : vector<8x32xf32> to vector<8x8xf32>
    %221 = arith.truncf %218 : vector<8x8xf32> to vector<8x8xbf16>
    %222 = arith.truncf %219 : vector<8x8xf32> to vector<8x8xbf16>
    %cst_78 = arith.constant dense<0.000000e+00> : vector<8x8xf32>
    %223 = tpu.matmul %221, %222, %cst_78 {dimension_numbers = #tpu.dot_dimension_numbers<[1], [1], [0], [0], [0, 0, 1, 0], [], []>} : vector<8x8xbf16>, vector<8x8xbf16>, vector<8x8xf32> -> vector<8x8xf32>
    %cst_79 = arith.constant dense<0xFF800000> : vector<8xf32>
    %224 = vector.multi_reduction <maximumf>, %223, %cst_79 [1] : vector<8x8xf32> to vector<8xf32>
    %225 = vector.shape_cast %224 : vector<8xf32> to vector<8x1xf32>
    %226 = vector.broadcast %225 : vector<8x1xf32> to vector<8x8xf32>
    %227 = arith.subf %223, %226 : vector<8x8xf32>
    %228 = math.exp %227 : vector<8x8xf32>
    %cst_80 = arith.constant dense<0.000000e+00> : vector<8xf32>
    %229 = vector.multi_reduction <add>, %228, %cst_80 [1] : vector<8x8xf32> to vector<8xf32>
    %230 = vector.shape_cast %229 : vector<8xf32> to vector<8x1xf32>
    %231 = tpu.reciprocal %230 {approx = true} : vector<8x1xf32> -> vector<8x1xf32>
    %232 = vector.broadcast %231 : vector<8x1xf32> to vector<8x8xf32>
    %233 = arith.mulf %228, %232 : vector<8x8xf32>
    %234 = arith.truncf %233 : vector<8x8xf32> to vector<8x8xbf16>
    %235 = arith.truncf %220 : vector<8x8xf32> to vector<8x8xbf16>
    %cst_81 = arith.constant dense<0.000000e+00> : vector<8x8xf32>
    %236 = tpu.matmul %234, %235, %cst_81 {dimension_numbers = #tpu.dot_dimension_numbers<[1], [0], [0], [1], [0, 0, 1, 1], [], []>} : vector<8x8xbf16>, vector<8x8xbf16>, vector<8x8xf32> -> vector<8x8xf32>
    %237 = tpu.concatenate %173, %194, %215, %236 in 1 : vector<8x8xf32>, vector<8x8xf32>, vector<8x8xf32>, vector<8x8xf32> -> vector<8x32xf32>
    %c0_82 = arith.constant 0 : index
    %c0_83 = arith.constant 0 : index
    %238 = vector.load %arg16[%c0_82, %c0_83] : memref<32x32xbf16, #tpu.memory_space<vmem>>, vector<32x32xbf16>
    %239 = arith.truncf %237 : vector<8x32xf32> to vector<8x32xbf16>
    %cst_84 = arith.constant dense<0.000000e+00> : vector<8x32xf32>
    %240 = tpu.matmul %239, %238, %cst_84 {dimension_numbers = #tpu.dot_dimension_numbers<[1], [0], [0], [1], [0, 0, 1, 1], [], []>} : vector<8x32xbf16>, vector<32x32xbf16>, vector<8x32xf32> -> vector<8x32xf32>
    %c0_85 = arith.constant 0 : index
    %c0_86 = arith.constant 0 : index
    %241 = vector.load %arg17[%c0_85, %c0_86] : memref<1x32xf32, #tpu.memory_space<vmem>>, vector<1x32xf32>
    %242 = vector.broadcast %241 : vector<1x32xf32> to vector<8x32xf32>
    %243 = arith.addf %240, %242 : vector<8x32xf32>
    %244 = arith.addf %243, %138 : vector<8x32xf32>
    %cst_87 = arith.constant dense<0.000000e+00> : vector<8xf32>
    %245 = vector.multi_reduction <add>, %244, %cst_87 [1] : vector<8x32xf32> to vector<8xf32>
    %246 = vector.shape_cast %245 : vector<8xf32> to vector<8x1xf32>
    %cst_88 = arith.constant 3.200000e+01 : f32
    %247 = vector.broadcast %cst_88 : f32 to vector<8x1xf32>
    %248 = arith.divf %246, %247 : vector<8x1xf32>
    %249 = vector.broadcast %248 : vector<8x1xf32> to vector<8x32xf32>
    %250 = arith.subf %244, %249 : vector<8x32xf32>
    %251 = arith.mulf %250, %250 : vector<8x32xf32>
    %cst_89 = arith.constant dense<0.000000e+00> : vector<8xf32>
    %252 = vector.multi_reduction <add>, %251, %cst_89 [1] : vector<8x32xf32> to vector<8xf32>
    %253 = vector.shape_cast %252 : vector<8xf32> to vector<8x1xf32>
    %cst_90 = arith.constant 3.200000e+01 : f32
    %254 = vector.broadcast %cst_90 : f32 to vector<8x1xf32>
    %255 = arith.divf %253, %254 : vector<8x1xf32>
    %256 = vector.broadcast %248 : vector<8x1xf32> to vector<8x32xf32>
    %257 = arith.subf %244, %256 : vector<8x32xf32>
    %cst_91 = arith.constant 9.99999997E-7 : f32
    %258 = vector.broadcast %cst_91 : f32 to vector<8x1xf32>
    %259 = arith.addf %255, %258 : vector<8x1xf32>
    %260 = math.rsqrt %259 : vector<8x1xf32>
    %261 = vector.broadcast %260 : vector<8x1xf32> to vector<8x32xf32>
    %262 = arith.mulf %257, %261 : vector<8x32xf32>
    %c0_92 = arith.constant 0 : index
    %c0_93 = arith.constant 0 : index
    %263 = vector.load %arg18[%c0_92, %c0_93] : memref<1x32xf32, #tpu.memory_space<vmem>>, vector<1x32xf32>
    %264 = vector.broadcast %263 : vector<1x32xf32> to vector<8x32xf32>
    %265 = arith.mulf %262, %264 : vector<8x32xf32>
    %c0_94 = arith.constant 0 : index
    %c0_95 = arith.constant 0 : index
    %266 = vector.load %arg19[%c0_94, %c0_95] : memref<1x32xf32, #tpu.memory_space<vmem>>, vector<1x32xf32>
    %267 = vector.broadcast %266 : vector<1x32xf32> to vector<8x32xf32>
    %268 = arith.addf %265, %267 : vector<8x32xf32>
    %c0_96 = arith.constant 0 : index
    %c0_97 = arith.constant 0 : index
    %269 = vector.load %arg20[%c0_96, %c0_97] : memref<32x32xbf16, #tpu.memory_space<vmem>>, vector<32x32xbf16>
    %270 = arith.truncf %268 : vector<8x32xf32> to vector<8x32xbf16>
    %cst_98 = arith.constant dense<0.000000e+00> : vector<8x32xf32>
    %271 = tpu.matmul %270, %269, %cst_98 {dimension_numbers = #tpu.dot_dimension_numbers<[1], [0], [0], [1], [0, 0, 1, 1], [], []>} : vector<8x32xbf16>, vector<32x32xbf16>, vector<8x32xf32> -> vector<8x32xf32>
    %c0_99 = arith.constant 0 : index
    %c0_100 = arith.constant 0 : index
    %272 = vector.load %arg21[%c0_99, %c0_100] : memref<1x32xf32, #tpu.memory_space<vmem>>, vector<1x32xf32>
    %273 = vector.broadcast %272 : vector<1x32xf32> to vector<8x32xf32>
    %274 = arith.addf %271, %273 : vector<8x32xf32>
    %c0_101 = arith.constant 0 : index
    %c0_102 = arith.constant 0 : index
    %275 = vector.load %arg22[%c0_101, %c0_102] : memref<32x64xbf16, #tpu.memory_space<vmem>>, vector<32x64xbf16>
    %276 = arith.truncf %3 : vector<16x32xf32> to vector<16x32xbf16>
    %cst_103 = arith.constant dense<0.000000e+00> : vector<16x64xf32>
    %277 = tpu.matmul %276, %275, %cst_103 {dimension_numbers = #tpu.dot_dimension_numbers<[1], [0], [0], [1], [0, 0, 1, 1], [], []>} : vector<16x32xbf16>, vector<32x64xbf16>, vector<16x64xf32> -> vector<16x64xf32>
    %c0_104 = arith.constant 0 : index
    %c0_105 = arith.constant 0 : index
    %278 = vector.load %arg23[%c0_104, %c0_105] : memref<1x64xf32, #tpu.memory_space<vmem>>, vector<1x64xf32>
    %279 = vector.broadcast %278 : vector<1x64xf32> to vector<16x64xf32>
    %280 = arith.addf %277, %279 : vector<16x64xf32>
    %281 = vector.extract_strided_slice %280 {offsets = [0, 0], sizes = [16, 32], strides = [1, 1]} : vector<16x64xf32> to vector<16x32xf32>
    %282 = vector.extract_strided_slice %280 {offsets = [0, 32], sizes = [16, 32], strides = [1, 1]} : vector<16x64xf32> to vector<16x32xf32>
    %283 = vector.extract_strided_slice %274 {offsets = [0, 0], sizes = [8, 8], strides = [1, 1]} : vector<8x32xf32> to vector<8x8xf32>
    %cst_106 = arith.constant 0.353553385 : f32
    %284 = vector.broadcast %cst_106 : f32 to vector<8x8xf32>
    %285 = arith.mulf %283, %284 : vector<8x8xf32>
    %286 = vector.extract_strided_slice %281 {offsets = [0, 0], sizes = [16, 8], strides = [1, 1]} : vector<16x32xf32> to vector<16x8xf32>
    %287 = vector.extract_strided_slice %282 {offsets = [0, 0], sizes = [16, 8], strides = [1, 1]} : vector<16x32xf32> to vector<16x8xf32>
    %288 = arith.truncf %285 : vector<8x8xf32> to vector<8x8xbf16>
    %289 = arith.truncf %286 : vector<16x8xf32> to vector<16x8xbf16>
    %cst_107 = arith.constant dense<0.000000e+00> : vector<8x16xf32>
    %290 = tpu.matmul %288, %289, %cst_107 {dimension_numbers = #tpu.dot_dimension_numbers<[1], [1], [0], [0], [0, 0, 1, 0], [], []>} : vector<8x8xbf16>, vector<16x8xbf16>, vector<8x16xf32> -> vector<8x16xf32>
    %291 = vector.broadcast %9 : vector<1x16xf32> to vector<8x16xf32>
    %292 = arith.addf %290, %291 : vector<8x16xf32>
    %cst_108 = arith.constant dense<0xFF800000> : vector<8xf32>
    %293 = vector.multi_reduction <maximumf>, %292, %cst_108 [1] : vector<8x16xf32> to vector<8xf32>
    %294 = vector.shape_cast %293 : vector<8xf32> to vector<8x1xf32>
    %295 = vector.broadcast %294 : vector<8x1xf32> to vector<8x16xf32>
    %296 = arith.subf %292, %295 : vector<8x16xf32>
    %297 = math.exp %296 : vector<8x16xf32>
    %cst_109 = arith.constant dense<0.000000e+00> : vector<8xf32>
    %298 = vector.multi_reduction <add>, %297, %cst_109 [1] : vector<8x16xf32> to vector<8xf32>
    %299 = vector.shape_cast %298 : vector<8xf32> to vector<8x1xf32>
    %300 = tpu.reciprocal %299 {approx = true} : vector<8x1xf32> -> vector<8x1xf32>
    %301 = vector.broadcast %300 : vector<8x1xf32> to vector<8x16xf32>
    %302 = arith.mulf %297, %301 : vector<8x16xf32>
    %303 = arith.truncf %302 : vector<8x16xf32> to vector<8x16xbf16>
    %304 = arith.truncf %287 : vector<16x8xf32> to vector<16x8xbf16>
    %cst_110 = arith.constant dense<0.000000e+00> : vector<8x8xf32>
    %305 = tpu.matmul %303, %304, %cst_110 {dimension_numbers = #tpu.dot_dimension_numbers<[1], [0], [0], [1], [0, 0, 1, 1], [], []>} : vector<8x16xbf16>, vector<16x8xbf16>, vector<8x8xf32> -> vector<8x8xf32>
    %306 = vector.extract_strided_slice %274 {offsets = [0, 8], sizes = [8, 8], strides = [1, 1]} : vector<8x32xf32> to vector<8x8xf32>
    %cst_111 = arith.constant 0.353553385 : f32
    %307 = vector.broadcast %cst_111 : f32 to vector<8x8xf32>
    %308 = arith.mulf %306, %307 : vector<8x8xf32>
    %309 = vector.extract_strided_slice %281 {offsets = [0, 8], sizes = [16, 8], strides = [1, 1]} : vector<16x32xf32> to vector<16x8xf32>
    %310 = vector.extract_strided_slice %282 {offsets = [0, 8], sizes = [16, 8], strides = [1, 1]} : vector<16x32xf32> to vector<16x8xf32>
    %311 = arith.truncf %308 : vector<8x8xf32> to vector<8x8xbf16>
    %312 = arith.truncf %309 : vector<16x8xf32> to vector<16x8xbf16>
    %cst_112 = arith.constant dense<0.000000e+00> : vector<8x16xf32>
    %313 = tpu.matmul %311, %312, %cst_112 {dimension_numbers = #tpu.dot_dimension_numbers<[1], [1], [0], [0], [0, 0, 1, 0], [], []>} : vector<8x8xbf16>, vector<16x8xbf16>, vector<8x16xf32> -> vector<8x16xf32>
    %314 = vector.broadcast %9 : vector<1x16xf32> to vector<8x16xf32>
    %315 = arith.addf %313, %314 : vector<8x16xf32>
    %cst_113 = arith.constant dense<0xFF800000> : vector<8xf32>
    %316 = vector.multi_reduction <maximumf>, %315, %cst_113 [1] : vector<8x16xf32> to vector<8xf32>
    %317 = vector.shape_cast %316 : vector<8xf32> to vector<8x1xf32>
    %318 = vector.broadcast %317 : vector<8x1xf32> to vector<8x16xf32>
    %319 = arith.subf %315, %318 : vector<8x16xf32>
    %320 = math.exp %319 : vector<8x16xf32>
    %cst_114 = arith.constant dense<0.000000e+00> : vector<8xf32>
    %321 = vector.multi_reduction <add>, %320, %cst_114 [1] : vector<8x16xf32> to vector<8xf32>
    %322 = vector.shape_cast %321 : vector<8xf32> to vector<8x1xf32>
    %323 = tpu.reciprocal %322 {approx = true} : vector<8x1xf32> -> vector<8x1xf32>
    %324 = vector.broadcast %323 : vector<8x1xf32> to vector<8x16xf32>
    %325 = arith.mulf %320, %324 : vector<8x16xf32>
    %326 = arith.truncf %325 : vector<8x16xf32> to vector<8x16xbf16>
    %327 = arith.truncf %310 : vector<16x8xf32> to vector<16x8xbf16>
    %cst_115 = arith.constant dense<0.000000e+00> : vector<8x8xf32>
    %328 = tpu.matmul %326, %327, %cst_115 {dimension_numbers = #tpu.dot_dimension_numbers<[1], [0], [0], [1], [0, 0, 1, 1], [], []>} : vector<8x16xbf16>, vector<16x8xbf16>, vector<8x8xf32> -> vector<8x8xf32>
    %329 = arith.addf %302, %325 : vector<8x16xf32>
    %330 = vector.extract_strided_slice %274 {offsets = [0, 16], sizes = [8, 8], strides = [1, 1]} : vector<8x32xf32> to vector<8x8xf32>
    %cst_116 = arith.constant 0.353553385 : f32
    %331 = vector.broadcast %cst_116 : f32 to vector<8x8xf32>
    %332 = arith.mulf %330, %331 : vector<8x8xf32>
    %333 = vector.extract_strided_slice %281 {offsets = [0, 16], sizes = [16, 8], strides = [1, 1]} : vector<16x32xf32> to vector<16x8xf32>
    %334 = vector.extract_strided_slice %282 {offsets = [0, 16], sizes = [16, 8], strides = [1, 1]} : vector<16x32xf32> to vector<16x8xf32>
    %335 = arith.truncf %332 : vector<8x8xf32> to vector<8x8xbf16>
    %336 = arith.truncf %333 : vector<16x8xf32> to vector<16x8xbf16>
    %cst_117 = arith.constant dense<0.000000e+00> : vector<8x16xf32>
    %337 = tpu.matmul %335, %336, %cst_117 {dimension_numbers = #tpu.dot_dimension_numbers<[1], [1], [0], [0], [0, 0, 1, 0], [], []>} : vector<8x8xbf16>, vector<16x8xbf16>, vector<8x16xf32> -> vector<8x16xf32>
    %338 = vector.broadcast %9 : vector<1x16xf32> to vector<8x16xf32>
    %339 = arith.addf %337, %338 : vector<8x16xf32>
    %cst_118 = arith.constant dense<0xFF800000> : vector<8xf32>
    %340 = vector.multi_reduction <maximumf>, %339, %cst_118 [1] : vector<8x16xf32> to vector<8xf32>
    %341 = vector.shape_cast %340 : vector<8xf32> to vector<8x1xf32>
    %342 = vector.broadcast %341 : vector<8x1xf32> to vector<8x16xf32>
    %343 = arith.subf %339, %342 : vector<8x16xf32>
    %344 = math.exp %343 : vector<8x16xf32>
    %cst_119 = arith.constant dense<0.000000e+00> : vector<8xf32>
    %345 = vector.multi_reduction <add>, %344, %cst_119 [1] : vector<8x16xf32> to vector<8xf32>
    %346 = vector.shape_cast %345 : vector<8xf32> to vector<8x1xf32>
    %347 = tpu.reciprocal %346 {approx = true} : vector<8x1xf32> -> vector<8x1xf32>
    %348 = vector.broadcast %347 : vector<8x1xf32> to vector<8x16xf32>
    %349 = arith.mulf %344, %348 : vector<8x16xf32>
    %350 = arith.truncf %349 : vector<8x16xf32> to vector<8x16xbf16>
    %351 = arith.truncf %334 : vector<16x8xf32> to vector<16x8xbf16>
    %cst_120 = arith.constant dense<0.000000e+00> : vector<8x8xf32>
    %352 = tpu.matmul %350, %351, %cst_120 {dimension_numbers = #tpu.dot_dimension_numbers<[1], [0], [0], [1], [0, 0, 1, 1], [], []>} : vector<8x16xbf16>, vector<16x8xbf16>, vector<8x8xf32> -> vector<8x8xf32>
    %353 = arith.addf %329, %349 : vector<8x16xf32>
    %354 = vector.extract_strided_slice %274 {offsets = [0, 24], sizes = [8, 8], strides = [1, 1]} : vector<8x32xf32> to vector<8x8xf32>
    %cst_121 = arith.constant 0.353553385 : f32
    %355 = vector.broadcast %cst_121 : f32 to vector<8x8xf32>
    %356 = arith.mulf %354, %355 : vector<8x8xf32>
    %357 = vector.extract_strided_slice %281 {offsets = [0, 24], sizes = [16, 8], strides = [1, 1]} : vector<16x32xf32> to vector<16x8xf32>
    %358 = vector.extract_strided_slice %282 {offsets = [0, 24], sizes = [16, 8], strides = [1, 1]} : vector<16x32xf32> to vector<16x8xf32>
    %359 = arith.truncf %356 : vector<8x8xf32> to vector<8x8xbf16>
    %360 = arith.truncf %357 : vector<16x8xf32> to vector<16x8xbf16>
    %cst_122 = arith.constant dense<0.000000e+00> : vector<8x16xf32>
    %361 = tpu.matmul %359, %360, %cst_122 {dimension_numbers = #tpu.dot_dimension_numbers<[1], [1], [0], [0], [0, 0, 1, 0], [], []>} : vector<8x8xbf16>, vector<16x8xbf16>, vector<8x16xf32> -> vector<8x16xf32>
    %362 = vector.broadcast %9 : vector<1x16xf32> to vector<8x16xf32>
    %363 = arith.addf %361, %362 : vector<8x16xf32>
    %cst_123 = arith.constant dense<0xFF800000> : vector<8xf32>
    %364 = vector.multi_reduction <maximumf>, %363, %cst_123 [1] : vector<8x16xf32> to vector<8xf32>
    %365 = vector.shape_cast %364 : vector<8xf32> to vector<8x1xf32>
    %366 = vector.broadcast %365 : vector<8x1xf32> to vector<8x16xf32>
    %367 = arith.subf %363, %366 : vector<8x16xf32>
    %368 = math.exp %367 : vector<8x16xf32>
    %cst_124 = arith.constant dense<0.000000e+00> : vector<8xf32>
    %369 = vector.multi_reduction <add>, %368, %cst_124 [1] : vector<8x16xf32> to vector<8xf32>
    %370 = vector.shape_cast %369 : vector<8xf32> to vector<8x1xf32>
    %371 = tpu.reciprocal %370 {approx = true} : vector<8x1xf32> -> vector<8x1xf32>
    %372 = vector.broadcast %371 : vector<8x1xf32> to vector<8x16xf32>
    %373 = arith.mulf %368, %372 : vector<8x16xf32>
    %374 = arith.truncf %373 : vector<8x16xf32> to vector<8x16xbf16>
    %375 = arith.truncf %358 : vector<16x8xf32> to vector<16x8xbf16>
    %cst_125 = arith.constant dense<0.000000e+00> : vector<8x8xf32>
    %376 = tpu.matmul %374, %375, %cst_125 {dimension_numbers = #tpu.dot_dimension_numbers<[1], [0], [0], [1], [0, 0, 1, 1], [], []>} : vector<8x16xbf16>, vector<16x8xbf16>, vector<8x8xf32> -> vector<8x8xf32>
    %377 = arith.addf %353, %373 : vector<8x16xf32>
    %378 = tpu.concatenate %305, %328, %352, %376 in 1 : vector<8x8xf32>, vector<8x8xf32>, vector<8x8xf32>, vector<8x8xf32> -> vector<8x32xf32>
    %cst_126 = arith.constant 2.500000e-01 : f32
    %379 = vector.broadcast %cst_126 : f32 to vector<8x16xf32>
    %380 = arith.mulf %377, %379 : vector<8x16xf32>
    %c0_127 = arith.constant 0 : index
    %c0_128 = arith.constant 0 : index
    %381 = vector.load %arg24[%c0_127, %c0_128] : memref<32x32xbf16, #tpu.memory_space<vmem>>, vector<32x32xbf16>
    %382 = arith.truncf %378 : vector<8x32xf32> to vector<8x32xbf16>
    %cst_129 = arith.constant dense<0.000000e+00> : vector<8x32xf32>
    %383 = tpu.matmul %382, %381, %cst_129 {dimension_numbers = #tpu.dot_dimension_numbers<[1], [0], [0], [1], [0, 0, 1, 1], [], []>} : vector<8x32xbf16>, vector<32x32xbf16>, vector<8x32xf32> -> vector<8x32xf32>
    %c0_130 = arith.constant 0 : index
    %c0_131 = arith.constant 0 : index
    %384 = vector.load %arg25[%c0_130, %c0_131] : memref<1x32xf32, #tpu.memory_space<vmem>>, vector<1x32xf32>
    %385 = vector.broadcast %384 : vector<1x32xf32> to vector<8x32xf32>
    %386 = arith.addf %383, %385 : vector<8x32xf32>
    %387 = arith.addf %386, %268 : vector<8x32xf32>
    %cst_132 = arith.constant dense<0.000000e+00> : vector<8xf32>
    %388 = vector.multi_reduction <add>, %387, %cst_132 [1] : vector<8x32xf32> to vector<8xf32>
    %389 = vector.shape_cast %388 : vector<8xf32> to vector<8x1xf32>
    %cst_133 = arith.constant 3.200000e+01 : f32
    %390 = vector.broadcast %cst_133 : f32 to vector<8x1xf32>
    %391 = arith.divf %389, %390 : vector<8x1xf32>
    %392 = vector.broadcast %391 : vector<8x1xf32> to vector<8x32xf32>
    %393 = arith.subf %387, %392 : vector<8x32xf32>
    %394 = arith.mulf %393, %393 : vector<8x32xf32>
    %cst_134 = arith.constant dense<0.000000e+00> : vector<8xf32>
    %395 = vector.multi_reduction <add>, %394, %cst_134 [1] : vector<8x32xf32> to vector<8xf32>
    %396 = vector.shape_cast %395 : vector<8xf32> to vector<8x1xf32>
    %cst_135 = arith.constant 3.200000e+01 : f32
    %397 = vector.broadcast %cst_135 : f32 to vector<8x1xf32>
    %398 = arith.divf %396, %397 : vector<8x1xf32>
    %399 = vector.broadcast %391 : vector<8x1xf32> to vector<8x32xf32>
    %400 = arith.subf %387, %399 : vector<8x32xf32>
    %cst_136 = arith.constant 9.99999997E-7 : f32
    %401 = vector.broadcast %cst_136 : f32 to vector<8x1xf32>
    %402 = arith.addf %398, %401 : vector<8x1xf32>
    %403 = math.rsqrt %402 : vector<8x1xf32>
    %404 = vector.broadcast %403 : vector<8x1xf32> to vector<8x32xf32>
    %405 = arith.mulf %400, %404 : vector<8x32xf32>
    %c0_137 = arith.constant 0 : index
    %c0_138 = arith.constant 0 : index
    %406 = vector.load %arg26[%c0_137, %c0_138] : memref<1x32xf32, #tpu.memory_space<vmem>>, vector<1x32xf32>
    %407 = vector.broadcast %406 : vector<1x32xf32> to vector<8x32xf32>
    %408 = arith.mulf %405, %407 : vector<8x32xf32>
    %c0_139 = arith.constant 0 : index
    %c0_140 = arith.constant 0 : index
    %409 = vector.load %arg27[%c0_139, %c0_140] : memref<1x32xf32, #tpu.memory_space<vmem>>, vector<1x32xf32>
    %410 = vector.broadcast %409 : vector<1x32xf32> to vector<8x32xf32>
    %411 = arith.addf %408, %410 : vector<8x32xf32>
    %cst_141 = arith.constant dense<0.000000e+00> : vector<8xf32>
    %412 = vector.multi_reduction <add>, %411, %cst_141 [1] : vector<8x32xf32> to vector<8xf32>
    %413 = vector.shape_cast %412 : vector<8xf32> to vector<8x1xf32>
    %cst_142 = arith.constant 3.200000e+01 : f32
    %414 = vector.broadcast %cst_142 : f32 to vector<8x1xf32>
    %415 = arith.divf %413, %414 : vector<8x1xf32>
    %416 = vector.broadcast %415 : vector<8x1xf32> to vector<8x32xf32>
    %417 = arith.subf %411, %416 : vector<8x32xf32>
    %418 = arith.mulf %417, %417 : vector<8x32xf32>
    %cst_143 = arith.constant dense<0.000000e+00> : vector<8xf32>
    %419 = vector.multi_reduction <add>, %418, %cst_143 [1] : vector<8x32xf32> to vector<8xf32>
    %420 = vector.shape_cast %419 : vector<8xf32> to vector<8x1xf32>
    %cst_144 = arith.constant 3.200000e+01 : f32
    %421 = vector.broadcast %cst_144 : f32 to vector<8x1xf32>
    %422 = arith.divf %420, %421 : vector<8x1xf32>
    %423 = vector.broadcast %415 : vector<8x1xf32> to vector<8x32xf32>
    %424 = arith.subf %411, %423 : vector<8x32xf32>
    %cst_145 = arith.constant 9.99999997E-7 : f32
    %425 = vector.broadcast %cst_145 : f32 to vector<8x1xf32>
    %426 = arith.addf %422, %425 : vector<8x1xf32>
    %427 = math.rsqrt %426 : vector<8x1xf32>
    %428 = vector.broadcast %427 : vector<8x1xf32> to vector<8x32xf32>
    %429 = arith.mulf %424, %428 : vector<8x32xf32>
    %c0_146 = arith.constant 0 : index
    %c0_147 = arith.constant 0 : index
    %430 = vector.load %arg28[%c0_146, %c0_147] : memref<1x32xf32, #tpu.memory_space<vmem>>, vector<1x32xf32>
    %431 = vector.broadcast %430 : vector<1x32xf32> to vector<8x32xf32>
    %432 = arith.mulf %429, %431 : vector<8x32xf32>
    %c0_148 = arith.constant 0 : index
    %c0_149 = arith.constant 0 : index
    %433 = vector.load %arg29[%c0_148, %c0_149] : memref<1x32xf32, #tpu.memory_space<vmem>>, vector<1x32xf32>
    %434 = vector.broadcast %433 : vector<1x32xf32> to vector<8x32xf32>
    %435 = arith.addf %432, %434 : vector<8x32xf32>
    %c0_150 = arith.constant 0 : index
    %c0_151 = arith.constant 0 : index
    %436 = vector.load %arg30[%c0_150, %c0_151] : memref<32x64xbf16, #tpu.memory_space<vmem>>, vector<32x64xbf16>
    %437 = arith.truncf %435 : vector<8x32xf32> to vector<8x32xbf16>
    %cst_152 = arith.constant dense<0.000000e+00> : vector<8x64xf32>
    %438 = tpu.matmul %437, %436, %cst_152 {dimension_numbers = #tpu.dot_dimension_numbers<[1], [0], [0], [1], [0, 0, 1, 1], [], []>} : vector<8x32xbf16>, vector<32x64xbf16>, vector<8x64xf32> -> vector<8x64xf32>
    %c0_153 = arith.constant 0 : index
    %c0_154 = arith.constant 0 : index
    %439 = vector.load %arg31[%c0_153, %c0_154] : memref<1x64xf32, #tpu.memory_space<vmem>>, vector<1x64xf32>
    %440 = vector.broadcast %439 : vector<1x64xf32> to vector<8x64xf32>
    %441 = arith.addf %438, %440 : vector<8x64xf32>
    %cst_155 = arith.constant 0.000000e+00 : f32
    %442 = vector.broadcast %cst_155 : f32 to vector<8x64xf32>
    %443 = arith.maximumf %441, %442 : vector<8x64xf32>
    %c0_156 = arith.constant 0 : index
    %c0_157 = arith.constant 0 : index
    %444 = vector.load %arg32[%c0_156, %c0_157] : memref<64x32xbf16, #tpu.memory_space<vmem>>, vector<64x32xbf16>
    %445 = arith.truncf %443 : vector<8x64xf32> to vector<8x64xbf16>
    %cst_158 = arith.constant dense<0.000000e+00> : vector<8x32xf32>
    %446 = tpu.matmul %445, %444, %cst_158 {dimension_numbers = #tpu.dot_dimension_numbers<[1], [0], [0], [1], [0, 0, 1, 1], [], []>} : vector<8x64xbf16>, vector<64x32xbf16>, vector<8x32xf32> -> vector<8x32xf32>
    %c0_159 = arith.constant 0 : index
    %c0_160 = arith.constant 0 : index
    %447 = vector.load %arg33[%c0_159, %c0_160] : memref<1x32xf32, #tpu.memory_space<vmem>>, vector<1x32xf32>
    %448 = vector.broadcast %447 : vector<1x32xf32> to vector<8x32xf32>
    %449 = arith.addf %446, %448 : vector<8x32xf32>
    %450 = arith.addf %411, %449 : vector<8x32xf32>
    %c0_161 = arith.constant 0 : index
    %c0_162 = arith.constant 0 : index
    %c0_163 = arith.constant 0 : index
    %451 = vector.load %arg34[%c0_161, %c0_162, %c0_163] : memref<1x8x32xf32, #tpu.memory_space<vmem>>, vector<1x8x32xf32>
    %452 = vector.shape_cast %451 : vector<1x8x32xf32> to vector<8x32xf32>
    %453 = vector.shape_cast %450 : vector<8x32xf32> to vector<1x8x32xf32>
    tpu.vector_store %arg34[%c0_161, %c0_162, %c0_163], %453 {strides = array<i32>} : memref<1x8x32xf32, #tpu.memory_space<vmem>>, vector<1x8x32xf32>,
    %c0_164 = arith.constant 0 : index
    %c0_165 = arith.constant 0 : index
    %c0_166 = arith.constant 0 : index
    %454 = vector.load %arg35[%c0_164, %c0_165, %c0_166] : memref<1x8x16xf32, #tpu.memory_space<vmem>>, vector<1x8x16xf32>
    %455 = vector.shape_cast %454 : vector<1x8x16xf32> to vector<8x16xf32>
    %456 = vector.shape_cast %380 : vector<8x16xf32> to vector<1x8x16xf32>
    tpu.vector_store %arg35[%c0_164, %c0_165, %c0_166], %456 {strides = array<i32>} : memref<1x8x16xf32, #tpu.memory_space<vmem>>, vector<1x8x16xf32>,
    return
  }
  func.func @transform_0(%arg0: i32) -> (i32, i32, i32) {
    %c0_i32 = arith.constant 0 : i32
    %c0_i32_0 = arith.constant 0 : i32
    %c0_i32_1 = arith.constant 0 : i32
    return %arg0, %c0_i32, %c0_i32_0 : i32, i32, i32
  }
  func.func @transform_1(%arg0: i32) -> (i32, i32, i32) {
    %c0_i32 = arith.constant 0 : i32
    %c0_i32_0 = arith.constant 0 : i32
    %c0_i32_1 = arith.constant 0 : i32
    return %arg0, %c0_i32, %c0_i32_0 : i32, i32, i32
  }
  func.func @transform_2(%arg0: i32) -> (i32, i32, i32) {
    %c0_i32 = arith.constant 0 : i32
    %c0_i32_0 = arith.constant 0 : i32
    %c0_i32_1 = arith.constant 0 : i32
    return %arg0, %c0_i32, %c0_i32_0 : i32, i32, i32
  }
  func.func @transform_3(%arg0: i32) -> (i32, i32, i32) {
    %c0_i32 = arith.constant 0 : i32
    %c0_i32_0 = arith.constant 0 : i32
    %c0_i32_1 = arith.constant 0 : i32
    return %arg0, %c0_i32, %c0_i32_0 : i32, i32, i32
  }
  func.func @transform_4(%arg0: i32) -> (i32, i32, i32) {
    %c0_i32 = arith.constant 0 : i32
    %c0_i32_0 = arith.constant 0 : i32
    %c0_i32_1 = arith.constant 0 : i32
    return %arg0, %c0_i32, %c0_i32_0 : i32, i32, i32
  }
  func.func @transform_5(%arg0: i32) -> (i32, i32) {
    %c0_i32 = arith.constant 0 : i32
    %c0_i32_0 = arith.constant 0 : i32
    %c0_i32_1 = arith.constant 0 : i32
    return %c0_i32, %c0_i32_0 : i32, i32
  }
  func.func @transform_6(%arg0: i32) -> (i32, i32) {
    %c0_i32 = arith.constant 0 : i32
    %c0_i32_0 = arith.constant 0 : i32
    %c0_i32_1 = arith.constant 0 : i32
    return %c0_i32, %c0_i32_0 : i32, i32
  }
  func.func @transform_7(%arg0: i32) -> (i32, i32) {
    %c0_i32 = arith.constant 0 : i32
    %c0_i32_0 = arith.constant 0 : i32
    %c0_i32_1 = arith.constant 0 : i32
    return %c0_i32, %c0_i32_0 : i32, i32
  }
  func.func @transform_8(%arg0: i32) -> (i32, i32) {
    %c0_i32 = arith.constant 0 : i32
    %c0_i32_0 = arith.constant 0 : i32
    %c0_i32_1 = arith.constant 0 : i32
    return %c0_i32, %c0_i32_0 : i32, i32
  }
  func.func @transform_9(%arg0: i32) -> (i32, i32) {
    %c0_i32 = arith.constant 0 : i32
    %c0_i32_0 = arith.constant 0 : i32
    %c0_i32_1 = arith.constant 0 : i32
    return %c0_i32, %c0_i32_0 : i32, i32
  }
  func.func @transform_10(%arg0: i32) -> (i32, i32) {
    %c0_i32 = arith.constant 0 : i32
    %c0_i32_0 = arith.constant 0 : i32
    %c0_i32_1 = arith.constant 0 : i32
    return %c0_i32, %c0_i32_0 : i32, i32
  }
  func.func @transform_11(%arg0: i32) -> (i32, i32) {
    %c0_i32 = arith.constant 0 : i32
    %c0_i32_0 = arith.constant 0 : i32
    %c0_i32_1 = arith.constant 0 : i32
    return %c0_i32, %c0_i32_0 : i32, i32
  }
  func.func @transform_12(%arg0: i32) -> (i32, i32) {
    %c0_i32 = arith.constant 0 : i32
    %c0_i32_0 = arith.constant 0 : i32
    %c0_i32_1 = arith.constant 0 : i32
    return %c0_i32, %c0_i32_0 : i32, i32
  }
  func.func @transform_13(%arg0: i32) -> (i32, i32) {
    %c0_i32 = arith.constant 0 : i32
    %c0_i32_0 = arith.constant 0 : i32
    %c0_i32_1 = arith.constant 0 : i32
    return %c0_i32, %c0_i32_0 : i32, i32
  }
  func.func @transform_14(%arg0: i32) -> (i32, i32) {
    %c0_i32 = arith.constant 0 : i32
    %c0_i32_0 = arith.constant 0 : i32
    %c0_i32_1 = arith.constant 0 : i32
    return %c0_i32, %c0_i32_0 : i32, i32
  }
  func.func @transform_15(%arg0: i32) -> (i32, i32) {
    %c0_i32 = arith.constant 0 : i32
    %c0_i32_0 = arith.constant 0 : i32
    %c0_i32_1 = arith.constant 0 : i32
    return %c0_i32, %c0_i32_0 : i32, i32
  }
  func.func @transform_16(%arg0: i32) -> (i32, i32) {
    %c0_i32 = arith.constant 0 : i32
    %c0_i32_0 = arith.constant 0 : i32
    %c0_i32_1 = arith.constant 0 : i32
    return %c0_i32, %c0_i32_0 : i32, i32
  }
  func.func @transform_17(%arg0: i32) -> (i32, i32) {
    %c0_i32 = arith.constant 0 : i32
    %c0_i32_0 = arith.constant 0 : i32
    %c0_i32_1 = arith.constant 0 : i32
    return %c0_i32, %c0_i32_0 : i32, i32
  }
  func.func @transform_18(%arg0: i32) -> (i32, i32) {
    %c0_i32 = arith.constant 0 : i32
    %c0_i32_0 = arith.constant 0 : i32
    %c0_i32_1 = arith.constant 0 : i32
    return %c0_i32, %c0_i32_0 : i32, i32
  }
  func.func @transform_19(%arg0: i32) -> (i32, i32) {
    %c0_i32 = arith.constant 0 : i32
    %c0_i32_0 = arith.constant 0 : i32
    %c0_i32_1 = arith.constant 0 : i32
    return %c0_i32, %c0_i32_0 : i32, i32
  }
  func.func @transform_20(%arg0: i32) -> (i32, i32) {
    %c0_i32 = arith.constant 0 : i32
    %c0_i32_0 = arith.constant 0 : i32
    %c0_i32_1 = arith.constant 0 : i32
    return %c0_i32, %c0_i32_0 : i32, i32
  }
  func.func @transform_21(%arg0: i32) -> (i32, i32) {
    %c0_i32 = arith.constant 0 : i32
    %c0_i32_0 = arith.constant 0 : i32
    %c0_i32_1 = arith.constant 0 : i32
    return %c0_i32, %c0_i32_0 : i32, i32
  }
  func.func @transform_22(%arg0: i32) -> (i32, i32) {
    %c0_i32 = arith.constant 0 : i32
    %c0_i32_0 = arith.constant 0 : i32
    %c0_i32_1 = arith.constant 0 : i32
    return %c0_i32, %c0_i32_0 : i32, i32
  }
  func.func @transform_23(%arg0: i32) -> (i32, i32) {
    %c0_i32 = arith.constant 0 : i32
    %c0_i32_0 = arith.constant 0 : i32
    %c0_i32_1 = arith.constant 0 : i32
    return %c0_i32, %c0_i32_0 : i32, i32
  }
  func.func @transform_24(%arg0: i32) -> (i32, i32) {
    %c0_i32 = arith.constant 0 : i32
    %c0_i32_0 = arith.constant 0 : i32
    %c0_i32_1 = arith.constant 0 : i32
    return %c0_i32, %c0_i32_0 : i32, i32
  }
  func.func @transform_25(%arg0: i32) -> (i32, i32) {
    %c0_i32 = arith.constant 0 : i32
    %c0_i32_0 = arith.constant 0 : i32
    %c0_i32_1 = arith.constant 0 : i32
    return %c0_i32, %c0_i32_0 : i32, i32
  }
  func.func @transform_26(%arg0: i32) -> (i32, i32) {
    %c0_i32 = arith.constant 0 : i32
    %c0_i32_0 = arith.constant 0 : i32
    %c0_i32_1 = arith.constant 0 : i32
    return %c0_i32, %c0_i32_0 : i32, i32
  }
  func.func @transform_27(%arg0: i32) -> (i32, i32) {
    %c0_i32 = arith.constant 0 : i32
    %c0_i32_0 = arith.constant 0 : i32
    %c0_i32_1 = arith.constant 0 : i32
    return %c0_i32, %c0_i32_0 : i32, i32
  }
  func.func @transform_28(%arg0: i32) -> (i32, i32) {
    %c0_i32 = arith.constant 0 : i32
    %c0_i32_0 = arith.constant 0 : i32
    %c0_i32_1 = arith.constant 0 : i32
    return %c0_i32, %c0_i32_0 : i32, i32
  }
  func.func @transform_29(%arg0: i32) -> (i32, i32) {
    %c0_i32 = arith.constant 0 : i32
    %c0_i32_0 = arith.constant 0 : i32
    %c0_i32_1 = arith.constant 0 : i32
    return %c0_i32, %c0_i32_0 : i32, i32
  }
  func.func @transform_30(%arg0: i32) -> (i32, i32) {
    %c0_i32 = arith.constant 0 : i32
    %c0_i32_0 = arith.constant 0 : i32
    %c0_i32_1 = arith.constant 0 : i32
    return %c0_i32, %c0_i32_0 : i32, i32
  }
  func.func @transform_31(%arg0: i32) -> (i32, i32) {
    %c0_i32 = arith.constant 0 : i32
    %c0_i32_0 = arith.constant 0 : i32
    %c0_i32_1 = arith.constant 0 : i32
    return %c0_i32, %c0_i32_0 : i32, i32
  }
  func.func @transform_32(%arg0: i32) -> (i32, i32) {
    %c0_i32 = arith.constant 0 : i32
    %c0_i32_0 = arith.constant 0 : i32
    %c0_i32_1 = arith.constant 0 : i32
    return %c0_i32, %c0_i32_0 : i32, i32
  }
  func.func @transform_33(%arg0: i32) -> (i32, i32, i32) {
    %c0_i32 = arith.constant 0 : i32
    %c0_i32_0 = arith.constant 0 : i32
    %c0_i32_1 = arith.constant 0 : i32
    return %arg0, %c0_i32, %c0_i32_0 : i32, i32, i32
  }
  func.func @transform_34(%arg0: i32) -> (i32, i32, i32) {
    %c0_i32 = arith.constant 0 : i32
    %c0_i32_0 = arith.constant 0 : i32
    %c0_i32_1 = arith.constant 0 : i32
    return %arg0, %c0_i32, %c0_i32_0 : i32, i32, i32
  }
}

module attributes {stable_mosaic.version = 11 : i64} {
  func.func @_decoder_layer_kernel(%arg0: i32, %arg1: memref<1x8x32xf32, #tpu.memory_space<vmem>>, %arg2: memref<1x16x32xf32, #tpu.memory_space<vmem>>, %arg3: memref<1x8x32xf32, #tpu.memory_space<vmem>>, %arg4: memref<1x8x8xf32, #tpu.memory_space<vmem>>, %arg5: memref<1x1x16xf32, #tpu.memory_space<vmem>>, %arg6: memref<32x96xbf16, #tpu.memory_space<vmem>>, %arg7: memref<1x96xf32, #tpu.memory_space<vmem>>, %arg8: memref<32x32xbf16, #tpu.memory_space<vmem>>, %arg9: memref<1x32xf32, #tpu.memory_space<vmem>>, %arg10: memref<1x32xf32, #tpu.memory_space<vmem>>, %arg11: memref<1x32xf32, #tpu.memory_space<vmem>>, %arg12: memref<32x32xbf16, #tpu.memory_space<vmem>>, %arg13: memref<1x32xf32, #tpu.memory_space<vmem>>, %arg14: memref<32x64xbf16, #tpu.memory_space<vmem>>, %arg15: memref<1x64xf32, #tpu.memory_space<vmem>>, %arg16: memref<32x32xbf16, #tpu.memory_space<vmem>>, %arg17: memref<1x32xf32, #tpu.memory_space<vmem>>, %arg18: memref<1x32xf32, #tpu.memory_space<vmem>>, %arg19: memref<1x32xf32, #tpu.memory_space<vmem>>, %arg20: memref<32x32xbf16, #tpu.memory_space<vmem>>, %arg21: memref<1x32xf32, #tpu.memory_space<vmem>>, %arg22: memref<32x64xbf16, #tpu.memory_space<vmem>>, %arg23: memref<1x64xf32, #tpu.memory_space<vmem>>, %arg24: memref<32x32xbf16, #tpu.memory_space<vmem>>, %arg25: memref<1x32xf32, #tpu.memory_space<vmem>>, %arg26: memref<1x32xf32, #tpu.memory_space<vmem>>, %arg27: memref<1x32xf32, #tpu.memory_space<vmem>>, %arg28: memref<1x32xf32, #tpu.memory_space<vmem>>, %arg29: memref<1x32xf32, #tpu.memory_space<vmem>>, %arg30: memref<32x64xbf16, #tpu.memory_space<vmem>>, %arg31: memref<1x64xf32, #tpu.memory_space<vmem>>, %arg32: memref<64x32xbf16, #tpu.memory_space<vmem>>, %arg33: memref<1x32xf32, #tpu.memory_space<vmem>>, %arg34: memref<1x8x32xf32, #tpu.memory_space<vmem>>, %arg35: memref<1x8x16xf32, #tpu.memory_space<vmem>>) attributes {dimension_semantics = [#tpu.dimension_semantics<parallel>], iteration_bounds = array<i64: 2>, scalar_prefetch = 0 : i64, scratch_operands = 0 : i64, tpu.core_type = #tpu.core_type<tc>, window_params = [{transform_indices = @transform_0, window_bounds = array<i64: 1, 8, 32>}, {transform_indices = @transform_1, window_bounds = array<i64: 1, 16, 32>}, {transform_indices = @transform_2, window_bounds = array<i64: 1, 8, 32>}, {transform_indices = @transform_3, window_bounds = array<i64: 1, 8, 8>}, {transform_indices = @transform_4, window_bounds = array<i64: 1, 1, 16>}, {pipeline_mode = #tpu.pipeline_mode<synchronous>, transform_indices = @transform_5, window_bounds = array<i64: 32, 96>}, {pipeline_mode = #tpu.pipeline_mode<synchronous>, transform_indices = @transform_6, window_bounds = array<i64: 1, 96>}, {pipeline_mode = #tpu.pipeline_mode<synchronous>, transform_indices = @transform_7, window_bounds = array<i64: 32, 32>}, {pipeline_mode = #tpu.pipeline_mode<synchronous>, transform_indices = @transform_8, window_bounds = array<i64: 1, 32>}, {pipeline_mode = #tpu.pipeline_mode<synchronous>, transform_indices = @transform_9, window_bounds = array<i64: 1, 32>}, {pipeline_mode = #tpu.pipeline_mode<synchronous>, transform_indices = @transform_10, window_bounds = array<i64: 1, 32>}, {pipeline_mode = #tpu.pipeline_mode<synchronous>, transform_indices = @transform_11, window_bounds = array<i64: 32, 32>}, {pipeline_mode = #tpu.pipeline_mode<synchronous>, transform_indices = @transform_12, window_bounds = array<i64: 1, 32>}, {pipeline_mode = #tpu.pipeline_mode<synchronous>, transform_indices = @transform_13, window_bounds = array<i64: 32, 64>}, {pipeline_mode = #tpu.pipeline_mode<synchronous>, transform_indices = @transform_14, window_bounds = array<i64: 1, 64>}, {pipeline_mode = #tpu.pipeline_mode<synchronous>, transform_indices = @transform_15, window_bounds = array<i64: 32, 32>}, {pipeline_mode = #tpu.pipeline_mode<synchronous>, transform_indices = @transform_16, window_bounds = array<i64: 1, 32>}, {pipeline_mode = #tpu.pipeline_mode<synchronous>, transform_indices = @transform_17, window_bounds = array<i64: 1, 32>}, {pipeline_mode = #tpu.pipeline_mode<synchronous>, transform_indices = @transform_18, window_bounds = array<i64: 1, 32>}, {pipeline_mode = #tpu.pipeline_mode<synchronous>, transform_indices = @transform_19, window_bounds = array<i64: 32, 32>}, {pipeline_mode = #tpu.pipeline_mode<synchronous>, transform_indices = @transform_20, window_bounds = array<i64: 1, 32>}, {pipeline_mode = #tpu.pipeline_mode<synchronous>, transform_indices = @transform_21, window_bounds = array<i64: 32, 64>}, {pipeline_mode = #tpu.pipeline_mode<synchronous>, transform_indices = @transform_22, window_bounds = array<i64: 1, 64>}, {pipeline_mode = #tpu.pipeline_mode<synchronous>, transform_indices = @transform_23, window_bounds = array<i64: 32, 32>}, {pipeline_mode = #tpu.pipeline_mode<synchronous>, transform_indices = @transform_24, window_bounds = array<i64: 1, 32>}, {pipeline_mode = #tpu.pipeline_mode<synchronous>, transform_indices = @transform_25, window_bounds = array<i64: 1, 32>}, {pipeline_mode = #tpu.pipeline_mode<synchronous>, transform_indices = @transform_26, window_bounds = array<i64: 1, 32>}, {pipeline_mode = #tpu.pipeline_mode<synchronous>, transform_indices = @transform_27, window_bounds = array<i64: 1, 32>}, {pipeline_mode = #tpu.pipeline_mode<synchronous>, transform_indices = @transform_28, window_bounds = array<i64: 1, 32>}, {pipeline_mode = #tpu.pipeline_mode<synchronous>, transform_indices = @transform_29, window_bounds = array<i64: 32, 64>}, {pipeline_mode = #tpu.pipeline_mode<synchronous>, transform_indices = @transform_30, window_bounds = array<i64: 1, 64>}, {pipeline_mode = #tpu.pipeline_mode<synchronous>, transform_indices = @transform_31, window_bounds = array<i64: 64, 32>}, {pipeline_mode = #tpu.pipeline_mode<synchronous>, transform_indices = @transform_32, window_bounds = array<i64: 1, 32>}, {transform_indices = @transform_33, window_bounds = array<i64: 1, 8, 32>}, {transform_indices = @transform_34, window_bounds = array<i64: 1, 8, 16>}]} {
    %c0 = arith.constant 0 : index
    %c0_0 = arith.constant 0 : index
    %c0_1 = arith.constant 0 : index
    %0 = vector.load %arg1[%c0, %c0_0, %c0_1] : memref<1x8x32xf32, #tpu.memory_space<vmem>>, vector<1x8x32xf32>
    %1 = vector.shape_cast %0 : vector<1x8x32xf32> to vector<8x32xf32>
    %c0_2 = arith.constant 0 : index
    %c0_3 = arith.constant 0 : index
    %c0_4 = arith.constant 0 : index
    %2 = vector.load %arg2[%c0_2, %c0_3, %c0_4] : memref<1x16x32xf32, #tpu.memory_space<vmem>>, vector<1x16x32xf32>
    %3 = vector.shape_cast %2 : vector<1x16x32xf32> to vector<16x32xf32>
    %c0_5 = arith.constant 0 : index
    %c0_6 = arith.constant 0 : index
    %c0_7 = arith.constant 0 : index
    %4 = vector.load %arg3[%c0_5, %c0_6, %c0_7] : memref<1x8x32xf32, #tpu.memory_space<vmem>>, vector<1x8x32xf32>
    %5 = vector.shape_cast %4 : vector<1x8x32xf32> to vector<8x32xf32>
    %c0_8 = arith.constant 0 : index
    %c0_9 = arith.constant 0 : index
    %c0_10 = arith.constant 0 : index
    %6 = vector.load %arg4[%c0_8, %c0_9, %c0_10] : memref<1x8x8xf32, #tpu.memory_space<vmem>>, vector<1x8x8xf32>
    %7 = vector.shape_cast %6 : vector<1x8x8xf32> to vector<8x8xf32>
    %c0_11 = arith.constant 0 : index
    %c0_12 = arith.constant 0 : index
    %c0_13 = arith.constant 0 : index
    %8 = vector.load %arg5[%c0_11, %c0_12, %c0_13] : memref<1x1x16xf32, #tpu.memory_space<vmem>>, vector<1x1x16xf32>
    %9 = vector.shape_cast %8 : vector<1x1x16xf32> to vector<1x16xf32>
    %c0_14 = arith.constant 0 : index
    %c0_15 = arith.constant 0 : index
    %10 = vector.load %arg6[%c0_14, %c0_15] : memref<32x96xbf16, #tpu.memory_space<vmem>>, vector<32x96xbf16>
    %11 = arith.truncf %1 : vector<8x32xf32> to vector<8x32xbf16>
    %cst = arith.constant dense<0.000000e+00> : vector<8x96xf32>
    %12 = tpu.matmul %11, %10, %cst {dimension_numbers = #tpu.dot_dimension_numbers<[1], [0], [0], [1], [0, 0, 1, 1], [], []>} : vector<8x32xbf16>, vector<32x96xbf16>, vector<8x96xf32> -> vector<8x96xf32>
    %c0_16 = arith.constant 0 : index
    %c0_17 = arith.constant 0 : index
    %13 = vector.load %arg7[%c0_16, %c0_17] : memref<1x96xf32, #tpu.memory_space<vmem>>, vector<1x96xf32>
    %14 = vector.broadcast %13 : vector<1x96xf32> to vector<8x96xf32>
    %15 = arith.addf %12, %14 : vector<8x96xf32>
    %16 = vector.extract_strided_slice %15 {offsets = [0, 0], sizes = [8, 32], strides = [1, 1]} : vector<8x96xf32> to vector<8x32xf32>
    %17 = vector.extract_strided_slice %15 {offsets = [0, 32], sizes = [8, 32], strides = [1, 1]} : vector<8x96xf32> to vector<8x32xf32>
    %18 = vector.extract_strided_slice %15 {offsets = [0, 64], sizes = [8, 32], strides = [1, 1]} : vector<8x96xf32> to vector<8x32xf32>
    %19 = vector.extract_strided_slice %16 {offsets = [0, 0], sizes = [8, 8], strides = [1, 1]} : vector<8x32xf32> to vector<8x8xf32>
    %cst_18 = arith.constant 0.353553385 : f32
    %20 = vector.broadcast %cst_18 : f32 to vector<8x8xf32>
    %21 = arith.mulf %19, %20 : vector<8x8xf32>
    %22 = vector.extract_strided_slice %17 {offsets = [0, 0], sizes = [8, 8], strides = [1, 1]} : vector<8x32xf32> to vector<8x8xf32>
    %23 = vector.extract_strided_slice %18 {offsets = [0, 0], sizes = [8, 8], strides = [1, 1]} : vector<8x32xf32> to vector<8x8xf32>
    %24 = arith.truncf %21 : vector<8x8xf32> to vector<8x8xbf16>
    %25 = arith.truncf %22 : vector<8x8xf32> to vector<8x8xbf16>
    %cst_19 = arith.constant dense<0.000000e+00> : vector<8x8xf32>
    %26 = tpu.matmul %24, %25, %cst_19 {dimension_numbers = #tpu.dot_dimension_numbers<[1], [1], [0], [0], [0, 0, 1, 0], [], []>} : vector<8x8xbf16>, vector<8x8xbf16>, vector<8x8xf32> -> vector<8x8xf32>
    %27 = arith.addf %26, %7 : vector<8x8xf32>
    %cst_20 = arith.constant dense<0xFF800000> : vector<8xf32>
    %28 = vector.multi_reduction <maximumf>, %27, %cst_20 [1] : vector<8x8xf32> to vector<8xf32>
    %29 = vector.shape_cast %28 : vector<8xf32> to vector<8x1xf32>
    %30 = vector.broadcast %29 : vector<8x1xf32> to vector<8x8xf32>
    %31 = arith.subf %27, %30 : vector<8x8xf32>
    %32 = math.exp %31 : vector<8x8xf32>
    %cst_21 = arith.constant dense<0.000000e+00> : vector<8xf32>
    %33 = vector.multi_reduction <add>, %32, %cst_21 [1] : vector<8x8xf32> to vector<8xf32>
    %34 = vector.shape_cast %33 : vector<8xf32> to vector<8x1xf32>
    %35 = tpu.reciprocal %34 {approx = true} : vector<8x1xf32> -> vector<8x1xf32>
    %36 = vector.broadcast %35 : vector<8x1xf32> to vector<8x8xf32>
    %37 = arith.mulf %32, %36 : vector<8x8xf32>
    %38 = arith.truncf %37 : vector<8x8xf32> to vector<8x8xbf16>
    %39 = arith.truncf %23 : vector<8x8xf32> to vector<8x8xbf16>
    %cst_22 = arith.constant dense<0.000000e+00> : vector<8x8xf32>
    %40 = tpu.matmul %38, %39, %cst_22 {dimension_numbers = #tpu.dot_dimension_numbers<[1], [0], [0], [1], [0, 0, 1, 1], [], []>} : vector<8x8xbf16>, vector<8x8xbf16>, vector<8x8xf32> -> vector<8x8xf32>
    %41 = vector.extract_strided_slice %16 {offsets = [0, 8], sizes = [8, 8], strides = [1, 1]} : vector<8x32xf32> to vector<8x8xf32>
    %cst_23 = arith.constant 0.353553385 : f32
    %42 = vector.broadcast %cst_23 : f32 to vector<8x8xf32>
    %43 = arith.mulf %41, %42 : vector<8x8xf32>
    %44 = vector.extract_strided_slice %17 {offsets = [0, 8], sizes = [8, 8], strides = [1, 1]} : vector<8x32xf32> to vector<8x8xf32>
    %45 = vector.extract_strided_slice %18 {offsets = [0, 8], sizes = [8, 8], strides = [1, 1]} : vector<8x32xf32> to vector<8x8xf32>
    %46 = arith.truncf %43 : vector<8x8xf32> to vector<8x8xbf16>
    %47 = arith.truncf %44 : vector<8x8xf32> to vector<8x8xbf16>
    %cst_24 = arith.constant dense<0.000000e+00> : vector<8x8xf32>
    %48 = tpu.matmul %46, %47, %cst_24 {dimension_numbers = #tpu.dot_dimension_numbers<[1], [1], [0], [0], [0, 0, 1, 0], [], []>} : vector<8x8xbf16>, vector<8x8xbf16>, vector<8x8xf32> -> vector<8x8xf32>
    %49 = arith.addf %48, %7 : vector<8x8xf32>
    %cst_25 = arith.constant dense<0xFF800000> : vector<8xf32>
    %50 = vector.multi_reduction <maximumf>, %49, %cst_25 [1] : vector<8x8xf32> to vector<8xf32>
    %51 = vector.shape_cast %50 : vector<8xf32> to vector<8x1xf32>
    %52 = vector.broadcast %51 : vector<8x1xf32> to vector<8x8xf32>
    %53 = arith.subf %49, %52 : vector<8x8xf32>
    %54 = math.exp %53 : vector<8x8xf32>
    %cst_26 = arith.constant dense<0.000000e+00> : vector<8xf32>
    %55 = vector.multi_reduction <add>, %54, %cst_26 [1] : vector<8x8xf32> to vector<8xf32>
    %56 = vector.shape_cast %55 : vector<8xf32> to vector<8x1xf32>
    %57 = tpu.reciprocal %56 {approx = true} : vector<8x1xf32> -> vector<8x1xf32>
    %58 = vector.broadcast %57 : vector<8x1xf32> to vector<8x8xf32>
    %59 = arith.mulf %54, %58 : vector<8x8xf32>
    %60 = arith.truncf %59 : vector<8x8xf32> to vector<8x8xbf16>
    %61 = arith.truncf %45 : vector<8x8xf32> to vector<8x8xbf16>
    %cst_27 = arith.constant dense<0.000000e+00> : vector<8x8xf32>
    %62 = tpu.matmul %60, %61, %cst_27 {dimension_numbers = #tpu.dot_dimension_numbers<[1], [0], [0], [1], [0, 0, 1, 1], [], []>} : vector<8x8xbf16>, vector<8x8xbf16>, vector<8x8xf32> -> vector<8x8xf32>
    %63 = vector.extract_strided_slice %16 {offsets = [0, 16], sizes = [8, 8], strides = [1, 1]} : vector<8x32xf32> to vector<8x8xf32>
    %cst_28 = arith.constant 0.353553385 : f32
    %64 = vector.broadcast %cst_28 : f32 to vector<8x8xf32>
    %65 = arith.mulf %63, %64 : vector<8x8xf32>
    %66 = vector.extract_strided_slice %17 {offsets = [0, 16], sizes = [8, 8], strides = [1, 1]} : vector<8x32xf32> to vector<8x8xf32>
    %67 = vector.extract_strided_slice %18 {offsets = [0, 16], sizes = [8, 8], strides = [1, 1]} : vector<8x32xf32> to vector<8x8xf32>
    %68 = arith.truncf %65 : vector<8x8xf32> to vector<8x8xbf16>
    %69 = arith.truncf %66 : vector<8x8xf32> to vector<8x8xbf16>
    %cst_29 = arith.constant dense<0.000000e+00> : vector<8x8xf32>
    %70 = tpu.matmul %68, %69, %cst_29 {dimension_numbers = #tpu.dot_dimension_numbers<[1], [1], [0], [0], [0, 0, 1, 0], [], []>} : vector<8x8xbf16>, vector<8x8xbf16>, vector<8x8xf32> -> vector<8x8xf32>
    %71 = arith.addf %70, %7 : vector<8x8xf32>
    %cst_30 = arith.constant dense<0xFF800000> : vector<8xf32>
    %72 = vector.multi_reduction <maximumf>, %71, %cst_30 [1] : vector<8x8xf32> to vector<8xf32>
    %73 = vector.shape_cast %72 : vector<8xf32> to vector<8x1xf32>
    %74 = vector.broadcast %73 : vector<8x1xf32> to vector<8x8xf32>
    %75 = arith.subf %71, %74 : vector<8x8xf32>
    %76 = math.exp %75 : vector<8x8xf32>
    %cst_31 = arith.constant dense<0.000000e+00> : vector<8xf32>
    %77 = vector.multi_reduction <add>, %76, %cst_31 [1] : vector<8x8xf32> to vector<8xf32>
    %78 = vector.shape_cast %77 : vector<8xf32> to vector<8x1xf32>
    %79 = tpu.reciprocal %78 {approx = true} : vector<8x1xf32> -> vector<8x1xf32>
    %80 = vector.broadcast %79 : vector<8x1xf32> to vector<8x8xf32>
    %81 = arith.mulf %76, %80 : vector<8x8xf32>
    %82 = arith.truncf %81 : vector<8x8xf32> to vector<8x8xbf16>
    %83 = arith.truncf %67 : vector<8x8xf32> to vector<8x8xbf16>
    %cst_32 = arith.constant dense<0.000000e+00> : vector<8x8xf32>
    %84 = tpu.matmul %82, %83, %cst_32 {dimension_numbers = #tpu.dot_dimension_numbers<[1], [0], [0], [1], [0, 0, 1, 1], [], []>} : vector<8x8xbf16>, vector<8x8xbf16>, vector<8x8xf32> -> vector<8x8xf32>
    %85 = vector.extract_strided_slice %16 {offsets = [0, 24], sizes = [8, 8], strides = [1, 1]} : vector<8x32xf32> to vector<8x8xf32>
    %cst_33 = arith.constant 0.353553385 : f32
    %86 = vector.broadcast %cst_33 : f32 to vector<8x8xf32>
    %87 = arith.mulf %85, %86 : vector<8x8xf32>
    %88 = vector.extract_strided_slice %17 {offsets = [0, 24], sizes = [8, 8], strides = [1, 1]} : vector<8x32xf32> to vector<8x8xf32>
    %89 = vector.extract_strided_slice %18 {offsets = [0, 24], sizes = [8, 8], strides = [1, 1]} : vector<8x32xf32> to vector<8x8xf32>
    %90 = arith.truncf %87 : vector<8x8xf32> to vector<8x8xbf16>
    %91 = arith.truncf %88 : vector<8x8xf32> to vector<8x8xbf16>
    %cst_34 = arith.constant dense<0.000000e+00> : vector<8x8xf32>
    %92 = tpu.matmul %90, %91, %cst_34 {dimension_numbers = #tpu.dot_dimension_numbers<[1], [1], [0], [0], [0, 0, 1, 0], [], []>} : vector<8x8xbf16>, vector<8x8xbf16>, vector<8x8xf32> -> vector<8x8xf32>
    %93 = arith.addf %92, %7 : vector<8x8xf32>
    %cst_35 = arith.constant dense<0xFF800000> : vector<8xf32>
    %94 = vector.multi_reduction <maximumf>, %93, %cst_35 [1] : vector<8x8xf32> to vector<8xf32>
    %95 = vector.shape_cast %94 : vector<8xf32> to vector<8x1xf32>
    %96 = vector.broadcast %95 : vector<8x1xf32> to vector<8x8xf32>
    %97 = arith.subf %93, %96 : vector<8x8xf32>
    %98 = math.exp %97 : vector<8x8xf32>
    %cst_36 = arith.constant dense<0.000000e+00> : vector<8xf32>
    %99 = vector.multi_reduction <add>, %98, %cst_36 [1] : vector<8x8xf32> to vector<8xf32>
    %100 = vector.shape_cast %99 : vector<8xf32> to vector<8x1xf32>
    %101 = tpu.reciprocal %100 {approx = true} : vector<8x1xf32> -> vector<8x1xf32>
    %102 = vector.broadcast %101 : vector<8x1xf32> to vector<8x8xf32>
    %103 = arith.mulf %98, %102 : vector<8x8xf32>
    %104 = arith.truncf %103 : vector<8x8xf32> to vector<8x8xbf16>
    %105 = arith.truncf %89 : vector<8x8xf32> to vector<8x8xbf16>
    %cst_37 = arith.constant dense<0.000000e+00> : vector<8x8xf32>
    %106 = tpu.matmul %104, %105, %cst_37 {dimension_numbers = #tpu.dot_dimension_numbers<[1], [0], [0], [1], [0, 0, 1, 1], [], []>} : vector<8x8xbf16>, vector<8x8xbf16>, vector<8x8xf32> -> vector<8x8xf32>
    %107 = tpu.concatenate %40, %62, %84, %106 in 1 : vector<8x8xf32>, vector<8x8xf32>, vector<8x8xf32>, vector<8x8xf32> -> vector<8x32xf32>
    %c0_38 = arith.constant 0 : index
    %c0_39 = arith.constant 0 : index
    %108 = vector.load %arg8[%c0_38, %c0_39] : memref<32x32xbf16, #tpu.memory_space<vmem>>, vector<32x32xbf16>
    %109 = arith.truncf %107 : vector<8x32xf32> to vector<8x32xbf16>
    %cst_40 = arith.constant dense<0.000000e+00> : vector<8x32xf32>
    %110 = tpu.matmul %109, %108, %cst_40 {dimension_numbers = #tpu.dot_dimension_numbers<[1], [0], [0], [1], [0, 0, 1, 1], [], []>} : vector<8x32xbf16>, vector<32x32xbf16>, vector<8x32xf32> -> vector<8x32xf32>
    %c0_41 = arith.constant 0 : index
    %c0_42 = arith.constant 0 : index
    %111 = vector.load %arg9[%c0_41, %c0_42] : memref<1x32xf32, #tpu.memory_space<vmem>>, vector<1x32xf32>
    %112 = vector.broadcast %111 : vector<1x32xf32> to vector<8x32xf32>
    %113 = arith.addf %110, %112 : vector<8x32xf32>
    %114 = arith.addf %113, %1 : vector<8x32xf32>
    %cst_43 = arith.constant dense<0.000000e+00> : vector<8xf32>
    %115 = vector.multi_reduction <add>, %114, %cst_43 [1] : vector<8x32xf32> to vector<8xf32>
    %116 = vector.shape_cast %115 : vector<8xf32> to vector<8x1xf32>
    %cst_44 = arith.constant 3.200000e+01 : f32
    %117 = vector.broadcast %cst_44 : f32 to vector<8x1xf32>
    %118 = arith.divf %116, %117 : vector<8x1xf32>
    %119 = vector.broadcast %118 : vector<8x1xf32> to vector<8x32xf32>
    %120 = arith.subf %114, %119 : vector<8x32xf32>
    %121 = arith.mulf %120, %120 : vector<8x32xf32>
    %cst_45 = arith.constant dense<0.000000e+00> : vector<8xf32>
    %122 = vector.multi_reduction <add>, %121, %cst_45 [1] : vector<8x32xf32> to vector<8xf32>
    %123 = vector.shape_cast %122 : vector<8xf32> to vector<8x1xf32>
    %cst_46 = arith.constant 3.200000e+01 : f32
    %124 = vector.broadcast %cst_46 : f32 to vector<8x1xf32>
    %125 = arith.divf %123, %124 : vector<8x1xf32>
    %126 = vector.broadcast %118 : vector<8x1xf32> to vector<8x32xf32>
    %127 = arith.subf %114, %126 : vector<8x32xf32>
    %cst_47 = arith.constant 9.99999997E-7 : f32
    %128 = vector.broadcast %cst_47 : f32 to vector<8x1xf32>
    %129 = arith.addf %125, %128 : vector<8x1xf32>
    %130 = math.rsqrt %129 : vector<8x1xf32>
    %131 = vector.broadcast %130 : vector<8x1xf32> to vector<8x32xf32>
    %132 = arith.mulf %127, %131 : vector<8x32xf32>
    %c0_48 = arith.constant 0 : index
    %c0_49 = arith.constant 0 : index
    %133 = vector.load %arg10[%c0_48, %c0_49] : memref<1x32xf32, #tpu.memory_space<vmem>>, vector<1x32xf32>
    %134 = vector.broadcast %133 : vector<1x32xf32> to vector<8x32xf32>
    %135 = arith.mulf %132, %134 : vector<8x32xf32>
    %c0_50 = arith.constant 0 : index
    %c0_51 = arith.constant 0 : index
    %136 = vector.load %arg11[%c0_50, %c0_51] : memref<1x32xf32, #tpu.memory_space<vmem>>, vector<1x32xf32>
    %137 = vector.broadcast %136 : vector<1x32xf32> to vector<8x32xf32>
    %138 = arith.addf %135, %137 : vector<8x32xf32>
    %c0_52 = arith.constant 0 : index
    %c0_53 = arith.constant 0 : index
    %139 = vector.load %arg12[%c0_52, %c0_53] : memref<32x32xbf16, #tpu.memory_space<vmem>>, vector<32x32xbf16>
    %140 = arith.truncf %138 : vector<8x32xf32> to vector<8x32xbf16>
    %cst_54 = arith.constant dense<0.000000e+00> : vector<8x32xf32>
    %141 = tpu.matmul %140, %139, %cst_54 {dimension_numbers = #tpu.dot_dimension_numbers<[1], [0], [0], [1], [0, 0, 1, 1], [], []>} : vector<8x32xbf16>, vector<32x32xbf16>, vector<8x32xf32> -> vector<8x32xf32>
    %c0_55 = arith.constant 0 : index
    %c0_56 = arith.constant 0 : index
    %142 = vector.load %arg13[%c0_55, %c0_56] : memref<1x32xf32, #tpu.memory_space<vmem>>, vector<1x32xf32>
    %143 = vector.broadcast %142 : vector<1x32xf32> to vector<8x32xf32>
    %144 = arith.addf %141, %143 : vector<8x32xf32>
    %c0_57 = arith.constant 0 : index
    %c0_58 = arith.constant 0 : index
    %145 = vector.load %arg14[%c0_57, %c0_58] : memref<32x64xbf16, #tpu.memory_space<vmem>>, vector<32x64xbf16>
    %146 = arith.truncf %5 : vector<8x32xf32> to vector<8x32xbf16>
    %cst_59 = arith.constant dense<0.000000e+00> : vector<8x64xf32>
    %147 = tpu.matmul %146, %145, %cst_59 {dimension_numbers = #tpu.dot_dimension_numbers<[1], [0], [0], [1], [0, 0, 1, 1], [], []>} : vector<8x32xbf16>, vector<32x64xbf16>, vector<8x64xf32> -> vector<8x64xf32>
    %c0_60 = arith.constant 0 : index
    %c0_61 = arith.constant 0 : index
    %148 = vector.load %arg15[%c0_60, %c0_61] : memref<1x64xf32, #tpu.memory_space<vmem>>, vector<1x64xf32>
    %149 = vector.broadcast %148 : vector<1x64xf32> to vector<8x64xf32>
    %150 = arith.addf %147, %149 : vector<8x64xf32>
    %151 = vector.extract_strided_slice %150 {offsets = [0, 0], sizes = [8, 32], strides = [1, 1]} : vector<8x64xf32> to vector<8x32xf32>
    %152 = vector.extract_strided_slice %150 {offsets = [0, 32], sizes = [8, 32], strides = [1, 1]} : vector<8x64xf32> to vector<8x32xf32>
    %153 = vector.extract_strided_slice %144 {offsets = [0, 0], sizes = [8, 8], strides = [1, 1]} : vector<8x32xf32> to vector<8x8xf32>
    %cst_62 = arith.constant 0.353553385 : f32
    %154 = vector.broadcast %cst_62 : f32 to vector<8x8xf32>
    %155 = arith.mulf %153, %154 : vector<8x8xf32>
    %156 = vector.extract_strided_slice %151 {offsets = [0, 0], sizes = [8, 8], strides = [1, 1]} : vector<8x32xf32> to vector<8x8xf32>
    %157 = vector.extract_strided_slice %152 {offsets = [0, 0], sizes = [8, 8], strides = [1, 1]} : vector<8x32xf32> to vector<8x8xf32>
    %158 = arith.truncf %155 : vector<8x8xf32> to vector<8x8xbf16>
    %159 = arith.truncf %156 : vector<8x8xf32> to vector<8x8xbf16>
    %cst_63 = arith.constant dense<0.000000e+00> : vector<8x8xf32>
    %160 = tpu.matmul %158, %159, %cst_63 {dimension_numbers = #tpu.dot_dimension_numbers<[1], [1], [0], [0], [0, 0, 1, 0], [], []>} : vector<8x8xbf16>, vector<8x8xbf16>, vector<8x8xf32> -> vector<8x8xf32>
    %cst_64 = arith.constant dense<0xFF800000> : vector<8xf32>
    %161 = vector.multi_reduction <maximumf>, %160, %cst_64 [1] : vector<8x8xf32> to vector<8xf32>
    %162 = vector.shape_cast %161 : vector<8xf32> to vector<8x1xf32>
    %163 = vector.broadcast %162 : vector<8x1xf32> to vector<8x8xf32>
    %164 = arith.subf %160, %163 : vector<8x8xf32>
    %165 = math.exp %164 : vector<8x8xf32>
    %cst_65 = arith.constant dense<0.000000e+00> : vector<8xf32>
    %166 = vector.multi_reduction <add>, %165, %cst_65 [1] : vector<8x8xf32> to vector<8xf32>
    %167 = vector.shape_cast %166 : vector<8xf32> to vector<8x1xf32>
    %168 = tpu.reciprocal %167 {approx = true} : vector<8x1xf32> -> vector<8x1xf32>
    %169 = vector.broadcast %168 : vector<8x1xf32> to vector<8x8xf32>
    %170 = arith.mulf %165, %169 : vector<8x8xf32>
    %171 = arith.truncf %170 : vector<8x8xf32> to vector<8x8xbf16>
    %172 = arith.truncf %157 : vector<8x8xf32> to vector<8x8xbf16>
    %cst_66 = arith.constant dense<0.000000e+00> : vector<8x8xf32>
    %173 = tpu.matmul %171, %172, %cst_66 {dimension_numbers = #tpu.dot_dimension_numbers<[1], [0], [0], [1], [0, 0, 1, 1], [], []>} : vector<8x8xbf16>, vector<8x8xbf16>, vector<8x8xf32> -> vector<8x8xf32>
    %174 = vector.extract_strided_slice %144 {offsets = [0, 8], sizes = [8, 8], strides = [1, 1]} : vector<8x32xf32> to vector<8x8xf32>
    %cst_67 = arith.constant 0.353553385 : f32
    %175 = vector.broadcast %cst_67 : f32 to vector<8x8xf32>
    %176 = arith.mulf %174, %175 : vector<8x8xf32>
    %177 = vector.extract_strided_slice %151 {offsets = [0, 8], sizes = [8, 8], strides = [1, 1]} : vector<8x32xf32> to vector<8x8xf32>
    %178 = vector.extract_strided_slice %152 {offsets = [0, 8], sizes = [8, 8], strides = [1, 1]} : vector<8x32xf32> to vector<8x8xf32>
    %179 = arith.truncf %176 : vector<8x8xf32> to vector<8x8xbf16>
    %180 = arith.truncf %177 : vector<8x8xf32> to vector<8x8xbf16>
    %cst_68 = arith.constant dense<0.000000e+00> : vector<8x8xf32>
    %181 = tpu.matmul %179, %180, %cst_68 {dimension_numbers = #tpu.dot_dimension_numbers<[1], [1], [0], [0], [0, 0, 1, 0], [], []>} : vector<8x8xbf16>, vector<8x8xbf16>, vector<8x8xf32> -> vector<8x8xf32>
    %cst_69 = arith.constant dense<0xFF800000> : vector<8xf32>
    %182 = vector.multi_reduction <maximumf>, %181, %cst_69 [1] : vector<8x8xf32> to vector<8xf32>
    %183 = vector.shape_cast %182 : vector<8xf32> to vector<8x1xf32>
    %184 = vector.broadcast %183 : vector<8x1xf32> to vector<8x8xf32>
    %185 = arith.subf %181, %184 : vector<8x8xf32>
    %186 = math.exp %185 : vector<8x8xf32>
    %cst_70 = arith.constant dense<0.000000e+00> : vector<8xf32>
    %187 = vector.multi_reduction <add>, %186, %cst_70 [1] : vector<8x8xf32> to vector<8xf32>
    %188 = vector.shape_cast %187 : vector<8xf32> to vector<8x1xf32>
    %189 = tpu.reciprocal %188 {approx = true} : vector<8x1xf32> -> vector<8x1xf32>
    %190 = vector.broadcast %189 : vector<8x1xf32> to vector<8x8xf32>
    %191 = arith.mulf %186, %190 : vector<8x8xf32>
    %192 = arith.truncf %191 : vector<8x8xf32> to vector<8x8xbf16>
    %193 = arith.truncf %178 : vector<8x8xf32> to vector<8x8xbf16>
    %cst_71 = arith.constant dense<0.000000e+00> : vector<8x8xf32>
    %194 = tpu.matmul %192, %193, %cst_71 {dimension_numbers = #tpu.dot_dimension_numbers<[1], [0], [0], [1], [0, 0, 1, 1], [], []>} : vector<8x8xbf16>, vector<8x8xbf16>, vector<8x8xf32> -> vector<8x8xf32>
    %195 = vector.extract_strided_slice %144 {offsets = [0, 16], sizes = [8, 8], strides = [1, 1]} : vector<8x32xf32> to vector<8x8xf32>
    %cst_72 = arith.constant 0.353553385 : f32
    %196 = vector.broadcast %cst_72 : f32 to vector<8x8xf32>
    %197 = arith.mulf %195, %196 : vector<8x8xf32>
    %198 = vector.extract_strided_slice %151 {offsets = [0, 16], sizes = [8, 8], strides = [1, 1]} : vector<8x32xf32> to vector<8x8xf32>
    %199 = vector.extract_strided_slice %152 {offsets = [0, 16], sizes = [8, 8], strides = [1, 1]} : vector<8x32xf32> to vector<8x8xf32>
    %200 = arith.truncf %197 : vector<8x8xf32> to vector<8x8xbf16>
    %201 = arith.truncf %198 : vector<8x8xf32> to vector<8x8xbf16>
    %cst_73 = arith.constant dense<0.000000e+00> : vector<8x8xf32>
    %202 = tpu.matmul %200, %201, %cst_73 {dimension_numbers = #tpu.dot_dimension_numbers<[1], [1], [0], [0], [0, 0, 1, 0], [], []>} : vector<8x8xbf16>, vector<8x8xbf16>, vector<8x8xf32> -> vector<8x8xf32>
    %cst_74 = arith.constant dense<0xFF800000> : vector<8xf32>
    %203 = vector.multi_reduction <maximumf>, %202, %cst_74 [1] : vector<8x8xf32> to vector<8xf32>
    %204 = vector.shape_cast %203 : vector<8xf32> to vector<8x1xf32>
    %205 = vector.broadcast %204 : vector<8x1xf32> to vector<8x8xf32>
    %206 = arith.subf %202, %205 : vector<8x8xf32>
    %207 = math.exp %206 : vector<8x8xf32>
    %cst_75 = arith.constant dense<0.000000e+00> : vector<8xf32>
    %208 = vector.multi_reduction <add>, %207, %cst_75 [1] : vector<8x8xf32> to vector<8xf32>
    %209 = vector.shape_cast %208 : vector<8xf32> to vector<8x1xf32>
    %210 = tpu.reciprocal %209 {approx = true} : vector<8x1xf32> -> vector<8x1xf32>
    %211 = vector.broadcast %210 : vector<8x1xf32> to vector<8x8xf32>
    %212 = arith.mulf %207, %211 : vector<8x8xf32>
    %213 = arith.truncf %212 : vector<8x8xf32> to vector<8x8xbf16>
    %214 = arith.truncf %199 : vector<8x8xf32> to vector<8x8xbf16>
    %cst_76 = arith.constant dense<0.000000e+00> : vector<8x8xf32>
    %215 = tpu.matmul %213, %214, %cst_76 {dimension_numbers = #tpu.dot_dimension_numbers<[1], [0], [0], [1], [0, 0, 1, 1], [], []>} : vector<8x8xbf16>, vector<8x8xbf16>, vector<8x8xf32> -> vector<8x8xf32>
    %216 = vector.extract_strided_slice %144 {offsets = [0, 24], sizes = [8, 8], strides = [1, 1]} : vector<8x32xf32> to vector<8x8xf32>
    %cst_77 = arith.constant 0.353553385 : f32
    %217 = vector.broadcast %cst_77 : f32 to vector<8x8xf32>
    %218 = arith.mulf %216, %217 : vector<8x8xf32>
    %219 = vector.extract_strided_slice %151 {offsets = [0, 24], sizes = [8, 8], strides = [1, 1]} : vector<8x32xf32> to vector<8x8xf32>
    %220 = vector.extract_strided_slice %152 {offsets = [0, 24], sizes = [8, 8], strides = [1, 1]} : vector<8x32xf32> to vector<8x8xf32>
    %221 = arith.truncf %218 : vector<8x8xf32> to vector<8x8xbf16>
    %222 = arith.truncf %219 : vector<8x8xf32> to vector<8x8xbf16>
    %cst_78 = arith.constant dense<0.000000e+00> : vector<8x8xf32>
    %223 = tpu.matmul %221, %222, %cst_78 {dimension_numbers = #tpu.dot_dimension_numbers<[1], [1], [0], [0], [0, 0, 1, 0], [], []>} : vector<8x8xbf16>, vector<8x8xbf16>, vector<8x8xf32> -> vector<8x8xf32>
    %cst_79 = arith.constant dense<0xFF800000> : vector<8xf32>
    %224 = vector.multi_reduction <maximumf>, %223, %cst_79 [1] : vector<8x8xf32> to vector<8xf32>
    %225 = vector.shape_cast %224 : vector<8xf32> to vector<8x1xf32>
    %226 = vector.broadcast %225 : vector<8x1xf32> to vector<8x8xf32>
    %227 = arith.subf %223, %226 : vector<8x8xf32>
    %228 = math.exp %227 : vector<8x8xf32>
    %cst_80 = arith.constant dense<0.000000e+00> : vector<8xf32>
    %229 = vector.multi_reduction <add>, %228, %cst_80 [1] : vector<8x8xf32> to vector<8xf32>
    %230 = vector.shape_cast %229 : vector<8xf32> to vector<8x1xf32>
    %231 = tpu.reciprocal %230 {approx = true} : vector<8x1xf32> -> vector<8x1xf32>
    %232 = vector.broadcast %231 : vector<8x1xf32> to vector<8x8xf32>
    %233 = arith.mulf %228, %232 : vector<8x8xf32>
    %234 = arith.truncf %233 : vector<8x8xf32> to vector<8x8xbf16>
    %235 = arith.truncf %220 : vector<8x8xf32> to vector<8x8xbf16>
    %cst_81 = arith.constant dense<0.000000e+00> : vector<8x8xf32>
    %236 = tpu.matmul %234, %235, %cst_81 {dimension_numbers = #tpu.dot_dimension_numbers<[1], [0], [0], [1], [0, 0, 1, 1], [], []>} : vector<8x8xbf16>, vector<8x8xbf16>, vector<8x8xf32> -> vector<8x8xf32>
    %237 = tpu.concatenate %173, %194, %215, %236 in 1 : vector<8x8xf32>, vector<8x8xf32>, vector<8x8xf32>, vector<8x8xf32> -> vector<8x32xf32>
    %c0_82 = arith.constant 0 : index
    %c0_83 = arith.constant 0 : index
    %238 = vector.load %arg16[%c0_82, %c0_83] : memref<32x32xbf16, #tpu.memory_space<vmem>>, vector<32x32xbf16>
    %239 = arith.truncf %237 : vector<8x32xf32> to vector<8x32xbf16>
    %cst_84 = arith.constant dense<0.000000e+00> : vector<8x32xf32>
    %240 = tpu.matmul %239, %238, %cst_84 {dimension_numbers = #tpu.dot_dimension_numbers<[1], [0], [0], [1], [0, 0, 1, 1], [], []>} : vector<8x32xbf16>, vector<32x32xbf16>, vector<8x32xf32> -> vector<8x32xf32>
    %c0_85 = arith.constant 0 : index
    %c0_86 = arith.constant 0 : index
    %241 = vector.load %arg17[%c0_85, %c0_86] : memref<1x32xf32, #tpu.memory_space<vmem>>, vector<1x32xf32>
    %242 = vector.broadcast %241 : vector<1x32xf32> to vector<8x32xf32>
    %243 = arith.addf %240, %242 : vector<8x32xf32>
    %244 = arith.addf %243, %138 : vector<8x32xf32>
    %cst_87 = arith.constant dense<0.000000e+00> : vector<8xf32>
    %245 = vector.multi_reduction <add>, %244, %cst_87 [1] : vector<8x32xf32> to vector<8xf32>
    %246 = vector.shape_cast %245 : vector<8xf32> to vector<8x1xf32>
    %cst_88 = arith.constant 3.200000e+01 : f32
    %247 = vector.broadcast %cst_88 : f32 to vector<8x1xf32>
    %248 = arith.divf %246, %247 : vector<8x1xf32>
    %249 = vector.broadcast %248 : vector<8x1xf32> to vector<8x32xf32>
    %250 = arith.subf %244, %249 : vector<8x32xf32>
    %251 = arith.mulf %250, %250 : vector<8x32xf32>
    %cst_89 = arith.constant dense<0.000000e+00> : vector<8xf32>
    %252 = vector.multi_reduction <add>, %251, %cst_89 [1] : vector<8x32xf32> to vector<8xf32>
    %253 = vector.shape_cast %252 : vector<8xf32> to vector<8x1xf32>
    %cst_90 = arith.constant 3.200000e+01 : f32
    %254 = vector.broadcast %cst_90 : f32 to vector<8x1xf32>
    %255 = arith.divf %253, %254 : vector<8x1xf32>
    %256 = vector.broadcast %248 : vector<8x1xf32> to vector<8x32xf32>
    %257 = arith.subf %244, %256 : vector<8x32xf32>
    %cst_91 = arith.constant 9.99999997E-7 : f32
    %258 = vector.broadcast %cst_91 : f32 to vector<8x1xf32>
    %259 = arith.addf %255, %258 : vector<8x1xf32>
    %260 = math.rsqrt %259 : vector<8x1xf32>
    %261 = vector.broadcast %260 : vector<8x1xf32> to vector<8x32xf32>
    %262 = arith.mulf %257, %261 : vector<8x32xf32>
    %c0_92 = arith.constant 0 : index
    %c0_93 = arith.constant 0 : index
    %263 = vector.load %arg18[%c0_92, %c0_93] : memref<1x32xf32, #tpu.memory_space<vmem>>, vector<1x32xf32>
    %264 = vector.broadcast %263 : vector<1x32xf32> to vector<8x32xf32>
    %265 = arith.mulf %262, %264 : vector<8x32xf32>
    %c0_94 = arith.constant 0 : index
    %c0_95 = arith.constant 0 : index
    %266 = vector.load %arg19[%c0_94, %c0_95] : memref<1x32xf32, #tpu.memory_space<vmem>>, vector<1x32xf32>
    %267 = vector.broadcast %266 : vector<1x32xf32> to vector<8x32xf32>
    %268 = arith.addf %265, %267 : vector<8x32xf32>
    %c0_96 = arith.constant 0 : index
    %c0_97 = arith.constant 0 : index
    %269 = vector.load %arg20[%c0_96, %c0_97] : memref<32x32xbf16, #tpu.memory_space<vmem>>, vector<32x32xbf16>
    %270 = arith.truncf %268 : vector<8x32xf32> to vector<8x32xbf16>
    %cst_98 = arith.constant dense<0.000000e+00> : vector<8x32xf32>
    %271 = tpu.matmul %270, %269, %cst_98 {dimension_numbers = #tpu.dot_dimension_numbers<[1], [0], [0], [1], [0, 0, 1, 1], [], []>} : vector<8x32xbf16>, vector<32x32xbf16>, vector<8x32xf32> -> vector<8x32xf32>
    %c0_99 = arith.constant 0 : index
    %c0_100 = arith.constant 0 : index
    %272 = vector.load %arg21[%c0_99, %c0_100] : memref<1x32xf32, #tpu.memory_space<vmem>>, vector<1x32xf32>
    %273 = vector.broadcast %272 : vector<1x32xf32> to vector<8x32xf32>
    %274 = arith.addf %271, %273 : vector<8x32xf32>
    %c0_101 = arith.constant 0 : index
    %c0_102 = arith.constant 0 : index
    %275 = vector.load %arg22[%c0_101, %c0_102] : memref<32x64xbf16, #tpu.memory_space<vmem>>, vector<32x64xbf16>
    %276 = arith.truncf %3 : vector<16x32xf32> to vector<16x32xbf16>
    %cst_103 = arith.constant dense<0.000000e+00> : vector<16x64xf32>
    %277 = tpu.matmul %276, %275, %cst_103 {dimension_numbers = #tpu.dot_dimension_numbers<[1], [0], [0], [1], [0, 0, 1, 1], [], []>} : vector<16x32xbf16>, vector<32x64xbf16>, vector<16x64xf32> -> vector<16x64xf32>
    %c0_104 = arith.constant 0 : index
    %c0_105 = arith.constant 0 : index
    %278 = vector.load %arg23[%c0_104, %c0_105] : memref<1x64xf32, #tpu.memory_space<vmem>>, vector<1x64xf32>
    %279 = vector.broadcast %278 : vector<1x64xf32> to vector<16x64xf32>
    %280 = arith.addf %277, %279 : vector<16x64xf32>
    %281 = vector.extract_strided_slice %280 {offsets = [0, 0], sizes = [16, 32], strides = [1, 1]} : vector<16x64xf32> to vector<16x32xf32>
    %282 = vector.extract_strided_slice %280 {offsets = [0, 32], sizes = [16, 32], strides = [1, 1]} : vector<16x64xf32> to vector<16x32xf32>
    %283 = vector.extract_strided_slice %274 {offsets = [0, 0], sizes = [8, 8], strides = [1, 1]} : vector<8x32xf32> to vector<8x8xf32>
    %cst_106 = arith.constant 0.353553385 : f32
    %284 = vector.broadcast %cst_106 : f32 to vector<8x8xf32>
    %285 = arith.mulf %283, %284 : vector<8x8xf32>
    %286 = vector.extract_strided_slice %281 {offsets = [0, 0], sizes = [16, 8], strides = [1, 1]} : vector<16x32xf32> to vector<16x8xf32>
    %287 = vector.extract_strided_slice %282 {offsets = [0, 0], sizes = [16, 8], strides = [1, 1]} : vector<16x32xf32> to vector<16x8xf32>
    %288 = arith.truncf %285 : vector<8x8xf32> to vector<8x8xbf16>
    %289 = arith.truncf %286 : vector<16x8xf32> to vector<16x8xbf16>
    %cst_107 = arith.constant dense<0.000000e+00> : vector<8x16xf32>
    %290 = tpu.matmul %288, %289, %cst_107 {dimension_numbers = #tpu.dot_dimension_numbers<[1], [1], [0], [0], [0, 0, 1, 0], [], []>} : vector<8x8xbf16>, vector<16x8xbf16>, vector<8x16xf32> -> vector<8x16xf32>
    %291 = vector.broadcast %9 : vector<1x16xf32> to vector<8x16xf32>
    %292 = arith.addf %290, %291 : vector<8x16xf32>
    %cst_108 = arith.constant dense<0xFF800000> : vector<8xf32>
    %293 = vector.multi_reduction <maximumf>, %292, %cst_108 [1] : vector<8x16xf32> to vector<8xf32>
    %294 = vector.shape_cast %293 : vector<8xf32> to vector<8x1xf32>
    %295 = vector.broadcast %294 : vector<8x1xf32> to vector<8x16xf32>
    %296 = arith.subf %292, %295 : vector<8x16xf32>
    %297 = math.exp %296 : vector<8x16xf32>
    %cst_109 = arith.constant dense<0.000000e+00> : vector<8xf32>
    %298 = vector.multi_reduction <add>, %297, %cst_109 [1] : vector<8x16xf32> to vector<8xf32>
    %299 = vector.shape_cast %298 : vector<8xf32> to vector<8x1xf32>
    %300 = tpu.reciprocal %299 {approx = true} : vector<8x1xf32> -> vector<8x1xf32>
    %301 = vector.broadcast %300 : vector<8x1xf32> to vector<8x16xf32>
    %302 = arith.mulf %297, %301 : vector<8x16xf32>
    %303 = arith.truncf %302 : vector<8x16xf32> to vector<8x16xbf16>
    %304 = arith.truncf %287 : vector<16x8xf32> to vector<16x8xbf16>
    %cst_110 = arith.constant dense<0.000000e+00> : vector<8x8xf32>
    %305 = tpu.matmul %303, %304, %cst_110 {dimension_numbers = #tpu.dot_dimension_numbers<[1], [0], [0], [1], [0, 0, 1, 1], [], []>} : vector<8x16xbf16>, vector<16x8xbf16>, vector<8x8xf32> -> vector<8x8xf32>
    %306 = vector.extract_strided_slice %274 {offsets = [0, 8], sizes = [8, 8], strides = [1, 1]} : vector<8x32xf32> to vector<8x8xf32>
    %cst_111 = arith.constant 0.353553385 : f32
    %307 = vector.broadcast %cst_111 : f32 to vector<8x8xf32>
    %308 = arith.mulf %306, %307 : vector<8x8xf32>
    %309 = vector.extract_strided_slice %281 {offsets = [0, 8], sizes = [16, 8], strides = [1, 1]} : vector<16x32xf32> to vector<16x8xf32>
    %310 = vector.extract_strided_slice %282 {offsets = [0, 8], sizes = [16, 8], strides = [1, 1]} : vector<16x32xf32> to vector<16x8xf32>
    %311 = arith.truncf %308 : vector<8x8xf32> to vector<8x8xbf16>
    %312 = arith.truncf %309 : vector<16x8xf32> to vector<16x8xbf16>
    %cst_112 = arith.constant dense<0.000000e+00> : vector<8x16xf32>
    %313 = tpu.matmul %311, %312, %cst_112 {dimension_numbers = #tpu.dot_dimension_numbers<[1], [1], [0], [0], [0, 0, 1, 0], [], []>} : vector<8x8xbf16>, vector<16x8xbf16>, vector<8x16xf32> -> vector<8x16xf32>
    %314 = vector.broadcast %9 : vector<1x16xf32> to vector<8x16xf32>
    %315 = arith.addf %313, %314 : vector<8x16xf32>
    %cst_113 = arith.constant dense<0xFF800000> : vector<8xf32>
    %316 = vector.multi_reduction <maximumf>, %315, %cst_113 [1] : vector<8x16xf32> to vector<8xf32>
    %317 = vector.shape_cast %316 : vector<8xf32> to vector<8x1xf32>
    %318 = vector.broadcast %317 : vector<8x1xf32> to vector<8x16xf32>
    %319 = arith.subf %315, %318 : vector<8x16xf32>
    %320 = math.exp %319 : vector<8x16xf32>
    %cst_114 = arith.constant dense<0.000000e+00> : vector<8xf32>
    %321 = vector.multi_reduction <add>, %320, %cst_114 [1] : vector<8x16xf32> to vector<8xf32>
    %322 = vector.shape_cast %321 : vector<8xf32> to vector<8x1xf32>
    %323 = tpu.reciprocal %322 {approx = true} : vector<8x1xf32> -> vector<8x1xf32>
    %324 = vector.broadcast %323 : vector<8x1xf32> to vector<8x16xf32>
    %325 = arith.mulf %320, %324 : vector<8x16xf32>
    %326 = arith.truncf %325 : vector<8x16xf32> to vector<8x16xbf16>
    %327 = arith.truncf %310 : vector<16x8xf32> to vector<16x8xbf16>
    %cst_115 = arith.constant dense<0.000000e+00> : vector<8x8xf32>
    %328 = tpu.matmul %326, %327, %cst_115 {dimension_numbers = #tpu.dot_dimension_numbers<[1], [0], [0], [1], [0, 0, 1, 1], [], []>} : vector<8x16xbf16>, vector<16x8xbf16>, vector<8x8xf32> -> vector<8x8xf32>
    %329 = arith.addf %302, %325 : vector<8x16xf32>
    %330 = vector.extract_strided_slice %274 {offsets = [0, 16], sizes = [8, 8], strides = [1, 1]} : vector<8x32xf32> to vector<8x8xf32>
    %cst_116 = arith.constant 0.353553385 : f32
    %331 = vector.broadcast %cst_116 : f32 to vector<8x8xf32>
    %332 = arith.mulf %330, %331 : vector<8x8xf32>
    %333 = vector.extract_strided_slice %281 {offsets = [0, 16], sizes = [16, 8], strides = [1, 1]} : vector<16x32xf32> to vector<16x8xf32>
    %334 = vector.extract_strided_slice %282 {offsets = [0, 16], sizes = [16, 8], strides = [1, 1]} : vector<16x32xf32> to vector<16x8xf32>
    %335 = arith.truncf %332 : vector<8x8xf32> to vector<8x8xbf16>
    %336 = arith.truncf %333 : vector<16x8xf32> to vector<16x8xbf16>
    %cst_117 = arith.constant dense<0.000000e+00> : vector<8x16xf32>
    %337 = tpu.matmul %335, %336, %cst_117 {dimension_numbers = #tpu.dot_dimension_numbers<[1], [1], [0], [0], [0, 0, 1, 0], [], []>} : vector<8x8xbf16>, vector<16x8xbf16>, vector<8x16xf32> -> vector<8x16xf32>
    %338 = vector.broadcast %9 : vector<1x16xf32> to vector<8x16xf32>
    %339 = arith.addf %337, %338 : vector<8x16xf32>
    %cst_118 = arith.constant dense<0xFF800000> : vector<8xf32>
    %340 = vector.multi_reduction <maximumf>, %339, %cst_118 [1] : vector<8x16xf32> to vector<8xf32>
    %341 = vector.shape_cast %340 : vector<8xf32> to vector<8x1xf32>
    %342 = vector.broadcast %341 : vector<8x1xf32> to vector<8x16xf32>
    %343 = arith.subf %339, %342 : vector<8x16xf32>
    %344 = math.exp %343 : vector<8x16xf32>
    %cst_119 = arith.constant dense<0.000000e+00> : vector<8xf32>
    %345 = vector.multi_reduction <add>, %344, %cst_119 [1] : vector<8x16xf32> to vector<8xf32>
    %346 = vector.shape_cast %345 : vector<8xf32> to vector<8x1xf32>
    %347 = tpu.reciprocal %346 {approx = true} : vector<8x1xf32> -> vector<8x1xf32>
    %348 = vector.broadcast %347 : vector<8x1xf32> to vector<8x16xf32>
    %349 = arith.mulf %344, %348 : vector<8x16xf32>
    %350 = arith.truncf %349 : vector<8x16xf32> to vector<8x16xbf16>
    %351 = arith.truncf %334 : vector<16x8xf32> to vector<16x8xbf16>
    %cst_120 = arith.constant dense<0.000000e+00> : vector<8x8xf32>
    %352 = tpu.matmul %350, %351, %cst_120 {dimension_numbers = #tpu.dot_dimension_numbers<[1], [0], [0], [1], [0, 0, 1, 1], [], []>} : vector<8x16xbf16>, vector<16x8xbf16>, vector<8x8xf32> -> vector<8x8xf32>
    %353 = arith.addf %329, %349 : vector<8x16xf32>
    %354 = vector.extract_strided_slice %274 {offsets = [0, 24], sizes = [8, 8], strides = [1, 1]} : vector<8x32xf32> to vector<8x8xf32>
    %cst_121 = arith.constant 0.353553385 : f32
    %355 = vector.broadcast %cst_121 : f32 to vector<8x8xf32>
    %356 = arith.mulf %354, %355 : vector<8x8xf32>
    %357 = vector.extract_strided_slice %281 {offsets = [0, 24], sizes = [16, 8], strides = [1, 1]} : vector<16x32xf32> to vector<16x8xf32>
    %358 = vector.extract_strided_slice %282 {offsets = [0, 24], sizes = [16, 8], strides = [1, 1]} : vector<16x32xf32> to vector<16x8xf32>
    %359 = arith.truncf %356 : vector<8x8xf32> to vector<8x8xbf16>
    %360 = arith.truncf %357 : vector<16x8xf32> to vector<16x8xbf16>
    %cst_122 = arith.constant dense<0.000000e+00> : vector<8x16xf32>
    %361 = tpu.matmul %359, %360, %cst_122 {dimension_numbers = #tpu.dot_dimension_numbers<[1], [1], [0], [0], [0, 0, 1, 0], [], []>} : vector<8x8xbf16>, vector<16x8xbf16>, vector<8x16xf32> -> vector<8x16xf32>
    %362 = vector.broadcast %9 : vector<1x16xf32> to vector<8x16xf32>
    %363 = arith.addf %361, %362 : vector<8x16xf32>
    %cst_123 = arith.constant dense<0xFF800000> : vector<8xf32>
    %364 = vector.multi_reduction <maximumf>, %363, %cst_123 [1] : vector<8x16xf32> to vector<8xf32>
    %365 = vector.shape_cast %364 : vector<8xf32> to vector<8x1xf32>
    %366 = vector.broadcast %365 : vector<8x1xf32> to vector<8x16xf32>
    %367 = arith.subf %363, %366 : vector<8x16xf32>
    %368 = math.exp %367 : vector<8x16xf32>
    %cst_124 = arith.constant dense<0.000000e+00> : vector<8xf32>
    %369 = vector.multi_reduction <add>, %368, %cst_124 [1] : vector<8x16xf32> to vector<8xf32>
    %370 = vector.shape_cast %369 : vector<8xf32> to vector<8x1xf32>
    %371 = tpu.reciprocal %370 {approx = true} : vector<8x1xf32> -> vector<8x1xf32>
    %372 = vector.broadcast %371 : vector<8x1xf32> to vector<8x16xf32>
    %373 = arith.mulf %368, %372 : vector<8x16xf32>
    %374 = arith.truncf %373 : vector<8x16xf32> to vector<8x16xbf16>
    %375 = arith.truncf %358 : vector<16x8xf32> to vector<16x8xbf16>
    %cst_125 = arith.constant dense<0.000000e+00> : vector<8x8xf32>
    %376 = tpu.matmul %374, %375, %cst_125 {dimension_numbers = #tpu.dot_dimension_numbers<[1], [0], [0], [1], [0, 0, 1, 1], [], []>} : vector<8x16xbf16>, vector<16x8xbf16>, vector<8x8xf32> -> vector<8x8xf32>
    %377 = arith.addf %353, %373 : vector<8x16xf32>
    %378 = tpu.concatenate %305, %328, %352, %376 in 1 : vector<8x8xf32>, vector<8x8xf32>, vector<8x8xf32>, vector<8x8xf32> -> vector<8x32xf32>
    %cst_126 = arith.constant 2.500000e-01 : f32
    %379 = vector.broadcast %cst_126 : f32 to vector<8x16xf32>
    %380 = arith.mulf %377, %379 : vector<8x16xf32>
    %c0_127 = arith.constant 0 : index
    %c0_128 = arith.constant 0 : index
    %381 = vector.load %arg24[%c0_127, %c0_128] : memref<32x32xbf16, #tpu.memory_space<vmem>>, vector<32x32xbf16>
    %382 = arith.truncf %378 : vector<8x32xf32> to vector<8x32xbf16>
    %cst_129 = arith.constant dense<0.000000e+00> : vector<8x32xf32>
    %383 = tpu.matmul %382, %381, %cst_129 {dimension_numbers = #tpu.dot_dimension_numbers<[1], [0], [0], [1], [0, 0, 1, 1], [], []>} : vector<8x32xbf16>, vector<32x32xbf16>, vector<8x32xf32> -> vector<8x32xf32>
    %c0_130 = arith.constant 0 : index
    %c0_131 = arith.constant 0 : index
    %384 = vector.load %arg25[%c0_130, %c0_131] : memref<1x32xf32, #tpu.memory_space<vmem>>, vector<1x32xf32>
    %385 = vector.broadcast %384 : vector<1x32xf32> to vector<8x32xf32>
    %386 = arith.addf %383, %385 : vector<8x32xf32>
    %387 = arith.addf %386, %268 : vector<8x32xf32>
    %cst_132 = arith.constant dense<0.000000e+00> : vector<8xf32>
    %388 = vector.multi_reduction <add>, %387, %cst_132 [1] : vector<8x32xf32> to vector<8xf32>
    %389 = vector.shape_cast %388 : vector<8xf32> to vector<8x1xf32>
    %cst_133 = arith.constant 3.200000e+01 : f32
    %390 = vector.broadcast %cst_133 : f32 to vector<8x1xf32>
    %391 = arith.divf %389, %390 : vector<8x1xf32>
    %392 = vector.broadcast %391 : vector<8x1xf32> to vector<8x32xf32>
    %393 = arith.subf %387, %392 : vector<8x32xf32>
    %394 = arith.mulf %393, %393 : vector<8x32xf32>
    %cst_134 = arith.constant dense<0.000000e+00> : vector<8xf32>
    %395 = vector.multi_reduction <add>, %394, %cst_134 [1] : vector<8x32xf32> to vector<8xf32>
    %396 = vector.shape_cast %395 : vector<8xf32> to vector<8x1xf32>
    %cst_135 = arith.constant 3.200000e+01 : f32
    %397 = vector.broadcast %cst_135 : f32 to vector<8x1xf32>
    %398 = arith.divf %396, %397 : vector<8x1xf32>
    %399 = vector.broadcast %391 : vector<8x1xf32> to vector<8x32xf32>
    %400 = arith.subf %387, %399 : vector<8x32xf32>
    %cst_136 = arith.constant 9.99999997E-7 : f32
    %401 = vector.broadcast %cst_136 : f32 to vector<8x1xf32>
    %402 = arith.addf %398, %401 : vector<8x1xf32>
    %403 = math.rsqrt %402 : vector<8x1xf32>
    %404 = vector.broadcast %403 : vector<8x1xf32> to vector<8x32xf32>
    %405 = arith.mulf %400, %404 : vector<8x32xf32>
    %c0_137 = arith.constant 0 : index
    %c0_138 = arith.constant 0 : index
    %406 = vector.load %arg26[%c0_137, %c0_138] : memref<1x32xf32, #tpu.memory_space<vmem>>, vector<1x32xf32>
    %407 = vector.broadcast %406 : vector<1x32xf32> to vector<8x32xf32>
    %408 = arith.mulf %405, %407 : vector<8x32xf32>
    %c0_139 = arith.constant 0 : index
    %c0_140 = arith.constant 0 : index
    %409 = vector.load %arg27[%c0_139, %c0_140] : memref<1x32xf32, #tpu.memory_space<vmem>>, vector<1x32xf32>
    %410 = vector.broadcast %409 : vector<1x32xf32> to vector<8x32xf32>
    %411 = arith.addf %408, %410 : vector<8x32xf32>
    %cst_141 = arith.constant dense<0.000000e+00> : vector<8xf32>
    %412 = vector.multi_reduction <add>, %411, %cst_141 [1] : vector<8x32xf32> to vector<8xf32>
    %413 = vector.shape_cast %412 : vector<8xf32> to vector<8x1xf32>
    %cst_142 = arith.constant 3.200000e+01 : f32
    %414 = vector.broadcast %cst_142 : f32 to vector<8x1xf32>
    %415 = arith.divf %413, %414 : vector<8x1xf32>
    %416 = vector.broadcast %415 : vector<8x1xf32> to vector<8x32xf32>
    %417 = arith.subf %411, %416 : vector<8x32xf32>
    %418 = arith.mulf %417, %417 : vector<8x32xf32>
    %cst_143 = arith.constant dense<0.000000e+00> : vector<8xf32>
    %419 = vector.multi_reduction <add>, %418, %cst_143 [1] : vector<8x32xf32> to vector<8xf32>
    %420 = vector.shape_cast %419 : vector<8xf32> to vector<8x1xf32>
    %cst_144 = arith.constant 3.200000e+01 : f32
    %421 = vector.broadcast %cst_144 : f32 to vector<8x1xf32>
    %422 = arith.divf %420, %421 : vector<8x1xf32>
    %423 = vector.broadcast %415 : vector<8x1xf32> to vector<8x32xf32>
    %424 = arith.subf %411, %423 : vector<8x32xf32>
    %cst_145 = arith.constant 9.99999997E-7 : f32
    %425 = vector.broadcast %cst_145 : f32 to vector<8x1xf32>
    %426 = arith.addf %422, %425 : vector<8x1xf32>
    %427 = math.rsqrt %426 : vector<8x1xf32>
    %428 = vector.broadcast %427 : vector<8x1xf32> to vector<8x32xf32>
    %429 = arith.mulf %424, %428 : vector<8x32xf32>
    %c0_146 = arith.constant 0 : index
    %c0_147 = arith.constant 0 : index
    %430 = vector.load %arg28[%c0_146, %c0_147] : memref<1x32xf32, #tpu.memory_space<vmem>>, vector<1x32xf32>
    %431 = vector.broadcast %430 : vector<1x32xf32> to vector<8x32xf32>
    %432 = arith.mulf %429, %431 : vector<8x32xf32>
    %c0_148 = arith.constant 0 : index
    %c0_149 = arith.constant 0 : index
    %433 = vector.load %arg29[%c0_148, %c0_149] : memref<1x32xf32, #tpu.memory_space<vmem>>, vector<1x32xf32>
    %434 = vector.broadcast %433 : vector<1x32xf32> to vector<8x32xf32>
    %435 = arith.addf %432, %434 : vector<8x32xf32>
    %c0_150 = arith.constant 0 : index
    %c0_151 = arith.constant 0 : index
    %436 = vector.load %arg30[%c0_150, %c0_151] : memref<32x64xbf16, #tpu.memory_space<vmem>>, vector<32x64xbf16>
    %437 = arith.truncf %435 : vector<8x32xf32> to vector<8x32xbf16>
    %cst_152 = arith.constant dense<0.000000e+00> : vector<8x64xf32>
    %438 = tpu.matmul %437, %436, %cst_152 {dimension_numbers = #tpu.dot_dimension_numbers<[1], [0], [0], [1], [0, 0, 1, 1], [], []>} : vector<8x32xbf16>, vector<32x64xbf16>, vector<8x64xf32> -> vector<8x64xf32>
    %c0_153 = arith.constant 0 : index
    %c0_154 = arith.constant 0 : index
    %439 = vector.load %arg31[%c0_153, %c0_154] : memref<1x64xf32, #tpu.memory_space<vmem>>, vector<1x64xf32>
    %440 = vector.broadcast %439 : vector<1x64xf32> to vector<8x64xf32>
    %441 = arith.addf %438, %440 : vector<8x64xf32>
    %cst_155 = arith.constant 0.000000e+00 : f32
    %442 = vector.broadcast %cst_155 : f32 to vector<8x64xf32>
    %443 = arith.maximumf %441, %442 : vector<8x64xf32>
    %c0_156 = arith.constant 0 : index
    %c0_157 = arith.constant 0 : index
    %444 = vector.load %arg32[%c0_156, %c0_157] : memref<64x32xbf16, #tpu.memory_space<vmem>>, vector<64x32xbf16>
    %445 = arith.truncf %443 : vector<8x64xf32> to vector<8x64xbf16>
    %cst_158 = arith.constant dense<0.000000e+00> : vector<8x32xf32>
    %446 = tpu.matmul %445, %444, %cst_158 {dimension_numbers = #tpu.dot_dimension_numbers<[1], [0], [0], [1], [0, 0, 1, 1], [], []>} : vector<8x64xbf16>, vector<64x32xbf16>, vector<8x32xf32> -> vector<8x32xf32>
    %c0_159 = arith.constant 0 : index
    %c0_160 = arith.constant 0 : index
    %447 = vector.load %arg33[%c0_159, %c0_160] : memref<1x32xf32, #tpu.memory_space<vmem>>, vector<1x32xf32>
    %448 = vector.broadcast %447 : vector<1x32xf32> to vector<8x32xf32>
    %449 = arith.addf %446, %448 : vector<8x32xf32>
    %450 = arith.addf %411, %449 : vector<8x32xf32>
    %c0_161 = arith.constant 0 : index
    %c0_162 = arith.constant 0 : index
    %c0_163 = arith.constant 0 : index
    %451 = vector.load %arg34[%c0_161, %c0_162, %c0_163] : memref<1x8x32xf32, #tpu.memory_space<vmem>>, vector<1x8x32xf32>
    %452 = vector.shape_cast %451 : vector<1x8x32xf32> to vector<8x32xf32>
    %453 = vector.shape_cast %450 : vector<8x32xf32> to vector<1x8x32xf32>
    tpu.vector_store %arg34[%c0_161, %c0_162, %c0_163], %453 {strides = array<i32>} : memref<1x8x32xf32, #tpu.memory_space<vmem>>, vector<1x8x32xf32>,
    %c0_164 = arith.constant 0 : index
    %c0_165 = arith.constant 0 : index
    %c0_166 = arith.constant 0 : index
    %454 = vector.load %arg35[%c0_164, %c0_165, %c0_166] : memref<1x8x16xf32, #tpu.memory_space<vmem>>, vector<1x8x16xf32>
    %455 = vector.shape_cast %454 : vector<1x8x16xf32> to vector<8x16xf32>
    %456 = vector.shape_cast %380 : vector<8x16xf32> to vector<1x8x16xf32>
    tpu.vector_store %arg35[%c0_164, %c0_165, %c0_166], %456 {strides = array<i32>} : memref<1x8x16xf32, #tpu.memory_space<vmem>>, vector<1x8x16xf32>,
    return
  }
  func.func @transform_0(%arg0: i32) -> (i32, i32, i32) {
    %c0_i32 = arith.constant 0 : i32
    %c0_i32_0 = arith.constant 0 : i32
    %c0_i32_1 = arith.constant 0 : i32
    return %arg0, %c0_i32, %c0_i32_0 : i32, i32, i32
  }
  func.func @transform_1(%arg0: i32) -> (i32, i32, i32) {
    %c0_i32 = arith.constant 0 : i32
    %c0_i32_0 = arith.constant 0 : i32
    %c0_i32_1 = arith.constant 0 : i32
    return %arg0, %c0_i32, %c0_i32_0 : i32, i32, i32
  }
  func.func @transform_2(%arg0: i32) -> (i32, i32, i32) {
    %c0_i32 = arith.constant 0 : i32
    %c0_i32_0 = arith.constant 0 : i32
    %c0_i32_1 = arith.constant 0 : i32
    return %arg0, %c0_i32, %c0_i32_0 : i32, i32, i32
  }
  func.func @transform_3(%arg0: i32) -> (i32, i32, i32) {
    %c0_i32 = arith.constant 0 : i32
    %c0_i32_0 = arith.constant 0 : i32
    %c0_i32_1 = arith.constant 0 : i32
    return %arg0, %c0_i32, %c0_i32_0 : i32, i32, i32
  }
  func.func @transform_4(%arg0: i32) -> (i32, i32, i32) {
    %c0_i32 = arith.constant 0 : i32
    %c0_i32_0 = arith.constant 0 : i32
    %c0_i32_1 = arith.constant 0 : i32
    return %arg0, %c0_i32, %c0_i32_0 : i32, i32, i32
  }
  func.func @transform_5(%arg0: i32) -> (i32, i32) {
    %c0_i32 = arith.constant 0 : i32
    %c0_i32_0 = arith.constant 0 : i32
    %c0_i32_1 = arith.constant 0 : i32
    return %c0_i32, %c0_i32_0 : i32, i32
  }
  func.func @transform_6(%arg0: i32) -> (i32, i32) {
    %c0_i32 = arith.constant 0 : i32
    %c0_i32_0 = arith.constant 0 : i32
    %c0_i32_1 = arith.constant 0 : i32
    return %c0_i32, %c0_i32_0 : i32, i32
  }
  func.func @transform_7(%arg0: i32) -> (i32, i32) {
    %c0_i32 = arith.constant 0 : i32
    %c0_i32_0 = arith.constant 0 : i32
    %c0_i32_1 = arith.constant 0 : i32
    return %c0_i32, %c0_i32_0 : i32, i32
  }
  func.func @transform_8(%arg0: i32) -> (i32, i32) {
    %c0_i32 = arith.constant 0 : i32
    %c0_i32_0 = arith.constant 0 : i32
    %c0_i32_1 = arith.constant 0 : i32
    return %c0_i32, %c0_i32_0 : i32, i32
  }
  func.func @transform_9(%arg0: i32) -> (i32, i32) {
    %c0_i32 = arith.constant 0 : i32
    %c0_i32_0 = arith.constant 0 : i32
    %c0_i32_1 = arith.constant 0 : i32
    return %c0_i32, %c0_i32_0 : i32, i32
  }
  func.func @transform_10(%arg0: i32) -> (i32, i32) {
    %c0_i32 = arith.constant 0 : i32
    %c0_i32_0 = arith.constant 0 : i32
    %c0_i32_1 = arith.constant 0 : i32
    return %c0_i32, %c0_i32_0 : i32, i32
  }
  func.func @transform_11(%arg0: i32) -> (i32, i32) {
    %c0_i32 = arith.constant 0 : i32
    %c0_i32_0 = arith.constant 0 : i32
    %c0_i32_1 = arith.constant 0 : i32
    return %c0_i32, %c0_i32_0 : i32, i32
  }
  func.func @transform_12(%arg0: i32) -> (i32, i32) {
    %c0_i32 = arith.constant 0 : i32
    %c0_i32_0 = arith.constant 0 : i32
    %c0_i32_1 = arith.constant 0 : i32
    return %c0_i32, %c0_i32_0 : i32, i32
  }
  func.func @transform_13(%arg0: i32) -> (i32, i32) {
    %c0_i32 = arith.constant 0 : i32
    %c0_i32_0 = arith.constant 0 : i32
    %c0_i32_1 = arith.constant 0 : i32
    return %c0_i32, %c0_i32_0 : i32, i32
  }
  func.func @transform_14(%arg0: i32) -> (i32, i32) {
    %c0_i32 = arith.constant 0 : i32
    %c0_i32_0 = arith.constant 0 : i32
    %c0_i32_1 = arith.constant 0 : i32
    return %c0_i32, %c0_i32_0 : i32, i32
  }
  func.func @transform_15(%arg0: i32) -> (i32, i32) {
    %c0_i32 = arith.constant 0 : i32
    %c0_i32_0 = arith.constant 0 : i32
    %c0_i32_1 = arith.constant 0 : i32
    return %c0_i32, %c0_i32_0 : i32, i32
  }
  func.func @transform_16(%arg0: i32) -> (i32, i32) {
    %c0_i32 = arith.constant 0 : i32
    %c0_i32_0 = arith.constant 0 : i32
    %c0_i32_1 = arith.constant 0 : i32
    return %c0_i32, %c0_i32_0 : i32, i32
  }
  func.func @transform_17(%arg0: i32) -> (i32, i32) {
    %c0_i32 = arith.constant 0 : i32
    %c0_i32_0 = arith.constant 0 : i32
    %c0_i32_1 = arith.constant 0 : i32
    return %c0_i32, %c0_i32_0 : i32, i32
  }
  func.func @transform_18(%arg0: i32) -> (i32, i32) {
    %c0_i32 = arith.constant 0 : i32
    %c0_i32_0 = arith.constant 0 : i32
    %c0_i32_1 = arith.constant 0 : i32
    return %c0_i32, %c0_i32_0 : i32, i32
  }
  func.func @transform_19(%arg0: i32) -> (i32, i32) {
    %c0_i32 = arith.constant 0 : i32
    %c0_i32_0 = arith.constant 0 : i32
    %c0_i32_1 = arith.constant 0 : i32
    return %c0_i32, %c0_i32_0 : i32, i32
  }
  func.func @transform_20(%arg0: i32) -> (i32, i32) {
    %c0_i32 = arith.constant 0 : i32
    %c0_i32_0 = arith.constant 0 : i32
    %c0_i32_1 = arith.constant 0 : i32
    return %c0_i32, %c0_i32_0 : i32, i32
  }
  func.func @transform_21(%arg0: i32) -> (i32, i32) {
    %c0_i32 = arith.constant 0 : i32
    %c0_i32_0 = arith.constant 0 : i32
    %c0_i32_1 = arith.constant 0 : i32
    return %c0_i32, %c0_i32_0 : i32, i32
  }
  func.func @transform_22(%arg0: i32) -> (i32, i32) {
    %c0_i32 = arith.constant 0 : i32
    %c0_i32_0 = arith.constant 0 : i32
    %c0_i32_1 = arith.constant 0 : i32
    return %c0_i32, %c0_i32_0 : i32, i32
  }
  func.func @transform_23(%arg0: i32) -> (i32, i32) {
    %c0_i32 = arith.constant 0 : i32
    %c0_i32_0 = arith.constant 0 : i32
    %c0_i32_1 = arith.constant 0 : i32
    return %c0_i32, %c0_i32_0 : i32, i32
  }
  func.func @transform_24(%arg0: i32) -> (i32, i32) {
    %c0_i32 = arith.constant 0 : i32
    %c0_i32_0 = arith.constant 0 : i32
    %c0_i32_1 = arith.constant 0 : i32
    return %c0_i32, %c0_i32_0 : i32, i32
  }
  func.func @transform_25(%arg0: i32) -> (i32, i32) {
    %c0_i32 = arith.constant 0 : i32
    %c0_i32_0 = arith.constant 0 : i32
    %c0_i32_1 = arith.constant 0 : i32
    return %c0_i32, %c0_i32_0 : i32, i32
  }
  func.func @transform_26(%arg0: i32) -> (i32, i32) {
    %c0_i32 = arith.constant 0 : i32
    %c0_i32_0 = arith.constant 0 : i32
    %c0_i32_1 = arith.constant 0 : i32
    return %c0_i32, %c0_i32_0 : i32, i32
  }
  func.func @transform_27(%arg0: i32) -> (i32, i32) {
    %c0_i32 = arith.constant 0 : i32
    %c0_i32_0 = arith.constant 0 : i32
    %c0_i32_1 = arith.constant 0 : i32
    return %c0_i32, %c0_i32_0 : i32, i32
  }
  func.func @transform_28(%arg0: i32) -> (i32, i32) {
    %c0_i32 = arith.constant 0 : i32
    %c0_i32_0 = arith.constant 0 : i32
    %c0_i32_1 = arith.constant 0 : i32
    return %c0_i32, %c0_i32_0 : i32, i32
  }
  func.func @transform_29(%arg0: i32) -> (i32, i32) {
    %c0_i32 = arith.constant 0 : i32
    %c0_i32_0 = arith.constant 0 : i32
    %c0_i32_1 = arith.constant 0 : i32
    return %c0_i32, %c0_i32_0 : i32, i32
  }
  func.func @transform_30(%arg0: i32) -> (i32, i32) {
    %c0_i32 = arith.constant 0 : i32
    %c0_i32_0 = arith.constant 0 : i32
    %c0_i32_1 = arith.constant 0 : i32
    return %c0_i32, %c0_i32_0 : i32, i32
  }
  func.func @transform_31(%arg0: i32) -> (i32, i32) {
    %c0_i32 = arith.constant 0 : i32
    %c0_i32_0 = arith.constant 0 : i32
    %c0_i32_1 = arith.constant 0 : i32
    return %c0_i32, %c0_i32_0 : i32, i32
  }
  func.func @transform_32(%arg0: i32) -> (i32, i32) {
    %c0_i32 = arith.constant 0 : i32
    %c0_i32_0 = arith.constant 0 : i32
    %c0_i32_1 = arith.constant 0 : i32
    return %c0_i32, %c0_i32_0 : i32, i32
  }
  func.func @transform_33(%arg0: i32) -> (i32, i32, i32) {
    %c0_i32 = arith.constant 0 : i32
    %c0_i32_0 = arith.constant 0 : i32
    %c0_i32_1 = arith.constant 0 : i32
    return %arg0, %c0_i32, %c0_i32_0 : i32, i32, i32
  }
  func.func @transform_34(%arg0: i32) -> (i32, i32, i32) {
    %c0_i32 = arith.constant 0 : i32
    %c0_i32_0 = arith.constant 0 : i32
    %c0_i32_1 = arith.constant 0 : i32
    return %arg0, %c0_i32, %c0_i32_0 : i32, i32, i32
  }
}

</mosaic_0001>

<llo_original>
// kernel: decoder_forward.2
$region0: #{decoder_forward.2}
  #allocation0 [shape = 'u32[]', space=smem, size = 0x4, offset = 0x4, fixed_abs, tag = 'smem constant byte address 0x4 - core index']
  #allocation1 [shape = 'u32[144,128]{1,0:T(1,128)}', space=vmem, size = 0x12000, scoped, tag = 'internal scratch']
  %s0 = inlined_call_operand.smem [shape: u32[35], index: -1, kind: input, shape index: {}]
  %s1 = sld [smem:[%s0]]
  %s2 = scalar_lea.smem %s0, 1
  %s3 = sld [smem:[%s2]]
  %s4 = scalar_lea.smem %s0, 2
  %s5 = sld [smem:[%s4]]
  %s6 = scalar_lea.smem %s0, 3
  %s7 = sld [smem:[%s6]]
  %s8 = scalar_lea.smem %s0, 4
  %s9 = sld [smem:[%s8]]
  %s10 = scalar_lea.smem %s0, 5
  %s11 = sld [smem:[%s10]]
  %s12 = scalar_lea.smem %s0, 6
  %s13 = sld [smem:[%s12]]
  %s14 = scalar_lea.smem %s0, 7
  %s15 = sld [smem:[%s14]]
  %s16 = scalar_lea.smem %s0, 8
  %s17 = sld [smem:[%s16]]
  %s18 = scalar_lea.smem %s0, 9
  %s19 = sld [smem:[%s18]]
  %s20 = scalar_lea.smem %s0, 10
  %s21 = sld [smem:[%s20]]
  %s22 = scalar_lea.smem %s0, 11
  %s23 = sld [smem:[%s22]]
  %s24 = scalar_lea.smem %s0, 12
  %s25 = sld [smem:[%s24]]
  %s26 = scalar_lea.smem %s0, 13
  %s27 = sld [smem:[%s26]]
  %s28 = scalar_lea.smem %s0, 14
  %s29 = sld [smem:[%s28]]
  %s30 = scalar_lea.smem %s0, 15
  %s31 = sld [smem:[%s30]]
  %s32 = scalar_lea.smem %s0, 16
  %s33 = sld [smem:[%s32]]
  %s34 = scalar_lea.smem %s0, 17
  %s35 = sld [smem:[%s34]]
  %s36 = scalar_lea.smem %s0, 18
  %s37 = sld [smem:[%s36]]
  %s38 = scalar_lea.smem %s0, 19
  %s39 = sld [smem:[%s38]]
  %s40 = scalar_lea.smem %s0, 20
  %s41 = sld [smem:[%s40]]
  %s42 = scalar_lea.smem %s0, 21
  %s43 = sld [smem:[%s42]]
  %s44 = scalar_lea.smem %s0, 22
  %s45 = sld [smem:[%s44]]
  %s46 = scalar_lea.smem %s0, 23
  %s47 = sld [smem:[%s46]]
  %s48 = scalar_lea.smem %s0, 24
  %s49 = sld [smem:[%s48]]
  %s50 = scalar_lea.smem %s0, 25
  %s51 = sld [smem:[%s50]]
  %s52 = scalar_lea.smem %s0, 26
  %s53 = sld [smem:[%s52]]
  %s54 = scalar_lea.smem %s0, 27
  %s55 = sld [smem:[%s54]]
  %s56 = scalar_lea.smem %s0, 28
  %s57 = sld [smem:[%s56]]
  %s58 = scalar_lea.smem %s0, 29
  %s59 = sld [smem:[%s58]]
  %s60 = scalar_lea.smem %s0, 30
  %s61 = sld [smem:[%s60]]
  %s62 = scalar_lea.smem %s0, 31
  %s63 = sld [smem:[%s62]]
  %s64 = scalar_lea.smem %s0, 32
  %s65 = sld [smem:[%s64]]
  %s66 = scalar_lea.smem %s0, 33
  %s67 = sld [smem:[%s66]]
  %s68 = scalar_lea.smem %s0, 34
  %s69 = sld [smem:[%s68]]
  %70 = xla_tuple %s67, %s69
  %s71 = sld [smem:[#allocation0]]
  $region257: #{decoder_forward.2} parent=0
    _
  %s73 = ssub.s32 1, %s71
  %s74 = scalar_select 0, %s73, %s71
  $region1: #{decoder_forward.2} parent=0
    #allocation2 [shape = 'u8[512]{0}', space=vmem, size = 0x400, scoped, tag = 'input window, operand 6, single buffered']
    #allocation3 [shape = 's32[2]{0}', space=sflag, size = 0x8, scoped, tag = 'scoped memory for decoder_forward.2']
    #allocation4 [shape = 's32[2]{0}', space=sflag, size = 0x8, scoped, tag = 'scoped memory for decoder_forward.2']
    #allocation5 [shape = 'u8[512]{0}', space=vmem, size = 0x400, scoped, tag = 'input window, operand 8, single buffered']
    #allocation6 [shape = 's32[1]{0}', space=sflag, size = 0x4, scoped, tag = 'scoped memory for decoder_forward.2']
    #allocation7 [shape = 'u8[512]{0}', space=vmem, size = 0x400, scoped, tag = 'input window, operand 10, single buffered']
    #allocation8 [shape = 'u8[512]{0}', space=vmem, size = 0x400, scoped, tag = 'input window, operand 12, single buffered']
    #allocation9 [shape = 's32[1]{0}', space=sflag, size = 0x4, scoped, tag = 'scoped memory for decoder_forward.2']
    #allocation10 [shape = 'u8[512]{0}', space=vmem, size = 0x400, scoped, tag = 'input window, operand 14, single buffered']
    #allocation11 [shape = 'u8[512]{0}', space=vmem, size = 0x400, scoped, tag = 'input window, operand 16, single buffered']
    #allocation12 [shape = 's32[1]{0}', space=sflag, size = 0x4, scoped, tag = 'scoped memory for decoder_forward.2']
    #allocation13 [shape = 'u8[512]{0}', space=vmem, size = 0x400, scoped, tag = 'input window, operand 17, single buffered']
    #allocation14 [shape = 'u8[512]{0}', space=vmem, size = 0x400, scoped, tag = 'input window, operand 18, single buffered']
    #allocation15 [shape = 's32[1]{0}', space=sflag, size = 0x4, scoped, tag = 'scoped memory for decoder_forward.2']
    #allocation16 [shape = 'u8[8192]{0}', space=vmem, size = 0x2000, scoped, tag = 'input window, operand 19, single buffered']
    #allocation17 [shape = 'u8[512]{0}', space=vmem, size = 0x400, scoped, tag = 'input window, operand 20, single buffered']
    #allocation18 [shape = 's32[1]{0}', space=sflag, size = 0x4, scoped, tag = 'scoped memory for decoder_forward.2']
    #allocation19 [shape = 'u8[8192]{0}', space=vmem, size = 0x2000, scoped, tag = 'input window, operand 21, single buffered']
    #allocation20 [shape = 'u8[512]{0}', space=vmem, size = 0x400, scoped, tag = 'input window, operand 22, single buffered']
    #allocation21 [shape = 's32[1]{0}', space=sflag, size = 0x4, scoped, tag = 'scoped memory for decoder_forward.2']
    #allocation22 [shape = 'u8[8192]{0}', space=vmem, size = 0x2000, scoped, tag = 'input window, operand 23, single buffered']
    #allocation23 [shape = 'u8[512]{0}', space=vmem, size = 0x400, scoped, tag = 'input window, operand 24, single buffered']
    #allocation24 [shape = 's32[1]{0}', space=sflag, size = 0x4, scoped, tag = 'scoped memory for decoder_forward.2']
    #allocation25 [shape = 'u8[512]{0}', space=vmem, size = 0x400, scoped, tag = 'input window, operand 25, single buffered']
    #allocation26 [shape = 'u8[512]{0}', space=vmem, size = 0x400, scoped, tag = 'input window, operand 26, single buffered']
    #allocation27 [shape = 's32[1]{0}', space=sflag, size = 0x4, scoped, tag = 'scoped memory for decoder_forward.2']
    #allocation28 [shape = 'u8[512]{0}', space=vmem, size = 0x400, scoped, tag = 'input window, operand 27, single buffered']
    #allocation29 [shape = 'u8[512]{0}', space=vmem, size = 0x400, scoped, tag = 'input window, operand 28, single buffered']
    #allocation30 [shape = 's32[1]{0}', space=sflag, size = 0x4, scoped, tag = 'scoped memory for decoder_forward.2']
    #allocation31 [shape = 'u8[8192]{0}', space=vmem, size = 0x2000, scoped, tag = 'input window, operand 29, single buffered']
    #allocation32 [shape = 'u8[512]{0}', space=vmem, size = 0x400, scoped, tag = 'input window, operand 30, single buffered']
    #allocation33 [shape = 's32[1]{0}', space=sflag, size = 0x4, scoped, tag = 'scoped memory for decoder_forward.2']
    #allocation34 [shape = 'u8[512]{0}', space=vmem, size = 0x400, scoped, tag = 'input window, operand 32, single buffered']
    #allocation35 [shape = 'u8[8192]{0}', space=vmem, size = 0x2000, scoped, tag = 'output window, operand 1']
    %75 = vsyncpa [#allocation3], 0
    %76 = vsyncpa [#allocation6], 0
    %77 = vsyncpa [#allocation9], 0
    %78 = vsyncpa [#allocation12], 0
    %79 = vsyncpa [#allocation15], 0
    %80 = vsyncpa [#allocation18], 0
    %81 = vsyncpa [#allocation21], 0
    %82 = vsyncpa [#allocation24], 0
    %83 = vsyncpa [#allocation27], 0
    %84 = vsyncpa [#allocation30], 0
    %85 = vsyncpa [#allocation33], 0
    %86 = vsyncpa [#allocation4], 0
    %s87 = scalar_lea.sflag [#allocation4], 1
    %88 = vsyncpa %s87, 0
    loop: start=0, step=1, limit=4
    $region2: #{decoder_forward.2} parent=1 // loop_pre_header
      _
    $region3: #{decoder_forward.2} parent=1 // loop_header
      %s90 = sphi 0, %s94
      %p91 = scmp.ge.s32.totalorder %s90, 4
      %s100 = sphi 0, %s102
      %s103 = sphi 0, %s100
      %s104 = sphi 0, %s103
      %s120 = sphi 0, %s104
      %s126 = sphi 0, %s128
      %s129 = sphi 0, %s126
      %s130 = sphi 0, %s129
      %s146 = sphi 0, %s130
      %s152 = sphi 0, %s154
      %s155 = sphi 0, %s152
      %s156 = sphi 0, %s155
      %s172 = sphi 0, %s156
      %s178 = sphi 0, %s180
      %s181 = sphi 0, %s178
      %s182 = sphi 0, %s181
      %s198 = sphi 0, %s182
      %s204 = sphi 0, %s206
      %s207 = sphi 0, %s204
      %s208 = sphi 0, %s207
      %s224 = sphi 0, %s208
      %s228 = sphi 0, %s228
      %s230 = sphi 0, %s228
      %s231 = sphi 0, %s230
      %s245 = sphi 0, %s231
      %s249 = sphi 0, %s249
      %s251 = sphi 0, %s249
      %s252 = sphi 0, %s251
      %s266 = sphi 0, %s252
      %s270 = sphi 0, %s270
      %s272 = sphi 0, %s270
      %s273 = sphi 0, %s272
      %s287 = sphi 0, %s273
      %s291 = sphi 0, %s291
      %s293 = sphi 0, %s291
      %s294 = sphi 0, %s293
      %s308 = sphi 0, %s294
      %s312 = sphi 0, %s312
      %s314 = sphi 0, %s312
      %s315 = sphi 0, %s314
      %s329 = sphi 0, %s315
      %s333 = sphi 0, %s333
      %s335 = sphi 0, %s333
      %s336 = sphi 0, %s335
      %s350 = sphi 0, %s336
      %s354 = sphi 0, %s354
      %s356 = sphi 0, %s354
      %s357 = sphi 0, %s356
      %s371 = sphi 0, %s357
      %s375 = sphi 0, %s375
      %s377 = sphi 0, %s375
      %s378 = sphi 0, %s377
      %s392 = sphi 0, %s378
      %s396 = sphi 0, %s396
      %s398 = sphi 0, %s396
      %s399 = sphi 0, %s398
      %s413 = sphi 0, %s399
      %s417 = sphi 0, %s417
      %s419 = sphi 0, %s417
      %s420 = sphi 0, %s419
      %s434 = sphi 0, %s420
      %s438 = sphi 0, %s438
      %s440 = sphi 0, %s438
      %s441 = sphi 0, %s440
      %s455 = sphi 0, %s441
      %s459 = sphi 0, %s459
      %s461 = sphi 0, %s459
      %s462 = sphi 0, %s461
      %s476 = sphi 0, %s462
      %s480 = sphi 0, %s480
      %s482 = sphi 0, %s480
      %s483 = sphi 0, %s482
      %s497 = sphi 0, %s483
      %s501 = sphi 0, %s501
      %s503 = sphi 0, %s501
      %s504 = sphi 0, %s503
      %s518 = sphi 0, %s504
      %s522 = sphi 0, %s522
      %s524 = sphi 0, %s522
      %s525 = sphi 0, %s524
      %s539 = sphi 0, %s525
      %s543 = sphi 0, %s543
      %s545 = sphi 0, %s543
      %s546 = sphi 0, %s545
      %s560 = sphi 0, %s546
      %s564 = sphi 0, %s564
      %s566 = sphi 0, %s564
      %s567 = sphi 0, %s566
      %s581 = sphi 0, %s567
      %s585 = sphi 0, %s585
      %s587 = sphi 0, %s585
      %s588 = sphi 0, %s587
      %s602 = sphi 0, %s588
      %s606 = sphi 0, %s606
      %s608 = sphi 0, %s606
      %s609 = sphi 0, %s608
      %s623 = sphi 0, %s609
      %s627 = sphi 0, %s627
      %s629 = sphi 0, %s627
      %s630 = sphi 0, %s629
      %s644 = sphi 0, %s630
      %s648 = sphi 0, %s648
      %s650 = sphi 0, %s648
      %s651 = sphi 0, %s650
      %s665 = sphi 0, %s651
      %s669 = sphi 0, %s669
      %s671 = sphi 0, %s669
      %s672 = sphi 0, %s671
      %s686 = sphi 0, %s672
      %s690 = sphi 0, %s690
      %s692 = sphi 0, %s690
      %s693 = sphi 0, %s692
      %s707 = sphi 0, %s693
      %s711 = sphi 0, %s711
      %s713 = sphi 0, %s711
      %s714 = sphi 0, %s713
      %s728 = sphi 0, %s714
      %s732 = sphi 0, %s732
      %s734 = sphi 0, %s732
      %s735 = sphi 0, %s734
      %s749 = sphi 0, %s735
      %s753 = sphi 0, %s753
      %s755 = sphi 0, %s753
      %s756 = sphi 0, %s755
      %s770 = sphi 0, %s756
      %s774 = sphi 0, %s774
      %s776 = sphi 0, %s774
      %s777 = sphi 0, %s776
      %s791 = sphi 0, %s777
      %s795 = sphi 0, %s795
      %s797 = sphi 0, %s795
      %s798 = sphi 0, %s797
      %s812 = sphi 0, %s798
      %s818 = sphi 0, %s820
      %s821 = sphi 0, %s818
      %s822 = sphi 0, %s821
      %s838 = sphi 0, %s822
      %s844 = sphi 0, %s846
      %s847 = sphi 0, %s844
      %s848 = sphi 0, %s847
      %s864 = sphi 0, %s848
    $region4: #{decoder_forward.2} parent=1 // loop_header_branch
      %93 = sbr.rel (%p91) target = $region8
    $region5: #{decoder_forward.2} parent=1 // loop_body
      %s95 = ssub.s32 %s90, 1
      %s96 = ssub.s32 %s90, 2
      %s97 = sadd.s32 %s90, 1
      %s98 = ssub.s32 %s90, %s97
      %p99 = scmp.eq.s32.totalorder %s98, 0
      %s101 = sadd.s32 %s100, 1
      %s102 = scalar_select %p99, %s100, %s101
      %p105 = pneg %p99
      %p106 = scmp.eq.s32.totalorder %s90, 1
      %p107 = por %p105, %p106
      %p108 = scmp.ne.s32.totalorder %s100, %s103
      %p109 = scmp.eq.s32.totalorder %s90, 0
      %p110 = por %p108, %p109
      %p111 = scmp.ne.s32.totalorder %s100, %s103
      %p112 = scmp.eq.s32.totalorder %s95, 1
      %p113 = por %p111, %p112
      %p114 = scmp.ne.s32.totalorder %s103, %s104
      %p115 = scmp.eq.s32.totalorder %s95, 0
      %p116 = por %p114, %p115
      %p117 = scmp.ne.s32.totalorder %s103, %s104
      %p118 = scmp.eq.s32.totalorder %s96, 1
      %p119 = por %p117, %p118
      %p121 = scmp.ne.s32.totalorder %s104, %s120
      %p122 = scmp.eq.s32.totalorder %s96, 0
      %p123 = por %p121, %p122
      %s124 = ssub.s32 %s90, %s97
      %p125 = scmp.eq.s32.totalorder %s124, 0
      %s127 = sadd.s32 %s126, 1
      %s128 = scalar_select %p125, %s126, %s127
      %p131 = pneg %p125
      %p132 = scmp.eq.s32.totalorder %s90, 1
      %p133 = por %p131, %p132
      %p134 = scmp.ne.s32.totalorder %s126, %s129
      %p135 = scmp.eq.s32.totalorder %s90, 0
      %p136 = por %p134, %p135
      %p137 = scmp.ne.s32.totalorder %s126, %s129
      %p138 = scmp.eq.s32.totalorder %s95, 1
      %p139 = por %p137, %p138
      %p140 = scmp.ne.s32.totalorder %s129, %s130
      %p141 = scmp.eq.s32.totalorder %s95, 0
      %p142 = por %p140, %p141
      %p143 = scmp.ne.s32.totalorder %s129, %s130
      %p144 = scmp.eq.s32.totalorder %s96, 1
      %p145 = por %p143, %p144
      %p147 = scmp.ne.s32.totalorder %s130, %s146
      %p148 = scmp.eq.s32.totalorder %s96, 0
      %p149 = por %p147, %p148
      %s150 = ssub.s32 %s90, %s97
      %p151 = scmp.eq.s32.totalorder %s150, 0
      %s153 = sadd.s32 %s152, 1
      %s154 = scalar_select %p151, %s152, %s153
      %p157 = pneg %p151
      %p158 = scmp.eq.s32.totalorder %s90, 1
      %p159 = por %p157, %p158
      %p160 = scmp.ne.s32.totalorder %s152, %s155
      %p161 = scmp.eq.s32.totalorder %s90, 0
      %p162 = por %p160, %p161
      %p163 = scmp.ne.s32.totalorder %s152, %s155
      %p164 = scmp.eq.s32.totalorder %s95, 1
      %p165 = por %p163, %p164
      %p166 = scmp.ne.s32.totalorder %s155, %s156
      %p167 = scmp.eq.s32.totalorder %s95, 0
      %p168 = por %p166, %p167
      %p169 = scmp.ne.s32.totalorder %s155, %s156
      %p170 = scmp.eq.s32.totalorder %s96, 1
      %p171 = por %p169, %p170
      %p173 = scmp.ne.s32.totalorder %s156, %s172
      %p174 = scmp.eq.s32.totalorder %s96, 0
      %p175 = por %p173, %p174
      %s176 = ssub.s32 %s90, %s97
      %p177 = scmp.eq.s32.totalorder %s176, 0
      %s179 = sadd.s32 %s178, 1
      %s180 = scalar_select %p177, %s178, %s179
      %p183 = pneg %p177
      %p184 = scmp.eq.s32.totalorder %s90, 1
      %p185 = por %p183, %p184
      %p186 = scmp.ne.s32.totalorder %s178, %s181
      %p187 = scmp.eq.s32.totalorder %s90, 0
      %p188 = por %p186, %p187
      %p189 = scmp.ne.s32.totalorder %s178, %s181
      %p190 = scmp.eq.s32.totalorder %s95, 1
      %p191 = por %p189, %p190
      %p192 = scmp.ne.s32.totalorder %s181, %s182
      %p193 = scmp.eq.s32.totalorder %s95, 0
      %p194 = por %p192, %p193
      %p195 = scmp.ne.s32.totalorder %s181, %s182
      %p196 = scmp.eq.s32.totalorder %s96, 1
      %p197 = por %p195, %p196
      %p199 = scmp.ne.s32.totalorder %s182, %s198
      %p200 = scmp.eq.s32.totalorder %s96, 0
      %p201 = por %p199, %p200
      %s202 = ssub.s32 %s90, %s97
      %p203 = scmp.eq.s32.totalorder %s202, 0
      %s205 = sadd.s32 %s204, 1
      %s206 = scalar_select %p203, %s204, %s205
      %p209 = pneg %p203
      %p210 = scmp.eq.s32.totalorder %s90, 1
      %p211 = por %p209, %p210
      %p212 = scmp.ne.s32.totalorder %s204, %s207
      %p213 = scmp.eq.s32.totalorder %s90, 0
      %p214 = por %p212, %p213
      %p215 = scmp.ne.s32.totalorder %s204, %s207
      %p216 = scmp.eq.s32.totalorder %s95, 1
      %p217 = por %p215, %p216
      %p218 = scmp.ne.s32.totalorder %s207, %s208
      %p219 = scmp.eq.s32.totalorder %s95, 0
      %p220 = por %p218, %p219
      %p221 = scmp.ne.s32.totalorder %s207, %s208
      %p222 = scmp.eq.s32.totalorder %s96, 1
      %p223 = por %p221, %p222
      %p225 = scmp.ne.s32.totalorder %s208, %s224
      %p226 = scmp.eq.s32.totalorder %s96, 0
      %p227 = por %p225, %p226
      %s229 = sadd.s32 %s228, 1
      %p232 = scmp.eq.s32.totalorder %s90, 1
      %p233 = scmp.ne.s32.totalorder %s228, %s230
      %p234 = scmp.eq.s32.totalorder %s90, 0
      %p235 = por %p233, %p234
      %p236 = scmp.ne.s32.totalorder %s228, %s230
      %p237 = scmp.eq.s32.totalorder %s95, 1
      %p238 = por %p236, %p237
      %p239 = scmp.ne.s32.totalorder %s230, %s231
      %p240 = scmp.eq.s32.totalorder %s95, 0
      %p241 = por %p239, %p240
      %p242 = scmp.ne.s32.totalorder %s230, %s231
      %p243 = scmp.eq.s32.totalorder %s96, 1
      %p244 = por %p242, %p243
      %p246 = scmp.ne.s32.totalorder %s231, %s245
      %p247 = scmp.eq.s32.totalorder %s96, 0
      %p248 = por %p246, %p247
      %s250 = sadd.s32 %s249, 1
      %p253 = scmp.eq.s32.totalorder %s90, 1
      %p254 = scmp.ne.s32.totalorder %s249, %s251
      %p255 = scmp.eq.s32.totalorder %s90, 0
      %p256 = por %p254, %p255
      %p257 = scmp.ne.s32.totalorder %s249, %s251
      %p258 = scmp.eq.s32.totalorder %s95, 1
      %p259 = por %p257, %p258
      %p260 = scmp.ne.s32.totalorder %s251, %s252
      %p261 = scmp.eq.s32.totalorder %s95, 0
      %p262 = por %p260, %p261
      %p263 = scmp.ne.s32.totalorder %s251, %s252
      %p264 = scmp.eq.s32.totalorder %s96, 1
      %p265 = por %p263, %p264
      %p267 = scmp.ne.s32.totalorder %s252, %s266
      %p268 = scmp.eq.s32.totalorder %s96, 0
      %p269 = por %p267, %p268
      %s271 = sadd.s32 %s270, 1
      %p274 = scmp.eq.s32.totalorder %s90, 1
      %p275 = scmp.ne.s32.totalorder %s270, %s272
      %p276 = scmp.eq.s32.totalorder %s90, 0
      %p277 = por %p275, %p276
      %p278 = scmp.ne.s32.totalorder %s270, %s272
      %p279 = scmp.eq.s32.totalorder %s95, 1
      %p280 = por %p278, %p279
      %p281 = scmp.ne.s32.totalorder %s272, %s273
      %p282 = scmp.eq.s32.totalorder %s95, 0
      %p283 = por %p281, %p282
      %p284 = scmp.ne.s32.totalorder %s272, %s273
      %p285 = scmp.eq.s32.totalorder %s96, 1
      %p286 = por %p284, %p285
      %p288 = scmp.ne.s32.totalorder %s273, %s287
      %p289 = scmp.eq.s32.totalorder %s96, 0
      %p290 = por %p288, %p289
      %s292 = sadd.s32 %s291, 1
      %p295 = scmp.eq.s32.totalorder %s90, 1
      %p296 = scmp.ne.s32.totalorder %s291, %s293
      %p297 = scmp.eq.s32.totalorder %s90, 0
      %p298 = por %p296, %p297
      %p299 = scmp.ne.s32.totalorder %s291, %s293
      %p300 = scmp.eq.s32.totalorder %s95, 1
      %p301 = por %p299, %p300
      %p302 = scmp.ne.s32.totalorder %s293, %s294
      %p303 = scmp.eq.s32.totalorder %s95, 0
      %p304 = por %p302, %p303
      %p305 = scmp.ne.s32.totalorder %s293, %s294
      %p306 = scmp.eq.s32.totalorder %s96, 1
      %p307 = por %p305, %p306
      %p309 = scmp.ne.s32.totalorder %s294, %s308
      %p310 = scmp.eq.s32.totalorder %s96, 0
      %p311 = por %p309, %p310
      %s313 = sadd.s32 %s312, 1
      %p316 = scmp.eq.s32.totalorder %s90, 1
      %p317 = scmp.ne.s32.totalorder %s312, %s314
      %p318 = scmp.eq.s32.totalorder %s90, 0
      %p319 = por %p317, %p318
      %p320 = scmp.ne.s32.totalorder %s312, %s314
      %p321 = scmp.eq.s32.totalorder %s95, 1
      %p322 = por %p320, %p321
      %p323 = scmp.ne.s32.totalorder %s314, %s315
      %p324 = scmp.eq.s32.totalorder %s95, 0
      %p325 = por %p323, %p324
      %p326 = scmp.ne.s32.totalorder %s314, %s315
      %p327 = scmp.eq.s32.totalorder %s96, 1
      %p328 = por %p326, %p327
      %p330 = scmp.ne.s32.totalorder %s315, %s329
      %p331 = scmp.eq.s32.totalorder %s96, 0
      %p332 = por %p330, %p331
      %s334 = sadd.s32 %s333, 1
      %p337 = scmp.eq.s32.totalorder %s90, 1
      %p338 = scmp.ne.s32.totalorder %s333, %s335
      %p339 = scmp.eq.s32.totalorder %s90, 0
      %p340 = por %p338, %p339
      %p341 = scmp.ne.s32.totalorder %s333, %s335
      %p342 = scmp.eq.s32.totalorder %s95, 1
      %p343 = por %p341, %p342
      %p344 = scmp.ne.s32.totalorder %s335, %s336
      %p345 = scmp.eq.s32.totalorder %s95, 0
      %p346 = por %p344, %p345
      %p347 = scmp.ne.s32.totalorder %s335, %s336
      %p348 = scmp.eq.s32.totalorder %s96, 1
      %p349 = por %p347, %p348
      %p351 = scmp.ne.s32.totalorder %s336, %s350
      %p352 = scmp.eq.s32.totalorder %s96, 0
      %p353 = por %p351, %p352
      %s355 = sadd.s32 %s354, 1
      %p358 = scmp.eq.s32.totalorder %s90, 1
      %p359 = scmp.ne.s32.totalorder %s354, %s356
      %p360 = scmp.eq.s32.totalorder %s90, 0
      %p361 = por %p359, %p360
      %p362 = scmp.ne.s32.totalorder %s354, %s356
      %p363 = scmp.eq.s32.totalorder %s95, 1
      %p364 = por %p362, %p363
      %p365 = scmp.ne.s32.totalorder %s356, %s357
      %p366 = scmp.eq.s32.totalorder %s95, 0
      %p367 = por %p365, %p366
      %p368 = scmp.ne.s32.totalorder %s356, %s357
      %p369 = scmp.eq.s32.totalorder %s96, 1
      %p370 = por %p368, %p369
      %p372 = scmp.ne.s32.totalorder %s357, %s371
      %p373 = scmp.eq.s32.totalorder %s96, 0
      %p374 = por %p372, %p373
      %s376 = sadd.s32 %s375, 1
      %p379 = scmp.eq.s32.totalorder %s90, 1
      %p380 = scmp.ne.s32.totalorder %s375, %s377
      %p381 = scmp.eq.s32.totalorder %s90, 0
      %p382 = por %p380, %p381
      %p383 = scmp.ne.s32.totalorder %s375, %s377
      %p384 = scmp.eq.s32.totalorder %s95, 1
      %p385 = por %p383, %p384
      %p386 = scmp.ne.s32.totalorder %s377, %s378
      %p387 = scmp.eq.s32.totalorder %s95, 0
      %p388 = por %p386, %p387
      %p389 = scmp.ne.s32.totalorder %s377, %s378
      %p390 = scmp.eq.s32.totalorder %s96, 1
      %p391 = por %p389, %p390
      %p393 = scmp.ne.s32.totalorder %s378, %s392
      %p394 = scmp.eq.s32.totalorder %s96, 0
      %p395 = por %p393, %p394
      %s397 = sadd.s32 %s396, 1
      %p400 = scmp.eq.s32.totalorder %s90, 1
      %p401 = scmp.ne.s32.totalorder %s396, %s398
      %p402 = scmp.eq.s32.totalorder %s90, 0
      %p403 = por %p401, %p402
      %p404 = scmp.ne.s32.totalorder %s396, %s398
      %p405 = scmp.eq.s32.totalorder %s95, 1
      %p406 = por %p404, %p405
      %p407 = scmp.ne.s32.totalorder %s398, %s399
      %p408 = scmp.eq.s32.totalorder %s95, 0
      %p409 = por %p407, %p408
      %p410 = scmp.ne.s32.totalorder %s398, %s399
      %p411 = scmp.eq.s32.totalorder %s96, 1
      %p412 = por %p410, %p411
      %p414 = scmp.ne.s32.totalorder %s399, %s413
      %p415 = scmp.eq.s32.totalorder %s96, 0
      %p416 = por %p414, %p415
      %s418 = sadd.s32 %s417, 1
      %p421 = scmp.eq.s32.totalorder %s90, 1
      %p422 = scmp.ne.s32.totalorder %s417, %s419
      %p423 = scmp.eq.s32.totalorder %s90, 0
      %p424 = por %p422, %p423
      %p425 = scmp.ne.s32.totalorder %s417, %s419
      %p426 = scmp.eq.s32.totalorder %s95, 1
      %p427 = por %p425, %p426
      %p428 = scmp.ne.s32.totalorder %s419, %s420
      %p429 = scmp.eq.s32.totalorder %s95, 0
      %p430 = por %p428, %p429
      %p431 = scmp.ne.s32.totalorder %s419, %s420
      %p432 = scmp.eq.s32.totalorder %s96, 1
      %p433 = por %p431, %p432
      %p435 = scmp.ne.s32.totalorder %s420, %s434
      %p436 = scmp.eq.s32.totalorder %s96, 0
      %p437 = por %p435, %p436
      %s439 = sadd.s32 %s438, 1
      %p442 = scmp.eq.s32.totalorder %s90, 1
      %p443 = scmp.ne.s32.totalorder %s438, %s440
      %p444 = scmp.eq.s32.totalorder %s90, 0
      %p445 = por %p443, %p444
      %p446 = scmp.ne.s32.totalorder %s438, %s440
      %p447 = scmp.eq.s32.totalorder %s95, 1
      %p448 = por %p446, %p447
      %p449 = scmp.ne.s32.totalorder %s440, %s441
      %p450 = scmp.eq.s32.totalorder %s95, 0
      %p451 = por %p449, %p450
      %p452 = scmp.ne.s32.totalorder %s440, %s441
      %p453 = scmp.eq.s32.totalorder %s96, 1
      %p454 = por %p452, %p453
      %p456 = scmp.ne.s32.totalorder %s441, %s455
      %p457 = scmp.eq.s32.totalorder %s96, 0
      %p458 = por %p456, %p457
      %s460 = sadd.s32 %s459, 1
      %p463 = scmp.eq.s32.totalorder %s90, 1
      %p464 = scmp.ne.s32.totalorder %s459, %s461
      %p465 = scmp.eq.s32.totalorder %s90, 0
      %p466 = por %p464, %p465
      %p467 = scmp.ne.s32.totalorder %s459, %s461
      %p468 = scmp.eq.s32.totalorder %s95, 1
      %p469 = por %p467, %p468
      %p470 = scmp.ne.s32.totalorder %s461, %s462
      %p471 = scmp.eq.s32.totalorder %s95, 0
      %p472 = por %p470, %p471
      %p473 = scmp.ne.s32.totalorder %s461, %s462
      %p474 = scmp.eq.s32.totalorder %s96, 1
      %p475 = por %p473, %p474
      %p477 = scmp.ne.s32.totalorder %s462, %s476
      %p478 = scmp.eq.s32.totalorder %s96, 0
      %p479 = por %p477, %p478
      %s481 = sadd.s32 %s480, 1
      %p484 = scmp.eq.s32.totalorder %s90, 1
      %p485 = scmp.ne.s32.totalorder %s480, %s482
      %p486 = scmp.eq.s32.totalorder %s90, 0
      %p487 = por %p485, %p486
      %p488 = scmp.ne.s32.totalorder %s480, %s482
      %p489 = scmp.eq.s32.totalorder %s95, 1
      %p490 = por %p488, %p489
      %p491 = scmp.ne.s32.totalorder %s482, %s483
      %p492 = scmp.eq.s32.totalorder %s95, 0
      %p493 = por %p491, %p492
      %p494 = scmp.ne.s32.totalorder %s482, %s483
      %p495 = scmp.eq.s32.totalorder %s96, 1
      %p496 = por %p494, %p495
      %p498 = scmp.ne.s32.totalorder %s483, %s497
      %p499 = scmp.eq.s32.totalorder %s96, 0
      %p500 = por %p498, %p499
      %s502 = sadd.s32 %s501, 1
      %p505 = scmp.eq.s32.totalorder %s90, 1
      %p506 = scmp.ne.s32.totalorder %s501, %s503
      %p507 = scmp.eq.s32.totalorder %s90, 0
      %p508 = por %p506, %p507
      %p509 = scmp.ne.s32.totalorder %s501, %s503
      %p510 = scmp.eq.s32.totalorder %s95, 1
      %p511 = por %p509, %p510
      %p512 = scmp.ne.s32.totalorder %s503, %s504
      %p513 = scmp.eq.s32.totalorder %s95, 0
      %p514 = por %p512, %p513
      %p515 = scmp.ne.s32.totalorder %s503, %s504
      %p516 = scmp.eq.s32.totalorder %s96, 1
      %p517 = por %p515, %p516
      %p519 = scmp.ne.s32.totalorder %s504, %s518
      %p520 = scmp.eq.s32.totalorder %s96, 0
      %p521 = por %p519, %p520
      %s523 = sadd.s32 %s522, 1
      %p526 = scmp.eq.s32.totalorder %s90, 1
      %p527 = scmp.ne.s32.totalorder %s522, %s524
      %p528 = scmp.eq.s32.totalorder %s90, 0
      %p529 = por %p527, %p528
      %p530 = scmp.ne.s32.totalorder %s522, %s524
      %p531 = scmp.eq.s32.totalorder %s95, 1
      %p532 = por %p530, %p531
      %p533 = scmp.ne.s32.totalorder %s524, %s525
      %p534 = scmp.eq.s32.totalorder %s95, 0
      %p535 = por %p533, %p534
      %p536 = scmp.ne.s32.totalorder %s524, %s525
      %p537 = scmp.eq.s32.totalorder %s96, 1
      %p538 = por %p536, %p537
      %p540 = scmp.ne.s32.totalorder %s525, %s539
      %p541 = scmp.eq.s32.totalorder %s96, 0
      %p542 = por %p540, %p541
      %s544 = sadd.s32 %s543, 1
      %p547 = scmp.eq.s32.totalorder %s90, 1
      %p548 = scmp.ne.s32.totalorder %s543, %s545
      %p549 = scmp.eq.s32.totalorder %s90, 0
      %p550 = por %p548, %p549
      %p551 = scmp.ne.s32.totalorder %s543, %s545
      %p552 = scmp.eq.s32.totalorder %s95, 1
      %p553 = por %p551, %p552
      %p554 = scmp.ne.s32.totalorder %s545, %s546
      %p555 = scmp.eq.s32.totalorder %s95, 0
      %p556 = por %p554, %p555
      %p557 = scmp.ne.s32.totalorder %s545, %s546
      %p558 = scmp.eq.s32.totalorder %s96, 1
      %p559 = por %p557, %p558
      %p561 = scmp.ne.s32.totalorder %s546, %s560
      %p562 = scmp.eq.s32.totalorder %s96, 0
      %p563 = por %p561, %p562
      %s565 = sadd.s32 %s564, 1
      %p568 = scmp.eq.s32.totalorder %s90, 1
      %p569 = scmp.ne.s32.totalorder %s564, %s566
      %p570 = scmp.eq.s32.totalorder %s90, 0
      %p571 = por %p569, %p570
      %p572 = scmp.ne.s32.totalorder %s564, %s566
      %p573 = scmp.eq.s32.totalorder %s95, 1
      %p574 = por %p572, %p573
      %p575 = scmp.ne.s32.totalorder %s566, %s567
      %p576 = scmp.eq.s32.totalorder %s95, 0
      %p577 = por %p575, %p576
      %p578 = scmp.ne.s32.totalorder %s566, %s567
      %p579 = scmp.eq.s32.totalorder %s96, 1
      %p580 = por %p578, %p579
      %p582 = scmp.ne.s32.totalorder %s567, %s581
      %p583 = scmp.eq.s32.totalorder %s96, 0
      %p584 = por %p582, %p583
      %s586 = sadd.s32 %s585, 1
      %p589 = scmp.eq.s32.totalorder %s90, 1
      %p590 = scmp.ne.s32.totalorder %s585, %s587
      %p591 = scmp.eq.s32.totalorder %s90, 0
      %p592 = por %p590, %p591
      %p593 = scmp.ne.s32.totalorder %s585, %s587
      %p594 = scmp.eq.s32.totalorder %s95, 1
      %p595 = por %p593, %p594
      %p596 = scmp.ne.s32.totalorder %s587, %s588
      %p597 = scmp.eq.s32.totalorder %s95, 0
      %p598 = por %p596, %p597
      %p599 = scmp.ne.s32.totalorder %s587, %s588
      %p600 = scmp.eq.s32.totalorder %s96, 1
      %p601 = por %p599, %p600
      %p603 = scmp.ne.s32.totalorder %s588, %s602
      %p604 = scmp.eq.s32.totalorder %s96, 0
      %p605 = por %p603, %p604
      %s607 = sadd.s32 %s606, 1
      %p610 = scmp.eq.s32.totalorder %s90, 1
      %p611 = scmp.ne.s32.totalorder %s606, %s608
      %p612 = scmp.eq.s32.totalorder %s90, 0
      %p613 = por %p611, %p612
      %p614 = scmp.ne.s32.totalorder %s606, %s608
      %p615 = scmp.eq.s32.totalorder %s95, 1
      %p616 = por %p614, %p615
      %p617 = scmp.ne.s32.totalorder %s608, %s609
      %p618 = scmp.eq.s32.totalorder %s95, 0
      %p619 = por %p617, %p618
      %p620 = scmp.ne.s32.totalorder %s608, %s609
      %p621 = scmp.eq.s32.totalorder %s96, 1
      %p622 = por %p620, %p621
      %p624 = scmp.ne.s32.totalorder %s609, %s623
      %p625 = scmp.eq.s32.totalorder %s96, 0
      %p626 = por %p624, %p625
      %s628 = sadd.s32 %s627, 1
      %p631 = scmp.eq.s32.totalorder %s90, 1
      %p632 = scmp.ne.s32.totalorder %s627, %s629
      %p633 = scmp.eq.s32.totalorder %s90, 0
      %p634 = por %p632, %p633
      %p635 = scmp.ne.s32.totalorder %s627, %s629
      %p636 = scmp.eq.s32.totalorder %s95, 1
      %p637 = por %p635, %p636
      %p638 = scmp.ne.s32.totalorder %s629, %s630
      %p639 = scmp.eq.s32.totalorder %s95, 0
      %p640 = por %p638, %p639
      %p641 = scmp.ne.s32.totalorder %s629, %s630
      %p642 = scmp.eq.s32.totalorder %s96, 1
      %p643 = por %p641, %p642
      %p645 = scmp.ne.s32.totalorder %s630, %s644
      %p646 = scmp.eq.s32.totalorder %s96, 0
      %p647 = por %p645, %p646
      %s649 = sadd.s32 %s648, 1
      %p652 = scmp.eq.s32.totalorder %s90, 1
      %p653 = scmp.ne.s32.totalorder %s648, %s650
      %p654 = scmp.eq.s32.totalorder %s90, 0
      %p655 = por %p653, %p654
      %p656 = scmp.ne.s32.totalorder %s648, %s650
      %p657 = scmp.eq.s32.totalorder %s95, 1
      %p658 = por %p656, %p657
      %p659 = scmp.ne.s32.totalorder %s650, %s651
      %p660 = scmp.eq.s32.totalorder %s95, 0
      %p661 = por %p659, %p660
      %p662 = scmp.ne.s32.totalorder %s650, %s651
      %p663 = scmp.eq.s32.totalorder %s96, 1
      %p664 = por %p662, %p663
      %p666 = scmp.ne.s32.totalorder %s651, %s665
      %p667 = scmp.eq.s32.totalorder %s96, 0
      %p668 = por %p666, %p667
      %s670 = sadd.s32 %s669, 1
      %p673 = scmp.eq.s32.totalorder %s90, 1
      %p674 = scmp.ne.s32.totalorder %s669, %s671
      %p675 = scmp.eq.s32.totalorder %s90, 0
      %p676 = por %p674, %p675
      %p677 = scmp.ne.s32.totalorder %s669, %s671
      %p678 = scmp.eq.s32.totalorder %s95, 1
      %p679 = por %p677, %p678
      %p680 = scmp.ne.s32.totalorder %s671, %s672
      %p681 = scmp.eq.s32.totalorder %s95, 0
      %p682 = por %p680, %p681
      %p683 = scmp.ne.s32.totalorder %s671, %s672
      %p684 = scmp.eq.s32.totalorder %s96, 1
      %p685 = por %p683, %p684
      %p687 = scmp.ne.s32.totalorder %s672, %s686
      %p688 = scmp.eq.s32.totalorder %s96, 0
      %p689 = por %p687, %p688
      %s691 = sadd.s32 %s690, 1
      %p694 = scmp.eq.s32.totalorder %s90, 1
      %p695 = scmp.ne.s32.totalorder %s690, %s692
      %p696 = scmp.eq.s32.totalorder %s90, 0
      %p697 = por %p695, %p696
      %p698 = scmp.ne.s32.totalorder %s690, %s692
      %p699 = scmp.eq.s32.totalorder %s95, 1
      %p700 = por %p698, %p699
      %p701 = scmp.ne.s32.totalorder %s692, %s693
      %p702 = scmp.eq.s32.totalorder %s95, 0
      %p703 = por %p701, %p702
      %p704 = scmp.ne.s32.totalorder %s692, %s693
      %p705 = scmp.eq.s32.totalorder %s96, 1
      %p706 = por %p704, %p705
      %p708 = scmp.ne.s32.totalorder %s693, %s707
      %p709 = scmp.eq.s32.totalorder %s96, 0
      %p710 = por %p708, %p709
      %s712 = sadd.s32 %s711, 1
      %p715 = scmp.eq.s32.totalorder %s90, 1
      %p716 = scmp.ne.s32.totalorder %s711, %s713
      %p717 = scmp.eq.s32.totalorder %s90, 0
      %p718 = por %p716, %p717
      %p719 = scmp.ne.s32.totalorder %s711, %s713
      %p720 = scmp.eq.s32.totalorder %s95, 1
      %p721 = por %p719, %p720
      %p722 = scmp.ne.s32.totalorder %s713, %s714
      %p723 = scmp.eq.s32.totalorder %s95, 0
      %p724 = por %p722, %p723
      %p725 = scmp.ne.s32.totalorder %s713, %s714
      %p726 = scmp.eq.s32.totalorder %s96, 1
      %p727 = por %p725, %p726
      %p729 = scmp.ne.s32.totalorder %s714, %s728
      %p730 = scmp.eq.s32.totalorder %s96, 0
      %p731 = por %p729, %p730
      %s733 = sadd.s32 %s732, 1
      %p736 = scmp.eq.s32.totalorder %s90, 1
      %p737 = scmp.ne.s32.totalorder %s732, %s734
      %p738 = scmp.eq.s32.totalorder %s90, 0
      %p739 = por %p737, %p738
      %p740 = scmp.ne.s32.totalorder %s732, %s734
      %p741 = scmp.eq.s32.totalorder %s95, 1
      %p742 = por %p740, %p741
      %p743 = scmp.ne.s32.totalorder %s734, %s735
      %p744 = scmp.eq.s32.totalorder %s95, 0
      %p745 = por %p743, %p744
      %p746 = scmp.ne.s32.totalorder %s734, %s735
      %p747 = scmp.eq.s32.totalorder %s96, 1
      %p748 = por %p746, %p747
      %p750 = scmp.ne.s32.totalorder %s735, %s749
      %p751 = scmp.eq.s32.totalorder %s96, 0
      %p752 = por %p750, %p751
      %s754 = sadd.s32 %s753, 1
      %p757 = scmp.eq.s32.totalorder %s90, 1
      %p758 = scmp.ne.s32.totalorder %s753, %s755
      %p759 = scmp.eq.s32.totalorder %s90, 0
      %p760 = por %p758, %p759
      %p761 = scmp.ne.s32.totalorder %s753, %s755
      %p762 = scmp.eq.s32.totalorder %s95, 1
      %p763 = por %p761, %p762
      %p764 = scmp.ne.s32.totalorder %s755, %s756
      %p765 = scmp.eq.s32.totalorder %s95, 0
      %p766 = por %p764, %p765
      %p767 = scmp.ne.s32.totalorder %s755, %s756
      %p768 = scmp.eq.s32.totalorder %s96, 1
      %p769 = por %p767, %p768
      %p771 = scmp.ne.s32.totalorder %s756, %s770
      %p772 = scmp.eq.s32.totalorder %s96, 0
      %p773 = por %p771, %p772
      %s775 = sadd.s32 %s774, 1
      %p778 = scmp.eq.s32.totalorder %s90, 1
      %p779 = scmp.ne.s32.totalorder %s774, %s776
      %p780 = scmp.eq.s32.totalorder %s90, 0
      %p781 = por %p779, %p780
      %p782 = scmp.ne.s32.totalorder %s774, %s776
      %p783 = scmp.eq.s32.totalorder %s95, 1
      %p784 = por %p782, %p783
      %p785 = scmp.ne.s32.totalorder %s776, %s777
      %p786 = scmp.eq.s32.totalorder %s95, 0
      %p787 = por %p785, %p786
      %p788 = scmp.ne.s32.totalorder %s776, %s777
      %p789 = scmp.eq.s32.totalorder %s96, 1
      %p790 = por %p788, %p789
      %p792 = scmp.ne.s32.totalorder %s777, %s791
      %p793 = scmp.eq.s32.totalorder %s96, 0
      %p794 = por %p792, %p793
      %s796 = sadd.s32 %s795, 1
      %p799 = scmp.eq.s32.totalorder %s90, 1
      %p800 = scmp.ne.s32.totalorder %s795, %s797
      %p801 = scmp.eq.s32.totalorder %s90, 0
      %p802 = por %p800, %p801
      %p803 = scmp.ne.s32.totalorder %s795, %s797
      %p804 = scmp.eq.s32.totalorder %s95, 1
      %p805 = por %p803, %p804
      %p806 = scmp.ne.s32.totalorder %s797, %s798
      %p807 = scmp.eq.s32.totalorder %s95, 0
      %p808 = por %p806, %p807
      %p809 = scmp.ne.s32.totalorder %s797, %s798
      %p810 = scmp.eq.s32.totalorder %s96, 1
      %p811 = por %p809, %p810
      %p813 = scmp.ne.s32.totalorder %s798, %s812
      %p814 = scmp.eq.s32.totalorder %s96, 0
      %p815 = por %p813, %p814
      %s816 = ssub.s32 %s90, %s97
      %p817 = scmp.eq.s32.totalorder %s816, 0
      %s819 = sadd.s32 %s818, 1
      %s820 = scalar_select %p817, %s818, %s819
      %p823 = pneg %p817
      %p824 = scmp.eq.s32.totalorder %s90, 1
      %p825 = por %p823, %p824
      %p826 = scmp.ne.s32.totalorder %s818, %s821
      %p827 = scmp.eq.s32.totalorder %s90, 0
      %p828 = por %p826, %p827
      %p829 = scmp.ne.s32.totalorder %s818, %s821
      %p830 = scmp.eq.s32.totalorder %s95, 1
      %p831 = por %p829, %p830
      %p832 = scmp.ne.s32.totalorder %s821, %s822
      %p833 = scmp.eq.s32.totalorder %s95, 0
      %p834 = por %p832, %p833
      %p835 = scmp.ne.s32.totalorder %s821, %s822
      %p836 = scmp.eq.s32.totalorder %s96, 1
      %p837 = por %p835, %p836
      %p839 = scmp.ne.s32.totalorder %s822, %s838
      %p840 = scmp.eq.s32.totalorder %s96, 0
      %p841 = por %p839, %p840
      %s842 = ssub.s32 %s90, %s97
      %p843 = scmp.eq.s32.totalorder %s842, 0
      %s845 = sadd.s32 %s844, 1
      %s846 = scalar_select %p843, %s844, %s845
      %p849 = pneg %p843
      %p850 = scmp.eq.s32.totalorder %s90, 1
      %p851 = por %p849, %p850
      %p852 = scmp.ne.s32.totalorder %s844, %s847
      %p853 = scmp.eq.s32.totalorder %s90, 0
      %p854 = por %p852, %p853
      %p855 = scmp.ne.s32.totalorder %s844, %s847
      %p856 = scmp.eq.s32.totalorder %s95, 1
      %p857 = por %p855, %p856
      %p858 = scmp.ne.s32.totalorder %s847, %s848
      %p859 = scmp.eq.s32.totalorder %s95, 0
      %p860 = por %p858, %p859
      %p861 = scmp.ne.s32.totalorder %s847, %s848
      %p862 = scmp.eq.s32.totalorder %s96, 1
      %p863 = por %p861, %p862
      %p865 = scmp.ne.s32.totalorder %s848, %s864
      %p866 = scmp.eq.s32.totalorder %s96, 0
      %p867 = por %p865, %p866
      %p868 = scmp.le.s32.totalorder 1, %s90
      %p869 = scmp.lt.s32.totalorder %s90, 3
      %p870 = pnand %p868, %p869
      %p871 = pneg %p870
      // Predicated region
      $region9: #{decoder_forward.2} parent=5 // pred_check
        _
      $region10: #{decoder_forward.2} parent=5 // pred_check_branch
        %873 = sbr.rel (%p870) target = $region12
      $region11: #{decoder_forward.2} parent=5 // pred_region
        %s874 = ssub.s32 %s90, 1
        // Predicated region
        $region13: #{decoder_forward.2} parent=11 // pred_check
          %p875 = pneg %p241
        $region14: #{decoder_forward.2} parent=11 // pred_check_branch
          %877 = sbr.rel (%p875) target = $region16
        $region15: #{decoder_forward.2} parent=11 // pred_region
          _
        $region16: #{decoder_forward.2} parent=11 // pred_fallthru
          _
        // Predicated region
        $region17: #{decoder_forward.2} parent=11 // pred_check
          %p878 = pneg %p262
        $region18: #{decoder_forward.2} parent=11 // pred_check_branch
          %880 = sbr.rel (%p878) target = $region20
        $region19: #{decoder_forward.2} parent=11 // pred_region
          %s882 = ssub.s32 16, 16
          %883 = vsyncadd [#allocation3], %s882
          %s885 = sshll.u32 [#allocation2], 4
          %s886 = int_to_ptr.vmem [resolvable:$true] %s885
          %888 = dma.hbm_to_vmem [thread:$0]  %s13, 16, %s886, [#allocation3]
        $region20: #{decoder_forward.2} parent=11 // pred_fallthru
          _
        // Predicated region
        $region21: #{decoder_forward.2} parent=11 // pred_check
          %p889 = pneg %p283
        $region22: #{decoder_forward.2} parent=11 // pred_check_branch
          %891 = sbr.rel (%p889) target = $region24
        $region23: #{decoder_forward.2} parent=11 // pred_region
          _
        $region24: #{decoder_forward.2} parent=11 // pred_fallthru
          _
        // Predicated region
        $region25: #{decoder_forward.2} parent=11 // pred_check
          %p892 = pneg %p304
        $region26: #{decoder_forward.2} parent=11 // pred_check_branch
          %894 = sbr.rel (%p892) target = $region28
        $region27: #{decoder_forward.2} parent=11 // pred_region
          %s896 = ssub.s32 16, 16
          %897 = vsyncadd [#allocation6], %s896
          %s899 = sshll.u32 [#allocation5], 4
          %s900 = int_to_ptr.vmem [resolvable:$true] %s899
          %902 = dma.hbm_to_vmem [thread:$0]  %s17, 16, %s900, [#allocation6]
        $region28: #{decoder_forward.2} parent=11 // pred_fallthru
          _
        // Predicated region
        $region29: #{decoder_forward.2} parent=11 // pred_check
          %p903 = pneg %p325
        $region30: #{decoder_forward.2} parent=11 // pred_check_branch
          %905 = sbr.rel (%p903) target = $region32
        $region31: #{decoder_forward.2} parent=11 // pred_region
          _
        $region32: #{decoder_forward.2} parent=11 // pred_fallthru
          _
        // Predicated region
        $region33: #{decoder_forward.2} parent=11 // pred_check
          %p906 = pneg %p346
        $region34: #{decoder_forward.2} parent=11 // pred_check_branch
          %908 = sbr.rel (%p906) target = $region36
        $region35: #{decoder_forward.2} parent=11 // pred_region
          %s910 = ssub.s32 16, 16
          %911 = vsyncadd [#allocation6], %s910
          %s913 = sshll.u32 [#allocation7], 4
          %s914 = int_to_ptr.vmem [resolvable:$true] %s913
          %916 = dma.hbm_to_vmem [thread:$0]  %s21, 16, %s914, [#allocation6]
        $region36: #{decoder_forward.2} parent=11 // pred_fallthru
          _
        // Predicated region
        $region37: #{decoder_forward.2} parent=11 // pred_check
          %p917 = pneg %p367
        $region38: #{decoder_forward.2} parent=11 // pred_check_branch
          %919 = sbr.rel (%p917) target = $region40
        $region39: #{decoder_forward.2} parent=11 // pred_region
          _
        $region40: #{decoder_forward.2} parent=11 // pred_fallthru
          _
        // Predicated region
        $region41: #{decoder_forward.2} parent=11 // pred_check
          %p920 = pneg %p388
        $region42: #{decoder_forward.2} parent=11 // pred_check_branch
          %922 = sbr.rel (%p920) target = $region44
        $region43: #{decoder_forward.2} parent=11 // pred_region
          %s924 = ssub.s32 16, 16
          %925 = vsyncadd [#allocation9], %s924
          %s927 = sshll.u32 [#allocation8], 4
          %s928 = int_to_ptr.vmem [resolvable:$true] %s927
          %930 = dma.hbm_to_vmem [thread:$0]  %s25, 16, %s928, [#allocation9]
        $region44: #{decoder_forward.2} parent=11 // pred_fallthru
          _
        // Predicated region
        $region45: #{decoder_forward.2} parent=11 // pred_check
          %p931 = pneg %p409
        $region46: #{decoder_forward.2} parent=11 // pred_check_branch
          %933 = sbr.rel (%p931) target = $region48
        $region47: #{decoder_forward.2} parent=11 // pred_region
          _
        $region48: #{decoder_forward.2} parent=11 // pred_fallthru
          _
        // Predicated region
        $region49: #{decoder_forward.2} parent=11 // pred_check
          %p934 = pneg %p430
        $region50: #{decoder_forward.2} parent=11 // pred_check_branch
          %936 = sbr.rel (%p934) target = $region52
        $region51: #{decoder_forward.2} parent=11 // pred_region
          %s938 = ssub.s32 16, 16
          %939 = vsyncadd [#allocation9], %s938
          %s941 = sshll.u32 [#allocation10], 4
          %s942 = int_to_ptr.vmem [resolvable:$true] %s941
          %944 = dma.hbm_to_vmem [thread:$0]  %s29, 16, %s942, [#allocation9]
        $region52: #{decoder_forward.2} parent=11 // pred_fallthru
          _
        // Predicated region
        $region53: #{decoder_forward.2} parent=11 // pred_check
          %p945 = pneg %p451
        $region54: #{decoder_forward.2} parent=11 // pred_check_branch
          %947 = sbr.rel (%p945) target = $region56
        $region55: #{decoder_forward.2} parent=11 // pred_region
          _
        $region56: #{decoder_forward.2} parent=11 // pred_fallthru
          _
        // Predicated region
        $region57: #{decoder_forward.2} parent=11 // pred_check
          %p948 = pneg %p472
        $region58: #{decoder_forward.2} parent=11 // pred_check_branch
          %950 = sbr.rel (%p948) target = $region60
        $region59: #{decoder_forward.2} parent=11 // pred_region
          %s952 = ssub.s32 16, 16
          %953 = vsyncadd [#allocation12], %s952
          %s955 = sshll.u32 [#allocation11], 4
          %s956 = int_to_ptr.vmem [resolvable:$true] %s955
          %958 = dma.hbm_to_vmem [thread:$0]  %s33, 16, %s956, [#allocation12]
        $region60: #{decoder_forward.2} parent=11 // pred_fallthru
          _
        // Predicated region
        $region61: #{decoder_forward.2} parent=11 // pred_check
          %p959 = pneg %p493
        $region62: #{decoder_forward.2} parent=11 // pred_check_branch
          %961 = sbr.rel (%p959) target = $region64
        $region63: #{decoder_forward.2} parent=11 // pred_region
          %s963 = ssub.s32 16, 16
          %964 = vsyncadd [#allocation12], %s963
          %s966 = sshll.u32 [#allocation13], 4
          %s967 = int_to_ptr.vmem [resolvable:$true] %s966
          %969 = dma.hbm_to_vmem [thread:$0]  %s35, 16, %s967, [#allocation12]
        $region64: #{decoder_forward.2} parent=11 // pred_fallthru
          _
        // Predicated region
        $region65: #{decoder_forward.2} parent=11 // pred_check
          %p970 = pneg %p514
        $region66: #{decoder_forward.2} parent=11 // pred_check_branch
          %972 = sbr.rel (%p970) target = $region68
        $region67: #{decoder_forward.2} parent=11 // pred_region
          %s974 = ssub.s32 16, 16
          %975 = vsyncadd [#allocation15], %s974
          %s977 = sshll.u32 [#allocation14], 4
          %s978 = int_to_ptr.vmem [resolvable:$true] %s977
          %980 = dma.hbm_to_vmem [thread:$0]  %s37, 16, %s978, [#allocation15]
        $region68: #{decoder_forward.2} parent=11 // pred_fallthru
          _
        // Predicated region
        $region69: #{decoder_forward.2} parent=11 // pred_check
          %p981 = pneg %p535
        $region70: #{decoder_forward.2} parent=11 // pred_check_branch
          %983 = sbr.rel (%p981) target = $region72
        $region71: #{decoder_forward.2} parent=11 // pred_region
          %s985 = ssub.s32 256, 256
          %986 = vsyncadd [#allocation15], %s985
          %s987 = sshll.u32 [#allocation16], 4
          %s988 = int_to_ptr.vmem [resolvable:$true] %s987
          %993 = dma.hbm_to_vmem [thread:$0]  %s39, 256, %s988, [#allocation15], 64, 64, 4
        $region72: #{decoder_forward.2} parent=11 // pred_fallthru
          _
        // Predicated region
        $region73: #{decoder_forward.2} parent=11 // pred_check
          %p994 = pneg %p556
        $region74: #{decoder_forward.2} parent=11 // pred_check_branch
          %996 = sbr.rel (%p994) target = $region76
        $region75: #{decoder_forward.2} parent=11 // pred_region
          %s998 = ssub.s32 16, 16
          %999 = vsyncadd [#allocation18], %s998
          %s1001 = sshll.u32 [#allocation17], 4
          %s1002 = int_to_ptr.vmem [resolvable:$true] %s1001
          %1004 = dma.hbm_to_vmem [thread:$0]  %s41, 16, %s1002, [#allocation18]
        $region76: #{decoder_forward.2} parent=11 // pred_fallthru
          _
        // Predicated region
        $region77: #{decoder_forward.2} parent=11 // pred_check
          %p1005 = pneg %p577
        $region78: #{decoder_forward.2} parent=11 // pred_check_branch
          %1007 = sbr.rel (%p1005) target = $region80
        $region79: #{decoder_forward.2} parent=11 // pred_region
          %s1009 = ssub.s32 256, 256
          %1010 = vsyncadd [#allocation18], %s1009
          %s1011 = sshll.u32 [#allocation19], 4
          %s1012 = int_to_ptr.vmem [resolvable:$true] %s1011
          %1017 = dma.hbm_to_vmem [thread:$0]  %s43, 256, %s1012, [#allocation18], 64, 64, 4
        $region80: #{decoder_forward.2} parent=11 // pred_fallthru
          _
        // Predicated region
        $region81: #{decoder_forward.2} parent=11 // pred_check
          %p1018 = pneg %p598
        $region82: #{decoder_forward.2} parent=11 // pred_check_branch
          %1020 = sbr.rel (%p1018) target = $region84
        $region83: #{decoder_forward.2} parent=11 // pred_region
          %s1022 = ssub.s32 16, 16
          %1023 = vsyncadd [#allocation21], %s1022
          %s1025 = sshll.u32 [#allocation20], 4
          %s1026 = int_to_ptr.vmem [resolvable:$true] %s1025
          %1028 = dma.hbm_to_vmem [thread:$0]  %s45, 16, %s1026, [#allocation21]
        $region84: #{decoder_forward.2} parent=11 // pred_fallthru
          _
        // Predicated region
        $region85: #{decoder_forward.2} parent=11 // pred_check
          %p1029 = pneg %p619
        $region86: #{decoder_forward.2} parent=11 // pred_check_branch
          %1031 = sbr.rel (%p1029) target = $region88
        $region87: #{decoder_forward.2} parent=11 // pred_region
          %s1033 = ssub.s32 256, 256
          %1034 = vsyncadd [#allocation21], %s1033
          %s1035 = sshll.u32 [#allocation22], 4
          %s1036 = int_to_ptr.vmem [resolvable:$true] %s1035
          %1041 = dma.hbm_to_vmem [thread:$0]  %s47, 256, %s1036, [#allocation21], 64, 64, 4
        $region88: #{decoder_forward.2} parent=11 // pred_fallthru
          _
        // Predicated region
        $region89: #{decoder_forward.2} parent=11 // pred_check
          %p1042 = pneg %p640
        $region90: #{decoder_forward.2} parent=11 // pred_check_branch
          %1044 = sbr.rel (%p1042) target = $region92
        $region91: #{decoder_forward.2} parent=11 // pred_region
          %s1046 = ssub.s32 16, 16
          %1047 = vsyncadd [#allocation24], %s1046
          %s1049 = sshll.u32 [#allocation23], 4
          %s1050 = int_to_ptr.vmem [resolvable:$true] %s1049
          %1052 = dma.hbm_to_vmem [thread:$0]  %s49, 16, %s1050, [#allocation24]
        $region92: #{decoder_forward.2} parent=11 // pred_fallthru
          _
        // Predicated region
        $region93: #{decoder_forward.2} parent=11 // pred_check
          %p1053 = pneg %p661
        $region94: #{decoder_forward.2} parent=11 // pred_check_branch
          %1055 = sbr.rel (%p1053) target = $region96
        $region95: #{decoder_forward.2} parent=11 // pred_region
          %s1057 = ssub.s32 16, 16
          %1058 = vsyncadd [#allocation24], %s1057
          %s1060 = sshll.u32 [#allocation25], 4
          %s1061 = int_to_ptr.vmem [resolvable:$true] %s1060
          %1063 = dma.hbm_to_vmem [thread:$0]  %s51, 16, %s1061, [#allocation24]
        $region96: #{decoder_forward.2} parent=11 // pred_fallthru
          _
        // Predicated region
        $region97: #{decoder_forward.2} parent=11 // pred_check
          %p1064 = pneg %p682
        $region98: #{decoder_forward.2} parent=11 // pred_check_branch
          %1066 = sbr.rel (%p1064) target = $region100
        $region99: #{decoder_forward.2} parent=11 // pred_region
          %s1068 = ssub.s32 16, 16
          %1069 = vsyncadd [#allocation27], %s1068
          %s1071 = sshll.u32 [#allocation26], 4
          %s1072 = int_to_ptr.vmem [resolvable:$true] %s1071
          %1074 = dma.hbm_to_vmem [thread:$0]  %s53, 16, %s1072, [#allocation27]
        $region100: #{decoder_forward.2} parent=11 // pred_fallthru
          _
        // Predicated region
        $region101: #{decoder_forward.2} parent=11 // pred_check
          %p1075 = pneg %p703
        $region102: #{decoder_forward.2} parent=11 // pred_check_branch
          %1077 = sbr.rel (%p1075) target = $region104
        $region103: #{decoder_forward.2} parent=11 // pred_region
          %s1079 = ssub.s32 16, 16
          %1080 = vsyncadd [#allocation27], %s1079
          %s1082 = sshll.u32 [#allocation28], 4
          %s1083 = int_to_ptr.vmem [resolvable:$true] %s1082
          %1085 = dma.hbm_to_vmem [thread:$0]  %s55, 16, %s1083, [#allocation27]
        $region104: #{decoder_forward.2} parent=11 // pred_fallthru
          _
        // Predicated region
        $region105: #{decoder_forward.2} parent=11 // pred_check
          %p1086 = pneg %p724
        $region106: #{decoder_forward.2} parent=11 // pred_check_branch
          %1088 = sbr.rel (%p1086) target = $region108
        $region107: #{decoder_forward.2} parent=11 // pred_region
          %s1090 = ssub.s32 16, 16
          %1091 = vsyncadd [#allocation30], %s1090
          %s1093 = sshll.u32 [#allocation29], 4
          %s1094 = int_to_ptr.vmem [resolvable:$true] %s1093
          %1096 = dma.hbm_to_vmem [thread:$0]  %s57, 16, %s1094, [#allocation30]
        $region108: #{decoder_forward.2} parent=11 // pred_fallthru
          _
        // Predicated region
        $region109: #{decoder_forward.2} parent=11 // pred_check
          %p1097 = pneg %p745
        $region110: #{decoder_forward.2} parent=11 // pred_check_branch
          %1099 = sbr.rel (%p1097) target = $region112
        $region111: #{decoder_forward.2} parent=11 // pred_region
          %s1101 = ssub.s32 256, 256
          %1102 = vsyncadd [#allocation30], %s1101
          %s1103 = sshll.u32 [#allocation31], 4
          %s1104 = int_to_ptr.vmem [resolvable:$true] %s1103
          %1109 = dma.hbm_to_vmem [thread:$0]  %s59, 256, %s1104, [#allocation30], 64, 64, 4
        $region112: #{decoder_forward.2} parent=11 // pred_fallthru
          _
        // Predicated region
        $region113: #{decoder_forward.2} parent=11 // pred_check
          %p1110 = pneg %p766
        $region114: #{decoder_forward.2} parent=11 // pred_check_branch
          %1112 = sbr.rel (%p1110) target = $region116
        $region115: #{decoder_forward.2} parent=11 // pred_region
          %s1114 = ssub.s32 16, 16
          %1115 = vsyncadd [#allocation33], %s1114
          %s1117 = sshll.u32 [#allocation32], 4
          %s1118 = int_to_ptr.vmem [resolvable:$true] %s1117
          %1120 = dma.hbm_to_vmem [thread:$0]  %s61, 16, %s1118, [#allocation33]
        $region116: #{decoder_forward.2} parent=11 // pred_fallthru
          _
        // Predicated region
        $region117: #{decoder_forward.2} parent=11 // pred_check
          %p1121 = pneg %p787
        $region118: #{decoder_forward.2} parent=11 // pred_check_branch
          %1123 = sbr.rel (%p1121) target = $region120
        $region119: #{decoder_forward.2} parent=11 // pred_region
          _
        $region120: #{decoder_forward.2} parent=11 // pred_fallthru
          _
        // Predicated region
        $region121: #{decoder_forward.2} parent=11 // pred_check
          %p1124 = pneg %p808
        $region122: #{decoder_forward.2} parent=11 // pred_check_branch
          %1126 = sbr.rel (%p1124) target = $region124
        $region123: #{decoder_forward.2} parent=11 // pred_region
          %s1128 = ssub.s32 16, 16
          %1129 = vsyncadd [#allocation33], %s1128
          %s1131 = sshll.u32 [#allocation34], 4
          %s1132 = int_to_ptr.vmem [resolvable:$true] %s1131
          %1134 = dma.hbm_to_vmem [thread:$0]  %s65, 16, %s1132, [#allocation33]
        $region124: #{decoder_forward.2} parent=11 // pred_fallthru
          _
      $region12: #{decoder_forward.2} parent=5 // pred_fallthru
        _
      %p1135 = scmp.lt.s32.totalorder %s90, 2
      // Predicated region
      $region125: #{decoder_forward.2} parent=5 // pred_check
        %p1136 = pneg %p1135
      $region126: #{decoder_forward.2} parent=5 // pred_check_branch
        %1138 = sbr.rel (%p1136) target = $region128
      $region127: #{decoder_forward.2} parent=5 // pred_region
        // Predicated region
        $region129: #{decoder_forward.2} parent=127 // pred_check
          %p1139 = pneg %p110
        $region130: #{decoder_forward.2} parent=127 // pred_check_branch
          %1141 = sbr.rel (%p1139) target = $region132
        $region131: #{decoder_forward.2} parent=127 // pred_region
          %p1142 = scmp.lt.s32.totalorder %s90, 1
          %s1143 = scalar_select %p1142, %s90, 1
          %s1144 = smul.addr %s1143, 8
          %s1145 = scalar_lea.vmem %s1, %s1144
        $region132: #{decoder_forward.2} parent=127 // pred_fallthru
          _
        // Predicated region
        $region133: #{decoder_forward.2} parent=127 // pred_check
          %p1146 = pneg %p136
        $region134: #{decoder_forward.2} parent=127 // pred_check_branch
          %1148 = sbr.rel (%p1146) target = $region136
        $region135: #{decoder_forward.2} parent=127 // pred_region
          %p1149 = scmp.lt.s32.totalorder %s90, 1
          %s1150 = scalar_select %p1149, %s90, 1
          %s1151 = smul.addr %s1150, 2
          %s1152 = smul.addr %s1151, 8
          %s1153 = scalar_lea.vmem %s3, %s1152
        $region136: #{decoder_forward.2} parent=127 // pred_fallthru
          _
        // Predicated region
        $region137: #{decoder_forward.2} parent=127 // pred_check
          %p1154 = pneg %p162
        $region138: #{decoder_forward.2} parent=127 // pred_check_branch
          %1156 = sbr.rel (%p1154) target = $region140
        $region139: #{decoder_forward.2} parent=127 // pred_region
          %p1157 = scmp.lt.s32.totalorder %s90, 1
          %s1158 = scalar_select %p1157, %s90, 1
          %s1159 = smul.addr %s1158, 8
          %s1160 = scalar_lea.vmem %s5, %s1159
        $region140: #{decoder_forward.2} parent=127 // pred_fallthru
          _
        // Predicated region
        $region141: #{decoder_forward.2} parent=127 // pred_check
          %p1161 = pneg %p188
        $region142: #{decoder_forward.2} parent=127 // pred_check_branch
          %1163 = sbr.rel (%p1161) target = $region144
        $region143: #{decoder_forward.2} parent=127 // pred_region
          %p1164 = scmp.lt.s32.totalorder %s90, 1
          %s1165 = scalar_select %p1164, %s90, 1
          %s1166 = smul.addr %s1165, 8
          %s1167 = scalar_lea.vmem %s7, %s1166
        $region144: #{decoder_forward.2} parent=127 // pred_fallthru
          _
        // Predicated region
        $region145: #{decoder_forward.2} parent=127 // pred_check
          %p1168 = pneg %p214
        $region146: #{decoder_forward.2} parent=127 // pred_check_branch
          %1170 = sbr.rel (%p1168) target = $region148
        $region147: #{decoder_forward.2} parent=127 // pred_region
          %p1171 = scmp.lt.s32.totalorder %s90, 1
          %s1172 = scalar_select %p1171, %s90, 1
          %s1173 = scalar_lea.vmem %s9, %s1172
        $region148: #{decoder_forward.2} parent=127 // pred_fallthru
          _
      $region128: #{decoder_forward.2} parent=5 // pred_fallthru
        _
      %p1174 = scmp.le.s32.totalorder 1, %s90
      %p1175 = scmp.lt.s32.totalorder %s90, 3
      %p1176 = pnand %p1174, %p1175
      %p1177 = pneg %p1176
      // Predicated region
      $region149: #{decoder_forward.2} parent=5 // pred_check
        _
      $region150: #{decoder_forward.2} parent=5 // pred_check_branch
        %1179 = sbr.rel (%p1176) target = $region152
      $region151: #{decoder_forward.2} parent=5 // pred_region
        %s1180 = ssub.s32 %s90, 1
        // Predicated region
        $region153: #{decoder_forward.2} parent=151 // pred_check
          %p1181 = pneg %p262
        $region154: #{decoder_forward.2} parent=151 // pred_check_branch
          %1183 = sbr.rel (%p1181) target = $region156
        $region155: #{decoder_forward.2} parent=151 // pred_region
          %1184 = dma.done [#allocation3], 16
        $region156: #{decoder_forward.2} parent=151 // pred_fallthru
          _
        // Predicated region
        $region157: #{decoder_forward.2} parent=151 // pred_check
          %p1185 = pneg %p304
        $region158: #{decoder_forward.2} parent=151 // pred_check_branch
          %1187 = sbr.rel (%p1185) target = $region160
        $region159: #{decoder_forward.2} parent=151 // pred_region
          %1188 = dma.done [#allocation6], 16
        $region160: #{decoder_forward.2} parent=151 // pred_fallthru
          _
        // Predicated region
        $region161: #{decoder_forward.2} parent=151 // pred_check
          %p1189 = pneg %p346
        $region162: #{decoder_forward.2} parent=151 // pred_check_branch
          %1191 = sbr.rel (%p1189) target = $region164
        $region163: #{decoder_forward.2} parent=151 // pred_region
          %1192 = dma.done [#allocation6], 16
        $region164: #{decoder_forward.2} parent=151 // pred_fallthru
          _
        // Predicated region
        $region165: #{decoder_forward.2} parent=151 // pred_check
          %p1193 = pneg %p388
        $region166: #{decoder_forward.2} parent=151 // pred_check_branch
          %1195 = sbr.rel (%p1193) target = $region168
        $region167: #{decoder_forward.2} parent=151 // pred_region
          %1196 = dma.done [#allocation9], 16
        $region168: #{decoder_forward.2} parent=151 // pred_fallthru
          _
        // Predicated region
        $region169: #{decoder_forward.2} parent=151 // pred_check
          %p1197 = pneg %p430
        $region170: #{decoder_forward.2} parent=151 // pred_check_branch
          %1199 = sbr.rel (%p1197) target = $region172
        $region171: #{decoder_forward.2} parent=151 // pred_region
          %1200 = dma.done [#allocation9], 16
        $region172: #{decoder_forward.2} parent=151 // pred_fallthru
          _
        // Predicated region
        $region173: #{decoder_forward.2} parent=151 // pred_check
          %p1201 = pneg %p472
        $region174: #{decoder_forward.2} parent=151 // pred_check_branch
          %1203 = sbr.rel (%p1201) target = $region176
        $region175: #{decoder_forward.2} parent=151 // pred_region
          %1204 = dma.done [#allocation12], 16
        $region176: #{decoder_forward.2} parent=151 // pred_fallthru
          _
        // Predicated region
        $region177: #{decoder_forward.2} parent=151 // pred_check
          %p1205 = pneg %p493
        $region178: #{decoder_forward.2} parent=151 // pred_check_branch
          %1207 = sbr.rel (%p1205) target = $region180
        $region179: #{decoder_forward.2} parent=151 // pred_region
          %1208 = dma.done [#allocation12], 16
        $region180: #{decoder_forward.2} parent=151 // pred_fallthru
          _
        // Predicated region
        $region181: #{decoder_forward.2} parent=151 // pred_check
          %p1209 = pneg %p514
        $region182: #{decoder_forward.2} parent=151 // pred_check_branch
          %1211 = sbr.rel (%p1209) target = $region184
        $region183: #{decoder_forward.2} parent=151 // pred_region
          %1212 = dma.done [#allocation15], 16
        $region184: #{decoder_forward.2} parent=151 // pred_fallthru
          _
        // Predicated region
        $region185: #{decoder_forward.2} parent=151 // pred_check
          %p1213 = pneg %p535
        $region186: #{decoder_forward.2} parent=151 // pred_check_branch
          %1215 = sbr.rel (%p1213) target = $region188
        $region187: #{decoder_forward.2} parent=151 // pred_region
          %1216 = dma.done [#allocation15], 256
        $region188: #{decoder_forward.2} parent=151 // pred_fallthru
          _
        // Predicated region
        $region189: #{decoder_forward.2} parent=151 // pred_check
          %p1217 = pneg %p556
        $region190: #{decoder_forward.2} parent=151 // pred_check_branch
          %1219 = sbr.rel (%p1217) target = $region192
        $region191: #{decoder_forward.2} parent=151 // pred_region
          %1220 = dma.done [#allocation18], 16
        $region192: #{decoder_forward.2} parent=151 // pred_fallthru
          _
        // Predicated region
        $region193: #{decoder_forward.2} parent=151 // pred_check
          %p1221 = pneg %p577
        $region194: #{decoder_forward.2} parent=151 // pred_check_branch
          %1223 = sbr.rel (%p1221) target = $region196
        $region195: #{decoder_forward.2} parent=151 // pred_region
          %1224 = dma.done [#allocation18], 256
        $region196: #{decoder_forward.2} parent=151 // pred_fallthru
          _
        // Predicated region
        $region197: #{decoder_forward.2} parent=151 // pred_check
          %p1225 = pneg %p598
        $region198: #{decoder_forward.2} parent=151 // pred_check_branch
          %1227 = sbr.rel (%p1225) target = $region200
        $region199: #{decoder_forward.2} parent=151 // pred_region
          %1228 = dma.done [#allocation21], 16
        $region200: #{decoder_forward.2} parent=151 // pred_fallthru
          _
        // Predicated region
        $region201: #{decoder_forward.2} parent=151 // pred_check
          %p1229 = pneg %p619
        $region202: #{decoder_forward.2} parent=151 // pred_check_branch
          %1231 = sbr.rel (%p1229) target = $region204
        $region203: #{decoder_forward.2} parent=151 // pred_region
          %1232 = dma.done [#allocation21], 256
        $region204: #{decoder_forward.2} parent=151 // pred_fallthru
          _
        // Predicated region
        $region205: #{decoder_forward.2} parent=151 // pred_check
          %p1233 = pneg %p640
        $region206: #{decoder_forward.2} parent=151 // pred_check_branch
          %1235 = sbr.rel (%p1233) target = $region208
        $region207: #{decoder_forward.2} parent=151 // pred_region
          %1236 = dma.done [#allocation24], 16
        $region208: #{decoder_forward.2} parent=151 // pred_fallthru
          _
        // Predicated region
        $region209: #{decoder_forward.2} parent=151 // pred_check
          %p1237 = pneg %p661
        $region210: #{decoder_forward.2} parent=151 // pred_check_branch
          %1239 = sbr.rel (%p1237) target = $region212
        $region211: #{decoder_forward.2} parent=151 // pred_region
          %1240 = dma.done [#allocation24], 16
        $region212: #{decoder_forward.2} parent=151 // pred_fallthru
          _
        // Predicated region
        $region213: #{decoder_forward.2} parent=151 // pred_check
          %p1241 = pneg %p682
        $region214: #{decoder_forward.2} parent=151 // pred_check_branch
          %1243 = sbr.rel (%p1241) target = $region216
        $region215: #{decoder_forward.2} parent=151 // pred_region
          %1244 = dma.done [#allocation27], 16
        $region216: #{decoder_forward.2} parent=151 // pred_fallthru
          _
        // Predicated region
        $region217: #{decoder_forward.2} parent=151 // pred_check
          %p1245 = pneg %p703
        $region218: #{decoder_forward.2} parent=151 // pred_check_branch
          %1247 = sbr.rel (%p1245) target = $region220
        $region219: #{decoder_forward.2} parent=151 // pred_region
          %1248 = dma.done [#allocation27], 16
        $region220: #{decoder_forward.2} parent=151 // pred_fallthru
          _
        // Predicated region
        $region221: #{decoder_forward.2} parent=151 // pred_check
          %p1249 = pneg %p724
        $region222: #{decoder_forward.2} parent=151 // pred_check_branch
          %1251 = sbr.rel (%p1249) target = $region224
        $region223: #{decoder_forward.2} parent=151 // pred_region
          %1252 = dma.done [#allocation30], 16
        $region224: #{decoder_forward.2} parent=151 // pred_fallthru
          _
        // Predicated region
        $region225: #{decoder_forward.2} parent=151 // pred_check
          %p1253 = pneg %p745
        $region226: #{decoder_forward.2} parent=151 // pred_check_branch
          %1255 = sbr.rel (%p1253) target = $region228
        $region227: #{decoder_forward.2} parent=151 // pred_region
          %1256 = dma.done [#allocation30], 256
        $region228: #{decoder_forward.2} parent=151 // pred_fallthru
          _
        // Predicated region
        $region229: #{decoder_forward.2} parent=151 // pred_check
          %p1257 = pneg %p766
        $region230: #{decoder_forward.2} parent=151 // pred_check_branch
          %1259 = sbr.rel (%p1257) target = $region232
        $region231: #{decoder_forward.2} parent=151 // pred_region
          %1260 = dma.done [#allocation33], 16
        $region232: #{decoder_forward.2} parent=151 // pred_fallthru
          _
        // Predicated region
        $region233: #{decoder_forward.2} parent=151 // pred_check
          %p1261 = pneg %p808
        $region234: #{decoder_forward.2} parent=151 // pred_check_branch
          %1263 = sbr.rel (%p1261) target = $region236
        $region235: #{decoder_forward.2} parent=151 // pred_region
          %1264 = dma.done [#allocation33], 16
        $region236: #{decoder_forward.2} parent=151 // pred_fallthru
          _
        %p1265 = scmp.lt.s32.totalorder %s95, 1
        %s1266 = scalar_select %p1265, %s95, 1
        %s1267 = smul.addr %s1266, 8
        %s1268 = scalar_lea.vmem %s1, %s1267
        %p1269 = pneg %p116
        %p1270 = pneg %p113
        %p1271 = scmp.lt.s32.totalorder %s95, 1
        %s1272 = scalar_select %p1271, %s95, 1
        %s1273 = smul.addr %s1272, 2
        %s1274 = smul.addr %s1273, 8
        %s1275 = scalar_lea.vmem %s3, %s1274
        %p1276 = pneg %p142
        %p1277 = pneg %p139
        %p1278 = scmp.lt.s32.totalorder %s95, 1
        %s1279 = scalar_select %p1278, %s95, 1
        %s1280 = smul.addr %s1279, 8
        %s1281 = scalar_lea.vmem %s5, %s1280
        %p1282 = pneg %p168
        %p1283 = pneg %p165
        %p1284 = scmp.lt.s32.totalorder %s95, 1
        %s1285 = scalar_select %p1284, %s95, 1
        %s1286 = smul.addr %s1285, 8
        %s1287 = scalar_lea.vmem %s7, %s1286
        %p1288 = pneg %p194
        %p1289 = pneg %p191
        %p1290 = scmp.lt.s32.totalorder %s95, 1
        %s1291 = scalar_select %p1290, %s95, 1
        %s1292 = scalar_lea.vmem %s9, %s1291
        %p1293 = pneg %p220
        %p1294 = pneg %p217
        %p1295 = pneg %p241
        %p1296 = pneg %p238
        %p1297 = pneg %p262
        %p1298 = pneg %p259
        %p1299 = pneg %p283
        %p1300 = pneg %p280
        %p1301 = pneg %p304
        %p1302 = pneg %p301
        %p1303 = pneg %p325
        %p1304 = pneg %p322
        %p1305 = pneg %p346
        %p1306 = pneg %p343
        %p1307 = pneg %p367
        %p1308 = pneg %p364
        %p1309 = pneg %p388
        %p1310 = pneg %p385
        %p1311 = pneg %p409
        %p1312 = pneg %p406
        %p1313 = pneg %p430
        %p1314 = pneg %p427
        %p1315 = pneg %p451
        %p1316 = pneg %p448
        %p1317 = pneg %p472
        %p1318 = pneg %p469
        %p1319 = pneg %p493
        %p1320 = pneg %p490
        %p1321 = pneg %p514
        %p1322 = pneg %p511
        %p1323 = pneg %p535
        %p1324 = pneg %p532
        %p1325 = pneg %p556
        %p1326 = pneg %p553
        %p1327 = pneg %p577
        %p1328 = pneg %p574
        %p1329 = pneg %p598
        %p1330 = pneg %p595
        %p1331 = pneg %p619
        %p1332 = pneg %p616
        %p1333 = pneg %p640
        %p1334 = pneg %p637
        %p1335 = pneg %p661
        %p1336 = pneg %p658
        %p1337 = pneg %p682
        %p1338 = pneg %p679
        %p1339 = pneg %p703
        %p1340 = pneg %p700
        %p1341 = pneg %p724
        %p1342 = pneg %p721
        %p1343 = pneg %p745
        %p1344 = pneg %p742
        %p1345 = pneg %p766
        %p1346 = pneg %p763
        %p1347 = pneg %p787
        %p1348 = pneg %p784
        %p1349 = pneg %p808
        %p1350 = pneg %p805
        %p1351 = pneg %p834
        %p1352 = pneg %p831
        %p1353 = scmp.lt.s32.totalorder %s95, 1
        %s1354 = scalar_select %p1353, %s95, 1
        %s1355 = smul.addr %s1354, 8
        %s1356 = scalar_lea.vmem %s67, %s1355
        %p1357 = pneg %p860
        %p1358 = pneg %p857
        %s1359 = sand.u32 %s847, 1
        %s1360 = scalar_lea.sflag [#allocation4], %s1359
        %s1361 = sand.u32 %s847, 1
        %s1362 = smul.addr %s1361, 8
        %s1363 = scalar_lea.vmem [#allocation35], %s1362
        %p1364 = scmp.lt.s32.totalorder %s95, 1
        %s1365 = scalar_select %p1364, %s95, 1
        %s1366 = smul.addr %s1365, 8
        %s1367 = scalar_lea.vmem %s1, %s1366
        %p1368 = scmp.lt.s32.totalorder %s95, 1
        %s1369 = scalar_select %p1368, %s95, 1
        %s1370 = smul.addr %s1369, 2
        %s1371 = smul.addr %s1370, 8
        %s1372 = scalar_lea.vmem %s3, %s1371
        %p1373 = scmp.lt.s32.totalorder %s95, 1
        %s1374 = scalar_select %p1373, %s95, 1
        %s1375 = smul.addr %s1374, 8
        %s1376 = scalar_lea.vmem %s5, %s1375
        %p1377 = scmp.lt.s32.totalorder %s95, 1
        %s1378 = scalar_select %p1377, %s95, 1
        %s1379 = smul.addr %s1378, 8
        %s1380 = scalar_lea.vmem %s7, %s1379
        %p1381 = scmp.lt.s32.totalorder %s95, 1
        %s1382 = scalar_select %p1381, %s95, 1
        %s1383 = scalar_lea.vmem %s9, %s1382
        %p1384 = scmp.lt.s32.totalorder %s95, 1
        %s1385 = scalar_select %p1384, %s95, 1
        %s1386 = smul.addr %s1385, 8
        %s1387 = scalar_lea.vmem %s67, %s1386
        %v1389 = vld [vmem:[%s1367] sm:$0xff]
        %v1390 = vld [vmem:[%s1372] sm:$0xff]
        %v1391 = vld [vmem:[%s1372 + $0x8] sm:$0xff]
        %v1392 = vld [vmem:[%s1376] sm:$0xff]
        %v1393 = vld [vmem:[%s1380] sm:$0xff]
        %v1394 = vld [vmem:[%s1383] sm:$0x1]
        %v1395 = vld [vmem:[%s11] sm:$0xf]
        %v1396 = vld [vmem:[%s11 + $0x4] sm:$0xf]
        %v1397 = vld [vmem:[%s11 + $0x8] sm:$0xf]
        %v1398 = vld [vmem:[%s11 + $0xc] sm:$0xf]
        %v1399 = vpack.c.bf16 %v1389, %v1389
        %v1400 = vld [vmem:[#allocation2] sm:$0x1]
        %v1402 = vlaneseq
        %v1403 = vshrl.u32 %v1402, 7
        %v1404 = vsub.s32 0, %v1403
        %v1405 = vrot.slane %v1400, %v1404
        %v1411 = vunpack.c.l.b16 %v1395
        %v1412 = vunpack.c.l.b16 %v1396
        %v1413 = vunpack.c.l.b16 %v1397
        %v1414 = vunpack.c.l.b16 %v1398
        %v1415 = vpack.c.b16 %v1412, %v1411
        %v1416 = vpack.c.b16 %v1414, %v1413
        %vm1419 = vcmask 261120
        %v1421 = vsel %vm1419, %v1399, 0
        %1423 = vmatprep.subr.bf16.mxu0 0
        %1424 = vmatpush1.bf16.msra.mxu0 %v1415
        %1425 = vmatprep.subr.bf16.mxu0 0
        %1426 = vmatpush1.bf16.msra.mxu0 %v1416
        %1427 = vmatprep.subr.bf16.mxu0 0
        %1428 = vmatpush1.bf16.msra.mxu0 0
        %1429 = vmatprep.subr.bf16.mxu0 0
        %1430 = vmatpush1.bf16.msra.mxu0 0
        %1431 = vmatprep.subr.bf16.mxu0 0
        %1432 = vmatpush1.bf16.msra.mxu0 0
        %1433 = vmatprep.subr.bf16.mxu0 0
        %1434 = vmatpush1.bf16.msra.mxu0 0
        %1435 = vmatprep.subr.bf16.mxu0 0
        %1436 = vmatpush1.bf16.msra.mxu0 0
        %1437 = vmatprep.subr.bf16.mxu0 0
        %1438 = vmatpush1.bf16.msra.mxu0 0
        %1439 = vmatprep.subr.bf16.mxu0 0
        %1440 = vmatpush1.bf16.msra.mxu0 0
        %1441 = vmatprep.subr.bf16.mxu0 0
        %1442 = vmatpush1.bf16.msra.mxu0 0
        %1443 = vmatprep.subr.bf16.mxu0 0
        %1444 = vmatpush1.bf16.msra.mxu0 0
        %1445 = vmatprep.subr.bf16.mxu0 0
        %1446 = vmatpush1.bf16.msra.mxu0 0
        %1447 = vmatprep.subr.bf16.mxu0 0
        %1448 = vmatpush1.bf16.msra.mxu0 0
        %1449 = vmatprep.subr.bf16.mxu0 0
        %1450 = vmatpush1.bf16.msra.mxu0 0
        %1451 = vmatprep.subr.bf16.mxu0 0
        %1452 = vmatpush1.bf16.msra.mxu0 0
        %1453 = vmatprep.subr.bf16.mxu0 0
        %1454 = vmatpush1.bf16.msra.mxu0 0
        %1455 = vmatprep.mubr.bf16.mxu0 0
        %1456 = vmatmul.mubr.bf16.gmra.mrb[0].mxu0 %v1421
        %v1457 = vpop.f32.mrb[0].mxu0
        %v1458 = vadd.f32 %v1405, %v1457
        %v1459 = vpop.f32.mrb[0].mxu0
        %v1460 = vpop.f32.mrb[0].mxu0
        %v1461 = vpop.f32.mrb[0].mxu0
        %1462 = vdwg.mxu0
        %v1463 = vmul.f32 %v1458, 0.35355338
        %v1464 = vpack.c.bf16 %v1463, %v1463
        %v1465 = vpack.c.bf16 %v1458, %v1458
        %1467 = vrot.lane.b32.xlu0 %v1465, 96
        %v1468 = vpop.permute.xlu0 %1467
        %vm1469 = vcmask 64512
        %v1471 = vsel %vm1469, %v1464, 0
        %v1474 = vsel %vm1469, %v1468, 0
        %1476 = vmatprep.subr.bf16.mxu0 0
        %1477 = vmatpush1.bf16.xpose.msra.mxu0 %v1474
        %1478 = vmatprep.subr.bf16.mxu0 0
        %1479 = vmatpush1.bf16.xpose.msra.mxu0 0
        %1480 = vmatprep.subr.bf16.mxu0 0
        %1481 = vmatpush1.bf16.xpose.msra.mxu0 0
        %1482 = vmatprep.subr.bf16.mxu0 0
        %1483 = vmatpush1.bf16.xpose.msra.mxu0 0
        %1484 = vmatprep.subr.bf16.mxu0 0
        %1485 = vmatpush1.bf16.xpose.msra.mxu0 0
        %1486 = vmatprep.subr.bf16.mxu0 0
        %1487 = vmatpush1.bf16.xpose.msra.mxu0 0
        %1488 = vmatprep.subr.bf16.mxu0 0
        %1489 = vmatpush1.bf16.xpose.msra.mxu0 0
        %1490 = vmatprep.subr.bf16.mxu0 0
        %1491 = vmatpush1.bf16.xpose.msra.mxu0 0
        %1492 = vmatprep.subr.bf16.mxu0 0
        %1493 = vmatpush1.bf16.xpose.msra.mxu0 0
        %1494 = vmatprep.subr.bf16.mxu0 0
        %1495 = vmatpush1.bf16.xpose.msra.mxu0 0
        %1496 = vmatprep.subr.bf16.mxu0 0
        %1497 = vmatpush1.bf16.xpose.msra.mxu0 0
        %1498 = vmatprep.subr.bf16.mxu0 0
        %1499 = vmatpush1.bf16.xpose.msra.mxu0 0
        %1500 = vmatprep.subr.bf16.mxu0 0
        %1501 = vmatpush1.bf16.xpose.msra.mxu0 0
        %1502 = vmatprep.subr.bf16.mxu0 0
        %1503 = vmatpush1.bf16.xpose.msra.mxu0 0
        %1504 = vmatprep.subr.bf16.mxu0 0
        %1505 = vmatpush1.bf16.xpose.msra.mxu0 0
        %1506 = vmatprep.subr.bf16.mxu0 0
        %1507 = vmatpush1.bf16.xpose.msra.mxu0 0
        %1508 = vmatprep.mubr.bf16.mxu0 0
        %1509 = vmatmul.mubr.bf16.gmra.mrb[0].mxu0 %v1471
        %v1510 = vpop.f32.mrb[0].mxu0
        %v1511 = vadd.f32 %v1393, %v1510
        %v1512 = vpop.f32.mrb[0].mxu0
        %v1513 = vpop.f32.mrb[0].mxu0
        %v1514 = vpop.f32.mrb[0].mxu0
        %1515 = vdwg.mxu0
        %v1516 = vsel %vm1469, %v1511, -inf
        %1517 = vmax.xlane.f32.xlu0 %v1516
        %v1518 = vpop.xlane.xlu0 %1517
        %v1519 = vsub.f32 %v1511, %v1518
        %v1520 = vmul.f32 %v1519, 1.442695
        %v1521 = vpow.pop %v1520
        %v1522 = vsel %vm1469, %v1521, 0.0
        %1523 = vadd.xlane.f32.xlu0 %v1522
        %v1524 = vpop.xlane.xlu0 %1523
        %v1525 = vrcp.pop %v1524
        %v1526 = vmul.f32 %v1521, %v1525
        %v1527 = vpack.c.bf16 %v1526, %v1526
        %1528 = vrot.lane.b32.xlu0 %v1465, 64
        %v1529 = vpop.permute.xlu0 %1528
        %v1531 = vsel %vm1469, %v1527, 0
        %vm1533 = vcmask 1043456
        %v1535 = vsel %vm1533, %v1529, 0
        %1537 = vmatprep.subr.bf16.mxu0 0
        %1538 = vmatpush1.bf16.msra.mxu0 %v1535
        %1539 = vmatprep.subr.bf16.mxu0 0
        %1540 = vmatpush1.bf16.msra.mxu0 0
        %1541 = vmatprep.subr.bf16.mxu0 0
        %1542 = vmatpush1.bf16.msra.mxu0 0
        %1543 = vmatprep.subr.bf16.mxu0 0
        %1544 = vmatpush1.bf16.msra.mxu0 0
        %1545 = vmatprep.subr.bf16.mxu0 0
        %1546 = vmatpush1.bf16.msra.mxu0 0
        %1547 = vmatprep.subr.bf16.mxu0 0
        %1548 = vmatpush1.bf16.msra.mxu0 0
        %1549 = vmatprep.subr.bf16.mxu0 0
        %1550 = vmatpush1.bf16.msra.mxu0 0
        %1551 = vmatprep.subr.bf16.mxu0 0
        %1552 = vmatpush1.bf16.msra.mxu0 0
        %1553 = vmatprep.subr.bf16.mxu0 0
        %1554 = vmatpush1.bf16.msra.mxu0 0
        %1555 = vmatprep.subr.bf16.mxu0 0
        %1556 = vmatpush1.bf16.msra.mxu0 0
        %1557 = vmatprep.subr.bf16.mxu0 0
        %1558 = vmatpush1.bf16.msra.mxu0 0
        %1559 = vmatprep.subr.bf16.mxu0 0
        %1560 = vmatpush1.bf16.msra.mxu0 0
        %1561 = vmatprep.subr.bf16.mxu0 0
        %1562 = vmatpush1.bf16.msra.mxu0 0
        %1563 = vmatprep.subr.bf16.mxu0 0
        %1564 = vmatpush1.bf16.msra.mxu0 0
        %1565 = vmatprep.subr.bf16.mxu0 0
        %1566 = vmatpush1.bf16.msra.mxu0 0
        %1567 = vmatprep.subr.bf16.mxu0 0
        %1568 = vmatpush1.bf16.msra.mxu0 0
        %1569 = vmatprep.mubr.bf16.mxu0 0
        %1570 = vmatmul.mubr.bf16.gmra.mrb[0].mxu0 %v1531
        %v1571 = vpop.f32.mrb[0].mxu0
        %v1572 = vadd.f32 0.0, %v1571
        %v1573 = vpop.f32.mrb[0].mxu0
        %v1574 = vpop.f32.mrb[0].mxu0
        %v1575 = vpop.f32.mrb[0].mxu0
        %1576 = vdwg.mxu0
        %1578 = vrot.lane.b32.xlu0 %v1464, 120
        %v1579 = vpop.permute.xlu0 %1578
        %1580 = vrot.lane.b32.xlu0 %v1465, 88
        %v1581 = vpop.permute.xlu0 %1580
        %v1583 = vsel %vm1469, %v1579, 0
        %v1586 = vsel %vm1469, %v1581, 0
        %1588 = vmatprep.subr.bf16.mxu0 0
        %1589 = vmatpush1.bf16.xpose.msra.mxu0 %v1586
        %1590 = vmatprep.subr.bf16.mxu0 0
        %1591 = vmatpush1.bf16.xpose.msra.mxu0 0
        %1592 = vmatprep.subr.bf16.mxu0 0
        %1593 = vmatpush1.bf16.xpose.msra.mxu0 0
        %1594 = vmatprep.subr.bf16.mxu0 0
        %1595 = vmatpush1.bf16.xpose.msra.mxu0 0
        %1596 = vmatprep.subr.bf16.mxu0 0
        %1597 = vmatpush1.bf16.xpose.msra.mxu0 0
        %1598 = vmatprep.subr.bf16.mxu0 0
        %1599 = vmatpush1.bf16.xpose.msra.mxu0 0
        %1600 = vmatprep.subr.bf16.mxu0 0
        %1601 = vmatpush1.bf16.xpose.msra.mxu0 0
        %1602 = vmatprep.subr.bf16.mxu0 0
        %1603 = vmatpush1.bf16.xpose.msra.mxu0 0
        %1604 = vmatprep.subr.bf16.mxu0 0
        %1605 = vmatpush1.bf16.xpose.msra.mxu0 0
        %1606 = vmatprep.subr.bf16.mxu0 0
        %1607 = vmatpush1.bf16.xpose.msra.mxu0 0
        %1608 = vmatprep.subr.bf16.mxu0 0
        %1609 = vmatpush1.bf16.xpose.msra.mxu0 0
        %1610 = vmatprep.subr.bf16.mxu0 0
        %1611 = vmatpush1.bf16.xpose.msra.mxu0 0
        %1612 = vmatprep.subr.bf16.mxu0 0
        %1613 = vmatpush1.bf16.xpose.msra.mxu0 0
        %1614 = vmatprep.subr.bf16.mxu0 0
        %1615 = vmatpush1.bf16.xpose.msra.mxu0 0
        %1616 = vmatprep.subr.bf16.mxu0 0
        %1617 = vmatpush1.bf16.xpose.msra.mxu0 0
        %1618 = vmatprep.subr.bf16.mxu0 0
        %1619 = vmatpush1.bf16.xpose.msra.mxu0 0
        %1620 = vmatprep.mubr.bf16.mxu0 0
        %1621 = vmatmul.mubr.bf16.gmra.mrb[0].mxu0 %v1583
        %v1622 = vpop.f32.mrb[0].mxu0
        %v1623 = vadd.f32 %v1393, %v1622
        %v1624 = vpop.f32.mrb[0].mxu0
        %v1625 = vpop.f32.mrb[0].mxu0
        %v1626 = vpop.f32.mrb[0].mxu0
        %1627 = vdwg.mxu0
        %v1628 = vsel %vm1469, %v1623, -inf
        %1629 = vmax.xlane.f32.xlu0 %v1628
        %v1630 = vpop.xlane.xlu0 %1629
        %v1631 = vsub.f32 %v1623, %v1630
        %v1632 = vmul.f32 %v1631, 1.442695
        %v1633 = vpow.pop %v1632
        %v1634 = vsel %vm1469, %v1633, 0.0
        %1635 = vadd.xlane.f32.xlu0 %v1634
        %v1636 = vpop.xlane.xlu0 %1635
        %v1637 = vrcp.pop %v1636
        %v1638 = vmul.f32 %v1633, %v1637
        %v1639 = vpack.c.bf16 %v1638, %v1638
        %1640 = vrot.lane.b32.xlu0 %v1465, 56
        %v1641 = vpop.permute.xlu0 %1640
        %v1643 = vsel %vm1469, %v1639, 0
        %v1646 = vsel %vm1533, %v1641, 0
        %1648 = vmatprep.subr.bf16.mxu0 0
        %1649 = vmatpush1.bf16.msra.mxu0 %v1646
        %1650 = vmatprep.subr.bf16.mxu0 0
        %1651 = vmatpush1.bf16.msra.mxu0 0
        %1652 = vmatprep.subr.bf16.mxu0 0
        %1653 = vmatpush1.bf16.msra.mxu0 0
        %1654 = vmatprep.subr.bf16.mxu0 0
        %1655 = vmatpush1.bf16.msra.mxu0 0
        %1656 = vmatprep.subr.bf16.mxu0 0
        %1657 = vmatpush1.bf16.msra.mxu0 0
        %1658 = vmatprep.subr.bf16.mxu0 0
        %1659 = vmatpush1.bf16.msra.mxu0 0
        %1660 = vmatprep.subr.bf16.mxu0 0
        %1661 = vmatpush1.bf16.msra.mxu0 0
        %1662 = vmatprep.subr.bf16.mxu0 0
        %1663 = vmatpush1.bf16.msra.mxu0 0
        %1664 = vmatprep.subr.bf16.mxu0 0
        %1665 = vmatpush1.bf16.msra.mxu0 0
        %1666 = vmatprep.subr.bf16.mxu0 0
        %1667 = vmatpush1.bf16.msra.mxu0 0
        %1668 = vmatprep.subr.bf16.mxu0 0
        %1669 = vmatpush1.bf16.msra.mxu0 0
        %1670 = vmatprep.subr.bf16.mxu0 0
        %1671 = vmatpush1.bf16.msra.mxu0 0
        %1672 = vmatprep.subr.bf16.mxu0 0
        %1673 = vmatpush1.bf16.msra.mxu0 0
        %1674 = vmatprep.subr.bf16.mxu0 0
        %1675 = vmatpush1.bf16.msra.mxu0 0
        %1676 = vmatprep.subr.bf16.mxu0 0
        %1677 = vmatpush1.bf16.msra.mxu0 0
        %1678 = vmatprep.subr.bf16.mxu0 0
        %1679 = vmatpush1.bf16.msra.mxu0 0
        %1680 = vmatprep.mubr.bf16.mxu0 0
        %1681 = vmatmul.mubr.bf16.gmra.mrb[0].mxu0 %v1643
        %v1682 = vpop.f32.mrb[0].mxu0
        %v1683 = vadd.f32 0.0, %v1682
        %v1684 = vpop.f32.mrb[0].mxu0
        %v1685 = vpop.f32.mrb[0].mxu0
        %v1686 = vpop.f32.mrb[0].mxu0
        %1687 = vdwg.mxu0
        %1688 = vrot.lane.b32.xlu0 %v1464, 112
        %v1689 = vpop.permute.xlu0 %1688
        %1690 = vrot.lane.b32.xlu0 %v1465, 80
        %v1691 = vpop.permute.xlu0 %1690
        %v1693 = vsel %vm1469, %v1689, 0
        %v1696 = vsel %vm1469, %v1691, 0
        %1698 = vmatprep.subr.bf16.mxu0 0
        %1699 = vmatpush1.bf16.xpose.msra.mxu0 %v1696
        %1700 = vmatprep.subr.bf16.mxu0 0
        %1701 = vmatpush1.bf16.xpose.msra.mxu0 0
        %1702 = vmatprep.subr.bf16.mxu0 0
        %1703 = vmatpush1.bf16.xpose.msra.mxu0 0
        %1704 = vmatprep.subr.bf16.mxu0 0
        %1705 = vmatpush1.bf16.xpose.msra.mxu0 0
        %1706 = vmatprep.subr.bf16.mxu0 0
        %1707 = vmatpush1.bf16.xpose.msra.mxu0 0
        %1708 = vmatprep.subr.bf16.mxu0 0
        %1709 = vmatpush1.bf16.xpose.msra.mxu0 0
        %1710 = vmatprep.subr.bf16.mxu0 0
        %1711 = vmatpush1.bf16.xpose.msra.mxu0 0
        %1712 = vmatprep.subr.bf16.mxu0 0
        %1713 = vmatpush1.bf16.xpose.msra.mxu0 0
        %1714 = vmatprep.subr.bf16.mxu0 0
        %1715 = vmatpush1.bf16.xpose.msra.mxu0 0
        %1716 = vmatprep.subr.bf16.mxu0 0
        %1717 = vmatpush1.bf16.xpose.msra.mxu0 0
        %1718 = vmatprep.subr.bf16.mxu0 0
        %1719 = vmatpush1.bf16.xpose.msra.mxu0 0
        %1720 = vmatprep.subr.bf16.mxu0 0
        %1721 = vmatpush1.bf16.xpose.msra.mxu0 0
        %1722 = vmatprep.subr.bf16.mxu0 0
        %1723 = vmatpush1.bf16.xpose.msra.mxu0 0
        %1724 = vmatprep.subr.bf16.mxu0 0
        %1725 = vmatpush1.bf16.xpose.msra.mxu0 0
        %1726 = vmatprep.subr.bf16.mxu0 0
        %1727 = vmatpush1.bf16.xpose.msra.mxu0 0
        %1728 = vmatprep.subr.bf16.mxu0 0
        %1729 = vmatpush1.bf16.xpose.msra.mxu0 0
        %1730 = vmatprep.mubr.bf16.mxu0 0
        %1731 = vmatmul.mubr.bf16.gmra.mrb[0].mxu0 %v1693
        %v1732 = vpop.f32.mrb[0].mxu0
        %v1733 = vadd.f32 %v1393, %v1732
        %v1734 = vpop.f32.mrb[0].mxu0
        %v1735 = vpop.f32.mrb[0].mxu0
        %v1736 = vpop.f32.mrb[0].mxu0
        %1737 = vdwg.mxu0
        %v1738 = vsel %vm1469, %v1733, -inf
        %1739 = vmax.xlane.f32.xlu0 %v1738
        %v1740 = vpop.xlane.xlu0 %1739
        %v1741 = vsub.f32 %v1733, %v1740
        %v1742 = vmul.f32 %v1741, 1.442695
        %v1743 = vpow.pop %v1742
        %v1744 = vsel %vm1469, %v1743, 0.0
        %1745 = vadd.xlane.f32.xlu0 %v1744
        %v1746 = vpop.xlane.xlu0 %1745
        %v1747 = vrcp.pop %v1746
        %v1748 = vmul.f32 %v1743, %v1747
        %v1749 = vpack.c.bf16 %v1748, %v1748
        %1750 = vrot.lane.b32.xlu0 %v1465, 48
        %v1751 = vpop.permute.xlu0 %1750
        %v1753 = vsel %vm1469, %v1749, 0
        %v1756 = vsel %vm1533, %v1751, 0
        %1758 = vmatprep.subr.bf16.mxu0 0
        %1759 = vmatpush1.bf16.msra.mxu0 %v1756
        %1760 = vmatprep.subr.bf16.mxu0 0
        %1761 = vmatpush1.bf16.msra.mxu0 0
        %1762 = vmatprep.subr.bf16.mxu0 0
        %1763 = vmatpush1.bf16.msra.mxu0 0
        %1764 = vmatprep.subr.bf16.mxu0 0
        %1765 = vmatpush1.bf16.msra.mxu0 0
        %1766 = vmatprep.subr.bf16.mxu0 0
        %1767 = vmatpush1.bf16.msra.mxu0 0
        %1768 = vmatprep.subr.bf16.mxu0 0
        %1769 = vmatpush1.bf16.msra.mxu0 0
        %1770 = vmatprep.subr.bf16.mxu0 0
        %1771 = vmatpush1.bf16.msra.mxu0 0
        %1772 = vmatprep.subr.bf16.mxu0 0
        %1773 = vmatpush1.bf16.msra.mxu0 0
        %1774 = vmatprep.subr.bf16.mxu0 0
        %1775 = vmatpush1.bf16.msra.mxu0 0
        %1776 = vmatprep.subr.bf16.mxu0 0
        %1777 = vmatpush1.bf16.msra.mxu0 0
        %1778 = vmatprep.subr.bf16.mxu0 0
        %1779 = vmatpush1.bf16.msra.mxu0 0
        %1780 = vmatprep.subr.bf16.mxu0 0
        %1781 = vmatpush1.bf16.msra.mxu0 0
        %1782 = vmatprep.subr.bf16.mxu0 0
        %1783 = vmatpush1.bf16.msra.mxu0 0
        %1784 = vmatprep.subr.bf16.mxu0 0
        %1785 = vmatpush1.bf16.msra.mxu0 0
        %1786 = vmatprep.subr.bf16.mxu0 0
        %1787 = vmatpush1.bf16.msra.mxu0 0
        %1788 = vmatprep.subr.bf16.mxu0 0
        %1789 = vmatpush1.bf16.msra.mxu0 0
        %1790 = vmatprep.mubr.bf16.mxu0 0
        %1791 = vmatmul.mubr.bf16.gmra.mrb[0].mxu0 %v1753
        %v1792 = vpop.f32.mrb[0].mxu0
        %v1793 = vadd.f32 0.0, %v1792
        %v1794 = vpop.f32.mrb[0].mxu0
        %v1795 = vpop.f32.mrb[0].mxu0
        %v1796 = vpop.f32.mrb[0].mxu0
        %1797 = vdwg.mxu0
        %1798 = vrot.lane.b32.xlu0 %v1464, 104
        %v1799 = vpop.permute.xlu0 %1798
        %1800 = vrot.lane.b32.xlu0 %v1465, 72
        %v1801 = vpop.permute.xlu0 %1800
        %v1803 = vsel %vm1469, %v1799, 0
        %v1806 = vsel %vm1469, %v1801, 0
        %1808 = vmatprep.subr.bf16.mxu0 0
        %1809 = vmatpush1.bf16.xpose.msra.mxu0 %v1806
        %1810 = vmatprep.subr.bf16.mxu0 0
        %1811 = vmatpush1.bf16.xpose.msra.mxu0 0
        %1812 = vmatprep.subr.bf16.mxu0 0
        %1813 = vmatpush1.bf16.xpose.msra.mxu0 0
        %1814 = vmatprep.subr.bf16.mxu0 0
        %1815 = vmatpush1.bf16.xpose.msra.mxu0 0
        %1816 = vmatprep.subr.bf16.mxu0 0
        %1817 = vmatpush1.bf16.xpose.msra.mxu0 0
        %1818 = vmatprep.subr.bf16.mxu0 0
        %1819 = vmatpush1.bf16.xpose.msra.mxu0 0
        %1820 = vmatprep.subr.bf16.mxu0 0
        %1821 = vmatpush1.bf16.xpose.msra.mxu0 0
        %1822 = vmatprep.subr.bf16.mxu0 0
        %1823 = vmatpush1.bf16.xpose.msra.mxu0 0
        %1824 = vmatprep.subr.bf16.mxu0 0
        %1825 = vmatpush1.bf16.xpose.msra.mxu0 0
        %1826 = vmatprep.subr.bf16.mxu0 0
        %1827 = vmatpush1.bf16.xpose.msra.mxu0 0
        %1828 = vmatprep.subr.bf16.mxu0 0
        %1829 = vmatpush1.bf16.xpose.msra.mxu0 0
        %1830 = vmatprep.subr.bf16.mxu0 0
        %1831 = vmatpush1.bf16.xpose.msra.mxu0 0
        %1832 = vmatprep.subr.bf16.mxu0 0
        %1833 = vmatpush1.bf16.xpose.msra.mxu0 0
        %1834 = vmatprep.subr.bf16.mxu0 0
        %1835 = vmatpush1.bf16.xpose.msra.mxu0 0
        %1836 = vmatprep.subr.bf16.mxu0 0
        %1837 = vmatpush1.bf16.xpose.msra.mxu0 0
        %1838 = vmatprep.subr.bf16.mxu0 0
        %1839 = vmatpush1.bf16.xpose.msra.mxu0 0
        %1840 = vmatprep.mubr.bf16.mxu0 0
        %1841 = vmatmul.mubr.bf16.gmra.mrb[0].mxu0 %v1803
        %v1842 = vpop.f32.mrb[0].mxu0
        %v1843 = vadd.f32 %v1393, %v1842
        %v1844 = vpop.f32.mrb[0].mxu0
        %v1845 = vpop.f32.mrb[0].mxu0
        %v1846 = vpop.f32.mrb[0].mxu0
        %1847 = vdwg.mxu0
        %v1848 = vsel %vm1469, %v1843, -inf
        %1849 = vmax.xlane.f32.xlu0 %v1848
        %v1850 = vpop.xlane.xlu0 %1849
        %v1851 = vsub.f32 %v1843, %v1850
        %v1852 = vmul.f32 %v1851, 1.442695
        %v1853 = vpow.pop %v1852
        %v1854 = vsel %vm1469, %v1853, 0.0
        %1855 = vadd.xlane.f32.xlu0 %v1854
        %v1856 = vpop.xlane.xlu0 %1855
        %v1857 = vrcp.pop %v1856
        %v1858 = vmul.f32 %v1853, %v1857
        %v1859 = vpack.c.bf16 %v1858, %v1858
        %1860 = vrot.lane.b32.xlu0 %v1465, 40
        %v1861 = vpop.permute.xlu0 %1860
        %v1863 = vsel %vm1469, %v1859, 0
        %v1866 = vsel %vm1533, %v1861, 0
        %1868 = vmatprep.subr.bf16.mxu0 0
        %1869 = vmatpush1.bf16.msra.mxu0 %v1866
        %1870 = vmatprep.subr.bf16.mxu0 0
        %1871 = vmatpush1.bf16.msra.mxu0 0
        %1872 = vmatprep.subr.bf16.mxu0 0
        %1873 = vmatpush1.bf16.msra.mxu0 0
        %1874 = vmatprep.subr.bf16.mxu0 0
        %1875 = vmatpush1.bf16.msra.mxu0 0
        %1876 = vmatprep.subr.bf16.mxu0 0
        %1877 = vmatpush1.bf16.msra.mxu0 0
        %1878 = vmatprep.subr.bf16.mxu0 0
        %1879 = vmatpush1.bf16.msra.mxu0 0
        %1880 = vmatprep.subr.bf16.mxu0 0
        %1881 = vmatpush1.bf16.msra.mxu0 0
        %1882 = vmatprep.subr.bf16.mxu0 0
        %1883 = vmatpush1.bf16.msra.mxu0 0
        %1884 = vmatprep.subr.bf16.mxu0 0
        %1885 = vmatpush1.bf16.msra.mxu0 0
        %1886 = vmatprep.subr.bf16.mxu0 0
        %1887 = vmatpush1.bf16.msra.mxu0 0
        %1888 = vmatprep.subr.bf16.mxu0 0
        %1889 = vmatpush1.bf16.msra.mxu0 0
        %1890 = vmatprep.subr.bf16.mxu0 0
        %1891 = vmatpush1.bf16.msra.mxu0 0
        %1892 = vmatprep.subr.bf16.mxu0 0
        %1893 = vmatpush1.bf16.msra.mxu0 0
        %1894 = vmatprep.subr.bf16.mxu0 0
        %1895 = vmatpush1.bf16.msra.mxu0 0
        %1896 = vmatprep.subr.bf16.mxu0 0
        %1897 = vmatpush1.bf16.msra.mxu0 0
        %1898 = vmatprep.subr.bf16.mxu0 0
        %1899 = vmatpush1.bf16.msra.mxu0 0
        %1900 = vmatprep.mubr.bf16.mxu0 0
        %1901 = vmatmul.mubr.bf16.gmra.mrb[0].mxu0 %v1863
        %v1902 = vpop.f32.mrb[0].mxu0
        %v1903 = vadd.f32 0.0, %v1902
        %v1904 = vpop.f32.mrb[0].mxu0
        %v1905 = vpop.f32.mrb[0].mxu0
        %v1906 = vpop.f32.mrb[0].mxu0
        %1907 = vdwg.mxu0
        %1909 = vrot.lane.b32.xlu0 %v1683, 8
        %v1910 = vpop.permute.xlu0 %1909
        %1913 = vrot.lane.b32.xlu0 %v1793, 16
        %v1914 = vpop.permute.xlu0 %1913
        %1917 = vrot.lane.b32.xlu0 %v1903, 24
        %v1918 = vpop.permute.xlu0 %1917
        %v1920 = vsel %vm1469, %v1572, %v1910
        %vm1921 = vcmask 130048
        %v1922 = vsel %vm1921, %v1920, %v1914
        %vm1923 = vcmask 195584
        %v1924 = vsel %vm1923, %v1922, %v1918
        %v1925 = vld [vmem:[%s15] sm:$0xf]
        %v1926 = vld [vmem:[%s15 + $0x4] sm:$0xf]
        %v1927 = vld [vmem:[%s15 + $0x8] sm:$0xf]
        %v1928 = vld [vmem:[%s15 + $0xc] sm:$0xf]
        %v1929 = vpack.c.bf16 %v1924, %v1924
        %v1930 = vld [vmem:[#allocation5] sm:$0x1]
        %v1932 = vlaneseq
        %v1933 = vshrl.u32 %v1932, 7
        %v1934 = vsub.s32 0, %v1933
        %v1935 = vrot.slane %v1930, %v1934
        %v1941 = vunpack.c.l.b16 %v1925
        %v1942 = vunpack.c.l.b16 %v1926
        %v1943 = vunpack.c.l.b16 %v1927
        %v1944 = vunpack.c.l.b16 %v1928
        %v1945 = vpack.c.b16 %v1942, %v1941
        %v1946 = vpack.c.b16 %v1944, %v1943
        %v1950 = vsel %vm1419, %v1929, 0
        %1952 = vmatprep.subr.bf16.mxu0 0
        %1953 = vmatpush1.bf16.msra.mxu0 %v1945
        %1954 = vmatprep.subr.bf16.mxu0 0
        %1955 = vmatpush1.bf16.msra.mxu0 %v1946
        %1956 = vmatprep.subr.bf16.mxu0 0
        %1957 = vmatpush1.bf16.msra.mxu0 0
        %1958 = vmatprep.subr.bf16.mxu0 0
        %1959 = vmatpush1.bf16.msra.mxu0 0
        %1960 = vmatprep.subr.bf16.mxu0 0
        %1961 = vmatpush1.bf16.msra.mxu0 0
        %1962 = vmatprep.subr.bf16.mxu0 0
        %1963 = vmatpush1.bf16.msra.mxu0 0
        %1964 = vmatprep.subr.bf16.mxu0 0
        %1965 = vmatpush1.bf16.msra.mxu0 0
        %1966 = vmatprep.subr.bf16.mxu0 0
        %1967 = vmatpush1.bf16.msra.mxu0 0
        %1968 = vmatprep.subr.bf16.mxu0 0
        %1969 = vmatpush1.bf16.msra.mxu0 0
        %1970 = vmatprep.subr.bf16.mxu0 0
        %1971 = vmatpush1.bf16.msra.mxu0 0
        %1972 = vmatprep.subr.bf16.mxu0 0
        %1973 = vmatpush1.bf16.msra.mxu0 0
        %1974 = vmatprep.subr.bf16.mxu0 0
        %1975 = vmatpush1.bf16.msra.mxu0 0
        %1976 = vmatprep.subr.bf16.mxu0 0
        %1977 = vmatpush1.bf16.msra.mxu0 0
        %1978 = vmatprep.subr.bf16.mxu0 0
        %1979 = vmatpush1.bf16.msra.mxu0 0
        %1980 = vmatprep.subr.bf16.mxu0 0
        %1981 = vmatpush1.bf16.msra.mxu0 0
        %1982 = vmatprep.subr.bf16.mxu0 0
        %1983 = vmatpush1.bf16.msra.mxu0 0
        %1984 = vmatprep.mubr.bf16.mxu0 0
        %1985 = vmatmul.mubr.bf16.gmra.mrb[0].mxu0 %v1950
        %v1986 = vpop.f32.mrb[0].mxu0
        %v1987 = vadd.f32 %v1935, %v1986
        %v1988 = vpop.f32.mrb[0].mxu0
        %v1989 = vpop.f32.mrb[0].mxu0
        %v1990 = vpop.f32.mrb[0].mxu0
        %1991 = vdwg.mxu0
        %v1992 = vadd.f32 %v1987, %v1389
        %v1993 = vsel %vm1419, %v1992, 0.0
        %1994 = vadd.xlane.f32.xlu0 %v1993
        %v1995 = vpop.xlane.xlu0 %1994
        %v1996 = vrcp.pop 32.0
        %v1997 = vmul.f32 %v1995, %v1996
        %v1998 = vsub.f32 %v1992, %v1997
        %v1999 = vmul.f32 %v1998, %v1998
        %v2000 = vsel %vm1419, %v1999, 0.0
        %2001 = vadd.xlane.f32.xlu0 %v2000
        %v2002 = vpop.xlane.xlu0 %2001
        %v2003 = vmul.f32 %v2002, %v1996
        %v2004 = vadd.f32 %v2003, 1e-06
        %v2005 = vrsqrt.pop %v2004
        %v2006 = vmul.f32 %v1998, %v2005
        %v2007 = vld [vmem:[%s19] sm:$0x1]
        %v2009 = vlaneseq
        %v2010 = vshrl.u32 %v2009, 7
        %v2011 = vsub.s32 0, %v2010
        %v2012 = vrot.slane %v2007, %v2011
        %v2014 = vmul.f32 %v2006, %v2012
        %v2015 = vld [vmem:[#allocation7] sm:$0x1]
        %v2017 = vlaneseq
        %v2018 = vshrl.u32 %v2017, 7
        %v2019 = vsub.s32 0, %v2018
        %v2020 = vrot.slane %v2015, %v2019
        %v2022 = vadd.f32 %v2014, %v2020
        %v2023 = vld [vmem:[%s23] sm:$0xf]
        %v2024 = vld [vmem:[%s23 + $0x4] sm:$0xf]
        %v2025 = vld [vmem:[%s23 + $0x8] sm:$0xf]
        %v2026 = vld [vmem:[%s23 + $0xc] sm:$0xf]
        %v2027 = vpack.c.bf16 %v2022, %v2022
        %v2028 = vld [vmem:[#allocation8] sm:$0x1]
        %v2030 = vlaneseq
        %v2031 = vshrl.u32 %v2030, 7
        %v2032 = vsub.s32 0, %v2031
        %v2033 = vrot.slane %v2028, %v2032
        %v2039 = vunpack.c.l.b16 %v2023
        %v2040 = vunpack.c.l.b16 %v2024
        %v2041 = vunpack.c.l.b16 %v2025
        %v2042 = vunpack.c.l.b16 %v2026
        %v2043 = vpack.c.b16 %v2040, %v2039
        %v2044 = vpack.c.b16 %v2042, %v2041
        %v2048 = vsel %vm1419, %v2027, 0
        %2050 = vmatprep.subr.bf16.mxu0 0
        %2051 = vmatpush1.bf16.msra.mxu0 %v2043
        %2052 = vmatprep.subr.bf16.mxu0 0
        %2053 = vmatpush1.bf16.msra.mxu0 %v2044
        %2054 = vmatprep.subr.bf16.mxu0 0
        %2055 = vmatpush1.bf16.msra.mxu0 0
        %2056 = vmatprep.subr.bf16.mxu0 0
        %2057 = vmatpush1.bf16.msra.mxu0 0
        %2058 = vmatprep.subr.bf16.mxu0 0
        %2059 = vmatpush1.bf16.msra.mxu0 0
        %2060 = vmatprep.subr.bf16.mxu0 0
        %2061 = vmatpush1.bf16.msra.mxu0 0
        %2062 = vmatprep.subr.bf16.mxu0 0
        %2063 = vmatpush1.bf16.msra.mxu0 0
        %2064 = vmatprep.subr.bf16.mxu0 0
        %2065 = vmatpush1.bf16.msra.mxu0 0
        %2066 = vmatprep.subr.bf16.mxu0 0
        %2067 = vmatpush1.bf16.msra.mxu0 0
        %2068 = vmatprep.subr.bf16.mxu0 0
        %2069 = vmatpush1.bf16.msra.mxu0 0
        %2070 = vmatprep.subr.bf16.mxu0 0
        %2071 = vmatpush1.bf16.msra.mxu0 0
        %2072 = vmatprep.subr.bf16.mxu0 0
        %2073 = vmatpush1.bf16.msra.mxu0 0
        %2074 = vmatprep.subr.bf16.mxu0 0
        %2075 = vmatpush1.bf16.msra.mxu0 0
        %2076 = vmatprep.subr.bf16.mxu0 0
        %2077 = vmatpush1.bf16.msra.mxu0 0
        %2078 = vmatprep.subr.bf16.mxu0 0
        %2079 = vmatpush1.bf16.msra.mxu0 0
        %2080 = vmatprep.subr.bf16.mxu0 0
        %2081 = vmatpush1.bf16.msra.mxu0 0
        %2082 = vmatprep.mubr.bf16.mxu0 0
        %2083 = vmatmul.mubr.bf16.gmra.mrb[0].mxu0 %v2048
        %v2084 = vpop.f32.mrb[0].mxu0
        %v2085 = vadd.f32 %v2033, %v2084
        %v2086 = vpop.f32.mrb[0].mxu0
        %v2087 = vpop.f32.mrb[0].mxu0
        %v2088 = vpop.f32.mrb[0].mxu0
        %2089 = vdwg.mxu0
        %v2090 = vld [vmem:[%s27] sm:$0xf]
        %v2091 = vld [vmem:[%s27 + $0x4] sm:$0xf]
        %v2092 = vld [vmem:[%s27 + $0x8] sm:$0xf]
        %v2093 = vld [vmem:[%s27 + $0xc] sm:$0xf]
        %v2094 = vpack.c.bf16 %v1392, %v1392
        %v2095 = vld [vmem:[#allocation10] sm:$0x1]
        %v2097 = vlaneseq
        %v2098 = vshrl.u32 %v2097, 7
        %v2099 = vsub.s32 0, %v2098
        %v2100 = vrot.slane %v2095, %v2099
        %v2106 = vunpack.c.l.b16 %v2090
        %v2107 = vunpack.c.l.b16 %v2091
        %v2108 = vunpack.c.l.b16 %v2092
        %v2109 = vunpack.c.l.b16 %v2093
        %v2110 = vpack.c.b16 %v2107, %v2106
        %v2111 = vpack.c.b16 %v2109, %v2108
        %v2115 = vsel %vm1419, %v2094, 0
        %2117 = vmatprep.subr.bf16.mxu0 0
        %2118 = vmatpush1.bf16.msra.mxu0 %v2110
        %2119 = vmatprep.subr.bf16.mxu0 0
        %2120 = vmatpush1.bf16.msra.mxu0 %v2111
        %2121 = vmatprep.subr.bf16.mxu0 0
        %2122 = vmatpush1.bf16.msra.mxu0 0
        %2123 = vmatprep.subr.bf16.mxu0 0
        %2124 = vmatpush1.bf16.msra.mxu0 0
        %2125 = vmatprep.subr.bf16.mxu0 0
        %2126 = vmatpush1.bf16.msra.mxu0 0
        %2127 = vmatprep.subr.bf16.mxu0 0
        %2128 = vmatpush1.bf16.msra.mxu0 0
        %2129 = vmatprep.subr.bf16.mxu0 0
        %2130 = vmatpush1.bf16.msra.mxu0 0
        %2131 = vmatprep.subr.bf16.mxu0 0
        %2132 = vmatpush1.bf16.msra.mxu0 0
        %2133 = vmatprep.subr.bf16.mxu0 0
        %2134 = vmatpush1.bf16.msra.mxu0 0
        %2135 = vmatprep.subr.bf16.mxu0 0
        %2136 = vmatpush1.bf16.msra.mxu0 0
        %2137 = vmatprep.subr.bf16.mxu0 0
        %2138 = vmatpush1.bf16.msra.mxu0 0
        %2139 = vmatprep.subr.bf16.mxu0 0
        %2140 = vmatpush1.bf16.msra.mxu0 0
        %2141 = vmatprep.subr.bf16.mxu0 0
        %2142 = vmatpush1.bf16.msra.mxu0 0
        %2143 = vmatprep.subr.bf16.mxu0 0
        %2144 = vmatpush1.bf16.msra.mxu0 0
        %2145 = vmatprep.subr.bf16.mxu0 0
        %2146 = vmatpush1.bf16.msra.mxu0 0
        %2147 = vmatprep.subr.bf16.mxu0 0
        %2148 = vmatpush1.bf16.msra.mxu0 0
        %2149 = vmatprep.mubr.bf16.mxu0 0
        %2150 = vmatmul.mubr.bf16.gmra.mrb[0].mxu0 %v2115
        %v2151 = vpop.f32.mrb[0].mxu0
        %v2152 = vadd.f32 %v2100, %v2151
        %v2153 = vpop.f32.mrb[0].mxu0
        %v2154 = vpop.f32.mrb[0].mxu0
        %v2155 = vpop.f32.mrb[0].mxu0
        %2156 = vdwg.mxu0
        %v2157 = vmul.f32 %v2085, 0.35355338
        %v2158 = vpack.c.bf16 %v2157, %v2157
        %v2159 = vpack.c.bf16 %v2152, %v2152
        %v2161 = vsel %vm1469, %v2158, 0
        %v2164 = vsel %vm1469, %v2159, 0
        %2166 = vmatprep.subr.bf16.mxu0 0
        %2167 = vmatpush1.bf16.xpose.msra.mxu0 %v2164
        %2168 = vmatprep.subr.bf16.mxu0 0
        %2169 = vmatpush1.bf16.xpose.msra.mxu0 0
        %2170 = vmatprep.subr.bf16.mxu0 0
        %2171 = vmatpush1.bf16.xpose.msra.mxu0 0
        %2172 = vmatprep.subr.bf16.mxu0 0
        %2173 = vmatpush1.bf16.xpose.msra.mxu0 0
        %2174 = vmatprep.subr.bf16.mxu0 0
        %2175 = vmatpush1.bf16.xpose.msra.mxu0 0
        %2176 = vmatprep.subr.bf16.mxu0 0
        %2177 = vmatpush1.bf16.xpose.msra.mxu0 0
        %2178 = vmatprep.subr.bf16.mxu0 0
        %2179 = vmatpush1.bf16.xpose.msra.mxu0 0
        %2180 = vmatprep.subr.bf16.mxu0 0
        %2181 = vmatpush1.bf16.xpose.msra.mxu0 0
        %2182 = vmatprep.subr.bf16.mxu0 0
        %2183 = vmatpush1.bf16.xpose.msra.mxu0 0
        %2184 = vmatprep.subr.bf16.mxu0 0
        %2185 = vmatpush1.bf16.xpose.msra.mxu0 0
        %2186 = vmatprep.subr.bf16.mxu0 0
        %2187 = vmatpush1.bf16.xpose.msra.mxu0 0
        %2188 = vmatprep.subr.bf16.mxu0 0
        %2189 = vmatpush1.bf16.xpose.msra.mxu0 0
        %2190 = vmatprep.subr.bf16.mxu0 0
        %2191 = vmatpush1.bf16.xpose.msra.mxu0 0
        %2192 = vmatprep.subr.bf16.mxu0 0
        %2193 = vmatpush1.bf16.xpose.msra.mxu0 0
        %2194 = vmatprep.subr.bf16.mxu0 0
        %2195 = vmatpush1.bf16.xpose.msra.mxu0 0
        %2196 = vmatprep.subr.bf16.mxu0 0
        %2197 = vmatpush1.bf16.xpose.msra.mxu0 0
        %2198 = vmatprep.mubr.bf16.mxu0 0
        %2199 = vmatmul.mubr.bf16.gmra.mrb[0].mxu0 %v2161
        %v2200 = vpop.f32.mrb[0].mxu0
        %v2201 = vadd.f32 0.0, %v2200
        %v2202 = vpop.f32.mrb[0].mxu0
        %v2203 = vpop.f32.mrb[0].mxu0
        %v2204 = vpop.f32.mrb[0].mxu0
        %2205 = vdwg.mxu0
        %v2206 = vsel %vm1469, %v2201, -inf
        %2207 = vmax.xlane.f32.xlu0 %v2206
        %v2208 = vpop.xlane.xlu0 %2207
        %v2209 = vsub.f32 %v2201, %v2208
        %v2210 = vmul.f32 %v2209, 1.442695
        %v2211 = vpow.pop %v2210
        %v2212 = vsel %vm1469, %v2211, 0.0
        %2213 = vadd.xlane.f32.xlu0 %v2212
        %v2214 = vpop.xlane.xlu0 %2213
        %v2215 = vrcp.pop %v2214
        %v2216 = vmul.f32 %v2211, %v2215
        %v2217 = vpack.c.bf16 %v2216, %v2216
        %2219 = vrot.lane.b32.xlu0 %v2159, 96
        %v2220 = vpop.permute.xlu0 %2219
        %v2222 = vsel %vm1469, %v2217, 0
        %v2225 = vsel %vm1533, %v2220, 0
        %2227 = vmatprep.subr.bf16.mxu0 0
        %2228 = vmatpush1.bf16.msra.mxu0 %v2225
        %2229 = vmatprep.subr.bf16.mxu0 0
        %2230 = vmatpush1.bf16.msra.mxu0 0
        %2231 = vmatprep.subr.bf16.mxu0 0
        %2232 = vmatpush1.bf16.msra.mxu0 0
        %2233 = vmatprep.subr.bf16.mxu0 0
        %2234 = vmatpush1.bf16.msra.mxu0 0
        %2235 = vmatprep.subr.bf16.mxu0 0
        %2236 = vmatpush1.bf16.msra.mxu0 0
        %2237 = vmatprep.subr.bf16.mxu0 0
        %2238 = vmatpush1.bf16.msra.mxu0 0
        %2239 = vmatprep.subr.bf16.mxu0 0
        %2240 = vmatpush1.bf16.msra.mxu0 0
        %2241 = vmatprep.subr.bf16.mxu0 0
        %2242 = vmatpush1.bf16.msra.mxu0 0
        %2243 = vmatprep.subr.bf16.mxu0 0
        %2244 = vmatpush1.bf16.msra.mxu0 0
        %2245 = vmatprep.subr.bf16.mxu0 0
        %2246 = vmatpush1.bf16.msra.mxu0 0
        %2247 = vmatprep.subr.bf16.mxu0 0
        %2248 = vmatpush1.bf16.msra.mxu0 0
        %2249 = vmatprep.subr.bf16.mxu0 0
        %2250 = vmatpush1.bf16.msra.mxu0 0
        %2251 = vmatprep.subr.bf16.mxu0 0
        %2252 = vmatpush1.bf16.msra.mxu0 0
        %2253 = vmatprep.subr.bf16.mxu0 0
        %2254 = vmatpush1.bf16.msra.mxu0 0
        %2255 = vmatprep.subr.bf16.mxu0 0
        %2256 = vmatpush1.bf16.msra.mxu0 0
        %2257 = vmatprep.subr.bf16.mxu0 0
        %2258 = vmatpush1.bf16.msra.mxu0 0
        %2259 = vmatprep.mubr.bf16.mxu0 0
        %2260 = vmatmul.mubr.bf16.gmra.mrb[0].mxu0 %v2222
        %v2261 = vpop.f32.mrb[0].mxu0
        %v2262 = vadd.f32 0.0, %v2261
        %v2263 = vpop.f32.mrb[0].mxu0
        %v2264 = vpop.f32.mrb[0].mxu0
        %v2265 = vpop.f32.mrb[0].mxu0
        %2266 = vdwg.mxu0
        %2268 = vrot.lane.b32.xlu0 %v2158, 120
        %v2269 = vpop.permute.xlu0 %2268
        %2270 = vrot.lane.b32.xlu0 %v2159, 120
        %v2271 = vpop.permute.xlu0 %2270
        %v2273 = vsel %vm1469, %v2269, 0
        %v2276 = vsel %vm1469, %v2271, 0
        %2278 = vmatprep.subr.bf16.mxu0 0
        %2279 = vmatpush1.bf16.xpose.msra.mxu0 %v2276
        %2280 = vmatprep.subr.bf16.mxu0 0
        %2281 = vmatpush1.bf16.xpose.msra.mxu0 0
        %2282 = vmatprep.subr.bf16.mxu0 0
        %2283 = vmatpush1.bf16.xpose.msra.mxu0 0
        %2284 = vmatprep.subr.bf16.mxu0 0
        %2285 = vmatpush1.bf16.xpose.msra.mxu0 0
        %2286 = vmatprep.subr.bf16.mxu0 0
        %2287 = vmatpush1.bf16.xpose.msra.mxu0 0
        %2288 = vmatprep.subr.bf16.mxu0 0
        %2289 = vmatpush1.bf16.xpose.msra.mxu0 0
        %2290 = vmatprep.subr.bf16.mxu0 0
        %2291 = vmatpush1.bf16.xpose.msra.mxu0 0
        %2292 = vmatprep.subr.bf16.mxu0 0
        %2293 = vmatpush1.bf16.xpose.msra.mxu0 0
        %2294 = vmatprep.subr.bf16.mxu0 0
        %2295 = vmatpush1.bf16.xpose.msra.mxu0 0
        %2296 = vmatprep.subr.bf16.mxu0 0
        %2297 = vmatpush1.bf16.xpose.msra.mxu0 0
        %2298 = vmatprep.subr.bf16.mxu0 0
        %2299 = vmatpush1.bf16.xpose.msra.mxu0 0
        %2300 = vmatprep.subr.bf16.mxu0 0
        %2301 = vmatpush1.bf16.xpose.msra.mxu0 0
        %2302 = vmatprep.subr.bf16.mxu0 0
        %2303 = vmatpush1.bf16.xpose.msra.mxu0 0
        %2304 = vmatprep.subr.bf16.mxu0 0
        %2305 = vmatpush1.bf16.xpose.msra.mxu0 0
        %2306 = vmatprep.subr.bf16.mxu0 0
        %2307 = vmatpush1.bf16.xpose.msra.mxu0 0
        %2308 = vmatprep.subr.bf16.mxu0 0
        %2309 = vmatpush1.bf16.xpose.msra.mxu0 0
        %2310 = vmatprep.mubr.bf16.mxu0 0
        %2311 = vmatmul.mubr.bf16.gmra.mrb[0].mxu0 %v2273
        %v2312 = vpop.f32.mrb[0].mxu0
        %v2313 = vadd.f32 0.0, %v2312
        %v2314 = vpop.f32.mrb[0].mxu0
        %v2315 = vpop.f32.mrb[0].mxu0
        %v2316 = vpop.f32.mrb[0].mxu0
        %2317 = vdwg.mxu0
        %v2318 = vsel %vm1469, %v2313, -inf
        %2319 = vmax.xlane.f32.xlu0 %v2318
        %v2320 = vpop.xlane.xlu0 %2319
        %v2321 = vsub.f32 %v2313, %v2320
        %v2322 = vmul.f32 %v2321, 1.442695
        %v2323 = vpow.pop %v2322
        %v2324 = vsel %vm1469, %v2323, 0.0
        %2325 = vadd.xlane.f32.xlu0 %v2324
        %v2326 = vpop.xlane.xlu0 %2325
        %v2327 = vrcp.pop %v2326
        %v2328 = vmul.f32 %v2323, %v2327
        %v2329 = vpack.c.bf16 %v2328, %v2328
        %2330 = vrot.lane.b32.xlu0 %v2159, 88
        %v2331 = vpop.permute.xlu0 %2330
        %v2333 = vsel %vm1469, %v2329, 0
        %v2336 = vsel %vm1533, %v2331, 0
        %2338 = vmatprep.subr.bf16.mxu0 0
        %2339 = vmatpush1.bf16.msra.mxu0 %v2336
        %2340 = vmatprep.subr.bf16.mxu0 0
        %2341 = vmatpush1.bf16.msra.mxu0 0
        %2342 = vmatprep.subr.bf16.mxu0 0
        %2343 = vmatpush1.bf16.msra.mxu0 0
        %2344 = vmatprep.subr.bf16.mxu0 0
        %2345 = vmatpush1.bf16.msra.mxu0 0
        %2346 = vmatprep.subr.bf16.mxu0 0
        %2347 = vmatpush1.bf16.msra.mxu0 0
        %2348 = vmatprep.subr.bf16.mxu0 0
        %2349 = vmatpush1.bf16.msra.mxu0 0
        %2350 = vmatprep.subr.bf16.mxu0 0
        %2351 = vmatpush1.bf16.msra.mxu0 0
        %2352 = vmatprep.subr.bf16.mxu0 0
        %2353 = vmatpush1.bf16.msra.mxu0 0
        %2354 = vmatprep.subr.bf16.mxu0 0
        %2355 = vmatpush1.bf16.msra.mxu0 0
        %2356 = vmatprep.subr.bf16.mxu0 0
        %2357 = vmatpush1.bf16.msra.mxu0 0
        %2358 = vmatprep.subr.bf16.mxu0 0
        %2359 = vmatpush1.bf16.msra.mxu0 0
        %2360 = vmatprep.subr.bf16.mxu0 0
        %2361 = vmatpush1.bf16.msra.mxu0 0
        %2362 = vmatprep.subr.bf16.mxu0 0
        %2363 = vmatpush1.bf16.msra.mxu0 0
        %2364 = vmatprep.subr.bf16.mxu0 0
        %2365 = vmatpush1.bf16.msra.mxu0 0
        %2366 = vmatprep.subr.bf16.mxu0 0
        %2367 = vmatpush1.bf16.msra.mxu0 0
        %2368 = vmatprep.subr.bf16.mxu0 0
        %2369 = vmatpush1.bf16.msra.mxu0 0
        %2370 = vmatprep.mubr.bf16.mxu0 0
        %2371 = vmatmul.mubr.bf16.gmra.mrb[0].mxu0 %v2333
        %v2372 = vpop.f32.mrb[0].mxu0
        %v2373 = vadd.f32 0.0, %v2372
        %v2374 = vpop.f32.mrb[0].mxu0
        %v2375 = vpop.f32.mrb[0].mxu0
        %v2376 = vpop.f32.mrb[0].mxu0
        %2377 = vdwg.mxu0
        %2378 = vrot.lane.b32.xlu0 %v2158, 112
        %v2379 = vpop.permute.xlu0 %2378
        %2380 = vrot.lane.b32.xlu0 %v2159, 112
        %v2381 = vpop.permute.xlu0 %2380
        %v2383 = vsel %vm1469, %v2379, 0
        %v2386 = vsel %vm1469, %v2381, 0
        %2388 = vmatprep.subr.bf16.mxu0 0
        %2389 = vmatpush1.bf16.xpose.msra.mxu0 %v2386
        %2390 = vmatprep.subr.bf16.mxu0 0
        %2391 = vmatpush1.bf16.xpose.msra.mxu0 0
        %2392 = vmatprep.subr.bf16.mxu0 0
        %2393 = vmatpush1.bf16.xpose.msra.mxu0 0
        %2394 = vmatprep.subr.bf16.mxu0 0
        %2395 = vmatpush1.bf16.xpose.msra.mxu0 0
        %2396 = vmatprep.subr.bf16.mxu0 0
        %2397 = vmatpush1.bf16.xpose.msra.mxu0 0
        %2398 = vmatprep.subr.bf16.mxu0 0
        %2399 = vmatpush1.bf16.xpose.msra.mxu0 0
        %2400 = vmatprep.subr.bf16.mxu0 0
        %2401 = vmatpush1.bf16.xpose.msra.mxu0 0
        %2402 = vmatprep.subr.bf16.mxu0 0
        %2403 = vmatpush1.bf16.xpose.msra.mxu0 0
        %2404 = vmatprep.subr.bf16.mxu0 0
        %2405 = vmatpush1.bf16.xpose.msra.mxu0 0
        %2406 = vmatprep.subr.bf16.mxu0 0
        %2407 = vmatpush1.bf16.xpose.msra.mxu0 0
        %2408 = vmatprep.subr.bf16.mxu0 0
        %2409 = vmatpush1.bf16.xpose.msra.mxu0 0
        %2410 = vmatprep.subr.bf16.mxu0 0
        %2411 = vmatpush1.bf16.xpose.msra.mxu0 0
        %2412 = vmatprep.subr.bf16.mxu0 0
        %2413 = vmatpush1.bf16.xpose.msra.mxu0 0
        %2414 = vmatprep.subr.bf16.mxu0 0
        %2415 = vmatpush1.bf16.xpose.msra.mxu0 0
        %2416 = vmatprep.subr.bf16.mxu0 0
        %2417 = vmatpush1.bf16.xpose.msra.mxu0 0
        %2418 = vmatprep.subr.bf16.mxu0 0
        %2419 = vmatpush1.bf16.xpose.msra.mxu0 0
        %2420 = vmatprep.mubr.bf16.mxu0 0
        %2421 = vmatmul.mubr.bf16.gmra.mrb[0].mxu0 %v2383
        %v2422 = vpop.f32.mrb[0].mxu0
        %v2423 = vadd.f32 0.0, %v2422
        %v2424 = vpop.f32.mrb[0].mxu0
        %v2425 = vpop.f32.mrb[0].mxu0
        %v2426 = vpop.f32.mrb[0].mxu0
        %2427 = vdwg.mxu0
        %v2428 = vsel %vm1469, %v2423, -inf
        %2429 = vmax.xlane.f32.xlu0 %v2428
        %v2430 = vpop.xlane.xlu0 %2429
        %v2431 = vsub.f32 %v2423, %v2430
        %v2432 = vmul.f32 %v2431, 1.442695
        %v2433 = vpow.pop %v2432
        %v2434 = vsel %vm1469, %v2433, 0.0
        %2435 = vadd.xlane.f32.xlu0 %v2434
        %v2436 = vpop.xlane.xlu0 %2435
        %v2437 = vrcp.pop %v2436
        %v2438 = vmul.f32 %v2433, %v2437
        %v2439 = vpack.c.bf16 %v2438, %v2438
        %2440 = vrot.lane.b32.xlu0 %v2159, 80
        %v2441 = vpop.permute.xlu0 %2440
        %v2443 = vsel %vm1469, %v2439, 0
        %v2446 = vsel %vm1533, %v2441, 0
        %2448 = vmatprep.subr.bf16.mxu0 0
        %2449 = vmatpush1.bf16.msra.mxu0 %v2446
        %2450 = vmatprep.subr.bf16.mxu0 0
        %2451 = vmatpush1.bf16.msra.mxu0 0
        %2452 = vmatprep.subr.bf16.mxu0 0
        %2453 = vmatpush1.bf16.msra.mxu0 0
        %2454 = vmatprep.subr.bf16.mxu0 0
        %2455 = vmatpush1.bf16.msra.mxu0 0
        %2456 = vmatprep.subr.bf16.mxu0 0
        %2457 = vmatpush1.bf16.msra.mxu0 0
        %2458 = vmatprep.subr.bf16.mxu0 0
        %2459 = vmatpush1.bf16.msra.mxu0 0
        %2460 = vmatprep.subr.bf16.mxu0 0
        %2461 = vmatpush1.bf16.msra.mxu0 0
        %2462 = vmatprep.subr.bf16.mxu0 0
        %2463 = vmatpush1.bf16.msra.mxu0 0
        %2464 = vmatprep.subr.bf16.mxu0 0
        %2465 = vmatpush1.bf16.msra.mxu0 0
        %2466 = vmatprep.subr.bf16.mxu0 0
        %2467 = vmatpush1.bf16.msra.mxu0 0
        %2468 = vmatprep.subr.bf16.mxu0 0
        %2469 = vmatpush1.bf16.msra.mxu0 0
        %2470 = vmatprep.subr.bf16.mxu0 0
        %2471 = vmatpush1.bf16.msra.mxu0 0
        %2472 = vmatprep.subr.bf16.mxu0 0
        %2473 = vmatpush1.bf16.msra.mxu0 0
        %2474 = vmatprep.subr.bf16.mxu0 0
        %2475 = vmatpush1.bf16.msra.mxu0 0
        %2476 = vmatprep.subr.bf16.mxu0 0
        %2477 = vmatpush1.bf16.msra.mxu0 0
        %2478 = vmatprep.subr.bf16.mxu0 0
        %2479 = vmatpush1.bf16.msra.mxu0 0
        %2480 = vmatprep.mubr.bf16.mxu0 0
        %2481 = vmatmul.mubr.bf16.gmra.mrb[0].mxu0 %v2443
        %v2482 = vpop.f32.mrb[0].mxu0
        %v2483 = vadd.f32 0.0, %v2482
        %v2484 = vpop.f32.mrb[0].mxu0
        %v2485 = vpop.f32.mrb[0].mxu0
        %v2486 = vpop.f32.mrb[0].mxu0
        %2487 = vdwg.mxu0
        %2488 = vrot.lane.b32.xlu0 %v2158, 104
        %v2489 = vpop.permute.xlu0 %2488
        %2490 = vrot.lane.b32.xlu0 %v2159, 104
        %v2491 = vpop.permute.xlu0 %2490
        %v2493 = vsel %vm1469, %v2489, 0
        %v2496 = vsel %vm1469, %v2491, 0
        %2498 = vmatprep.subr.bf16.mxu0 0
        %2499 = vmatpush1.bf16.xpose.msra.mxu0 %v2496
        %2500 = vmatprep.subr.bf16.mxu0 0
        %2501 = vmatpush1.bf16.xpose.msra.mxu0 0
        %2502 = vmatprep.subr.bf16.mxu0 0
        %2503 = vmatpush1.bf16.xpose.msra.mxu0 0
        %2504 = vmatprep.subr.bf16.mxu0 0
        %2505 = vmatpush1.bf16.xpose.msra.mxu0 0
        %2506 = vmatprep.subr.bf16.mxu0 0
        %2507 = vmatpush1.bf16.xpose.msra.mxu0 0
        %2508 = vmatprep.subr.bf16.mxu0 0
        %2509 = vmatpush1.bf16.xpose.msra.mxu0 0
        %2510 = vmatprep.subr.bf16.mxu0 0
        %2511 = vmatpush1.bf16.xpose.msra.mxu0 0
        %2512 = vmatprep.subr.bf16.mxu0 0
        %2513 = vmatpush1.bf16.xpose.msra.mxu0 0
        %2514 = vmatprep.subr.bf16.mxu0 0
        %2515 = vmatpush1.bf16.xpose.msra.mxu0 0
        %2516 = vmatprep.subr.bf16.mxu0 0
        %2517 = vmatpush1.bf16.xpose.msra.mxu0 0
        %2518 = vmatprep.subr.bf16.mxu0 0
        %2519 = vmatpush1.bf16.xpose.msra.mxu0 0
        %2520 = vmatprep.subr.bf16.mxu0 0
        %2521 = vmatpush1.bf16.xpose.msra.mxu0 0
        %2522 = vmatprep.subr.bf16.mxu0 0
        %2523 = vmatpush1.bf16.xpose.msra.mxu0 0
        %2524 = vmatprep.subr.bf16.mxu0 0
        %2525 = vmatpush1.bf16.xpose.msra.mxu0 0
        %2526 = vmatprep.subr.bf16.mxu0 0
        %2527 = vmatpush1.bf16.xpose.msra.mxu0 0
        %2528 = vmatprep.subr.bf16.mxu0 0
        %2529 = vmatpush1.bf16.xpose.msra.mxu0 0
        %2530 = vmatprep.mubr.bf16.mxu0 0
        %2531 = vmatmul.mubr.bf16.gmra.mrb[0].mxu0 %v2493
        %v2532 = vpop.f32.mrb[0].mxu0
        %v2533 = vadd.f32 0.0, %v2532
        %v2534 = vpop.f32.mrb[0].mxu0
        %v2535 = vpop.f32.mrb[0].mxu0
        %v2536 = vpop.f32.mrb[0].mxu0
        %2537 = vdwg.mxu0
        %v2538 = vsel %vm1469, %v2533, -inf
        %2539 = vmax.xlane.f32.xlu0 %v2538
        %v2540 = vpop.xlane.xlu0 %2539
        %v2541 = vsub.f32 %v2533, %v2540
        %v2542 = vmul.f32 %v2541, 1.442695
        %v2543 = vpow.pop %v2542
        %v2544 = vsel %vm1469, %v2543, 0.0
        %2545 = vadd.xlane.f32.xlu0 %v2544
        %v2546 = vpop.xlane.xlu0 %2545
        %v2547 = vrcp.pop %v2546
        %v2548 = vmul.f32 %v2543, %v2547
        %v2549 = vpack.c.bf16 %v2548, %v2548
        %2550 = vrot.lane.b32.xlu0 %v2159, 72
        %v2551 = vpop.permute.xlu0 %2550
        %v2553 = vsel %vm1469, %v2549, 0
        %v2556 = vsel %vm1533, %v2551, 0
        %2558 = vmatprep.subr.bf16.mxu0 0
        %2559 = vmatpush1.bf16.msra.mxu0 %v2556
        %2560 = vmatprep.subr.bf16.mxu0 0
        %2561 = vmatpush1.bf16.msra.mxu0 0
        %2562 = vmatprep.subr.bf16.mxu0 0
        %2563 = vmatpush1.bf16.msra.mxu0 0
        %2564 = vmatprep.subr.bf16.mxu0 0
        %2565 = vmatpush1.bf16.msra.mxu0 0
        %2566 = vmatprep.subr.bf16.mxu0 0
        %2567 = vmatpush1.bf16.msra.mxu0 0
        %2568 = vmatprep.subr.bf16.mxu0 0
        %2569 = vmatpush1.bf16.msra.mxu0 0
        %2570 = vmatprep.subr.bf16.mxu0 0
        %2571 = vmatpush1.bf16.msra.mxu0 0
        %2572 = vmatprep.subr.bf16.mxu0 0
        %2573 = vmatpush1.bf16.msra.mxu0 0
        %2574 = vmatprep.subr.bf16.mxu0 0
        %2575 = vmatpush1.bf16.msra.mxu0 0
        %2576 = vmatprep.subr.bf16.mxu0 0
        %2577 = vmatpush1.bf16.msra.mxu0 0
        %2578 = vmatprep.subr.bf16.mxu0 0
        %2579 = vmatpush1.bf16.msra.mxu0 0
        %2580 = vmatprep.subr.bf16.mxu0 0
        %2581 = vmatpush1.bf16.msra.mxu0 0
        %2582 = vmatprep.subr.bf16.mxu0 0
        %2583 = vmatpush1.bf16.msra.mxu0 0
        %2584 = vmatprep.subr.bf16.mxu0 0
        %2585 = vmatpush1.bf16.msra.mxu0 0
        %2586 = vmatprep.subr.bf16.mxu0 0
        %2587 = vmatpush1.bf16.msra.mxu0 0
        %2588 = vmatprep.subr.bf16.mxu0 0
        %2589 = vmatpush1.bf16.msra.mxu0 0
        %2590 = vmatprep.mubr.bf16.mxu0 0
        %2591 = vmatmul.mubr.bf16.gmra.mrb[0].mxu0 %v2553
        %v2592 = vpop.f32.mrb[0].mxu0
        %v2593 = vadd.f32 0.0, %v2592
        %v2594 = vpop.f32.mrb[0].mxu0
        %v2595 = vpop.f32.mrb[0].mxu0
        %v2596 = vpop.f32.mrb[0].mxu0
        %2597 = vdwg.mxu0
        %2599 = vrot.lane.b32.xlu0 %v2373, 8
        %v2600 = vpop.permute.xlu0 %2599
        %2603 = vrot.lane.b32.xlu0 %v2483, 16
        %v2604 = vpop.permute.xlu0 %2603
        %2607 = vrot.lane.b32.xlu0 %v2593, 24
        %v2608 = vpop.permute.xlu0 %2607
        %v2610 = vsel %vm1469, %v2262, %v2600
        %v2611 = vsel %vm1921, %v2610, %v2604
        %v2612 = vsel %vm1923, %v2611, %v2608
        %v2613 = vld [vmem:[%s31] sm:$0xf]
        %v2614 = vld [vmem:[%s31 + $0x4] sm:$0xf]
        %v2615 = vld [vmem:[%s31 + $0x8] sm:$0xf]
        %v2616 = vld [vmem:[%s31 + $0xc] sm:$0xf]
        %v2617 = vpack.c.bf16 %v2612, %v2612
        %v2618 = vld [vmem:[#allocation11] sm:$0x1]
        %v2620 = vlaneseq
        %v2621 = vshrl.u32 %v2620, 7
        %v2622 = vsub.s32 0, %v2621
        %v2623 = vrot.slane %v2618, %v2622
        %v2629 = vunpack.c.l.b16 %v2613
        %v2630 = vunpack.c.l.b16 %v2614
        %v2631 = vunpack.c.l.b16 %v2615
        %v2632 = vunpack.c.l.b16 %v2616
        %v2633 = vpack.c.b16 %v2630, %v2629
        %v2634 = vpack.c.b16 %v2632, %v2631
        %v2638 = vsel %vm1419, %v2617, 0
        %2640 = vmatprep.subr.bf16.mxu0 0
        %2641 = vmatpush1.bf16.msra.mxu0 %v2633
        %2642 = vmatprep.subr.bf16.mxu0 0
        %2643 = vmatpush1.bf16.msra.mxu0 %v2634
        %2644 = vmatprep.subr.bf16.mxu0 0
        %2645 = vmatpush1.bf16.msra.mxu0 0
        %2646 = vmatprep.subr.bf16.mxu0 0
        %2647 = vmatpush1.bf16.msra.mxu0 0
        %2648 = vmatprep.subr.bf16.mxu0 0
        %2649 = vmatpush1.bf16.msra.mxu0 0
        %2650 = vmatprep.subr.bf16.mxu0 0
        %2651 = vmatpush1.bf16.msra.mxu0 0
        %2652 = vmatprep.subr.bf16.mxu0 0
        %2653 = vmatpush1.bf16.msra.mxu0 0
        %2654 = vmatprep.subr.bf16.mxu0 0
        %2655 = vmatpush1.bf16.msra.mxu0 0
        %2656 = vmatprep.subr.bf16.mxu0 0
        %2657 = vmatpush1.bf16.msra.mxu0 0
        %2658 = vmatprep.subr.bf16.mxu0 0
        %2659 = vmatpush1.bf16.msra.mxu0 0
        %2660 = vmatprep.subr.bf16.mxu0 0
        %2661 = vmatpush1.bf16.msra.mxu0 0
        %2662 = vmatprep.subr.bf16.mxu0 0
        %2663 = vmatpush1.bf16.msra.mxu0 0
        %2664 = vmatprep.subr.bf16.mxu0 0
        %2665 = vmatpush1.bf16.msra.mxu0 0
        %2666 = vmatprep.subr.bf16.mxu0 0
        %2667 = vmatpush1.bf16.msra.mxu0 0
        %2668 = vmatprep.subr.bf16.mxu0 0
        %2669 = vmatpush1.bf16.msra.mxu0 0
        %2670 = vmatprep.subr.bf16.mxu0 0
        %2671 = vmatpush1.bf16.msra.mxu0 0
        %2672 = vmatprep.mubr.bf16.mxu0 0
        %2673 = vmatmul.mubr.bf16.gmra.mrb[0].mxu0 %v2638
        %v2674 = vpop.f32.mrb[0].mxu0
        %v2675 = vadd.f32 %v2623, %v2674
        %v2676 = vpop.f32.mrb[0].mxu0
        %v2677 = vpop.f32.mrb[0].mxu0
        %v2678 = vpop.f32.mrb[0].mxu0
        %2679 = vdwg.mxu0
        %v2680 = vadd.f32 %v2675, %v2022
        %v2681 = vsel %vm1419, %v2680, 0.0
        %2682 = vadd.xlane.f32.xlu0 %v2681
        %v2683 = vpop.xlane.xlu0 %2682
        %v2684 = vmul.f32 %v2683, %v1996
        %v2685 = vsub.f32 %v2680, %v2684
        %v2686 = vmul.f32 %v2685, %v2685
        %v2687 = vsel %vm1419, %v2686, 0.0
        %2688 = vadd.xlane.f32.xlu0 %v2687
        %v2689 = vpop.xlane.xlu0 %2688
        %v2690 = vmul.f32 %v2689, %v1996
        %v2691 = vadd.f32 %v2690, 1e-06
        %v2692 = vrsqrt.pop %v2691
        %v2693 = vmul.f32 %v2685, %v2692
        %v2694 = vld [vmem:[#allocation13] sm:$0x1]
        %v2696 = vlaneseq
        %v2697 = vshrl.u32 %v2696, 7
        %v2698 = vsub.s32 0, %v2697
        %v2699 = vrot.slane %v2694, %v2698
        %v2701 = vmul.f32 %v2693, %v2699
        %v2702 = vld [vmem:[#allocation14] sm:$0x1]
        %v2704 = vlaneseq
        %v2705 = vshrl.u32 %v2704, 7
        %v2706 = vsub.s32 0, %v2705
        %v2707 = vrot.slane %v2702, %v2706
        %v2709 = vadd.f32 %v2701, %v2707
        %v2710 = vld [vmem:[#allocation16] sm:$0xf]
        %v2711 = vld [vmem:[#allocation16 + $0x4] sm:$0xf]
        %v2712 = vld [vmem:[#allocation16 + $0x8] sm:$0xf]
        %v2713 = vld [vmem:[#allocation16 + $0xc] sm:$0xf]
        %v2714 = vpack.c.bf16 %v2709, %v2709
        %v2715 = vld [vmem:[#allocation17] sm:$0x1]
        %v2717 = vlaneseq
        %v2718 = vshrl.u32 %v2717, 7
        %v2719 = vsub.s32 0, %v2718
        %v2720 = vrot.slane %v2715, %v2719
        %v2726 = vunpack.c.l.b16 %v2710
        %v2727 = vunpack.c.l.b16 %v2711
        %v2728 = vunpack.c.l.b16 %v2712
        %v2729 = vunpack.c.l.b16 %v2713
        %v2730 = vpack.c.b16 %v2727, %v2726
        %v2731 = vpack.c.b16 %v2729, %v2728
        %v2735 = vsel %vm1419, %v2714, 0
        %2737 = vmatprep.subr.bf16.mxu0 0
        %2738 = vmatpush1.bf16.msra.mxu0 %v2730
        %2739 = vmatprep.subr.bf16.mxu0 0
        %2740 = vmatpush1.bf16.msra.mxu0 %v2731
        %2741 = vmatprep.subr.bf16.mxu0 0
        %2742 = vmatpush1.bf16.msra.mxu0 0
        %2743 = vmatprep.subr.bf16.mxu0 0
        %2744 = vmatpush1.bf16.msra.mxu0 0
        %2745 = vmatprep.subr.bf16.mxu0 0
        %2746 = vmatpush1.bf16.msra.mxu0 0
        %2747 = vmatprep.subr.bf16.mxu0 0
        %2748 = vmatpush1.bf16.msra.mxu0 0
        %2749 = vmatprep.subr.bf16.mxu0 0
        %2750 = vmatpush1.bf16.msra.mxu0 0
        %2751 = vmatprep.subr.bf16.mxu0 0
        %2752 = vmatpush1.bf16.msra.mxu0 0
        %2753 = vmatprep.subr.bf16.mxu0 0
        %2754 = vmatpush1.bf16.msra.mxu0 0
        %2755 = vmatprep.subr.bf16.mxu0 0
        %2756 = vmatpush1.bf16.msra.mxu0 0
        %2757 = vmatprep.subr.bf16.mxu0 0
        %2758 = vmatpush1.bf16.msra.mxu0 0
        %2759 = vmatprep.subr.bf16.mxu0 0
        %2760 = vmatpush1.bf16.msra.mxu0 0
        %2761 = vmatprep.subr.bf16.mxu0 0
        %2762 = vmatpush1.bf16.msra.mxu0 0
        %2763 = vmatprep.subr.bf16.mxu0 0
        %2764 = vmatpush1.bf16.msra.mxu0 0
        %2765 = vmatprep.subr.bf16.mxu0 0
        %2766 = vmatpush1.bf16.msra.mxu0 0
        %2767 = vmatprep.subr.bf16.mxu0 0
        %2768 = vmatpush1.bf16.msra.mxu0 0
        %2769 = vmatprep.mubr.bf16.mxu0 0
        %2770 = vmatmul.mubr.bf16.gmra.mrb[0].mxu0 %v2735
        %v2771 = vpop.f32.mrb[0].mxu0
        %v2772 = vadd.f32 %v2720, %v2771
        %v2773 = vpop.f32.mrb[0].mxu0
        %v2774 = vpop.f32.mrb[0].mxu0
        %v2775 = vpop.f32.mrb[0].mxu0
        %2776 = vdwg.mxu0
        %v2777 = vld [vmem:[#allocation19] sm:$0xf]
        %v2778 = vld [vmem:[#allocation19 + $0x4] sm:$0xf]
        %v2779 = vld [vmem:[#allocation19 + $0x8] sm:$0xf]
        %v2780 = vld [vmem:[#allocation19 + $0xc] sm:$0xf]
        %v2781 = vpack.c.bf16 %v1391, %v1390
        %v2782 = vld [vmem:[#allocation20] sm:$0x1]
        %v2784 = vlaneseq
        %v2785 = vshrl.u32 %v2784, 7
        %v2786 = vsub.s32 0, %v2785
        %v2787 = vrot.slane %v2782, %v2786
        %v2793 = vunpack.c.l.b16 %v2777
        %v2794 = vunpack.c.l.b16 %v2778
        %v2795 = vunpack.c.l.b16 %v2779
        %v2796 = vunpack.c.l.b16 %v2780
        %v2797 = vpack.c.b16 %v2794, %v2793
        %v2798 = vpack.c.b16 %v2796, %v2795
        %v2802 = vsel %vm1419, %v2781, 0
        %2804 = vmatprep.subr.bf16.mxu0 0
        %2805 = vmatpush1.bf16.msra.mxu0 %v2797
        %2806 = vmatprep.subr.bf16.mxu0 0
        %2807 = vmatpush1.bf16.msra.mxu0 %v2798
        %2808 = vmatprep.subr.bf16.mxu0 0
        %2809 = vmatpush1.bf16.msra.mxu0 0
        %2810 = vmatprep.subr.bf16.mxu0 0
        %2811 = vmatpush1.bf16.msra.mxu0 0
        %2812 = vmatprep.subr.bf16.mxu0 0
        %2813 = vmatpush1.bf16.msra.mxu0 0
        %2814 = vmatprep.subr.bf16.mxu0 0
        %2815 = vmatpush1.bf16.msra.mxu0 0
        %2816 = vmatprep.subr.bf16.mxu0 0
        %2817 = vmatpush1.bf16.msra.mxu0 0
        %2818 = vmatprep.subr.bf16.mxu0 0
        %2819 = vmatpush1.bf16.msra.mxu0 0
        %2820 = vmatprep.subr.bf16.mxu0 0
        %2821 = vmatpush1.bf16.msra.mxu0 0
        %2822 = vmatprep.subr.bf16.mxu0 0
        %2823 = vmatpush1.bf16.msra.mxu0 0
        %2824 = vmatprep.subr.bf16.mxu0 0
        %2825 = vmatpush1.bf16.msra.mxu0 0
        %2826 = vmatprep.subr.bf16.mxu0 0
        %2827 = vmatpush1.bf16.msra.mxu0 0
        %2828 = vmatprep.subr.bf16.mxu0 0
        %2829 = vmatpush1.bf16.msra.mxu0 0
        %2830 = vmatprep.subr.bf16.mxu0 0
        %2831 = vmatpush1.bf16.msra.mxu0 0
        %2832 = vmatprep.subr.bf16.mxu0 0
        %2833 = vmatpush1.bf16.msra.mxu0 0
        %2834 = vmatprep.subr.bf16.mxu0 0
        %2835 = vmatpush1.bf16.msra.mxu0 0
        %2836 = vmatprep.mubr.bf16.mxu0 0
        %2837 = vmatmul.mubr.bf16.gmra.mrb[0].mxu0 %v2802
        %v2838 = vpop.f32.mrb[0].mxu0
        %v2839 = vadd.f32 %v2787, %v2838
        %v2840 = vpop.f32.mrb[0].mxu0
        %v2841 = vpop.f32.mrb[0].mxu0
        %v2842 = vadd.f32 %v2787, %v2841
        %v2843 = vpop.f32.mrb[0].mxu0
        %2844 = vdwg.mxu0
        %v2845 = vmul.f32 %v2772, 0.35355338
        %v2846 = vpack.c.bf16 %v2845, %v2845
        %v2847 = vpack.c.bf16 %v2842, %v2839
        %v2849 = vlaneseq
        %v2850 = vshrl.u32 %v2849, 7
        %v2851 = vsub.s32 0, %v2850
        %v2852 = vrot.slane %v1394, %v2851
        %v2855 = vsel %vm1469, %v2846, 0
        %v2858 = vsel %vm1469, %v2847, 0
        %2860 = vmatprep.subr.bf16.mxu0 0
        %2861 = vmatpush1.bf16.xpose.msra.mxu0 %v2858
        %2862 = vmatprep.subr.bf16.mxu0 0
        %2863 = vmatpush1.bf16.xpose.msra.mxu0 0
        %2864 = vmatprep.subr.bf16.mxu0 0
        %2865 = vmatpush1.bf16.xpose.msra.mxu0 0
        %2866 = vmatprep.subr.bf16.mxu0 0
        %2867 = vmatpush1.bf16.xpose.msra.mxu0 0
        %2868 = vmatprep.subr.bf16.mxu0 0
        %2869 = vmatpush1.bf16.xpose.msra.mxu0 0
        %2870 = vmatprep.subr.bf16.mxu0 0
        %2871 = vmatpush1.bf16.xpose.msra.mxu0 0
        %2872 = vmatprep.subr.bf16.mxu0 0
        %2873 = vmatpush1.bf16.xpose.msra.mxu0 0
        %2874 = vmatprep.subr.bf16.mxu0 0
        %2875 = vmatpush1.bf16.xpose.msra.mxu0 0
        %2876 = vmatprep.subr.bf16.mxu0 0
        %2877 = vmatpush1.bf16.xpose.msra.mxu0 0
        %2878 = vmatprep.subr.bf16.mxu0 0
        %2879 = vmatpush1.bf16.xpose.msra.mxu0 0
        %2880 = vmatprep.subr.bf16.mxu0 0
        %2881 = vmatpush1.bf16.xpose.msra.mxu0 0
        %2882 = vmatprep.subr.bf16.mxu0 0
        %2883 = vmatpush1.bf16.xpose.msra.mxu0 0
        %2884 = vmatprep.subr.bf16.mxu0 0
        %2885 = vmatpush1.bf16.xpose.msra.mxu0 0
        %2886 = vmatprep.subr.bf16.mxu0 0
        %2887 = vmatpush1.bf16.xpose.msra.mxu0 0
        %2888 = vmatprep.subr.bf16.mxu0 0
        %2889 = vmatpush1.bf16.xpose.msra.mxu0 0
        %2890 = vmatprep.subr.bf16.mxu0 0
        %2891 = vmatpush1.bf16.xpose.msra.mxu0 0
        %2892 = vmatprep.mubr.bf16.mxu0 0
        %2893 = vmatmul.mubr.bf16.gmra.mrb[0].mxu0 %v2855
        %v2894 = vpop.f32.mrb[0].mxu0
        %v2895 = vadd.f32 %v2852, %v2894
        %v2896 = vpop.f32.mrb[0].mxu0
        %v2897 = vpop.f32.mrb[0].mxu0
        %v2898 = vpop.f32.mrb[0].mxu0
        %2899 = vdwg.mxu0
        %v2900 = vsel %vm1921, %v2895, -inf
        %2901 = vmax.xlane.f32.xlu0 %v2900
        %v2902 = vpop.xlane.xlu0 %2901
        %v2903 = vsub.f32 %v2895, %v2902
        %v2904 = vmul.f32 %v2903, 1.442695
        %v2905 = vpow.pop %v2904
        %v2906 = vsel %vm1921, %v2905, 0.0
        %2907 = vadd.xlane.f32.xlu0 %v2906
        %v2908 = vpop.xlane.xlu0 %2907
        %v2909 = vrcp.pop %v2908
        %v2910 = vmul.f32 %v2905, %v2909
        %v2911 = vpack.c.bf16 %v2910, %v2910
        %2913 = vrot.lane.b32.xlu0 %v2847, 96
        %v2914 = vpop.permute.xlu0 %2913
        %v2917 = vsel %vm1921, %v2911, 0
        %2919 = vmatprep.subr.bf16.mxu0 0
        %2920 = vmatpush1.bf16.msra.mxu0 %v2914
        %2921 = vmatprep.subr.bf16.mxu0 0
        %2922 = vmatpush1.bf16.msra.mxu0 0
        %2923 = vmatprep.subr.bf16.mxu0 0
        %2924 = vmatpush1.bf16.msra.mxu0 0
        %2925 = vmatprep.subr.bf16.mxu0 0
        %2926 = vmatpush1.bf16.msra.mxu0 0
        %2927 = vmatprep.subr.bf16.mxu0 0
        %2928 = vmatpush1.bf16.msra.mxu0 0
        %2929 = vmatprep.subr.bf16.mxu0 0
        %2930 = vmatpush1.bf16.msra.mxu0 0
        %2931 = vmatprep.subr.bf16.mxu0 0
        %2932 = vmatpush1.bf16.msra.mxu0 0
        %2933 = vmatprep.subr.bf16.mxu0 0
        %2934 = vmatpush1.bf16.msra.mxu0 0
        %2935 = vmatprep.subr.bf16.mxu0 0
        %2936 = vmatpush1.bf16.msra.mxu0 0
        %2937 = vmatprep.subr.bf16.mxu0 0
        %2938 = vmatpush1.bf16.msra.mxu0 0
        %2939 = vmatprep.subr.bf16.mxu0 0
        %2940 = vmatpush1.bf16.msra.mxu0 0
        %2941 = vmatprep.subr.bf16.mxu0 0
        %2942 = vmatpush1.bf16.msra.mxu0 0
        %2943 = vmatprep.subr.bf16.mxu0 0
        %2944 = vmatpush1.bf16.msra.mxu0 0
        %2945 = vmatprep.subr.bf16.mxu0 0
        %2946 = vmatpush1.bf16.msra.mxu0 0
        %2947 = vmatprep.subr.bf16.mxu0 0
        %2948 = vmatpush1.bf16.msra.mxu0 0
        %2949 = vmatprep.subr.bf16.mxu0 0
        %2950 = vmatpush1.bf16.msra.mxu0 0
        %2951 = vmatprep.mubr.bf16.mxu0 0
        %2952 = vmatmul.mubr.bf16.gmra.mrb[0].mxu0 %v2917
        %v2953 = vpop.f32.mrb[0].mxu0
        %v2954 = vadd.f32 0.0, %v2953
        %v2955 = vpop.f32.mrb[0].mxu0
        %v2956 = vpop.f32.mrb[0].mxu0
        %v2957 = vpop.f32.mrb[0].mxu0
        %2958 = vdwg.mxu0
        %2960 = vrot.lane.b32.xlu0 %v2846, 120
        %v2961 = vpop.permute.xlu0 %2960
        %2962 = vrot.lane.b32.xlu0 %v2847, 120
        %v2963 = vpop.permute.xlu0 %2962
        %v2965 = vsel %vm1469, %v2961, 0
        %v2968 = vsel %vm1469, %v2963, 0
        %2970 = vmatprep.subr.bf16.mxu0 0
        %2971 = vmatpush1.bf16.xpose.msra.mxu0 %v2968
        %2972 = vmatprep.subr.bf16.mxu0 0
        %2973 = vmatpush1.bf16.xpose.msra.mxu0 0
        %2974 = vmatprep.subr.bf16.mxu0 0
        %2975 = vmatpush1.bf16.xpose.msra.mxu0 0
        %2976 = vmatprep.subr.bf16.mxu0 0
        %2977 = vmatpush1.bf16.xpose.msra.mxu0 0
        %2978 = vmatprep.subr.bf16.mxu0 0
        %2979 = vmatpush1.bf16.xpose.msra.mxu0 0
        %2980 = vmatprep.subr.bf16.mxu0 0
        %2981 = vmatpush1.bf16.xpose.msra.mxu0 0
        %2982 = vmatprep.subr.bf16.mxu0 0
        %2983 = vmatpush1.bf16.xpose.msra.mxu0 0
        %2984 = vmatprep.subr.bf16.mxu0 0
        %2985 = vmatpush1.bf16.xpose.msra.mxu0 0
        %2986 = vmatprep.subr.bf16.mxu0 0
        %2987 = vmatpush1.bf16.xpose.msra.mxu0 0
        %2988 = vmatprep.subr.bf16.mxu0 0
        %2989 = vmatpush1.bf16.xpose.msra.mxu0 0
        %2990 = vmatprep.subr.bf16.mxu0 0
        %2991 = vmatpush1.bf16.xpose.msra.mxu0 0
        %2992 = vmatprep.subr.bf16.mxu0 0
        %2993 = vmatpush1.bf16.xpose.msra.mxu0 0
        %2994 = vmatprep.subr.bf16.mxu0 0
        %2995 = vmatpush1.bf16.xpose.msra.mxu0 0
        %2996 = vmatprep.subr.bf16.mxu0 0
        %2997 = vmatpush1.bf16.xpose.msra.mxu0 0
        %2998 = vmatprep.subr.bf16.mxu0 0
        %2999 = vmatpush1.bf16.xpose.msra.mxu0 0
        %3000 = vmatprep.subr.bf16.mxu0 0
        %3001 = vmatpush1.bf16.xpose.msra.mxu0 0
        %3002 = vmatprep.mubr.bf16.mxu0 0
        %3003 = vmatmul.mubr.bf16.gmra.mrb[0].mxu0 %v2965
        %v3004 = vpop.f32.mrb[0].mxu0
        %v3005 = vadd.f32 %v2852, %v3004
        %v3006 = vpop.f32.mrb[0].mxu0
        %v3007 = vpop.f32.mrb[0].mxu0
        %v3008 = vpop.f32.mrb[0].mxu0
        %3009 = vdwg.mxu0
        %v3010 = vsel %vm1921, %v3005, -inf
        %3011 = vmax.xlane.f32.xlu0 %v3010
        %v3012 = vpop.xlane.xlu0 %3011
        %v3013 = vsub.f32 %v3005, %v3012
        %v3014 = vmul.f32 %v3013, 1.442695
        %v3015 = vpow.pop %v3014
        %v3016 = vsel %vm1921, %v3015, 0.0
        %3017 = vadd.xlane.f32.xlu0 %v3016
        %v3018 = vpop.xlane.xlu0 %3017
        %v3019 = vrcp.pop %v3018
        %v3020 = vmul.f32 %v3015, %v3019
        %v3021 = vpack.c.bf16 %v3020, %v3020
        %3022 = vrot.lane.b32.xlu0 %v2847, 88
        %v3023 = vpop.permute.xlu0 %3022
        %v3026 = vsel %vm1921, %v3021, 0
        %3028 = vmatprep.subr.bf16.mxu0 0
        %3029 = vmatpush1.bf16.msra.mxu0 %v3023
        %3030 = vmatprep.subr.bf16.mxu0 0
        %3031 = vmatpush1.bf16.msra.mxu0 0
        %3032 = vmatprep.subr.bf16.mxu0 0
        %3033 = vmatpush1.bf16.msra.mxu0 0
        %3034 = vmatprep.subr.bf16.mxu0 0
        %3035 = vmatpush1.bf16.msra.mxu0 0
        %3036 = vmatprep.subr.bf16.mxu0 0
        %3037 = vmatpush1.bf16.msra.mxu0 0
        %3038 = vmatprep.subr.bf16.mxu0 0
        %3039 = vmatpush1.bf16.msra.mxu0 0
        %3040 = vmatprep.subr.bf16.mxu0 0
        %3041 = vmatpush1.bf16.msra.mxu0 0
        %3042 = vmatprep.subr.bf16.mxu0 0
        %3043 = vmatpush1.bf16.msra.mxu0 0
        %3044 = vmatprep.subr.bf16.mxu0 0
        %3045 = vmatpush1.bf16.msra.mxu0 0
        %3046 = vmatprep.subr.bf16.mxu0 0
        %3047 = vmatpush1.bf16.msra.mxu0 0
        %3048 = vmatprep.subr.bf16.mxu0 0
        %3049 = vmatpush1.bf16.msra.mxu0 0
        %3050 = vmatprep.subr.bf16.mxu0 0
        %3051 = vmatpush1.bf16.msra.mxu0 0
        %3052 = vmatprep.subr.bf16.mxu0 0
        %3053 = vmatpush1.bf16.msra.mxu0 0
        %3054 = vmatprep.subr.bf16.mxu0 0
        %3055 = vmatpush1.bf16.msra.mxu0 0
        %3056 = vmatprep.subr.bf16.mxu0 0
        %3057 = vmatpush1.bf16.msra.mxu0 0
        %3058 = vmatprep.subr.bf16.mxu0 0
        %3059 = vmatpush1.bf16.msra.mxu0 0
        %3060 = vmatprep.mubr.bf16.mxu0 0
        %3061 = vmatmul.mubr.bf16.gmra.mrb[0].mxu0 %v3026
        %v3062 = vpop.f32.mrb[0].mxu0
        %v3063 = vadd.f32 0.0, %v3062
        %v3064 = vpop.f32.mrb[0].mxu0
        %v3065 = vpop.f32.mrb[0].mxu0
        %v3066 = vpop.f32.mrb[0].mxu0
        %3067 = vdwg.mxu0
        %v3068 = vadd.f32 %v2910, %v3020
        %3069 = vrot.lane.b32.xlu0 %v2846, 112
        %v3070 = vpop.permute.xlu0 %3069
        %3071 = vrot.lane.b32.xlu0 %v2847, 112
        %v3072 = vpop.permute.xlu0 %3071
        %v3074 = vsel %vm1469, %v3070, 0
        %v3077 = vsel %vm1469, %v3072, 0
        %3079 = vmatprep.subr.bf16.mxu0 0
        %3080 = vmatpush1.bf16.xpose.msra.mxu0 %v3077
        %3081 = vmatprep.subr.bf16.mxu0 0
        %3082 = vmatpush1.bf16.xpose.msra.mxu0 0
        %3083 = vmatprep.subr.bf16.mxu0 0
        %3084 = vmatpush1.bf16.xpose.msra.mxu0 0
        %3085 = vmatprep.subr.bf16.mxu0 0
        %3086 = vmatpush1.bf16.xpose.msra.mxu0 0
        %3087 = vmatprep.subr.bf16.mxu0 0
        %3088 = vmatpush1.bf16.xpose.msra.mxu0 0
        %3089 = vmatprep.subr.bf16.mxu0 0
        %3090 = vmatpush1.bf16.xpose.msra.mxu0 0
        %3091 = vmatprep.subr.bf16.mxu0 0
        %3092 = vmatpush1.bf16.xpose.msra.mxu0 0
        %3093 = vmatprep.subr.bf16.mxu0 0
        %3094 = vmatpush1.bf16.xpose.msra.mxu0 0
        %3095 = vmatprep.subr.bf16.mxu0 0
        %3096 = vmatpush1.bf16.xpose.msra.mxu0 0
        %3097 = vmatprep.subr.bf16.mxu0 0
        %3098 = vmatpush1.bf16.xpose.msra.mxu0 0
        %3099 = vmatprep.subr.bf16.mxu0 0
        %3100 = vmatpush1.bf16.xpose.msra.mxu0 0
        %3101 = vmatprep.subr.bf16.mxu0 0
        %3102 = vmatpush1.bf16.xpose.msra.mxu0 0
        %3103 = vmatprep.subr.bf16.mxu0 0
        %3104 = vmatpush1.bf16.xpose.msra.mxu0 0
        %3105 = vmatprep.subr.bf16.mxu0 0
        %3106 = vmatpush1.bf16.xpose.msra.mxu0 0
        %3107 = vmatprep.subr.bf16.mxu0 0
        %3108 = vmatpush1.bf16.xpose.msra.mxu0 0
        %3109 = vmatprep.subr.bf16.mxu0 0
        %3110 = vmatpush1.bf16.xpose.msra.mxu0 0
        %3111 = vmatprep.mubr.bf16.mxu0 0
        %3112 = vmatmul.mubr.bf16.gmra.mrb[0].mxu0 %v3074
        %v3113 = vpop.f32.mrb[0].mxu0
        %v3114 = vadd.f32 %v2852, %v3113
        %v3115 = vpop.f32.mrb[0].mxu0
        %v3116 = vpop.f32.mrb[0].mxu0
        %v3117 = vpop.f32.mrb[0].mxu0
        %3118 = vdwg.mxu0
        %v3119 = vsel %vm1921, %v3114, -inf
        %3120 = vmax.xlane.f32.xlu0 %v3119
        %v3121 = vpop.xlane.xlu0 %3120
        %v3122 = vsub.f32 %v3114, %v3121
        %v3123 = vmul.f32 %v3122, 1.442695
        %v3124 = vpow.pop %v3123
        %v3125 = vsel %vm1921, %v3124, 0.0
        %3126 = vadd.xlane.f32.xlu0 %v3125
        %v3127 = vpop.xlane.xlu0 %3126
        %v3128 = vrcp.pop %v3127
        %v3129 = vmul.f32 %v3124, %v3128
        %v3130 = vpack.c.bf16 %v3129, %v3129
        %3131 = vrot.lane.b32.xlu0 %v2847, 80
        %v3132 = vpop.permute.xlu0 %3131
        %v3135 = vsel %vm1921, %v3130, 0
        %3137 = vmatprep.subr.bf16.mxu0 0
        %3138 = vmatpush1.bf16.msra.mxu0 %v3132
        %3139 = vmatprep.subr.bf16.mxu0 0
        %3140 = vmatpush1.bf16.msra.mxu0 0
        %3141 = vmatprep.subr.bf16.mxu0 0
        %3142 = vmatpush1.bf16.msra.mxu0 0
        %3143 = vmatprep.subr.bf16.mxu0 0
        %3144 = vmatpush1.bf16.msra.mxu0 0
        %3145 = vmatprep.subr.bf16.mxu0 0
        %3146 = vmatpush1.bf16.msra.mxu0 0
        %3147 = vmatprep.subr.bf16.mxu0 0
        %3148 = vmatpush1.bf16.msra.mxu0 0
        %3149 = vmatprep.subr.bf16.mxu0 0
        %3150 = vmatpush1.bf16.msra.mxu0 0
        %3151 = vmatprep.subr.bf16.mxu0 0
        %3152 = vmatpush1.bf16.msra.mxu0 0
        %3153 = vmatprep.subr.bf16.mxu0 0
        %3154 = vmatpush1.bf16.msra.mxu0 0
        %3155 = vmatprep.subr.bf16.mxu0 0
        %3156 = vmatpush1.bf16.msra.mxu0 0
        %3157 = vmatprep.subr.bf16.mxu0 0
        %3158 = vmatpush1.bf16.msra.mxu0 0
        %3159 = vmatprep.subr.bf16.mxu0 0
        %3160 = vmatpush1.bf16.msra.mxu0 0
        %3161 = vmatprep.subr.bf16.mxu0 0
        %3162 = vmatpush1.bf16.msra.mxu0 0
        %3163 = vmatprep.subr.bf16.mxu0 0
        %3164 = vmatpush1.bf16.msra.mxu0 0
        %3165 = vmatprep.subr.bf16.mxu0 0
        %3166 = vmatpush1.bf16.msra.mxu0 0
        %3167 = vmatprep.subr.bf16.mxu0 0
        %3168 = vmatpush1.bf16.msra.mxu0 0
        %3169 = vmatprep.mubr.bf16.mxu0 0
        %3170 = vmatmul.mubr.bf16.gmra.mrb[0].mxu0 %v3135
        %v3171 = vpop.f32.mrb[0].mxu0
        %v3172 = vadd.f32 0.0, %v3171
        %v3173 = vpop.f32.mrb[0].mxu0
        %v3174 = vpop.f32.mrb[0].mxu0
        %v3175 = vpop.f32.mrb[0].mxu0
        %3176 = vdwg.mxu0
        %v3177 = vadd.f32 %v3068, %v3129
        %3178 = vrot.lane.b32.xlu0 %v2846, 104
        %v3179 = vpop.permute.xlu0 %3178
        %3180 = vrot.lane.b32.xlu0 %v2847, 104
        %v3181 = vpop.permute.xlu0 %3180
        %v3183 = vsel %vm1469, %v3179, 0
        %v3186 = vsel %vm1469, %v3181, 0
        %3188 = vmatprep.subr.bf16.mxu0 0
        %3189 = vmatpush1.bf16.xpose.msra.mxu0 %v3186
        %3190 = vmatprep.subr.bf16.mxu0 0
        %3191 = vmatpush1.bf16.xpose.msra.mxu0 0
        %3192 = vmatprep.subr.bf16.mxu0 0
        %3193 = vmatpush1.bf16.xpose.msra.mxu0 0
        %3194 = vmatprep.subr.bf16.mxu0 0
        %3195 = vmatpush1.bf16.xpose.msra.mxu0 0
        %3196 = vmatprep.subr.bf16.mxu0 0
        %3197 = vmatpush1.bf16.xpose.msra.mxu0 0
        %3198 = vmatprep.subr.bf16.mxu0 0
        %3199 = vmatpush1.bf16.xpose.msra.mxu0 0
        %3200 = vmatprep.subr.bf16.mxu0 0
        %3201 = vmatpush1.bf16.xpose.msra.mxu0 0
        %3202 = vmatprep.subr.bf16.mxu0 0
        %3203 = vmatpush1.bf16.xpose.msra.mxu0 0
        %3204 = vmatprep.subr.bf16.mxu0 0
        %3205 = vmatpush1.bf16.xpose.msra.mxu0 0
        %3206 = vmatprep.subr.bf16.mxu0 0
        %3207 = vmatpush1.bf16.xpose.msra.mxu0 0
        %3208 = vmatprep.subr.bf16.mxu0 0
        %3209 = vmatpush1.bf16.xpose.msra.mxu0 0
        %3210 = vmatprep.subr.bf16.mxu0 0
        %3211 = vmatpush1.bf16.xpose.msra.mxu0 0
        %3212 = vmatprep.subr.bf16.mxu0 0
        %3213 = vmatpush1.bf16.xpose.msra.mxu0 0
        %3214 = vmatprep.subr.bf16.mxu0 0
        %3215 = vmatpush1.bf16.xpose.msra.mxu0 0
        %3216 = vmatprep.subr.bf16.mxu0 0
        %3217 = vmatpush1.bf16.xpose.msra.mxu0 0
        %3218 = vmatprep.subr.bf16.mxu0 0
        %3219 = vmatpush1.bf16.xpose.msra.mxu0 0
        %3220 = vmatprep.mubr.bf16.mxu0 0
        %3221 = vmatmul.mubr.bf16.gmra.mrb[0].mxu0 %v3183
        %v3222 = vpop.f32.mrb[0].mxu0
        %v3223 = vadd.f32 %v2852, %v3222
        %v3224 = vpop.f32.mrb[0].mxu0
        %v3225 = vpop.f32.mrb[0].mxu0
        %v3226 = vpop.f32.mrb[0].mxu0
        %3227 = vdwg.mxu0
        %v3228 = vsel %vm1921, %v3223, -inf
        %3229 = vmax.xlane.f32.xlu0 %v3228
        %v3230 = vpop.xlane.xlu0 %3229
        %v3231 = vsub.f32 %v3223, %v3230
        %v3232 = vmul.f32 %v3231, 1.442695
        %v3233 = vpow.pop %v3232
        %v3234 = vsel %vm1921, %v3233, 0.0
        %3235 = vadd.xlane.f32.xlu0 %v3234
        %v3236 = vpop.xlane.xlu0 %3235
        %v3237 = vrcp.pop %v3236
        %v3238 = vmul.f32 %v3233, %v3237
        %v3239 = vpack.c.bf16 %v3238, %v3238
        %3240 = vrot.lane.b32.xlu0 %v2847, 72
        %v3241 = vpop.permute.xlu0 %3240
        %v3244 = vsel %vm1921, %v3239, 0
        %3246 = vmatprep.subr.bf16.mxu0 0
        %3247 = vmatpush1.bf16.msra.mxu0 %v3241
        %3248 = vmatprep.subr.bf16.mxu0 0
        %3249 = vmatpush1.bf16.msra.mxu0 0
        %3250 = vmatprep.subr.bf16.mxu0 0
        %3251 = vmatpush1.bf16.msra.mxu0 0
        %3252 = vmatprep.subr.bf16.mxu0 0
        %3253 = vmatpush1.bf16.msra.mxu0 0
        %3254 = vmatprep.subr.bf16.mxu0 0
        %3255 = vmatpush1.bf16.msra.mxu0 0
        %3256 = vmatprep.subr.bf16.mxu0 0
        %3257 = vmatpush1.bf16.msra.mxu0 0
        %3258 = vmatprep.subr.bf16.mxu0 0
        %3259 = vmatpush1.bf16.msra.mxu0 0
        %3260 = vmatprep.subr.bf16.mxu0 0
        %3261 = vmatpush1.bf16.msra.mxu0 0
        %3262 = vmatprep.subr.bf16.mxu0 0
        %3263 = vmatpush1.bf16.msra.mxu0 0
        %3264 = vmatprep.subr.bf16.mxu0 0
        %3265 = vmatpush1.bf16.msra.mxu0 0
        %3266 = vmatprep.subr.bf16.mxu0 0
        %3267 = vmatpush1.bf16.msra.mxu0 0
        %3268 = vmatprep.subr.bf16.mxu0 0
        %3269 = vmatpush1.bf16.msra.mxu0 0
        %3270 = vmatprep.subr.bf16.mxu0 0
        %3271 = vmatpush1.bf16.msra.mxu0 0
        %3272 = vmatprep.subr.bf16.mxu0 0
        %3273 = vmatpush1.bf16.msra.mxu0 0
        %3274 = vmatprep.subr.bf16.mxu0 0
        %3275 = vmatpush1.bf16.msra.mxu0 0
        %3276 = vmatprep.subr.bf16.mxu0 0
        %3277 = vmatpush1.bf16.msra.mxu0 0
        %3278 = vmatprep.mubr.bf16.mxu0 0
        %3279 = vmatmul.mubr.bf16.gmra.mrb[0].mxu0 %v3244
        %v3280 = vpop.f32.mrb[0].mxu0
        %v3281 = vadd.f32 0.0, %v3280
        %v3282 = vpop.f32.mrb[0].mxu0
        %v3283 = vpop.f32.mrb[0].mxu0
        %v3284 = vpop.f32.mrb[0].mxu0
        %3285 = vdwg.mxu0
        %v3286 = vadd.f32 %v3177, %v3238
        %3288 = vrot.lane.b32.xlu0 %v3063, 8
        %v3289 = vpop.permute.xlu0 %3288
        %3292 = vrot.lane.b32.xlu0 %v3172, 16
        %v3293 = vpop.permute.xlu0 %3292
        %3296 = vrot.lane.b32.xlu0 %v3281, 24
        %v3297 = vpop.permute.xlu0 %3296
        %v3299 = vsel %vm1469, %v2954, %v3289
        %v3300 = vsel %vm1921, %v3299, %v3293
        %v3301 = vsel %vm1923, %v3300, %v3297
        %v3302 = vmul.f32 %v3286, 0.25
        %v3303 = vld [vmem:[#allocation22] sm:$0xf]
        %v3304 = vld [vmem:[#allocation22 + $0x4] sm:$0xf]
        %v3305 = vld [vmem:[#allocation22 + $0x8] sm:$0xf]
        %v3306 = vld [vmem:[#allocation22 + $0xc] sm:$0xf]
        %v3307 = vpack.c.bf16 %v3301, %v3301
        %v3308 = vld [vmem:[#allocation23] sm:$0x1]
        %v3310 = vlaneseq
        %v3311 = vshrl.u32 %v3310, 7
        %v3312 = vsub.s32 0, %v3311
        %v3313 = vrot.slane %v3308, %v3312
        %v3319 = vunpack.c.l.b16 %v3303
        %v3320 = vunpack.c.l.b16 %v3304
        %v3321 = vunpack.c.l.b16 %v3305
        %v3322 = vunpack.c.l.b16 %v3306
        %v3323 = vpack.c.b16 %v3320, %v3319
        %v3324 = vpack.c.b16 %v3322, %v3321
        %v3328 = vsel %vm1419, %v3307, 0
        %3330 = vmatprep.subr.bf16.mxu0 0
        %3331 = vmatpush1.bf16.msra.mxu0 %v3323
        %3332 = vmatprep.subr.bf16.mxu0 0
        %3333 = vmatpush1.bf16.msra.mxu0 %v3324
        %3334 = vmatprep.subr.bf16.mxu0 0
        %3335 = vmatpush1.bf16.msra.mxu0 0
        %3336 = vmatprep.subr.bf16.mxu0 0
        %3337 = vmatpush1.bf16.msra.mxu0 0
        %3338 = vmatprep.subr.bf16.mxu0 0
        %3339 = vmatpush1.bf16.msra.mxu0 0
        %3340 = vmatprep.subr.bf16.mxu0 0
        %3341 = vmatpush1.bf16.msra.mxu0 0
        %3342 = vmatprep.subr.bf16.mxu0 0
        %3343 = vmatpush1.bf16.msra.mxu0 0
        %3344 = vmatprep.subr.bf16.mxu0 0
        %3345 = vmatpush1.bf16.msra.mxu0 0
        %3346 = vmatprep.subr.bf16.mxu0 0
        %3347 = vmatpush1.bf16.msra.mxu0 0
        %3348 = vmatprep.subr.bf16.mxu0 0
        %3349 = vmatpush1.bf16.msra.mxu0 0
        %3350 = vmatprep.subr.bf16.mxu0 0
        %3351 = vmatpush1.bf16.msra.mxu0 0
        %3352 = vmatprep.subr.bf16.mxu0 0
        %3353 = vmatpush1.bf16.msra.mxu0 0
        %3354 = vmatprep.subr.bf16.mxu0 0
        %3355 = vmatpush1.bf16.msra.mxu0 0
        %3356 = vmatprep.subr.bf16.mxu0 0
        %3357 = vmatpush1.bf16.msra.mxu0 0
        %3358 = vmatprep.subr.bf16.mxu0 0
        %3359 = vmatpush1.bf16.msra.mxu0 0
        %3360 = vmatprep.subr.bf16.mxu0 0
        %3361 = vmatpush1.bf16.msra.mxu0 0
        %3362 = vmatprep.mubr.bf16.mxu0 0
        %3363 = vmatmul.mubr.bf16.gmra.mrb[0].mxu0 %v3328
        %v3364 = vpop.f32.mrb[0].mxu0
        %v3365 = vadd.f32 %v3313, %v3364
        %v3366 = vpop.f32.mrb[0].mxu0
        %v3367 = vpop.f32.mrb[0].mxu0
        %v3368 = vpop.f32.mrb[0].mxu0
        %3369 = vdwg.mxu0
        %v3370 = vadd.f32 %v3365, %v2709
        %v3371 = vsel %vm1419, %v3370, 0.0
        %3372 = vadd.xlane.f32.xlu0 %v3371
        %v3373 = vpop.xlane.xlu0 %3372
        %v3374 = vmul.f32 %v3373, %v1996
        %v3375 = vsub.f32 %v3370, %v3374
        %v3376 = vmul.f32 %v3375, %v3375
        %v3377 = vsel %vm1419, %v3376, 0.0
        %3378 = vadd.xlane.f32.xlu0 %v3377
        %v3379 = vpop.xlane.xlu0 %3378
        %v3380 = vmul.f32 %v3379, %v1996
        %v3381 = vadd.f32 %v3380, 1e-06
        %v3382 = vrsqrt.pop %v3381
        %v3383 = vmul.f32 %v3375, %v3382
        %v3384 = vld [vmem:[#allocation25] sm:$0x1]
        %v3386 = vlaneseq
        %v3387 = vshrl.u32 %v3386, 7
        %v3388 = vsub.s32 0, %v3387
        %v3389 = vrot.slane %v3384, %v3388
        %v3391 = vmul.f32 %v3383, %v3389
        %v3392 = vld [vmem:[#allocation26] sm:$0x1]
        %v3394 = vlaneseq
        %v3395 = vshrl.u32 %v3394, 7
        %v3396 = vsub.s32 0, %v3395
        %v3397 = vrot.slane %v3392, %v3396
        %v3399 = vadd.f32 %v3391, %v3397
        %v3400 = vsel %vm1419, %v3399, 0.0
        %3401 = vadd.xlane.f32.xlu0 %v3400
        %v3402 = vpop.xlane.xlu0 %3401
        %v3403 = vmul.f32 %v3402, %v1996
        %v3404 = vsub.f32 %v3399, %v3403
        %v3405 = vmul.f32 %v3404, %v3404
        %v3406 = vsel %vm1419, %v3405, 0.0
        %3407 = vadd.xlane.f32.xlu0 %v3406
        %v3408 = vpop.xlane.xlu0 %3407
        %v3409 = vmul.f32 %v3408, %v1996
        %v3410 = vadd.f32 %v3409, 1e-06
        %v3411 = vrsqrt.pop %v3410
        %v3412 = vmul.f32 %v3404, %v3411
        %v3413 = vld [vmem:[#allocation28] sm:$0x1]
        %v3415 = vlaneseq
        %v3416 = vshrl.u32 %v3415, 7
        %v3417 = vsub.s32 0, %v3416
        %v3418 = vrot.slane %v3413, %v3417
        %v3420 = vmul.f32 %v3412, %v3418
        %v3421 = vld [vmem:[#allocation29] sm:$0x1]
        %v3423 = vlaneseq
        %v3424 = vshrl.u32 %v3423, 7
        %v3425 = vsub.s32 0, %v3424
        %v3426 = vrot.slane %v3421, %v3425
        %v3428 = vadd.f32 %v3420, %v3426
        %v3429 = vld [vmem:[#allocation31] sm:$0xf]
        %v3430 = vld [vmem:[#allocation31 + $0x4] sm:$0xf]
        %v3431 = vld [vmem:[#allocation31 + $0x8] sm:$0xf]
        %v3432 = vld [vmem:[#allocation31 + $0xc] sm:$0xf]
        %v3433 = vpack.c.bf16 %v3428, %v3428
        %v3434 = vld [vmem:[#allocation32] sm:$0x1]
        %v3436 = vlaneseq
        %v3437 = vshrl.u32 %v3436, 7
        %v3438 = vsub.s32 0, %v3437
        %v3439 = vrot.slane %v3434, %v3438
        %v3445 = vunpack.c.l.b16 %v3429
        %v3446 = vunpack.c.l.b16 %v3430
        %v3447 = vunpack.c.l.b16 %v3431
        %v3448 = vunpack.c.l.b16 %v3432
        %v3449 = vpack.c.b16 %v3446, %v3445
        %v3450 = vpack.c.b16 %v3448, %v3447
        %v3454 = vsel %vm1419, %v3433, 0
        %3456 = vmatprep.subr.bf16.mxu0 0
        %3457 = vmatpush1.bf16.msra.mxu0 %v3449
        %3458 = vmatprep.subr.bf16.mxu0 0
        %3459 = vmatpush1.bf16.msra.mxu0 %v3450
        %3460 = vmatprep.subr.bf16.mxu0 0
        %3461 = vmatpush1.bf16.msra.mxu0 0
        %3462 = vmatprep.subr.bf16.mxu0 0
        %3463 = vmatpush1.bf16.msra.mxu0 0
        %3464 = vmatprep.subr.bf16.mxu0 0
        %3465 = vmatpush1.bf16.msra.mxu0 0
        %3466 = vmatprep.subr.bf16.mxu0 0
        %3467 = vmatpush1.bf16.msra.mxu0 0
        %3468 = vmatprep.subr.bf16.mxu0 0
        %3469 = vmatpush1.bf16.msra.mxu0 0
        %3470 = vmatprep.subr.bf16.mxu0 0
        %3471 = vmatpush1.bf16.msra.mxu0 0
        %3472 = vmatprep.subr.bf16.mxu0 0
        %3473 = vmatpush1.bf16.msra.mxu0 0
        %3474 = vmatprep.subr.bf16.mxu0 0
        %3475 = vmatpush1.bf16.msra.mxu0 0
        %3476 = vmatprep.subr.bf16.mxu0 0
        %3477 = vmatpush1.bf16.msra.mxu0 0
        %3478 = vmatprep.subr.bf16.mxu0 0
        %3479 = vmatpush1.bf16.msra.mxu0 0
        %3480 = vmatprep.subr.bf16.mxu0 0
        %3481 = vmatpush1.bf16.msra.mxu0 0
        %3482 = vmatprep.subr.bf16.mxu0 0
        %3483 = vmatpush1.bf16.msra.mxu0 0
        %3484 = vmatprep.subr.bf16.mxu0 0
        %3485 = vmatpush1.bf16.msra.mxu0 0
        %3486 = vmatprep.subr.bf16.mxu0 0
        %3487 = vmatpush1.bf16.msra.mxu0 0
        %3488 = vmatprep.mubr.bf16.mxu0 0
        %3489 = vmatmul.mubr.bf16.gmra.mrb[0].mxu0 %v3454
        %v3490 = vpop.f32.mrb[0].mxu0
        %v3491 = vadd.f32 %v3439, %v3490
        %v3492 = vpop.f32.mrb[0].mxu0
        %v3493 = vpop.f32.mrb[0].mxu0
        %v3494 = vpop.f32.mrb[0].mxu0
        %3495 = vdwg.mxu0
        %v3496 = vmax.f32 %v3491, 0.0
        %v3497 = vld [vmem:[%s63] sm:$0xf]
        %v3498 = vld [vmem:[%s63 + $0x4] sm:$0xf]
        %v3499 = vld [vmem:[%s63 + $0x8] sm:$0xf]
        %v3500 = vld [vmem:[%s63 + $0xc] sm:$0xf]
        %v3501 = vld [vmem:[%s63 + $0x10] sm:$0xf]
        %v3502 = vld [vmem:[%s63 + $0x14] sm:$0xf]
        %v3503 = vld [vmem:[%s63 + $0x18] sm:$0xf]
        %v3504 = vld [vmem:[%s63 + $0x1c] sm:$0xf]
        %v3505 = vpack.c.bf16 %v3496, %v3496
        %v3506 = vld [vmem:[#allocation34] sm:$0x1]
        %v3508 = vlaneseq
        %v3509 = vshrl.u32 %v3508, 7
        %v3510 = vsub.s32 0, %v3509
        %v3511 = vrot.slane %v3506, %v3510
        %v3521 = vunpack.c.l.b16 %v3497
        %v3522 = vunpack.c.l.b16 %v3498
        %v3523 = vunpack.c.l.b16 %v3499
        %v3524 = vunpack.c.l.b16 %v3500
        %v3525 = vunpack.c.l.b16 %v3501
        %v3526 = vunpack.c.l.b16 %v3502
        %v3527 = vunpack.c.l.b16 %v3503
        %v3528 = vunpack.c.l.b16 %v3504
        %v3529 = vpack.c.b16 %v3522, %v3521
        %v3530 = vpack.c.b16 %v3524, %v3523
        %v3531 = vpack.c.b16 %v3526, %v3525
        %v3532 = vpack.c.b16 %v3528, %v3527
        %vm3537 = vcmask 523264
        %v3539 = vsel %vm3537, %v3505, 0
        %3541 = vmatprep.subr.bf16.mxu0 0
        %3542 = vmatpush1.bf16.msra.mxu0 %v3529
        %3543 = vmatprep.subr.bf16.mxu0 0
        %3544 = vmatpush1.bf16.msra.mxu0 %v3530
        %3545 = vmatprep.subr.bf16.mxu0 0
        %3546 = vmatpush1.bf16.msra.mxu0 %v3531
        %3547 = vmatprep.subr.bf16.mxu0 0
        %3548 = vmatpush1.bf16.msra.mxu0 %v3532
        %3549 = vmatprep.subr.bf16.mxu0 0
        %3550 = vmatpush1.bf16.msra.mxu0 0
        %3551 = vmatprep.subr.bf16.mxu0 0
        %3552 = vmatpush1.bf16.msra.mxu0 0
        %3553 = vmatprep.subr.bf16.mxu0 0
        %3554 = vmatpush1.bf16.msra.mxu0 0
        %3555 = vmatprep.subr.bf16.mxu0 0
        %3556 = vmatpush1.bf16.msra.mxu0 0
        %3557 = vmatprep.subr.bf16.mxu0 0
        %3558 = vmatpush1.bf16.msra.mxu0 0
        %3559 = vmatprep.subr.bf16.mxu0 0
        %3560 = vmatpush1.bf16.msra.mxu0 0
        %3561 = vmatprep.subr.bf16.mxu0 0
        %3562 = vmatpush1.bf16.msra.mxu0 0
        %3563 = vmatprep.subr.bf16.mxu0 0
        %3564 = vmatpush1.bf16.msra.mxu0 0
        %3565 = vmatprep.subr.bf16.mxu0 0
        %3566 = vmatpush1.bf16.msra.mxu0 0
        %3567 = vmatprep.subr.bf16.mxu0 0
        %3568 = vmatpush1.bf16.msra.mxu0 0
        %3569 = vmatprep.subr.bf16.mxu0 0
        %3570 = vmatpush1.bf16.msra.mxu0 0
        %3571 = vmatprep.subr.bf16.mxu0 0
        %3572 = vmatpush1.bf16.msra.mxu0 0
        %3573 = vmatprep.mubr.bf16.mxu0 0
        %3574 = vmatmul.mubr.bf16.gmra.mrb[0].mxu0 %v3539
        %v3575 = vpop.f32.mrb[0].mxu0
        %v3576 = vadd.f32 %v3511, %v3575
        %v3577 = vpop.f32.mrb[0].mxu0
        %v3578 = vpop.f32.mrb[0].mxu0
        %v3579 = vpop.f32.mrb[0].mxu0
        %3580 = vdwg.mxu0
        %v3581 = vadd.f32 %v3399, %v3576
        %3582 = vst.msk [vmem:[%s1387] sm:$0xff] %vm1419, %v3581
        %3583 = vst.msk [vmem:[%s1363] sm:$0xff] %vm1921, %v3302
        %p3584 = scmp.lt.s32.totalorder %s95, 1
        %s3585 = scalar_select %p3584, %s95, 1
        %s3586 = smul.addr %s3585, 8
        %s3587 = scalar_lea.vmem %s67, %s3586
        %s3588 = sand.u32 %s847, 1
        %s3589 = scalar_lea.sflag [#allocation4], %s3588
        %s3590 = sand.u32 %s847, 1
        %s3591 = smul.addr %s3590, 8
        %s3592 = scalar_lea.vmem [#allocation35], %s3591
        // Predicated region
        $region237: #{decoder_forward.2} parent=151 // pred_check
          %p3593 = pneg %p831
        $region238: #{decoder_forward.2} parent=151 // pred_check_branch
          %3595 = sbr.rel (%p3593) target = $region240
        $region239: #{decoder_forward.2} parent=151 // pred_region
          _
        $region240: #{decoder_forward.2} parent=151 // pred_fallthru
          _
        // Predicated region
        $region241: #{decoder_forward.2} parent=151 // pred_check
          %p3596 = pneg %p857
        $region242: #{decoder_forward.2} parent=151 // pred_check_branch
          %3598 = sbr.rel (%p3596) target = $region244
        $region243: #{decoder_forward.2} parent=151 // pred_region
          %s3600 = ssub.s32 128, 128
          %3601 = vsyncadd %s3589, %s3600
          %s3602 = smul.addr %s95, 128
          %s3603 = scalar_lea.hbm %s69, %s3602
          %s3605 = sshll.u32 %s3592, 4
          %s3606 = int_to_ptr.vmem [resolvable:$true] %s3605
          %3608 = dma.vmem_to_hbm [thread:$0]  %s3606, 128, %s3603, %s3589
        $region244: #{decoder_forward.2} parent=151 // pred_fallthru
          _
      $region152: #{decoder_forward.2} parent=5 // pred_fallthru
        _
      %p3609 = scmp.le.s32.totalorder 2, %s90
      // Predicated region
      $region245: #{decoder_forward.2} parent=5 // pred_check
        %p3610 = pneg %p3609
      $region246: #{decoder_forward.2} parent=5 // pred_check_branch
        %3612 = sbr.rel (%p3610) target = $region248
      $region247: #{decoder_forward.2} parent=5 // pred_region
        %s3613 = ssub.s32 %s90, 2
        // Predicated region
        $region249: #{decoder_forward.2} parent=247 // pred_check
          %p3614 = pneg %p837
        $region250: #{decoder_forward.2} parent=247 // pred_check_branch
          %3616 = sbr.rel (%p3614) target = $region252
        $region251: #{decoder_forward.2} parent=247 // pred_region
          %p3617 = scmp.lt.s32.totalorder %s96, 1
          %s3618 = scalar_select %p3617, %s96, 1
          %s3619 = smul.addr %s3618, 8
          %s3620 = scalar_lea.vmem %s67, %s3619
        $region252: #{decoder_forward.2} parent=247 // pred_fallthru
          _
        // Predicated region
        $region253: #{decoder_forward.2} parent=247 // pred_check
          %p3621 = pneg %p863
        $region254: #{decoder_forward.2} parent=247 // pred_check_branch
          %3623 = sbr.rel (%p3621) target = $region256
        $region255: #{decoder_forward.2} parent=247 // pred_region
          %s3624 = sand.u32 %s848, 1
          %s3625 = scalar_lea.sflag [#allocation4], %s3624
          %s3626 = sand.u32 %s848, 1
          %s3627 = smul.addr %s3626, 8
          %s3628 = scalar_lea.vmem [#allocation35], %s3627
          %3629 = dma.done %s3625, 128
        $region256: #{decoder_forward.2} parent=247 // pred_fallthru
          _
      $region248: #{decoder_forward.2} parent=5 // pred_fallthru
        _
    $region6: #{decoder_forward.2} parent=1 // loop_footer
      %s94 = sadd.s32 1, %s90
    $region7: #{decoder_forward.2} parent=1 // loop_footer_branch
      %89 = sbr.rel target = $region3
    $region8: #{decoder_forward.2} parent=1 // loop_exit
      _
    %3630 = vsyncpa [#allocation3], 1
    %s3631 = scalar_lea.sflag [#allocation3], 1
    %3632 = vsyncpa %s3631, 1
    %3633 = vsyncpa [#allocation6], 1
    %3634 = vsyncpa [#allocation9], 1
    %3635 = vsyncpa [#allocation12], 1
    %3636 = vsyncpa [#allocation15], 1
    %3637 = vsyncpa [#allocation18], 1
    %3638 = vsyncpa [#allocation21], 1
    %3639 = vsyncpa [#allocation24], 1
    %3640 = vsyncpa [#allocation27], 1
    %3641 = vsyncpa [#allocation30], 1
    %3642 = vsyncpa [#allocation33], 1
    %3643 = vsyncpa [#allocation4], 1
    %s3644 = scalar_lea.sflag [#allocation4], 1
    %3645 = vsyncpa %s3644, 1

// kernel: decoder_forward.3
$region0: #{decoder_forward.3}
  #allocation0 [shape = 'u32[]', space=smem, size = 0x4, offset = 0x4, fixed_abs, tag = 'smem constant byte address 0x4 - core index']
  #allocation1 [shape = 'u32[144,128]{1,0:T(1,128)}', space=vmem, size = 0x12000, scoped, tag = 'internal scratch']
  %s0 = inlined_call_operand.smem [shape: u32[35], index: -1, kind: input, shape index: {}]
  %s1 = sld [smem:[%s0]]
  %s2 = scalar_lea.smem %s0, 1
  %s3 = sld [smem:[%s2]]
  %s4 = scalar_lea.smem %s0, 2
  %s5 = sld [smem:[%s4]]
  %s6 = scalar_lea.smem %s0, 3
  %s7 = sld [smem:[%s6]]
  %s8 = scalar_lea.smem %s0, 4
  %s9 = sld [smem:[%s8]]
  %s10 = scalar_lea.smem %s0, 5
  %s11 = sld [smem:[%s10]]
  %s12 = scalar_lea.smem %s0, 6
  %s13 = sld [smem:[%s12]]
  %s14 = scalar_lea.smem %s0, 7
  %s15 = sld [smem:[%s14]]
  %s16 = scalar_lea.smem %s0, 8
  %s17 = sld [smem:[%s16]]
  %s18 = scalar_lea.smem %s0, 9
  %s19 = sld [smem:[%s18]]
  %s20 = scalar_lea.smem %s0, 10
  %s21 = sld [smem:[%s20]]
  %s22 = scalar_lea.smem %s0, 11
  %s23 = sld [smem:[%s22]]
  %s24 = scalar_lea.smem %s0, 12
  %s25 = sld [smem:[%s24]]
  %s26 = scalar_lea.smem %s0, 13
  %s27 = sld [smem:[%s26]]
  %s28 = scalar_lea.smem %s0, 14
  %s29 = sld [smem:[%s28]]
  %s30 = scalar_lea.smem %s0, 15
  %s31 = sld [smem:[%s30]]
  %s32 = scalar_lea.smem %s0, 16
  %s33 = sld [smem:[%s32]]
  %s34 = scalar_lea.smem %s0, 17
  %s35 = sld [smem:[%s34]]
  %s36 = scalar_lea.smem %s0, 18
  %s37 = sld [smem:[%s36]]
  %s38 = scalar_lea.smem %s0, 19
  %s39 = sld [smem:[%s38]]
  %s40 = scalar_lea.smem %s0, 20
  %s41 = sld [smem:[%s40]]
  %s42 = scalar_lea.smem %s0, 21
  %s43 = sld [smem:[%s42]]
  %s44 = scalar_lea.smem %s0, 22
  %s45 = sld [smem:[%s44]]
  %s46 = scalar_lea.smem %s0, 23
  %s47 = sld [smem:[%s46]]
  %s48 = scalar_lea.smem %s0, 24
  %s49 = sld [smem:[%s48]]
  %s50 = scalar_lea.smem %s0, 25
  %s51 = sld [smem:[%s50]]
  %s52 = scalar_lea.smem %s0, 26
  %s53 = sld [smem:[%s52]]
  %s54 = scalar_lea.smem %s0, 27
  %s55 = sld [smem:[%s54]]
  %s56 = scalar_lea.smem %s0, 28
  %s57 = sld [smem:[%s56]]
  %s58 = scalar_lea.smem %s0, 29
  %s59 = sld [smem:[%s58]]
  %s60 = scalar_lea.smem %s0, 30
  %s61 = sld [smem:[%s60]]
  %s62 = scalar_lea.smem %s0, 31
  %s63 = sld [smem:[%s62]]
  %s64 = scalar_lea.smem %s0, 32
  %s65 = sld [smem:[%s64]]
  %s66 = scalar_lea.smem %s0, 33
  %s67 = sld [smem:[%s66]]
  %s68 = scalar_lea.smem %s0, 34
  %s69 = sld [smem:[%s68]]
  %70 = xla_tuple %s67, %s69
  %s71 = sld [smem:[#allocation0]]
  $region173: #{decoder_forward.3} parent=0
    _
  %s73 = ssub.s32 1, %s71
  %s74 = scalar_select 0, %s73, %s71
  $region1: #{decoder_forward.3} parent=0
    #allocation2 [shape = 'u8[8192]{0}', space=vmem, size = 0x2000, scoped, tag = 'output window, operand 0']
    #allocation3 [shape = 's32[2]{0}', space=sflag, size = 0x8, scoped, tag = 'scoped memory for decoder_forward.3']
    #allocation4 [shape = 'u8[8192]{0}', space=vmem, size = 0x2000, scoped, tag = 'output window, operand 1']
    #allocation5 [shape = 's32[2]{0}', space=sflag, size = 0x8, scoped, tag = 'scoped memory for decoder_forward.3']
    %75 = vsyncpa [#allocation3], 0
    %s76 = scalar_lea.sflag [#allocation3], 1
    %77 = vsyncpa %s76, 0
    %78 = vsyncpa [#allocation5], 0
    %s79 = scalar_lea.sflag [#allocation5], 1
    %80 = vsyncpa %s79, 0
    loop: start=0, step=1, limit=4
    $region2: #{decoder_forward.3} parent=1 // loop_pre_header
      _
    $region3: #{decoder_forward.3} parent=1 // loop_header
      %s82 = sphi 0, %s86
      %p83 = scmp.ge.s32.totalorder %s82, 4
      %s92 = sphi 0, %s94
      %s95 = sphi 0, %s92
      %s96 = sphi 0, %s95
      %s112 = sphi 0, %s96
      %s118 = sphi 0, %s120
      %s121 = sphi 0, %s118
      %s122 = sphi 0, %s121
      %s138 = sphi 0, %s122
      %s144 = sphi 0, %s146
      %s147 = sphi 0, %s144
      %s148 = sphi 0, %s147
      %s164 = sphi 0, %s148
      %s170 = sphi 0, %s172
      %s173 = sphi 0, %s170
      %s174 = sphi 0, %s173
      %s190 = sphi 0, %s174
      %s196 = sphi 0, %s198
      %s199 = sphi 0, %s196
      %s200 = sphi 0, %s199
      %s216 = sphi 0, %s200
      %s220 = sphi 0, %s220
      %s222 = sphi 0, %s220
      %s223 = sphi 0, %s222
      %s237 = sphi 0, %s223
      %s241 = sphi 0, %s241
      %s243 = sphi 0, %s241
      %s244 = sphi 0, %s243
      %s258 = sphi 0, %s244
      %s262 = sphi 0, %s262
      %s264 = sphi 0, %s262
      %s265 = sphi 0, %s264
      %s279 = sphi 0, %s265
      %s283 = sphi 0, %s283
      %s285 = sphi 0, %s283
      %s286 = sphi 0, %s285
      %s300 = sphi 0, %s286
      %s304 = sphi 0, %s304
      %s306 = sphi 0, %s304
      %s307 = sphi 0, %s306
      %s321 = sphi 0, %s307
      %s325 = sphi 0, %s325
      %s327 = sphi 0, %s325
      %s328 = sphi 0, %s327
      %s342 = sphi 0, %s328
      %s346 = sphi 0, %s346
      %s348 = sphi 0, %s346
      %s349 = sphi 0, %s348
      %s363 = sphi 0, %s349
      %s367 = sphi 0, %s367
      %s369 = sphi 0, %s367
      %s370 = sphi 0, %s369
      %s384 = sphi 0, %s370
      %s388 = sphi 0, %s388
      %s390 = sphi 0, %s388
      %s391 = sphi 0, %s390
      %s405 = sphi 0, %s391
      %s409 = sphi 0, %s409
      %s411 = sphi 0, %s409
      %s412 = sphi 0, %s411
      %s426 = sphi 0, %s412
      %s430 = sphi 0, %s430
      %s432 = sphi 0, %s430
      %s433 = sphi 0, %s432
      %s447 = sphi 0, %s433
      %s451 = sphi 0, %s451
      %s453 = sphi 0, %s451
      %s454 = sphi 0, %s453
      %s468 = sphi 0, %s454
      %s472 = sphi 0, %s472
      %s474 = sphi 0, %s472
      %s475 = sphi 0, %s474
      %s489 = sphi 0, %s475
      %s493 = sphi 0, %s493
      %s495 = sphi 0, %s493
      %s496 = sphi 0, %s495
      %s510 = sphi 0, %s496
      %s514 = sphi 0, %s514
      %s516 = sphi 0, %s514
      %s517 = sphi 0, %s516
      %s531 = sphi 0, %s517
      %s535 = sphi 0, %s535
      %s537 = sphi 0, %s535
      %s538 = sphi 0, %s537
      %s552 = sphi 0, %s538
      %s556 = sphi 0, %s556
      %s558 = sphi 0, %s556
      %s559 = sphi 0, %s558
      %s573 = sphi 0, %s559
      %s577 = sphi 0, %s577
      %s579 = sphi 0, %s577
      %s580 = sphi 0, %s579
      %s594 = sphi 0, %s580
      %s598 = sphi 0, %s598
      %s600 = sphi 0, %s598
      %s601 = sphi 0, %s600
      %s615 = sphi 0, %s601
      %s619 = sphi 0, %s619
      %s621 = sphi 0, %s619
      %s622 = sphi 0, %s621
      %s636 = sphi 0, %s622
      %s640 = sphi 0, %s640
      %s642 = sphi 0, %s640
      %s643 = sphi 0, %s642
      %s657 = sphi 0, %s643
      %s661 = sphi 0, %s661
      %s663 = sphi 0, %s661
      %s664 = sphi 0, %s663
      %s678 = sphi 0, %s664
      %s682 = sphi 0, %s682
      %s684 = sphi 0, %s682
      %s685 = sphi 0, %s684
      %s699 = sphi 0, %s685
      %s703 = sphi 0, %s703
      %s705 = sphi 0, %s703
      %s706 = sphi 0, %s705
      %s720 = sphi 0, %s706
      %s724 = sphi 0, %s724
      %s726 = sphi 0, %s724
      %s727 = sphi 0, %s726
      %s741 = sphi 0, %s727
      %s745 = sphi 0, %s745
      %s747 = sphi 0, %s745
      %s748 = sphi 0, %s747
      %s762 = sphi 0, %s748
      %s766 = sphi 0, %s766
      %s768 = sphi 0, %s766
      %s769 = sphi 0, %s768
      %s783 = sphi 0, %s769
      %s787 = sphi 0, %s787
      %s789 = sphi 0, %s787
      %s790 = sphi 0, %s789
      %s804 = sphi 0, %s790
      %s810 = sphi 0, %s812
      %s813 = sphi 0, %s810
      %s814 = sphi 0, %s813
      %s830 = sphi 0, %s814
      %s836 = sphi 0, %s838
      %s839 = sphi 0, %s836
      %s840 = sphi 0, %s839
      %s856 = sphi 0, %s840
    $region4: #{decoder_forward.3} parent=1 // loop_header_branch
      %85 = sbr.rel (%p83) target = $region8
    $region5: #{decoder_forward.3} parent=1 // loop_body
      %s87 = ssub.s32 %s82, 1
      %s88 = ssub.s32 %s82, 2
      %s89 = sadd.s32 %s82, 1
      %s90 = ssub.s32 %s82, %s89
      %p91 = scmp.eq.s32.totalorder %s90, 0
      %s93 = sadd.s32 %s92, 1
      %s94 = scalar_select %p91, %s92, %s93
      %p97 = pneg %p91
      %p98 = scmp.eq.s32.totalorder %s82, 1
      %p99 = por %p97, %p98
      %p100 = scmp.ne.s32.totalorder %s92, %s95
      %p101 = scmp.eq.s32.totalorder %s82, 0
      %p102 = por %p100, %p101
      %p103 = scmp.ne.s32.totalorder %s92, %s95
      %p104 = scmp.eq.s32.totalorder %s87, 1
      %p105 = por %p103, %p104
      %p106 = scmp.ne.s32.totalorder %s95, %s96
      %p107 = scmp.eq.s32.totalorder %s87, 0
      %p108 = por %p106, %p107
      %p109 = scmp.ne.s32.totalorder %s95, %s96
      %p110 = scmp.eq.s32.totalorder %s88, 1
      %p111 = por %p109, %p110
      %p113 = scmp.ne.s32.totalorder %s96, %s112
      %p114 = scmp.eq.s32.totalorder %s88, 0
      %p115 = por %p113, %p114
      %s116 = ssub.s32 %s82, %s89
      %p117 = scmp.eq.s32.totalorder %s116, 0
      %s119 = sadd.s32 %s118, 1
      %s120 = scalar_select %p117, %s118, %s119
      %p123 = pneg %p117
      %p124 = scmp.eq.s32.totalorder %s82, 1
      %p125 = por %p123, %p124
      %p126 = scmp.ne.s32.totalorder %s118, %s121
      %p127 = scmp.eq.s32.totalorder %s82, 0
      %p128 = por %p126, %p127
      %p129 = scmp.ne.s32.totalorder %s118, %s121
      %p130 = scmp.eq.s32.totalorder %s87, 1
      %p131 = por %p129, %p130
      %p132 = scmp.ne.s32.totalorder %s121, %s122
      %p133 = scmp.eq.s32.totalorder %s87, 0
      %p134 = por %p132, %p133
      %p135 = scmp.ne.s32.totalorder %s121, %s122
      %p136 = scmp.eq.s32.totalorder %s88, 1
      %p137 = por %p135, %p136
      %p139 = scmp.ne.s32.totalorder %s122, %s138
      %p140 = scmp.eq.s32.totalorder %s88, 0
      %p141 = por %p139, %p140
      %s142 = ssub.s32 %s82, %s89
      %p143 = scmp.eq.s32.totalorder %s142, 0
      %s145 = sadd.s32 %s144, 1
      %s146 = scalar_select %p143, %s144, %s145
      %p149 = pneg %p143
      %p150 = scmp.eq.s32.totalorder %s82, 1
      %p151 = por %p149, %p150
      %p152 = scmp.ne.s32.totalorder %s144, %s147
      %p153 = scmp.eq.s32.totalorder %s82, 0
      %p154 = por %p152, %p153
      %p155 = scmp.ne.s32.totalorder %s144, %s147
      %p156 = scmp.eq.s32.totalorder %s87, 1
      %p157 = por %p155, %p156
      %p158 = scmp.ne.s32.totalorder %s147, %s148
      %p159 = scmp.eq.s32.totalorder %s87, 0
      %p160 = por %p158, %p159
      %p161 = scmp.ne.s32.totalorder %s147, %s148
      %p162 = scmp.eq.s32.totalorder %s88, 1
      %p163 = por %p161, %p162
      %p165 = scmp.ne.s32.totalorder %s148, %s164
      %p166 = scmp.eq.s32.totalorder %s88, 0
      %p167 = por %p165, %p166
      %s168 = ssub.s32 %s82, %s89
      %p169 = scmp.eq.s32.totalorder %s168, 0
      %s171 = sadd.s32 %s170, 1
      %s172 = scalar_select %p169, %s170, %s171
      %p175 = pneg %p169
      %p176 = scmp.eq.s32.totalorder %s82, 1
      %p177 = por %p175, %p176
      %p178 = scmp.ne.s32.totalorder %s170, %s173
      %p179 = scmp.eq.s32.totalorder %s82, 0
      %p180 = por %p178, %p179
      %p181 = scmp.ne.s32.totalorder %s170, %s173
      %p182 = scmp.eq.s32.totalorder %s87, 1
      %p183 = por %p181, %p182
      %p184 = scmp.ne.s32.totalorder %s173, %s174
      %p185 = scmp.eq.s32.totalorder %s87, 0
      %p186 = por %p184, %p185
      %p187 = scmp.ne.s32.totalorder %s173, %s174
      %p188 = scmp.eq.s32.totalorder %s88, 1
      %p189 = por %p187, %p188
      %p191 = scmp.ne.s32.totalorder %s174, %s190
      %p192 = scmp.eq.s32.totalorder %s88, 0
      %p193 = por %p191, %p192
      %s194 = ssub.s32 %s82, %s89
      %p195 = scmp.eq.s32.totalorder %s194, 0
      %s197 = sadd.s32 %s196, 1
      %s198 = scalar_select %p195, %s196, %s197
      %p201 = pneg %p195
      %p202 = scmp.eq.s32.totalorder %s82, 1
      %p203 = por %p201, %p202
      %p204 = scmp.ne.s32.totalorder %s196, %s199
      %p205 = scmp.eq.s32.totalorder %s82, 0
      %p206 = por %p204, %p205
      %p207 = scmp.ne.s32.totalorder %s196, %s199
      %p208 = scmp.eq.s32.totalorder %s87, 1
      %p209 = por %p207, %p208
      %p210 = scmp.ne.s32.totalorder %s199, %s200
      %p211 = scmp.eq.s32.totalorder %s87, 0
      %p212 = por %p210, %p211
      %p213 = scmp.ne.s32.totalorder %s199, %s200
      %p214 = scmp.eq.s32.totalorder %s88, 1
      %p215 = por %p213, %p214
      %p217 = scmp.ne.s32.totalorder %s200, %s216
      %p218 = scmp.eq.s32.totalorder %s88, 0
      %p219 = por %p217, %p218
      %s221 = sadd.s32 %s220, 1
      %p224 = scmp.eq.s32.totalorder %s82, 1
      %p225 = scmp.ne.s32.totalorder %s220, %s222
      %p226 = scmp.eq.s32.totalorder %s82, 0
      %p227 = por %p225, %p226
      %p228 = scmp.ne.s32.totalorder %s220, %s222
      %p229 = scmp.eq.s32.totalorder %s87, 1
      %p230 = por %p228, %p229
      %p231 = scmp.ne.s32.totalorder %s222, %s223
      %p232 = scmp.eq.s32.totalorder %s87, 0
      %p233 = por %p231, %p232
      %p234 = scmp.ne.s32.totalorder %s222, %s223
      %p235 = scmp.eq.s32.totalorder %s88, 1
      %p236 = por %p234, %p235
      %p238 = scmp.ne.s32.totalorder %s223, %s237
      %p239 = scmp.eq.s32.totalorder %s88, 0
      %p240 = por %p238, %p239
      %s242 = sadd.s32 %s241, 1
      %p245 = scmp.eq.s32.totalorder %s82, 1
      %p246 = scmp.ne.s32.totalorder %s241, %s243
      %p247 = scmp.eq.s32.totalorder %s82, 0
      %p248 = por %p246, %p247
      %p249 = scmp.ne.s32.totalorder %s241, %s243
      %p250 = scmp.eq.s32.totalorder %s87, 1
      %p251 = por %p249, %p250
      %p252 = scmp.ne.s32.totalorder %s243, %s244
      %p253 = scmp.eq.s32.totalorder %s87, 0
      %p254 = por %p252, %p253
      %p255 = scmp.ne.s32.totalorder %s243, %s244
      %p256 = scmp.eq.s32.totalorder %s88, 1
      %p257 = por %p255, %p256
      %p259 = scmp.ne.s32.totalorder %s244, %s258
      %p260 = scmp.eq.s32.totalorder %s88, 0
      %p261 = por %p259, %p260
      %s263 = sadd.s32 %s262, 1
      %p266 = scmp.eq.s32.totalorder %s82, 1
      %p267 = scmp.ne.s32.totalorder %s262, %s264
      %p268 = scmp.eq.s32.totalorder %s82, 0
      %p269 = por %p267, %p268
      %p270 = scmp.ne.s32.totalorder %s262, %s264
      %p271 = scmp.eq.s32.totalorder %s87, 1
      %p272 = por %p270, %p271
      %p273 = scmp.ne.s32.totalorder %s264, %s265
      %p274 = scmp.eq.s32.totalorder %s87, 0
      %p275 = por %p273, %p274
      %p276 = scmp.ne.s32.totalorder %s264, %s265
      %p277 = scmp.eq.s32.totalorder %s88, 1
      %p278 = por %p276, %p277
      %p280 = scmp.ne.s32.totalorder %s265, %s279
      %p281 = scmp.eq.s32.totalorder %s88, 0
      %p282 = por %p280, %p281
      %s284 = sadd.s32 %s283, 1
      %p287 = scmp.eq.s32.totalorder %s82, 1
      %p288 = scmp.ne.s32.totalorder %s283, %s285
      %p289 = scmp.eq.s32.totalorder %s82, 0
      %p290 = por %p288, %p289
      %p291 = scmp.ne.s32.totalorder %s283, %s285
      %p292 = scmp.eq.s32.totalorder %s87, 1
      %p293 = por %p291, %p292
      %p294 = scmp.ne.s32.totalorder %s285, %s286
      %p295 = scmp.eq.s32.totalorder %s87, 0
      %p296 = por %p294, %p295
      %p297 = scmp.ne.s32.totalorder %s285, %s286
      %p298 = scmp.eq.s32.totalorder %s88, 1
      %p299 = por %p297, %p298
      %p301 = scmp.ne.s32.totalorder %s286, %s300
      %p302 = scmp.eq.s32.totalorder %s88, 0
      %p303 = por %p301, %p302
      %s305 = sadd.s32 %s304, 1
      %p308 = scmp.eq.s32.totalorder %s82, 1
      %p309 = scmp.ne.s32.totalorder %s304, %s306
      %p310 = scmp.eq.s32.totalorder %s82, 0
      %p311 = por %p309, %p310
      %p312 = scmp.ne.s32.totalorder %s304, %s306
      %p313 = scmp.eq.s32.totalorder %s87, 1
      %p314 = por %p312, %p313
      %p315 = scmp.ne.s32.totalorder %s306, %s307
      %p316 = scmp.eq.s32.totalorder %s87, 0
      %p317 = por %p315, %p316
      %p318 = scmp.ne.s32.totalorder %s306, %s307
      %p319 = scmp.eq.s32.totalorder %s88, 1
      %p320 = por %p318, %p319
      %p322 = scmp.ne.s32.totalorder %s307, %s321
      %p323 = scmp.eq.s32.totalorder %s88, 0
      %p324 = por %p322, %p323
      %s326 = sadd.s32 %s325, 1
      %p329 = scmp.eq.s32.totalorder %s82, 1
      %p330 = scmp.ne.s32.totalorder %s325, %s327
      %p331 = scmp.eq.s32.totalorder %s82, 0
      %p332 = por %p330, %p331
      %p333 = scmp.ne.s32.totalorder %s325, %s327
      %p334 = scmp.eq.s32.totalorder %s87, 1
      %p335 = por %p333, %p334
      %p336 = scmp.ne.s32.totalorder %s327, %s328
      %p337 = scmp.eq.s32.totalorder %s87, 0
      %p338 = por %p336, %p337
      %p339 = scmp.ne.s32.totalorder %s327, %s328
      %p340 = scmp.eq.s32.totalorder %s88, 1
      %p341 = por %p339, %p340
      %p343 = scmp.ne.s32.totalorder %s328, %s342
      %p344 = scmp.eq.s32.totalorder %s88, 0
      %p345 = por %p343, %p344
      %s347 = sadd.s32 %s346, 1
      %p350 = scmp.eq.s32.totalorder %s82, 1
      %p351 = scmp.ne.s32.totalorder %s346, %s348
      %p352 = scmp.eq.s32.totalorder %s82, 0
      %p353 = por %p351, %p352
      %p354 = scmp.ne.s32.totalorder %s346, %s348
      %p355 = scmp.eq.s32.totalorder %s87, 1
      %p356 = por %p354, %p355
      %p357 = scmp.ne.s32.totalorder %s348, %s349
      %p358 = scmp.eq.s32.totalorder %s87, 0
      %p359 = por %p357, %p358
      %p360 = scmp.ne.s32.totalorder %s348, %s349
      %p361 = scmp.eq.s32.totalorder %s88, 1
      %p362 = por %p360, %p361
      %p364 = scmp.ne.s32.totalorder %s349, %s363
      %p365 = scmp.eq.s32.totalorder %s88, 0
      %p366 = por %p364, %p365
      %s368 = sadd.s32 %s367, 1
      %p371 = scmp.eq.s32.totalorder %s82, 1
      %p372 = scmp.ne.s32.totalorder %s367, %s369
      %p373 = scmp.eq.s32.totalorder %s82, 0
      %p374 = por %p372, %p373
      %p375 = scmp.ne.s32.totalorder %s367, %s369
      %p376 = scmp.eq.s32.totalorder %s87, 1
      %p377 = por %p375, %p376
      %p378 = scmp.ne.s32.totalorder %s369, %s370
      %p379 = scmp.eq.s32.totalorder %s87, 0
      %p380 = por %p378, %p379
      %p381 = scmp.ne.s32.totalorder %s369, %s370
      %p382 = scmp.eq.s32.totalorder %s88, 1
      %p383 = por %p381, %p382
      %p385 = scmp.ne.s32.totalorder %s370, %s384
      %p386 = scmp.eq.s32.totalorder %s88, 0
      %p387 = por %p385, %p386
      %s389 = sadd.s32 %s388, 1
      %p392 = scmp.eq.s32.totalorder %s82, 1
      %p393 = scmp.ne.s32.totalorder %s388, %s390
      %p394 = scmp.eq.s32.totalorder %s82, 0
      %p395 = por %p393, %p394
      %p396 = scmp.ne.s32.totalorder %s388, %s390
      %p397 = scmp.eq.s32.totalorder %s87, 1
      %p398 = por %p396, %p397
      %p399 = scmp.ne.s32.totalorder %s390, %s391
      %p400 = scmp.eq.s32.totalorder %s87, 0
      %p401 = por %p399, %p400
      %p402 = scmp.ne.s32.totalorder %s390, %s391
      %p403 = scmp.eq.s32.totalorder %s88, 1
      %p404 = por %p402, %p403
      %p406 = scmp.ne.s32.totalorder %s391, %s405
      %p407 = scmp.eq.s32.totalorder %s88, 0
      %p408 = por %p406, %p407
      %s410 = sadd.s32 %s409, 1
      %p413 = scmp.eq.s32.totalorder %s82, 1
      %p414 = scmp.ne.s32.totalorder %s409, %s411
      %p415 = scmp.eq.s32.totalorder %s82, 0
      %p416 = por %p414, %p415
      %p417 = scmp.ne.s32.totalorder %s409, %s411
      %p418 = scmp.eq.s32.totalorder %s87, 1
      %p419 = por %p417, %p418
      %p420 = scmp.ne.s32.totalorder %s411, %s412
      %p421 = scmp.eq.s32.totalorder %s87, 0
      %p422 = por %p420, %p421
      %p423 = scmp.ne.s32.totalorder %s411, %s412
      %p424 = scmp.eq.s32.totalorder %s88, 1
      %p425 = por %p423, %p424
      %p427 = scmp.ne.s32.totalorder %s412, %s426
      %p428 = scmp.eq.s32.totalorder %s88, 0
      %p429 = por %p427, %p428
      %s431 = sadd.s32 %s430, 1
      %p434 = scmp.eq.s32.totalorder %s82, 1
      %p435 = scmp.ne.s32.totalorder %s430, %s432
      %p436 = scmp.eq.s32.totalorder %s82, 0
      %p437 = por %p435, %p436
      %p438 = scmp.ne.s32.totalorder %s430, %s432
      %p439 = scmp.eq.s32.totalorder %s87, 1
      %p440 = por %p438, %p439
      %p441 = scmp.ne.s32.totalorder %s432, %s433
      %p442 = scmp.eq.s32.totalorder %s87, 0
      %p443 = por %p441, %p442
      %p444 = scmp.ne.s32.totalorder %s432, %s433
      %p445 = scmp.eq.s32.totalorder %s88, 1
      %p446 = por %p444, %p445
      %p448 = scmp.ne.s32.totalorder %s433, %s447
      %p449 = scmp.eq.s32.totalorder %s88, 0
      %p450 = por %p448, %p449
      %s452 = sadd.s32 %s451, 1
      %p455 = scmp.eq.s32.totalorder %s82, 1
      %p456 = scmp.ne.s32.totalorder %s451, %s453
      %p457 = scmp.eq.s32.totalorder %s82, 0
      %p458 = por %p456, %p457
      %p459 = scmp.ne.s32.totalorder %s451, %s453
      %p460 = scmp.eq.s32.totalorder %s87, 1
      %p461 = por %p459, %p460
      %p462 = scmp.ne.s32.totalorder %s453, %s454
      %p463 = scmp.eq.s32.totalorder %s87, 0
      %p464 = por %p462, %p463
      %p465 = scmp.ne.s32.totalorder %s453, %s454
      %p466 = scmp.eq.s32.totalorder %s88, 1
      %p467 = por %p465, %p466
      %p469 = scmp.ne.s32.totalorder %s454, %s468
      %p470 = scmp.eq.s32.totalorder %s88, 0
      %p471 = por %p469, %p470
      %s473 = sadd.s32 %s472, 1
      %p476 = scmp.eq.s32.totalorder %s82, 1
      %p477 = scmp.ne.s32.totalorder %s472, %s474
      %p478 = scmp.eq.s32.totalorder %s82, 0
      %p479 = por %p477, %p478
      %p480 = scmp.ne.s32.totalorder %s472, %s474
      %p481 = scmp.eq.s32.totalorder %s87, 1
      %p482 = por %p480, %p481
      %p483 = scmp.ne.s32.totalorder %s474, %s475
      %p484 = scmp.eq.s32.totalorder %s87, 0
      %p485 = por %p483, %p484
      %p486 = scmp.ne.s32.totalorder %s474, %s475
      %p487 = scmp.eq.s32.totalorder %s88, 1
      %p488 = por %p486, %p487
      %p490 = scmp.ne.s32.totalorder %s475, %s489
      %p491 = scmp.eq.s32.totalorder %s88, 0
      %p492 = por %p490, %p491
      %s494 = sadd.s32 %s493, 1
      %p497 = scmp.eq.s32.totalorder %s82, 1
      %p498 = scmp.ne.s32.totalorder %s493, %s495
      %p499 = scmp.eq.s32.totalorder %s82, 0
      %p500 = por %p498, %p499
      %p501 = scmp.ne.s32.totalorder %s493, %s495
      %p502 = scmp.eq.s32.totalorder %s87, 1
      %p503 = por %p501, %p502
      %p504 = scmp.ne.s32.totalorder %s495, %s496
      %p505 = scmp.eq.s32.totalorder %s87, 0
      %p506 = por %p504, %p505
      %p507 = scmp.ne.s32.totalorder %s495, %s496
      %p508 = scmp.eq.s32.totalorder %s88, 1
      %p509 = por %p507, %p508
      %p511 = scmp.ne.s32.totalorder %s496, %s510
      %p512 = scmp.eq.s32.totalorder %s88, 0
      %p513 = por %p511, %p512
      %s515 = sadd.s32 %s514, 1
      %p518 = scmp.eq.s32.totalorder %s82, 1
      %p519 = scmp.ne.s32.totalorder %s514, %s516
      %p520 = scmp.eq.s32.totalorder %s82, 0
      %p521 = por %p519, %p520
      %p522 = scmp.ne.s32.totalorder %s514, %s516
      %p523 = scmp.eq.s32.totalorder %s87, 1
      %p524 = por %p522, %p523
      %p525 = scmp.ne.s32.totalorder %s516, %s517
      %p526 = scmp.eq.s32.totalorder %s87, 0
      %p527 = por %p525, %p526
      %p528 = scmp.ne.s32.totalorder %s516, %s517
      %p529 = scmp.eq.s32.totalorder %s88, 1
      %p530 = por %p528, %p529
      %p532 = scmp.ne.s32.totalorder %s517, %s531
      %p533 = scmp.eq.s32.totalorder %s88, 0
      %p534 = por %p532, %p533
      %s536 = sadd.s32 %s535, 1
      %p539 = scmp.eq.s32.totalorder %s82, 1
      %p540 = scmp.ne.s32.totalorder %s535, %s537
      %p541 = scmp.eq.s32.totalorder %s82, 0
      %p542 = por %p540, %p541
      %p543 = scmp.ne.s32.totalorder %s535, %s537
      %p544 = scmp.eq.s32.totalorder %s87, 1
      %p545 = por %p543, %p544
      %p546 = scmp.ne.s32.totalorder %s537, %s538
      %p547 = scmp.eq.s32.totalorder %s87, 0
      %p548 = por %p546, %p547
      %p549 = scmp.ne.s32.totalorder %s537, %s538
      %p550 = scmp.eq.s32.totalorder %s88, 1
      %p551 = por %p549, %p550
      %p553 = scmp.ne.s32.totalorder %s538, %s552
      %p554 = scmp.eq.s32.totalorder %s88, 0
      %p555 = por %p553, %p554
      %s557 = sadd.s32 %s556, 1
      %p560 = scmp.eq.s32.totalorder %s82, 1
      %p561 = scmp.ne.s32.totalorder %s556, %s558
      %p562 = scmp.eq.s32.totalorder %s82, 0
      %p563 = por %p561, %p562
      %p564 = scmp.ne.s32.totalorder %s556, %s558
      %p565 = scmp.eq.s32.totalorder %s87, 1
      %p566 = por %p564, %p565
      %p567 = scmp.ne.s32.totalorder %s558, %s559
      %p568 = scmp.eq.s32.totalorder %s87, 0
      %p569 = por %p567, %p568
      %p570 = scmp.ne.s32.totalorder %s558, %s559
      %p571 = scmp.eq.s32.totalorder %s88, 1
      %p572 = por %p570, %p571
      %p574 = scmp.ne.s32.totalorder %s559, %s573
      %p575 = scmp.eq.s32.totalorder %s88, 0
      %p576 = por %p574, %p575
      %s578 = sadd.s32 %s577, 1
      %p581 = scmp.eq.s32.totalorder %s82, 1
      %p582 = scmp.ne.s32.totalorder %s577, %s579
      %p583 = scmp.eq.s32.totalorder %s82, 0
      %p584 = por %p582, %p583
      %p585 = scmp.ne.s32.totalorder %s577, %s579
      %p586 = scmp.eq.s32.totalorder %s87, 1
      %p587 = por %p585, %p586
      %p588 = scmp.ne.s32.totalorder %s579, %s580
      %p589 = scmp.eq.s32.totalorder %s87, 0
      %p590 = por %p588, %p589
      %p591 = scmp.ne.s32.totalorder %s579, %s580
      %p592 = scmp.eq.s32.totalorder %s88, 1
      %p593 = por %p591, %p592
      %p595 = scmp.ne.s32.totalorder %s580, %s594
      %p596 = scmp.eq.s32.totalorder %s88, 0
      %p597 = por %p595, %p596
      %s599 = sadd.s32 %s598, 1
      %p602 = scmp.eq.s32.totalorder %s82, 1
      %p603 = scmp.ne.s32.totalorder %s598, %s600
      %p604 = scmp.eq.s32.totalorder %s82, 0
      %p605 = por %p603, %p604
      %p606 = scmp.ne.s32.totalorder %s598, %s600
      %p607 = scmp.eq.s32.totalorder %s87, 1
      %p608 = por %p606, %p607
      %p609 = scmp.ne.s32.totalorder %s600, %s601
      %p610 = scmp.eq.s32.totalorder %s87, 0
      %p611 = por %p609, %p610
      %p612 = scmp.ne.s32.totalorder %s600, %s601
      %p613 = scmp.eq.s32.totalorder %s88, 1
      %p614 = por %p612, %p613
      %p616 = scmp.ne.s32.totalorder %s601, %s615
      %p617 = scmp.eq.s32.totalorder %s88, 0
      %p618 = por %p616, %p617
      %s620 = sadd.s32 %s619, 1
      %p623 = scmp.eq.s32.totalorder %s82, 1
      %p624 = scmp.ne.s32.totalorder %s619, %s621
      %p625 = scmp.eq.s32.totalorder %s82, 0
      %p626 = por %p624, %p625
      %p627 = scmp.ne.s32.totalorder %s619, %s621
      %p628 = scmp.eq.s32.totalorder %s87, 1
      %p629 = por %p627, %p628
      %p630 = scmp.ne.s32.totalorder %s621, %s622
      %p631 = scmp.eq.s32.totalorder %s87, 0
      %p632 = por %p630, %p631
      %p633 = scmp.ne.s32.totalorder %s621, %s622
      %p634 = scmp.eq.s32.totalorder %s88, 1
      %p635 = por %p633, %p634
      %p637 = scmp.ne.s32.totalorder %s622, %s636
      %p638 = scmp.eq.s32.totalorder %s88, 0
      %p639 = por %p637, %p638
      %s641 = sadd.s32 %s640, 1
      %p644 = scmp.eq.s32.totalorder %s82, 1
      %p645 = scmp.ne.s32.totalorder %s640, %s642
      %p646 = scmp.eq.s32.totalorder %s82, 0
      %p647 = por %p645, %p646
      %p648 = scmp.ne.s32.totalorder %s640, %s642
      %p649 = scmp.eq.s32.totalorder %s87, 1
      %p650 = por %p648, %p649
      %p651 = scmp.ne.s32.totalorder %s642, %s643
      %p652 = scmp.eq.s32.totalorder %s87, 0
      %p653 = por %p651, %p652
      %p654 = scmp.ne.s32.totalorder %s642, %s643
      %p655 = scmp.eq.s32.totalorder %s88, 1
      %p656 = por %p654, %p655
      %p658 = scmp.ne.s32.totalorder %s643, %s657
      %p659 = scmp.eq.s32.totalorder %s88, 0
      %p660 = por %p658, %p659
      %s662 = sadd.s32 %s661, 1
      %p665 = scmp.eq.s32.totalorder %s82, 1
      %p666 = scmp.ne.s32.totalorder %s661, %s663
      %p667 = scmp.eq.s32.totalorder %s82, 0
      %p668 = por %p666, %p667
      %p669 = scmp.ne.s32.totalorder %s661, %s663
      %p670 = scmp.eq.s32.totalorder %s87, 1
      %p671 = por %p669, %p670
      %p672 = scmp.ne.s32.totalorder %s663, %s664
      %p673 = scmp.eq.s32.totalorder %s87, 0
      %p674 = por %p672, %p673
      %p675 = scmp.ne.s32.totalorder %s663, %s664
      %p676 = scmp.eq.s32.totalorder %s88, 1
      %p677 = por %p675, %p676
      %p679 = scmp.ne.s32.totalorder %s664, %s678
      %p680 = scmp.eq.s32.totalorder %s88, 0
      %p681 = por %p679, %p680
      %s683 = sadd.s32 %s682, 1
      %p686 = scmp.eq.s32.totalorder %s82, 1
      %p687 = scmp.ne.s32.totalorder %s682, %s684
      %p688 = scmp.eq.s32.totalorder %s82, 0
      %p689 = por %p687, %p688
      %p690 = scmp.ne.s32.totalorder %s682, %s684
      %p691 = scmp.eq.s32.totalorder %s87, 1
      %p692 = por %p690, %p691
      %p693 = scmp.ne.s32.totalorder %s684, %s685
      %p694 = scmp.eq.s32.totalorder %s87, 0
      %p695 = por %p693, %p694
      %p696 = scmp.ne.s32.totalorder %s684, %s685
      %p697 = scmp.eq.s32.totalorder %s88, 1
      %p698 = por %p696, %p697
      %p700 = scmp.ne.s32.totalorder %s685, %s699
      %p701 = scmp.eq.s32.totalorder %s88, 0
      %p702 = por %p700, %p701
      %s704 = sadd.s32 %s703, 1
      %p707 = scmp.eq.s32.totalorder %s82, 1
      %p708 = scmp.ne.s32.totalorder %s703, %s705
      %p709 = scmp.eq.s32.totalorder %s82, 0
      %p710 = por %p708, %p709
      %p711 = scmp.ne.s32.totalorder %s703, %s705
      %p712 = scmp.eq.s32.totalorder %s87, 1
      %p713 = por %p711, %p712
      %p714 = scmp.ne.s32.totalorder %s705, %s706
      %p715 = scmp.eq.s32.totalorder %s87, 0
      %p716 = por %p714, %p715
      %p717 = scmp.ne.s32.totalorder %s705, %s706
      %p718 = scmp.eq.s32.totalorder %s88, 1
      %p719 = por %p717, %p718
      %p721 = scmp.ne.s32.totalorder %s706, %s720
      %p722 = scmp.eq.s32.totalorder %s88, 0
      %p723 = por %p721, %p722
      %s725 = sadd.s32 %s724, 1
      %p728 = scmp.eq.s32.totalorder %s82, 1
      %p729 = scmp.ne.s32.totalorder %s724, %s726
      %p730 = scmp.eq.s32.totalorder %s82, 0
      %p731 = por %p729, %p730
      %p732 = scmp.ne.s32.totalorder %s724, %s726
      %p733 = scmp.eq.s32.totalorder %s87, 1
      %p734 = por %p732, %p733
      %p735 = scmp.ne.s32.totalorder %s726, %s727
      %p736 = scmp.eq.s32.totalorder %s87, 0
      %p737 = por %p735, %p736
      %p738 = scmp.ne.s32.totalorder %s726, %s727
      %p739 = scmp.eq.s32.totalorder %s88, 1
      %p740 = por %p738, %p739
      %p742 = scmp.ne.s32.totalorder %s727, %s741
      %p743 = scmp.eq.s32.totalorder %s88, 0
      %p744 = por %p742, %p743
      %s746 = sadd.s32 %s745, 1
      %p749 = scmp.eq.s32.totalorder %s82, 1
      %p750 = scmp.ne.s32.totalorder %s745, %s747
      %p751 = scmp.eq.s32.totalorder %s82, 0
      %p752 = por %p750, %p751
      %p753 = scmp.ne.s32.totalorder %s745, %s747
      %p754 = scmp.eq.s32.totalorder %s87, 1
      %p755 = por %p753, %p754
      %p756 = scmp.ne.s32.totalorder %s747, %s748
      %p757 = scmp.eq.s32.totalorder %s87, 0
      %p758 = por %p756, %p757
      %p759 = scmp.ne.s32.totalorder %s747, %s748
      %p760 = scmp.eq.s32.totalorder %s88, 1
      %p761 = por %p759, %p760
      %p763 = scmp.ne.s32.totalorder %s748, %s762
      %p764 = scmp.eq.s32.totalorder %s88, 0
      %p765 = por %p763, %p764
      %s767 = sadd.s32 %s766, 1
      %p770 = scmp.eq.s32.totalorder %s82, 1
      %p771 = scmp.ne.s32.totalorder %s766, %s768
      %p772 = scmp.eq.s32.totalorder %s82, 0
      %p773 = por %p771, %p772
      %p774 = scmp.ne.s32.totalorder %s766, %s768
      %p775 = scmp.eq.s32.totalorder %s87, 1
      %p776 = por %p774, %p775
      %p777 = scmp.ne.s32.totalorder %s768, %s769
      %p778 = scmp.eq.s32.totalorder %s87, 0
      %p779 = por %p777, %p778
      %p780 = scmp.ne.s32.totalorder %s768, %s769
      %p781 = scmp.eq.s32.totalorder %s88, 1
      %p782 = por %p780, %p781
      %p784 = scmp.ne.s32.totalorder %s769, %s783
      %p785 = scmp.eq.s32.totalorder %s88, 0
      %p786 = por %p784, %p785
      %s788 = sadd.s32 %s787, 1
      %p791 = scmp.eq.s32.totalorder %s82, 1
      %p792 = scmp.ne.s32.totalorder %s787, %s789
      %p793 = scmp.eq.s32.totalorder %s82, 0
      %p794 = por %p792, %p793
      %p795 = scmp.ne.s32.totalorder %s787, %s789
      %p796 = scmp.eq.s32.totalorder %s87, 1
      %p797 = por %p795, %p796
      %p798 = scmp.ne.s32.totalorder %s789, %s790
      %p799 = scmp.eq.s32.totalorder %s87, 0
      %p800 = por %p798, %p799
      %p801 = scmp.ne.s32.totalorder %s789, %s790
      %p802 = scmp.eq.s32.totalorder %s88, 1
      %p803 = por %p801, %p802
      %p805 = scmp.ne.s32.totalorder %s790, %s804
      %p806 = scmp.eq.s32.totalorder %s88, 0
      %p807 = por %p805, %p806
      %s808 = ssub.s32 %s82, %s89
      %p809 = scmp.eq.s32.totalorder %s808, 0
      %s811 = sadd.s32 %s810, 1
      %s812 = scalar_select %p809, %s810, %s811
      %p815 = pneg %p809
      %p816 = scmp.eq.s32.totalorder %s82, 1
      %p817 = por %p815, %p816
      %p818 = scmp.ne.s32.totalorder %s810, %s813
      %p819 = scmp.eq.s32.totalorder %s82, 0
      %p820 = por %p818, %p819
      %p821 = scmp.ne.s32.totalorder %s810, %s813
      %p822 = scmp.eq.s32.totalorder %s87, 1
      %p823 = por %p821, %p822
      %p824 = scmp.ne.s32.totalorder %s813, %s814
      %p825 = scmp.eq.s32.totalorder %s87, 0
      %p826 = por %p824, %p825
      %p827 = scmp.ne.s32.totalorder %s813, %s814
      %p828 = scmp.eq.s32.totalorder %s88, 1
      %p829 = por %p827, %p828
      %p831 = scmp.ne.s32.totalorder %s814, %s830
      %p832 = scmp.eq.s32.totalorder %s88, 0
      %p833 = por %p831, %p832
      %s834 = ssub.s32 %s82, %s89
      %p835 = scmp.eq.s32.totalorder %s834, 0
      %s837 = sadd.s32 %s836, 1
      %s838 = scalar_select %p835, %s836, %s837
      %p841 = pneg %p835
      %p842 = scmp.eq.s32.totalorder %s82, 1
      %p843 = por %p841, %p842
      %p844 = scmp.ne.s32.totalorder %s836, %s839
      %p845 = scmp.eq.s32.totalorder %s82, 0
      %p846 = por %p844, %p845
      %p847 = scmp.ne.s32.totalorder %s836, %s839
      %p848 = scmp.eq.s32.totalorder %s87, 1
      %p849 = por %p847, %p848
      %p850 = scmp.ne.s32.totalorder %s839, %s840
      %p851 = scmp.eq.s32.totalorder %s87, 0
      %p852 = por %p850, %p851
      %p853 = scmp.ne.s32.totalorder %s839, %s840
      %p854 = scmp.eq.s32.totalorder %s88, 1
      %p855 = por %p853, %p854
      %p857 = scmp.ne.s32.totalorder %s840, %s856
      %p858 = scmp.eq.s32.totalorder %s88, 0
      %p859 = por %p857, %p858
      %p860 = scmp.le.s32.totalorder 1, %s82
      %p861 = scmp.lt.s32.totalorder %s82, 3
      %p862 = pnand %p860, %p861
      %p863 = pneg %p862
      // Predicated region
      $region9: #{decoder_forward.3} parent=5 // pred_check
        _
      $region10: #{decoder_forward.3} parent=5 // pred_check_branch
        %865 = sbr.rel (%p862) target = $region12
      $region11: #{decoder_forward.3} parent=5 // pred_region
        %s866 = ssub.s32 %s82, 1
        // Predicated region
        $region13: #{decoder_forward.3} parent=11 // pred_check
          %p867 = pneg %p233
        $region14: #{decoder_forward.3} parent=11 // pred_check_branch
          %869 = sbr.rel (%p867) target = $region16
        $region15: #{decoder_forward.3} parent=11 // pred_region
          _
        $region16: #{decoder_forward.3} parent=11 // pred_fallthru
          _
        // Predicated region
        $region17: #{decoder_forward.3} parent=11 // pred_check
          %p870 = pneg %p254
        $region18: #{decoder_forward.3} parent=11 // pred_check_branch
          %872 = sbr.rel (%p870) target = $region20
        $region19: #{decoder_forward.3} parent=11 // pred_region
          _
        $region20: #{decoder_forward.3} parent=11 // pred_fallthru
          _
        // Predicated region
        $region21: #{decoder_forward.3} parent=11 // pred_check
          %p873 = pneg %p275
        $region22: #{decoder_forward.3} parent=11 // pred_check_branch
          %875 = sbr.rel (%p873) target = $region24
        $region23: #{decoder_forward.3} parent=11 // pred_region
          _
        $region24: #{decoder_forward.3} parent=11 // pred_fallthru
          _
        // Predicated region
        $region25: #{decoder_forward.3} parent=11 // pred_check
          %p876 = pneg %p296
        $region26: #{decoder_forward.3} parent=11 // pred_check_branch
          %878 = sbr.rel (%p876) target = $region28
        $region27: #{decoder_forward.3} parent=11 // pred_region
          _
        $region28: #{decoder_forward.3} parent=11 // pred_fallthru
          _
        // Predicated region
        $region29: #{decoder_forward.3} parent=11 // pred_check
          %p879 = pneg %p317
        $region30: #{decoder_forward.3} parent=11 // pred_check_branch
          %881 = sbr.rel (%p879) target = $region32
        $region31: #{decoder_forward.3} parent=11 // pred_region
          _
        $region32: #{decoder_forward.3} parent=11 // pred_fallthru
          _
        // Predicated region
        $region33: #{decoder_forward.3} parent=11 // pred_check
          %p882 = pneg %p338
        $region34: #{decoder_forward.3} parent=11 // pred_check_branch
          %884 = sbr.rel (%p882) target = $region36
        $region35: #{decoder_forward.3} parent=11 // pred_region
          _
        $region36: #{decoder_forward.3} parent=11 // pred_fallthru
          _
        // Predicated region
        $region37: #{decoder_forward.3} parent=11 // pred_check
          %p885 = pneg %p359
        $region38: #{decoder_forward.3} parent=11 // pred_check_branch
          %887 = sbr.rel (%p885) target = $region40
        $region39: #{decoder_forward.3} parent=11 // pred_region
          _
        $region40: #{decoder_forward.3} parent=11 // pred_fallthru
          _
        // Predicated region
        $region41: #{decoder_forward.3} parent=11 // pred_check
          %p888 = pneg %p380
        $region42: #{decoder_forward.3} parent=11 // pred_check_branch
          %890 = sbr.rel (%p888) target = $region44
        $region43: #{decoder_forward.3} parent=11 // pred_region
          _
        $region44: #{decoder_forward.3} parent=11 // pred_fallthru
          _
        // Predicated region
        $region45: #{decoder_forward.3} parent=11 // pred_check
          %p891 = pneg %p401
        $region46: #{decoder_forward.3} parent=11 // pred_check_branch
          %893 = sbr.rel (%p891) target = $region48
        $region47: #{decoder_forward.3} parent=11 // pred_region
          _
        $region48: #{decoder_forward.3} parent=11 // pred_fallthru
          _
        // Predicated region
        $region49: #{decoder_forward.3} parent=11 // pred_check
          %p894 = pneg %p422
        $region50: #{decoder_forward.3} parent=11 // pred_check_branch
          %896 = sbr.rel (%p894) target = $region52
        $region51: #{decoder_forward.3} parent=11 // pred_region
          _
        $region52: #{decoder_forward.3} parent=11 // pred_fallthru
          _
        // Predicated region
        $region53: #{decoder_forward.3} parent=11 // pred_check
          %p897 = pneg %p443
        $region54: #{decoder_forward.3} parent=11 // pred_check_branch
          %899 = sbr.rel (%p897) target = $region56
        $region55: #{decoder_forward.3} parent=11 // pred_region
          _
        $region56: #{decoder_forward.3} parent=11 // pred_fallthru
          _
        // Predicated region
        $region57: #{decoder_forward.3} parent=11 // pred_check
          %p900 = pneg %p464
        $region58: #{decoder_forward.3} parent=11 // pred_check_branch
          %902 = sbr.rel (%p900) target = $region60
        $region59: #{decoder_forward.3} parent=11 // pred_region
          _
        $region60: #{decoder_forward.3} parent=11 // pred_fallthru
          _
        // Predicated region
        $region61: #{decoder_forward.3} parent=11 // pred_check
          %p903 = pneg %p485
        $region62: #{decoder_forward.3} parent=11 // pred_check_branch
          %905 = sbr.rel (%p903) target = $region64
        $region63: #{decoder_forward.3} parent=11 // pred_region
          _
        $region64: #{decoder_forward.3} parent=11 // pred_fallthru
          _
        // Predicated region
        $region65: #{decoder_forward.3} parent=11 // pred_check
          %p906 = pneg %p506
        $region66: #{decoder_forward.3} parent=11 // pred_check_branch
          %908 = sbr.rel (%p906) target = $region68
        $region67: #{decoder_forward.3} parent=11 // pred_region
          _
        $region68: #{decoder_forward.3} parent=11 // pred_fallthru
          _
        // Predicated region
        $region69: #{decoder_forward.3} parent=11 // pred_check
          %p909 = pneg %p527
        $region70: #{decoder_forward.3} parent=11 // pred_check_branch
          %911 = sbr.rel (%p909) target = $region72
        $region71: #{decoder_forward.3} parent=11 // pred_region
          _
        $region72: #{decoder_forward.3} parent=11 // pred_fallthru
          _
        // Predicated region
        $region73: #{decoder_forward.3} parent=11 // pred_check
          %p912 = pneg %p548
        $region74: #{decoder_forward.3} parent=11 // pred_check_branch
          %914 = sbr.rel (%p912) target = $region76
        $region75: #{decoder_forward.3} parent=11 // pred_region
          _
        $region76: #{decoder_forward.3} parent=11 // pred_fallthru
          _
        // Predicated region
        $region77: #{decoder_forward.3} parent=11 // pred_check
          %p915 = pneg %p569
        $region78: #{decoder_forward.3} parent=11 // pred_check_branch
          %917 = sbr.rel (%p915) target = $region80
        $region79: #{decoder_forward.3} parent=11 // pred_region
          _
        $region80: #{decoder_forward.3} parent=11 // pred_fallthru
          _
        // Predicated region
        $region81: #{decoder_forward.3} parent=11 // pred_check
          %p918 = pneg %p590
        $region82: #{decoder_forward.3} parent=11 // pred_check_branch
          %920 = sbr.rel (%p918) target = $region84
        $region83: #{decoder_forward.3} parent=11 // pred_region
          _
        $region84: #{decoder_forward.3} parent=11 // pred_fallthru
          _
        // Predicated region
        $region85: #{decoder_forward.3} parent=11 // pred_check
          %p921 = pneg %p611
        $region86: #{decoder_forward.3} parent=11 // pred_check_branch
          %923 = sbr.rel (%p921) target = $region88
        $region87: #{decoder_forward.3} parent=11 // pred_region
          _
        $region88: #{decoder_forward.3} parent=11 // pred_fallthru
          _
        // Predicated region
        $region89: #{decoder_forward.3} parent=11 // pred_check
          %p924 = pneg %p632
        $region90: #{decoder_forward.3} parent=11 // pred_check_branch
          %926 = sbr.rel (%p924) target = $region92
        $region91: #{decoder_forward.3} parent=11 // pred_region
          _
        $region92: #{decoder_forward.3} parent=11 // pred_fallthru
          _
        // Predicated region
        $region93: #{decoder_forward.3} parent=11 // pred_check
          %p927 = pneg %p653
        $region94: #{decoder_forward.3} parent=11 // pred_check_branch
          %929 = sbr.rel (%p927) target = $region96
        $region95: #{decoder_forward.3} parent=11 // pred_region
          _
        $region96: #{decoder_forward.3} parent=11 // pred_fallthru
          _
        // Predicated region
        $region97: #{decoder_forward.3} parent=11 // pred_check
          %p930 = pneg %p674
        $region98: #{decoder_forward.3} parent=11 // pred_check_branch
          %932 = sbr.rel (%p930) target = $region100
        $region99: #{decoder_forward.3} parent=11 // pred_region
          _
        $region100: #{decoder_forward.3} parent=11 // pred_fallthru
          _
        // Predicated region
        $region101: #{decoder_forward.3} parent=11 // pred_check
          %p933 = pneg %p695
        $region102: #{decoder_forward.3} parent=11 // pred_check_branch
          %935 = sbr.rel (%p933) target = $region104
        $region103: #{decoder_forward.3} parent=11 // pred_region
          _
        $region104: #{decoder_forward.3} parent=11 // pred_fallthru
          _
        // Predicated region
        $region105: #{decoder_forward.3} parent=11 // pred_check
          %p936 = pneg %p716
        $region106: #{decoder_forward.3} parent=11 // pred_check_branch
          %938 = sbr.rel (%p936) target = $region108
        $region107: #{decoder_forward.3} parent=11 // pred_region
          _
        $region108: #{decoder_forward.3} parent=11 // pred_fallthru
          _
        // Predicated region
        $region109: #{decoder_forward.3} parent=11 // pred_check
          %p939 = pneg %p737
        $region110: #{decoder_forward.3} parent=11 // pred_check_branch
          %941 = sbr.rel (%p939) target = $region112
        $region111: #{decoder_forward.3} parent=11 // pred_region
          _
        $region112: #{decoder_forward.3} parent=11 // pred_fallthru
          _
        // Predicated region
        $region113: #{decoder_forward.3} parent=11 // pred_check
          %p942 = pneg %p758
        $region114: #{decoder_forward.3} parent=11 // pred_check_branch
          %944 = sbr.rel (%p942) target = $region116
        $region115: #{decoder_forward.3} parent=11 // pred_region
          _
        $region116: #{decoder_forward.3} parent=11 // pred_fallthru
          _
        // Predicated region
        $region117: #{decoder_forward.3} parent=11 // pred_check
          %p945 = pneg %p779
        $region118: #{decoder_forward.3} parent=11 // pred_check_branch
          %947 = sbr.rel (%p945) target = $region120
        $region119: #{decoder_forward.3} parent=11 // pred_region
          _
        $region120: #{decoder_forward.3} parent=11 // pred_fallthru
          _
        // Predicated region
        $region121: #{decoder_forward.3} parent=11 // pred_check
          %p948 = pneg %p800
        $region122: #{decoder_forward.3} parent=11 // pred_check_branch
          %950 = sbr.rel (%p948) target = $region124
        $region123: #{decoder_forward.3} parent=11 // pred_region
          _
        $region124: #{decoder_forward.3} parent=11 // pred_fallthru
          _
      $region12: #{decoder_forward.3} parent=5 // pred_fallthru
        _
      %p951 = scmp.lt.s32.totalorder %s82, 2
      // Predicated region
      $region125: #{decoder_forward.3} parent=5 // pred_check
        %p952 = pneg %p951
      $region126: #{decoder_forward.3} parent=5 // pred_check_branch
        %954 = sbr.rel (%p952) target = $region128
      $region127: #{decoder_forward.3} parent=5 // pred_region
        // Predicated region
        $region129: #{decoder_forward.3} parent=127 // pred_check
          %p955 = pneg %p102
        $region130: #{decoder_forward.3} parent=127 // pred_check_branch
          %957 = sbr.rel (%p955) target = $region132
        $region131: #{decoder_forward.3} parent=127 // pred_region
          %p958 = scmp.lt.s32.totalorder %s82, 1
          %s959 = scalar_select %p958, %s82, 1
          %s960 = smul.addr %s959, 8
          %s961 = scalar_lea.vmem %s1, %s960
        $region132: #{decoder_forward.3} parent=127 // pred_fallthru
          _
        // Predicated region
        $region133: #{decoder_forward.3} parent=127 // pred_check
          %p962 = pneg %p128
        $region134: #{decoder_forward.3} parent=127 // pred_check_branch
          %964 = sbr.rel (%p962) target = $region136
        $region135: #{decoder_forward.3} parent=127 // pred_region
          %p965 = scmp.lt.s32.totalorder %s82, 1
          %s966 = scalar_select %p965, %s82, 1
          %s967 = smul.addr %s966, 2
          %s968 = smul.addr %s967, 8
          %s969 = scalar_lea.vmem %s3, %s968
        $region136: #{decoder_forward.3} parent=127 // pred_fallthru
          _
        // Predicated region
        $region137: #{decoder_forward.3} parent=127 // pred_check
          %p970 = pneg %p154
        $region138: #{decoder_forward.3} parent=127 // pred_check_branch
          %972 = sbr.rel (%p970) target = $region140
        $region139: #{decoder_forward.3} parent=127 // pred_region
          %p973 = scmp.lt.s32.totalorder %s82, 1
          %s974 = scalar_select %p973, %s82, 1
          %s975 = smul.addr %s974, 8
          %s976 = scalar_lea.vmem %s5, %s975
        $region140: #{decoder_forward.3} parent=127 // pred_fallthru
          _
        // Predicated region
        $region141: #{decoder_forward.3} parent=127 // pred_check
          %p977 = pneg %p180
        $region142: #{decoder_forward.3} parent=127 // pred_check_branch
          %979 = sbr.rel (%p977) target = $region144
        $region143: #{decoder_forward.3} parent=127 // pred_region
          %p980 = scmp.lt.s32.totalorder %s82, 1
          %s981 = scalar_select %p980, %s82, 1
          %s982 = smul.addr %s981, 8
          %s983 = scalar_lea.vmem %s7, %s982
        $region144: #{decoder_forward.3} parent=127 // pred_fallthru
          _
        // Predicated region
        $region145: #{decoder_forward.3} parent=127 // pred_check
          %p984 = pneg %p206
        $region146: #{decoder_forward.3} parent=127 // pred_check_branch
          %986 = sbr.rel (%p984) target = $region148
        $region147: #{decoder_forward.3} parent=127 // pred_region
          %p987 = scmp.lt.s32.totalorder %s82, 1
          %s988 = scalar_select %p987, %s82, 1
          %s989 = scalar_lea.vmem %s9, %s988
        $region148: #{decoder_forward.3} parent=127 // pred_fallthru
          _
      $region128: #{decoder_forward.3} parent=5 // pred_fallthru
        _
      %p990 = scmp.le.s32.totalorder 1, %s82
      %p991 = scmp.lt.s32.totalorder %s82, 3
      %p992 = pnand %p990, %p991
      %p993 = pneg %p992
      // Predicated region
      $region149: #{decoder_forward.3} parent=5 // pred_check
        _
      $region150: #{decoder_forward.3} parent=5 // pred_check_branch
        %995 = sbr.rel (%p992) target = $region152
      $region151: #{decoder_forward.3} parent=5 // pred_region
        %s996 = ssub.s32 %s82, 1
        %p997 = scmp.lt.s32.totalorder %s87, 1
        %s998 = scalar_select %p997, %s87, 1
        %s999 = smul.addr %s998, 8
        %s1000 = scalar_lea.vmem %s1, %s999
        %p1001 = pneg %p108
        %p1002 = pneg %p105
        %p1003 = scmp.lt.s32.totalorder %s87, 1
        %s1004 = scalar_select %p1003, %s87, 1
        %s1005 = smul.addr %s1004, 2
        %s1006 = smul.addr %s1005, 8
        %s1007 = scalar_lea.vmem %s3, %s1006
        %p1008 = pneg %p134
        %p1009 = pneg %p131
        %p1010 = scmp.lt.s32.totalorder %s87, 1
        %s1011 = scalar_select %p1010, %s87, 1
        %s1012 = smul.addr %s1011, 8
        %s1013 = scalar_lea.vmem %s5, %s1012
        %p1014 = pneg %p160
        %p1015 = pneg %p157
        %p1016 = scmp.lt.s32.totalorder %s87, 1
        %s1017 = scalar_select %p1016, %s87, 1
        %s1018 = smul.addr %s1017, 8
        %s1019 = scalar_lea.vmem %s7, %s1018
        %p1020 = pneg %p186
        %p1021 = pneg %p183
        %p1022 = scmp.lt.s32.totalorder %s87, 1
        %s1023 = scalar_select %p1022, %s87, 1
        %s1024 = scalar_lea.vmem %s9, %s1023
        %p1025 = pneg %p212
        %p1026 = pneg %p209
        %p1027 = pneg %p233
        %p1028 = pneg %p230
        %p1029 = pneg %p254
        %p1030 = pneg %p251
        %p1031 = pneg %p275
        %p1032 = pneg %p272
        %p1033 = pneg %p296
        %p1034 = pneg %p293
        %p1035 = pneg %p317
        %p1036 = pneg %p314
        %p1037 = pneg %p338
        %p1038 = pneg %p335
        %p1039 = pneg %p359
        %p1040 = pneg %p356
        %p1041 = pneg %p380
        %p1042 = pneg %p377
        %p1043 = pneg %p401
        %p1044 = pneg %p398
        %p1045 = pneg %p422
        %p1046 = pneg %p419
        %p1047 = pneg %p443
        %p1048 = pneg %p440
        %p1049 = pneg %p464
        %p1050 = pneg %p461
        %p1051 = pneg %p485
        %p1052 = pneg %p482
        %p1053 = pneg %p506
        %p1054 = pneg %p503
        %p1055 = pneg %p527
        %p1056 = pneg %p524
        %p1057 = pneg %p548
        %p1058 = pneg %p545
        %p1059 = pneg %p569
        %p1060 = pneg %p566
        %p1061 = pneg %p590
        %p1062 = pneg %p587
        %p1063 = pneg %p611
        %p1064 = pneg %p608
        %p1065 = pneg %p632
        %p1066 = pneg %p629
        %p1067 = pneg %p653
        %p1068 = pneg %p650
        %p1069 = pneg %p674
        %p1070 = pneg %p671
        %p1071 = pneg %p695
        %p1072 = pneg %p692
        %p1073 = pneg %p716
        %p1074 = pneg %p713
        %p1075 = pneg %p737
        %p1076 = pneg %p734
        %p1077 = pneg %p758
        %p1078 = pneg %p755
        %p1079 = pneg %p779
        %p1080 = pneg %p776
        %p1081 = pneg %p800
        %p1082 = pneg %p797
        %p1083 = pneg %p826
        %p1084 = pneg %p823
        %s1085 = sand.u32 %s813, 1
        %s1086 = scalar_lea.sflag [#allocation3], %s1085
        %s1087 = sand.u32 %s813, 1
        %s1088 = smul.addr %s1087, 8
        %s1089 = scalar_lea.vmem [#allocation2], %s1088
        %p1090 = pneg %p852
        %p1091 = pneg %p849
        %s1092 = sand.u32 %s839, 1
        %s1093 = scalar_lea.sflag [#allocation5], %s1092
        %s1094 = sand.u32 %s839, 1
        %s1095 = smul.addr %s1094, 8
        %s1096 = scalar_lea.vmem [#allocation4], %s1095
        %p1097 = scmp.lt.s32.totalorder %s87, 1
        %s1098 = scalar_select %p1097, %s87, 1
        %s1099 = smul.addr %s1098, 8
        %s1100 = scalar_lea.vmem %s1, %s1099
        %p1101 = scmp.lt.s32.totalorder %s87, 1
        %s1102 = scalar_select %p1101, %s87, 1
        %s1103 = smul.addr %s1102, 2
        %s1104 = smul.addr %s1103, 8
        %s1105 = scalar_lea.vmem %s3, %s1104
        %p1106 = scmp.lt.s32.totalorder %s87, 1
        %s1107 = scalar_select %p1106, %s87, 1
        %s1108 = smul.addr %s1107, 8
        %s1109 = scalar_lea.vmem %s5, %s1108
        %p1110 = scmp.lt.s32.totalorder %s87, 1
        %s1111 = scalar_select %p1110, %s87, 1
        %s1112 = smul.addr %s1111, 8
        %s1113 = scalar_lea.vmem %s7, %s1112
        %p1114 = scmp.lt.s32.totalorder %s87, 1
        %s1115 = scalar_select %p1114, %s87, 1
        %s1116 = scalar_lea.vmem %s9, %s1115
        %v1118 = vld [vmem:[%s1100] sm:$0xff]
        %v1119 = vld [vmem:[%s1105] sm:$0xff]
        %v1120 = vld [vmem:[%s1105 + $0x8] sm:$0xff]
        %v1121 = vld [vmem:[%s1109] sm:$0xff]
        %v1122 = vld [vmem:[%s1113] sm:$0xff]
        %v1123 = vld [vmem:[%s1116] sm:$0x1]
        %v1124 = vld [vmem:[%s11] sm:$0xf]
        %v1125 = vld [vmem:[%s11 + $0x4] sm:$0xf]
        %v1126 = vld [vmem:[%s11 + $0x8] sm:$0xf]
        %v1127 = vld [vmem:[%s11 + $0xc] sm:$0xf]
        %v1128 = vpack.c.bf16 %v1118, %v1118
        %v1129 = vld [vmem:[%s13] sm:$0x1]
        %v1131 = vlaneseq
        %v1132 = vshrl.u32 %v1131, 7
        %v1133 = vsub.s32 0, %v1132
        %v1134 = vrot.slane %v1129, %v1133
        %v1140 = vunpack.c.l.b16 %v1124
        %v1141 = vunpack.c.l.b16 %v1125
        %v1142 = vunpack.c.l.b16 %v1126
        %v1143 = vunpack.c.l.b16 %v1127
        %v1144 = vpack.c.b16 %v1141, %v1140
        %v1145 = vpack.c.b16 %v1143, %v1142
        %vm1148 = vcmask 261120
        %v1150 = vsel %vm1148, %v1128, 0
        %1152 = vmatprep.subr.bf16.mxu0 0
        %1153 = vmatpush1.bf16.msra.mxu0 %v1144
        %1154 = vmatprep.subr.bf16.mxu0 0
        %1155 = vmatpush1.bf16.msra.mxu0 %v1145
        %1156 = vmatprep.subr.bf16.mxu0 0
        %1157 = vmatpush1.bf16.msra.mxu0 0
        %1158 = vmatprep.subr.bf16.mxu0 0
        %1159 = vmatpush1.bf16.msra.mxu0 0
        %1160 = vmatprep.subr.bf16.mxu0 0
        %1161 = vmatpush1.bf16.msra.mxu0 0
        %1162 = vmatprep.subr.bf16.mxu0 0
        %1163 = vmatpush1.bf16.msra.mxu0 0
        %1164 = vmatprep.subr.bf16.mxu0 0
        %1165 = vmatpush1.bf16.msra.mxu0 0
        %1166 = vmatprep.subr.bf16.mxu0 0
        %1167 = vmatpush1.bf16.msra.mxu0 0
        %1168 = vmatprep.subr.bf16.mxu0 0
        %1169 = vmatpush1.bf16.msra.mxu0 0
        %1170 = vmatprep.subr.bf16.mxu0 0
        %1171 = vmatpush1.bf16.msra.mxu0 0
        %1172 = vmatprep.subr.bf16.mxu0 0
        %1173 = vmatpush1.bf16.msra.mxu0 0
        %1174 = vmatprep.subr.bf16.mxu0 0
        %1175 = vmatpush1.bf16.msra.mxu0 0
        %1176 = vmatprep.subr.bf16.mxu0 0
        %1177 = vmatpush1.bf16.msra.mxu0 0
        %1178 = vmatprep.subr.bf16.mxu0 0
        %1179 = vmatpush1.bf16.msra.mxu0 0
        %1180 = vmatprep.subr.bf16.mxu0 0
        %1181 = vmatpush1.bf16.msra.mxu0 0
        %1182 = vmatprep.subr.bf16.mxu0 0
        %1183 = vmatpush1.bf16.msra.mxu0 0
        %1184 = vmatprep.mubr.bf16.mxu0 0
        %1185 = vmatmul.mubr.bf16.gmra.mrb[0].mxu0 %v1150
        %v1186 = vpop.f32.mrb[0].mxu0
        %v1187 = vadd.f32 %v1134, %v1186
        %v1188 = vpop.f32.mrb[0].mxu0
        %v1189 = vpop.f32.mrb[0].mxu0
        %v1190 = vpop.f32.mrb[0].mxu0
        %1191 = vdwg.mxu0
        %v1192 = vmul.f32 %v1187, 0.35355338
        %v1193 = vpack.c.bf16 %v1192, %v1192
        %v1194 = vpack.c.bf16 %v1187, %v1187
        %1196 = vrot.lane.b32.xlu0 %v1194, 96
        %v1197 = vpop.permute.xlu0 %1196
        %vm1198 = vcmask 64512
        %v1200 = vsel %vm1198, %v1193, 0
        %v1203 = vsel %vm1198, %v1197, 0
        %1205 = vmatprep.subr.bf16.mxu0 0
        %1206 = vmatpush1.bf16.xpose.msra.mxu0 %v1203
        %1207 = vmatprep.subr.bf16.mxu0 0
        %1208 = vmatpush1.bf16.xpose.msra.mxu0 0
        %1209 = vmatprep.subr.bf16.mxu0 0
        %1210 = vmatpush1.bf16.xpose.msra.mxu0 0
        %1211 = vmatprep.subr.bf16.mxu0 0
        %1212 = vmatpush1.bf16.xpose.msra.mxu0 0
        %1213 = vmatprep.subr.bf16.mxu0 0
        %1214 = vmatpush1.bf16.xpose.msra.mxu0 0
        %1215 = vmatprep.subr.bf16.mxu0 0
        %1216 = vmatpush1.bf16.xpose.msra.mxu0 0
        %1217 = vmatprep.subr.bf16.mxu0 0
        %1218 = vmatpush1.bf16.xpose.msra.mxu0 0
        %1219 = vmatprep.subr.bf16.mxu0 0
        %1220 = vmatpush1.bf16.xpose.msra.mxu0 0
        %1221 = vmatprep.subr.bf16.mxu0 0
        %1222 = vmatpush1.bf16.xpose.msra.mxu0 0
        %1223 = vmatprep.subr.bf16.mxu0 0
        %1224 = vmatpush1.bf16.xpose.msra.mxu0 0
        %1225 = vmatprep.subr.bf16.mxu0 0
        %1226 = vmatpush1.bf16.xpose.msra.mxu0 0
        %1227 = vmatprep.subr.bf16.mxu0 0
        %1228 = vmatpush1.bf16.xpose.msra.mxu0 0
        %1229 = vmatprep.subr.bf16.mxu0 0
        %1230 = vmatpush1.bf16.xpose.msra.mxu0 0
        %1231 = vmatprep.subr.bf16.mxu0 0
        %1232 = vmatpush1.bf16.xpose.msra.mxu0 0
        %1233 = vmatprep.subr.bf16.mxu0 0
        %1234 = vmatpush1.bf16.xpose.msra.mxu0 0
        %1235 = vmatprep.subr.bf16.mxu0 0
        %1236 = vmatpush1.bf16.xpose.msra.mxu0 0
        %1237 = vmatprep.mubr.bf16.mxu0 0
        %1238 = vmatmul.mubr.bf16.gmra.mrb[0].mxu0 %v1200
        %v1239 = vpop.f32.mrb[0].mxu0
        %v1240 = vadd.f32 %v1122, %v1239
        %v1241 = vpop.f32.mrb[0].mxu0
        %v1242 = vpop.f32.mrb[0].mxu0
        %v1243 = vpop.f32.mrb[0].mxu0
        %1244 = vdwg.mxu0
        %v1245 = vsel %vm1198, %v1240, -inf
        %1246 = vmax.xlane.f32.xlu0 %v1245
        %v1247 = vpop.xlane.xlu0 %1246
        %v1248 = vsub.f32 %v1240, %v1247
        %v1249 = vmul.f32 %v1248, 1.442695
        %v1250 = vpow.pop %v1249
        %v1251 = vsel %vm1198, %v1250, 0.0
        %1252 = vadd.xlane.f32.xlu0 %v1251
        %v1253 = vpop.xlane.xlu0 %1252
        %v1254 = vrcp.pop %v1253
        %v1255 = vmul.f32 %v1250, %v1254
        %v1256 = vpack.c.bf16 %v1255, %v1255
        %1257 = vrot.lane.b32.xlu0 %v1194, 64
        %v1258 = vpop.permute.xlu0 %1257
        %v1260 = vsel %vm1198, %v1256, 0
        %vm1262 = vcmask 1043456
        %v1264 = vsel %vm1262, %v1258, 0
        %1266 = vmatprep.subr.bf16.mxu0 0
        %1267 = vmatpush1.bf16.msra.mxu0 %v1264
        %1268 = vmatprep.subr.bf16.mxu0 0
        %1269 = vmatpush1.bf16.msra.mxu0 0
        %1270 = vmatprep.subr.bf16.mxu0 0
        %1271 = vmatpush1.bf16.msra.mxu0 0
        %1272 = vmatprep.subr.bf16.mxu0 0
        %1273 = vmatpush1.bf16.msra.mxu0 0
        %1274 = vmatprep.subr.bf16.mxu0 0
        %1275 = vmatpush1.bf16.msra.mxu0 0
        %1276 = vmatprep.subr.bf16.mxu0 0
        %1277 = vmatpush1.bf16.msra.mxu0 0
        %1278 = vmatprep.subr.bf16.mxu0 0
        %1279 = vmatpush1.bf16.msra.mxu0 0
        %1280 = vmatprep.subr.bf16.mxu0 0
        %1281 = vmatpush1.bf16.msra.mxu0 0
        %1282 = vmatprep.subr.bf16.mxu0 0
        %1283 = vmatpush1.bf16.msra.mxu0 0
        %1284 = vmatprep.subr.bf16.mxu0 0
        %1285 = vmatpush1.bf16.msra.mxu0 0
        %1286 = vmatprep.subr.bf16.mxu0 0
        %1287 = vmatpush1.bf16.msra.mxu0 0
        %1288 = vmatprep.subr.bf16.mxu0 0
        %1289 = vmatpush1.bf16.msra.mxu0 0
        %1290 = vmatprep.subr.bf16.mxu0 0
        %1291 = vmatpush1.bf16.msra.mxu0 0
        %1292 = vmatprep.subr.bf16.mxu0 0
        %1293 = vmatpush1.bf16.msra.mxu0 0
        %1294 = vmatprep.subr.bf16.mxu0 0
        %1295 = vmatpush1.bf16.msra.mxu0 0
        %1296 = vmatprep.subr.bf16.mxu0 0
        %1297 = vmatpush1.bf16.msra.mxu0 0
        %1298 = vmatprep.mubr.bf16.mxu0 0
        %1299 = vmatmul.mubr.bf16.gmra.mrb[0].mxu0 %v1260
        %v1300 = vpop.f32.mrb[0].mxu0
        %v1301 = vadd.f32 0.0, %v1300
        %v1302 = vpop.f32.mrb[0].mxu0
        %v1303 = vpop.f32.mrb[0].mxu0
        %v1304 = vpop.f32.mrb[0].mxu0
        %1305 = vdwg.mxu0
        %1307 = vrot.lane.b32.xlu0 %v1193, 120
        %v1308 = vpop.permute.xlu0 %1307
        %1309 = vrot.lane.b32.xlu0 %v1194, 88
        %v1310 = vpop.permute.xlu0 %1309
        %v1312 = vsel %vm1198, %v1308, 0
        %v1315 = vsel %vm1198, %v1310, 0
        %1317 = vmatprep.subr.bf16.mxu0 0
        %1318 = vmatpush1.bf16.xpose.msra.mxu0 %v1315
        %1319 = vmatprep.subr.bf16.mxu0 0
        %1320 = vmatpush1.bf16.xpose.msra.mxu0 0
        %1321 = vmatprep.subr.bf16.mxu0 0
        %1322 = vmatpush1.bf16.xpose.msra.mxu0 0
        %1323 = vmatprep.subr.bf16.mxu0 0
        %1324 = vmatpush1.bf16.xpose.msra.mxu0 0
        %1325 = vmatprep.subr.bf16.mxu0 0
        %1326 = vmatpush1.bf16.xpose.msra.mxu0 0
        %1327 = vmatprep.subr.bf16.mxu0 0
        %1328 = vmatpush1.bf16.xpose.msra.mxu0 0
        %1329 = vmatprep.subr.bf16.mxu0 0
        %1330 = vmatpush1.bf16.xpose.msra.mxu0 0
        %1331 = vmatprep.subr.bf16.mxu0 0
        %1332 = vmatpush1.bf16.xpose.msra.mxu0 0
        %1333 = vmatprep.subr.bf16.mxu0 0
        %1334 = vmatpush1.bf16.xpose.msra.mxu0 0
        %1335 = vmatprep.subr.bf16.mxu0 0
        %1336 = vmatpush1.bf16.xpose.msra.mxu0 0
        %1337 = vmatprep.subr.bf16.mxu0 0
        %1338 = vmatpush1.bf16.xpose.msra.mxu0 0
        %1339 = vmatprep.subr.bf16.mxu0 0
        %1340 = vmatpush1.bf16.xpose.msra.mxu0 0
        %1341 = vmatprep.subr.bf16.mxu0 0
        %1342 = vmatpush1.bf16.xpose.msra.mxu0 0
        %1343 = vmatprep.subr.bf16.mxu0 0
        %1344 = vmatpush1.bf16.xpose.msra.mxu0 0
        %1345 = vmatprep.subr.bf16.mxu0 0
        %1346 = vmatpush1.bf16.xpose.msra.mxu0 0
        %1347 = vmatprep.subr.bf16.mxu0 0
        %1348 = vmatpush1.bf16.xpose.msra.mxu0 0
        %1349 = vmatprep.mubr.bf16.mxu0 0
        %1350 = vmatmul.mubr.bf16.gmra.mrb[0].mxu0 %v1312
        %v1351 = vpop.f32.mrb[0].mxu0
        %v1352 = vadd.f32 %v1122, %v1351
        %v1353 = vpop.f32.mrb[0].mxu0
        %v1354 = vpop.f32.mrb[0].mxu0
        %v1355 = vpop.f32.mrb[0].mxu0
        %1356 = vdwg.mxu0
        %v1357 = vsel %vm1198, %v1352, -inf
        %1358 = vmax.xlane.f32.xlu0 %v1357
        %v1359 = vpop.xlane.xlu0 %1358
        %v1360 = vsub.f32 %v1352, %v1359
        %v1361 = vmul.f32 %v1360, 1.442695
        %v1362 = vpow.pop %v1361
        %v1363 = vsel %vm1198, %v1362, 0.0
        %1364 = vadd.xlane.f32.xlu0 %v1363
        %v1365 = vpop.xlane.xlu0 %1364
        %v1366 = vrcp.pop %v1365
        %v1367 = vmul.f32 %v1362, %v1366
        %v1368 = vpack.c.bf16 %v1367, %v1367
        %1369 = vrot.lane.b32.xlu0 %v1194, 56
        %v1370 = vpop.permute.xlu0 %1369
        %v1372 = vsel %vm1198, %v1368, 0
        %v1375 = vsel %vm1262, %v1370, 0
        %1377 = vmatprep.subr.bf16.mxu0 0
        %1378 = vmatpush1.bf16.msra.mxu0 %v1375
        %1379 = vmatprep.subr.bf16.mxu0 0
        %1380 = vmatpush1.bf16.msra.mxu0 0
        %1381 = vmatprep.subr.bf16.mxu0 0
        %1382 = vmatpush1.bf16.msra.mxu0 0
        %1383 = vmatprep.subr.bf16.mxu0 0
        %1384 = vmatpush1.bf16.msra.mxu0 0
        %1385 = vmatprep.subr.bf16.mxu0 0
        %1386 = vmatpush1.bf16.msra.mxu0 0
        %1387 = vmatprep.subr.bf16.mxu0 0
        %1388 = vmatpush1.bf16.msra.mxu0 0
        %1389 = vmatprep.subr.bf16.mxu0 0
        %1390 = vmatpush1.bf16.msra.mxu0 0
        %1391 = vmatprep.subr.bf16.mxu0 0
        %1392 = vmatpush1.bf16.msra.mxu0 0
        %1393 = vmatprep.subr.bf16.mxu0 0
        %1394 = vmatpush1.bf16.msra.mxu0 0
        %1395 = vmatprep.subr.bf16.mxu0 0
        %1396 = vmatpush1.bf16.msra.mxu0 0
        %1397 = vmatprep.subr.bf16.mxu0 0
        %1398 = vmatpush1.bf16.msra.mxu0 0
        %1399 = vmatprep.subr.bf16.mxu0 0
        %1400 = vmatpush1.bf16.msra.mxu0 0
        %1401 = vmatprep.subr.bf16.mxu0 0
        %1402 = vmatpush1.bf16.msra.mxu0 0
        %1403 = vmatprep.subr.bf16.mxu0 0
        %1404 = vmatpush1.bf16.msra.mxu0 0
        %1405 = vmatprep.subr.bf16.mxu0 0
        %1406 = vmatpush1.bf16.msra.mxu0 0
        %1407 = vmatprep.subr.bf16.mxu0 0
        %1408 = vmatpush1.bf16.msra.mxu0 0
        %1409 = vmatprep.mubr.bf16.mxu0 0
        %1410 = vmatmul.mubr.bf16.gmra.mrb[0].mxu0 %v1372
        %v1411 = vpop.f32.mrb[0].mxu0
        %v1412 = vadd.f32 0.0, %v1411
        %v1413 = vpop.f32.mrb[0].mxu0
        %v1414 = vpop.f32.mrb[0].mxu0
        %v1415 = vpop.f32.mrb[0].mxu0
        %1416 = vdwg.mxu0
        %1417 = vrot.lane.b32.xlu0 %v1193, 112
        %v1418 = vpop.permute.xlu0 %1417
        %1419 = vrot.lane.b32.xlu0 %v1194, 80
        %v1420 = vpop.permute.xlu0 %1419
        %v1422 = vsel %vm1198, %v1418, 0
        %v1425 = vsel %vm1198, %v1420, 0
        %1427 = vmatprep.subr.bf16.mxu0 0
        %1428 = vmatpush1.bf16.xpose.msra.mxu0 %v1425
        %1429 = vmatprep.subr.bf16.mxu0 0
        %1430 = vmatpush1.bf16.xpose.msra.mxu0 0
        %1431 = vmatprep.subr.bf16.mxu0 0
        %1432 = vmatpush1.bf16.xpose.msra.mxu0 0
        %1433 = vmatprep.subr.bf16.mxu0 0
        %1434 = vmatpush1.bf16.xpose.msra.mxu0 0
        %1435 = vmatprep.subr.bf16.mxu0 0
        %1436 = vmatpush1.bf16.xpose.msra.mxu0 0
        %1437 = vmatprep.subr.bf16.mxu0 0
        %1438 = vmatpush1.bf16.xpose.msra.mxu0 0
        %1439 = vmatprep.subr.bf16.mxu0 0
        %1440 = vmatpush1.bf16.xpose.msra.mxu0 0
        %1441 = vmatprep.subr.bf16.mxu0 0
        %1442 = vmatpush1.bf16.xpose.msra.mxu0 0
        %1443 = vmatprep.subr.bf16.mxu0 0
        %1444 = vmatpush1.bf16.xpose.msra.mxu0 0
        %1445 = vmatprep.subr.bf16.mxu0 0
        %1446 = vmatpush1.bf16.xpose.msra.mxu0 0
        %1447 = vmatprep.subr.bf16.mxu0 0
        %1448 = vmatpush1.bf16.xpose.msra.mxu0 0
        %1449 = vmatprep.subr.bf16.mxu0 0
        %1450 = vmatpush1.bf16.xpose.msra.mxu0 0
        %1451 = vmatprep.subr.bf16.mxu0 0
        %1452 = vmatpush1.bf16.xpose.msra.mxu0 0
        %1453 = vmatprep.subr.bf16.mxu0 0
        %1454 = vmatpush1.bf16.xpose.msra.mxu0 0
        %1455 = vmatprep.subr.bf16.mxu0 0
        %1456 = vmatpush1.bf16.xpose.msra.mxu0 0
        %1457 = vmatprep.subr.bf16.mxu0 0
        %1458 = vmatpush1.bf16.xpose.msra.mxu0 0
        %1459 = vmatprep.mubr.bf16.mxu0 0
        %1460 = vmatmul.mubr.bf16.gmra.mrb[0].mxu0 %v1422
        %v1461 = vpop.f32.mrb[0].mxu0
        %v1462 = vadd.f32 %v1122, %v1461
        %v1463 = vpop.f32.mrb[0].mxu0
        %v1464 = vpop.f32.mrb[0].mxu0
        %v1465 = vpop.f32.mrb[0].mxu0
        %1466 = vdwg.mxu0
        %v1467 = vsel %vm1198, %v1462, -inf
        %1468 = vmax.xlane.f32.xlu0 %v1467
        %v1469 = vpop.xlane.xlu0 %1468
        %v1470 = vsub.f32 %v1462, %v1469
        %v1471 = vmul.f32 %v1470, 1.442695
        %v1472 = vpow.pop %v1471
        %v1473 = vsel %vm1198, %v1472, 0.0
        %1474 = vadd.xlane.f32.xlu0 %v1473
        %v1475 = vpop.xlane.xlu0 %1474
        %v1476 = vrcp.pop %v1475
        %v1477 = vmul.f32 %v1472, %v1476
        %v1478 = vpack.c.bf16 %v1477, %v1477
        %1479 = vrot.lane.b32.xlu0 %v1194, 48
        %v1480 = vpop.permute.xlu0 %1479
        %v1482 = vsel %vm1198, %v1478, 0
        %v1485 = vsel %vm1262, %v1480, 0
        %1487 = vmatprep.subr.bf16.mxu0 0
        %1488 = vmatpush1.bf16.msra.mxu0 %v1485
        %1489 = vmatprep.subr.bf16.mxu0 0
        %1490 = vmatpush1.bf16.msra.mxu0 0
        %1491 = vmatprep.subr.bf16.mxu0 0
        %1492 = vmatpush1.bf16.msra.mxu0 0
        %1493 = vmatprep.subr.bf16.mxu0 0
        %1494 = vmatpush1.bf16.msra.mxu0 0
        %1495 = vmatprep.subr.bf16.mxu0 0
        %1496 = vmatpush1.bf16.msra.mxu0 0
        %1497 = vmatprep.subr.bf16.mxu0 0
        %1498 = vmatpush1.bf16.msra.mxu0 0
        %1499 = vmatprep.subr.bf16.mxu0 0
        %1500 = vmatpush1.bf16.msra.mxu0 0
        %1501 = vmatprep.subr.bf16.mxu0 0
        %1502 = vmatpush1.bf16.msra.mxu0 0
        %1503 = vmatprep.subr.bf16.mxu0 0
        %1504 = vmatpush1.bf16.msra.mxu0 0
        %1505 = vmatprep.subr.bf16.mxu0 0
        %1506 = vmatpush1.bf16.msra.mxu0 0
        %1507 = vmatprep.subr.bf16.mxu0 0
        %1508 = vmatpush1.bf16.msra.mxu0 0
        %1509 = vmatprep.subr.bf16.mxu0 0
        %1510 = vmatpush1.bf16.msra.mxu0 0
        %1511 = vmatprep.subr.bf16.mxu0 0
        %1512 = vmatpush1.bf16.msra.mxu0 0
        %1513 = vmatprep.subr.bf16.mxu0 0
        %1514 = vmatpush1.bf16.msra.mxu0 0
        %1515 = vmatprep.subr.bf16.mxu0 0
        %1516 = vmatpush1.bf16.msra.mxu0 0
        %1517 = vmatprep.subr.bf16.mxu0 0
        %1518 = vmatpush1.bf16.msra.mxu0 0
        %1519 = vmatprep.mubr.bf16.mxu0 0
        %1520 = vmatmul.mubr.bf16.gmra.mrb[0].mxu0 %v1482
        %v1521 = vpop.f32.mrb[0].mxu0
        %v1522 = vadd.f32 0.0, %v1521
        %v1523 = vpop.f32.mrb[0].mxu0
        %v1524 = vpop.f32.mrb[0].mxu0
        %v1525 = vpop.f32.mrb[0].mxu0
        %1526 = vdwg.mxu0
        %1527 = vrot.lane.b32.xlu0 %v1193, 104
        %v1528 = vpop.permute.xlu0 %1527
        %1529 = vrot.lane.b32.xlu0 %v1194, 72
        %v1530 = vpop.permute.xlu0 %1529
        %v1532 = vsel %vm1198, %v1528, 0
        %v1535 = vsel %vm1198, %v1530, 0
        %1537 = vmatprep.subr.bf16.mxu0 0
        %1538 = vmatpush1.bf16.xpose.msra.mxu0 %v1535
        %1539 = vmatprep.subr.bf16.mxu0 0
        %1540 = vmatpush1.bf16.xpose.msra.mxu0 0
        %1541 = vmatprep.subr.bf16.mxu0 0
        %1542 = vmatpush1.bf16.xpose.msra.mxu0 0
        %1543 = vmatprep.subr.bf16.mxu0 0
        %1544 = vmatpush1.bf16.xpose.msra.mxu0 0
        %1545 = vmatprep.subr.bf16.mxu0 0
        %1546 = vmatpush1.bf16.xpose.msra.mxu0 0
        %1547 = vmatprep.subr.bf16.mxu0 0
        %1548 = vmatpush1.bf16.xpose.msra.mxu0 0
        %1549 = vmatprep.subr.bf16.mxu0 0
        %1550 = vmatpush1.bf16.xpose.msra.mxu0 0
        %1551 = vmatprep.subr.bf16.mxu0 0
        %1552 = vmatpush1.bf16.xpose.msra.mxu0 0
        %1553 = vmatprep.subr.bf16.mxu0 0
        %1554 = vmatpush1.bf16.xpose.msra.mxu0 0
        %1555 = vmatprep.subr.bf16.mxu0 0
        %1556 = vmatpush1.bf16.xpose.msra.mxu0 0
        %1557 = vmatprep.subr.bf16.mxu0 0
        %1558 = vmatpush1.bf16.xpose.msra.mxu0 0
        %1559 = vmatprep.subr.bf16.mxu0 0
        %1560 = vmatpush1.bf16.xpose.msra.mxu0 0
        %1561 = vmatprep.subr.bf16.mxu0 0
        %1562 = vmatpush1.bf16.xpose.msra.mxu0 0
        %1563 = vmatprep.subr.bf16.mxu0 0
        %1564 = vmatpush1.bf16.xpose.msra.mxu0 0
        %1565 = vmatprep.subr.bf16.mxu0 0
        %1566 = vmatpush1.bf16.xpose.msra.mxu0 0
        %1567 = vmatprep.subr.bf16.mxu0 0
        %1568 = vmatpush1.bf16.xpose.msra.mxu0 0
        %1569 = vmatprep.mubr.bf16.mxu0 0
        %1570 = vmatmul.mubr.bf16.gmra.mrb[0].mxu0 %v1532
        %v1571 = vpop.f32.mrb[0].mxu0
        %v1572 = vadd.f32 %v1122, %v1571
        %v1573 = vpop.f32.mrb[0].mxu0
        %v1574 = vpop.f32.mrb[0].mxu0
        %v1575 = vpop.f32.mrb[0].mxu0
        %1576 = vdwg.mxu0
        %v1577 = vsel %vm1198, %v1572, -inf
        %1578 = vmax.xlane.f32.xlu0 %v1577
        %v1579 = vpop.xlane.xlu0 %1578
        %v1580 = vsub.f32 %v1572, %v1579
        %v1581 = vmul.f32 %v1580, 1.442695
        %v1582 = vpow.pop %v1581
        %v1583 = vsel %vm1198, %v1582, 0.0
        %1584 = vadd.xlane.f32.xlu0 %v1583
        %v1585 = vpop.xlane.xlu0 %1584
        %v1586 = vrcp.pop %v1585
        %v1587 = vmul.f32 %v1582, %v1586
        %v1588 = vpack.c.bf16 %v1587, %v1587
        %1589 = vrot.lane.b32.xlu0 %v1194, 40
        %v1590 = vpop.permute.xlu0 %1589
        %v1592 = vsel %vm1198, %v1588, 0
        %v1595 = vsel %vm1262, %v1590, 0
        %1597 = vmatprep.subr.bf16.mxu0 0
        %1598 = vmatpush1.bf16.msra.mxu0 %v1595
        %1599 = vmatprep.subr.bf16.mxu0 0
        %1600 = vmatpush1.bf16.msra.mxu0 0
        %1601 = vmatprep.subr.bf16.mxu0 0
        %1602 = vmatpush1.bf16.msra.mxu0 0
        %1603 = vmatprep.subr.bf16.mxu0 0
        %1604 = vmatpush1.bf16.msra.mxu0 0
        %1605 = vmatprep.subr.bf16.mxu0 0
        %1606 = vmatpush1.bf16.msra.mxu0 0
        %1607 = vmatprep.subr.bf16.mxu0 0
        %1608 = vmatpush1.bf16.msra.mxu0 0
        %1609 = vmatprep.subr.bf16.mxu0 0
        %1610 = vmatpush1.bf16.msra.mxu0 0
        %1611 = vmatprep.subr.bf16.mxu0 0
        %1612 = vmatpush1.bf16.msra.mxu0 0
        %1613 = vmatprep.subr.bf16.mxu0 0
        %1614 = vmatpush1.bf16.msra.mxu0 0
        %1615 = vmatprep.subr.bf16.mxu0 0
        %1616 = vmatpush1.bf16.msra.mxu0 0
        %1617 = vmatprep.subr.bf16.mxu0 0
        %1618 = vmatpush1.bf16.msra.mxu0 0
        %1619 = vmatprep.subr.bf16.mxu0 0
        %1620 = vmatpush1.bf16.msra.mxu0 0
        %1621 = vmatprep.subr.bf16.mxu0 0
        %1622 = vmatpush1.bf16.msra.mxu0 0
        %1623 = vmatprep.subr.bf16.mxu0 0
        %1624 = vmatpush1.bf16.msra.mxu0 0
        %1625 = vmatprep.subr.bf16.mxu0 0
        %1626 = vmatpush1.bf16.msra.mxu0 0
        %1627 = vmatprep.subr.bf16.mxu0 0
        %1628 = vmatpush1.bf16.msra.mxu0 0
        %1629 = vmatprep.mubr.bf16.mxu0 0
        %1630 = vmatmul.mubr.bf16.gmra.mrb[0].mxu0 %v1592
        %v1631 = vpop.f32.mrb[0].mxu0
        %v1632 = vadd.f32 0.0, %v1631
        %v1633 = vpop.f32.mrb[0].mxu0
        %v1634 = vpop.f32.mrb[0].mxu0
        %v1635 = vpop.f32.mrb[0].mxu0
        %1636 = vdwg.mxu0
        %1638 = vrot.lane.b32.xlu0 %v1412, 8
        %v1639 = vpop.permute.xlu0 %1638
        %1642 = vrot.lane.b32.xlu0 %v1522, 16
        %v1643 = vpop.permute.xlu0 %1642
        %1646 = vrot.lane.b32.xlu0 %v1632, 24
        %v1647 = vpop.permute.xlu0 %1646
        %v1649 = vsel %vm1198, %v1301, %v1639
        %vm1650 = vcmask 130048
        %v1651 = vsel %vm1650, %v1649, %v1643
        %vm1652 = vcmask 195584
        %v1653 = vsel %vm1652, %v1651, %v1647
        %v1654 = vld [vmem:[%s15] sm:$0xf]
        %v1655 = vld [vmem:[%s15 + $0x4] sm:$0xf]
        %v1656 = vld [vmem:[%s15 + $0x8] sm:$0xf]
        %v1657 = vld [vmem:[%s15 + $0xc] sm:$0xf]
        %v1658 = vpack.c.bf16 %v1653, %v1653
        %v1659 = vld [vmem:[%s17] sm:$0x1]
        %v1661 = vlaneseq
        %v1662 = vshrl.u32 %v1661, 7
        %v1663 = vsub.s32 0, %v1662
        %v1664 = vrot.slane %v1659, %v1663
        %v1670 = vunpack.c.l.b16 %v1654
        %v1671 = vunpack.c.l.b16 %v1655
        %v1672 = vunpack.c.l.b16 %v1656
        %v1673 = vunpack.c.l.b16 %v1657
        %v1674 = vpack.c.b16 %v1671, %v1670
        %v1675 = vpack.c.b16 %v1673, %v1672
        %v1679 = vsel %vm1148, %v1658, 0
        %1681 = vmatprep.subr.bf16.mxu0 0
        %1682 = vmatpush1.bf16.msra.mxu0 %v1674
        %1683 = vmatprep.subr.bf16.mxu0 0
        %1684 = vmatpush1.bf16.msra.mxu0 %v1675
        %1685 = vmatprep.subr.bf16.mxu0 0
        %1686 = vmatpush1.bf16.msra.mxu0 0
        %1687 = vmatprep.subr.bf16.mxu0 0
        %1688 = vmatpush1.bf16.msra.mxu0 0
        %1689 = vmatprep.subr.bf16.mxu0 0
        %1690 = vmatpush1.bf16.msra.mxu0 0
        %1691 = vmatprep.subr.bf16.mxu0 0
        %1692 = vmatpush1.bf16.msra.mxu0 0
        %1693 = vmatprep.subr.bf16.mxu0 0
        %1694 = vmatpush1.bf16.msra.mxu0 0
        %1695 = vmatprep.subr.bf16.mxu0 0
        %1696 = vmatpush1.bf16.msra.mxu0 0
        %1697 = vmatprep.subr.bf16.mxu0 0
        %1698 = vmatpush1.bf16.msra.mxu0 0
        %1699 = vmatprep.subr.bf16.mxu0 0
        %1700 = vmatpush1.bf16.msra.mxu0 0
        %1701 = vmatprep.subr.bf16.mxu0 0
        %1702 = vmatpush1.bf16.msra.mxu0 0
        %1703 = vmatprep.subr.bf16.mxu0 0
        %1704 = vmatpush1.bf16.msra.mxu0 0
        %1705 = vmatprep.subr.bf16.mxu0 0
        %1706 = vmatpush1.bf16.msra.mxu0 0
        %1707 = vmatprep.subr.bf16.mxu0 0
        %1708 = vmatpush1.bf16.msra.mxu0 0
        %1709 = vmatprep.subr.bf16.mxu0 0
        %1710 = vmatpush1.bf16.msra.mxu0 0
        %1711 = vmatprep.subr.bf16.mxu0 0
        %1712 = vmatpush1.bf16.msra.mxu0 0
        %1713 = vmatprep.mubr.bf16.mxu0 0
        %1714 = vmatmul.mubr.bf16.gmra.mrb[0].mxu0 %v1679
        %v1715 = vpop.f32.mrb[0].mxu0
        %v1716 = vadd.f32 %v1664, %v1715
        %v1717 = vpop.f32.mrb[0].mxu0
        %v1718 = vpop.f32.mrb[0].mxu0
        %v1719 = vpop.f32.mrb[0].mxu0
        %1720 = vdwg.mxu0
        %v1721 = vadd.f32 %v1716, %v1118
        %v1722 = vsel %vm1148, %v1721, 0.0
        %1723 = vadd.xlane.f32.xlu0 %v1722
        %v1724 = vpop.xlane.xlu0 %1723
        %v1725 = vrcp.pop 32.0
        %v1726 = vmul.f32 %v1724, %v1725
        %v1727 = vsub.f32 %v1721, %v1726
        %v1728 = vmul.f32 %v1727, %v1727
        %v1729 = vsel %vm1148, %v1728, 0.0
        %1730 = vadd.xlane.f32.xlu0 %v1729
        %v1731 = vpop.xlane.xlu0 %1730
        %v1732 = vmul.f32 %v1731, %v1725
        %v1733 = vadd.f32 %v1732, 1e-06
        %v1734 = vrsqrt.pop %v1733
        %v1735 = vmul.f32 %v1727, %v1734
        %v1736 = vld [vmem:[%s19] sm:$0x1]
        %v1738 = vlaneseq
        %v1739 = vshrl.u32 %v1738, 7
        %v1740 = vsub.s32 0, %v1739
        %v1741 = vrot.slane %v1736, %v1740
        %v1743 = vmul.f32 %v1735, %v1741
        %v1744 = vld [vmem:[%s21] sm:$0x1]
        %v1746 = vlaneseq
        %v1747 = vshrl.u32 %v1746, 7
        %v1748 = vsub.s32 0, %v1747
        %v1749 = vrot.slane %v1744, %v1748
        %v1751 = vadd.f32 %v1743, %v1749
        %v1752 = vld [vmem:[%s23] sm:$0xf]
        %v1753 = vld [vmem:[%s23 + $0x4] sm:$0xf]
        %v1754 = vld [vmem:[%s23 + $0x8] sm:$0xf]
        %v1755 = vld [vmem:[%s23 + $0xc] sm:$0xf]
        %v1756 = vpack.c.bf16 %v1751, %v1751
        %v1757 = vld [vmem:[%s25] sm:$0x1]
        %v1759 = vlaneseq
        %v1760 = vshrl.u32 %v1759, 7
        %v1761 = vsub.s32 0, %v1760
        %v1762 = vrot.slane %v1757, %v1761
        %v1768 = vunpack.c.l.b16 %v1752
        %v1769 = vunpack.c.l.b16 %v1753
        %v1770 = vunpack.c.l.b16 %v1754
        %v1771 = vunpack.c.l.b16 %v1755
        %v1772 = vpack.c.b16 %v1769, %v1768
        %v1773 = vpack.c.b16 %v1771, %v1770
        %v1777 = vsel %vm1148, %v1756, 0
        %1779 = vmatprep.subr.bf16.mxu0 0
        %1780 = vmatpush1.bf16.msra.mxu0 %v1772
        %1781 = vmatprep.subr.bf16.mxu0 0
        %1782 = vmatpush1.bf16.msra.mxu0 %v1773
        %1783 = vmatprep.subr.bf16.mxu0 0
        %1784 = vmatpush1.bf16.msra.mxu0 0
        %1785 = vmatprep.subr.bf16.mxu0 0
        %1786 = vmatpush1.bf16.msra.mxu0 0
        %1787 = vmatprep.subr.bf16.mxu0 0
        %1788 = vmatpush1.bf16.msra.mxu0 0
        %1789 = vmatprep.subr.bf16.mxu0 0
        %1790 = vmatpush1.bf16.msra.mxu0 0
        %1791 = vmatprep.subr.bf16.mxu0 0
        %1792 = vmatpush1.bf16.msra.mxu0 0
        %1793 = vmatprep.subr.bf16.mxu0 0
        %1794 = vmatpush1.bf16.msra.mxu0 0
        %1795 = vmatprep.subr.bf16.mxu0 0
        %1796 = vmatpush1.bf16.msra.mxu0 0
        %1797 = vmatprep.subr.bf16.mxu0 0
        %1798 = vmatpush1.bf16.msra.mxu0 0
        %1799 = vmatprep.subr.bf16.mxu0 0
        %1800 = vmatpush1.bf16.msra.mxu0 0
        %1801 = vmatprep.subr.bf16.mxu0 0
        %1802 = vmatpush1.bf16.msra.mxu0 0
        %1803 = vmatprep.subr.bf16.mxu0 0
        %1804 = vmatpush1.bf16.msra.mxu0 0
        %1805 = vmatprep.subr.bf16.mxu0 0
        %1806 = vmatpush1.bf16.msra.mxu0 0
        %1807 = vmatprep.subr.bf16.mxu0 0
        %1808 = vmatpush1.bf16.msra.mxu0 0
        %1809 = vmatprep.subr.bf16.mxu0 0
        %1810 = vmatpush1.bf16.msra.mxu0 0
        %1811 = vmatprep.mubr.bf16.mxu0 0
        %1812 = vmatmul.mubr.bf16.gmra.mrb[0].mxu0 %v1777
        %v1813 = vpop.f32.mrb[0].mxu0
        %v1814 = vadd.f32 %v1762, %v1813
        %v1815 = vpop.f32.mrb[0].mxu0
        %v1816 = vpop.f32.mrb[0].mxu0
        %v1817 = vpop.f32.mrb[0].mxu0
        %1818 = vdwg.mxu0
        %v1819 = vld [vmem:[%s27] sm:$0xf]
        %v1820 = vld [vmem:[%s27 + $0x4] sm:$0xf]
        %v1821 = vld [vmem:[%s27 + $0x8] sm:$0xf]
        %v1822 = vld [vmem:[%s27 + $0xc] sm:$0xf]
        %v1823 = vpack.c.bf16 %v1121, %v1121
        %v1824 = vld [vmem:[%s29] sm:$0x1]
        %v1826 = vlaneseq
        %v1827 = vshrl.u32 %v1826, 7
        %v1828 = vsub.s32 0, %v1827
        %v1829 = vrot.slane %v1824, %v1828
        %v1835 = vunpack.c.l.b16 %v1819
        %v1836 = vunpack.c.l.b16 %v1820
        %v1837 = vunpack.c.l.b16 %v1821
        %v1838 = vunpack.c.l.b16 %v1822
        %v1839 = vpack.c.b16 %v1836, %v1835
        %v1840 = vpack.c.b16 %v1838, %v1837
        %v1844 = vsel %vm1148, %v1823, 0
        %1846 = vmatprep.subr.bf16.mxu0 0
        %1847 = vmatpush1.bf16.msra.mxu0 %v1839
        %1848 = vmatprep.subr.bf16.mxu0 0
        %1849 = vmatpush1.bf16.msra.mxu0 %v1840
        %1850 = vmatprep.subr.bf16.mxu0 0
        %1851 = vmatpush1.bf16.msra.mxu0 0
        %1852 = vmatprep.subr.bf16.mxu0 0
        %1853 = vmatpush1.bf16.msra.mxu0 0
        %1854 = vmatprep.subr.bf16.mxu0 0
        %1855 = vmatpush1.bf16.msra.mxu0 0
        %1856 = vmatprep.subr.bf16.mxu0 0
        %1857 = vmatpush1.bf16.msra.mxu0 0
        %1858 = vmatprep.subr.bf16.mxu0 0
        %1859 = vmatpush1.bf16.msra.mxu0 0
        %1860 = vmatprep.subr.bf16.mxu0 0
        %1861 = vmatpush1.bf16.msra.mxu0 0
        %1862 = vmatprep.subr.bf16.mxu0 0
        %1863 = vmatpush1.bf16.msra.mxu0 0
        %1864 = vmatprep.subr.bf16.mxu0 0
        %1865 = vmatpush1.bf16.msra.mxu0 0
        %1866 = vmatprep.subr.bf16.mxu0 0
        %1867 = vmatpush1.bf16.msra.mxu0 0
        %1868 = vmatprep.subr.bf16.mxu0 0
        %1869 = vmatpush1.bf16.msra.mxu0 0
        %1870 = vmatprep.subr.bf16.mxu0 0
        %1871 = vmatpush1.bf16.msra.mxu0 0
        %1872 = vmatprep.subr.bf16.mxu0 0
        %1873 = vmatpush1.bf16.msra.mxu0 0
        %1874 = vmatprep.subr.bf16.mxu0 0
        %1875 = vmatpush1.bf16.msra.mxu0 0
        %1876 = vmatprep.subr.bf16.mxu0 0
        %1877 = vmatpush1.bf16.msra.mxu0 0
        %1878 = vmatprep.mubr.bf16.mxu0 0
        %1879 = vmatmul.mubr.bf16.gmra.mrb[0].mxu0 %v1844
        %v1880 = vpop.f32.mrb[0].mxu0
        %v1881 = vadd.f32 %v1829, %v1880
        %v1882 = vpop.f32.mrb[0].mxu0
        %v1883 = vpop.f32.mrb[0].mxu0
        %v1884 = vpop.f32.mrb[0].mxu0
        %1885 = vdwg.mxu0
        %v1886 = vmul.f32 %v1814, 0.35355338
        %v1887 = vpack.c.bf16 %v1886, %v1886
        %v1888 = vpack.c.bf16 %v1881, %v1881
        %v1890 = vsel %vm1198, %v1887, 0
        %v1893 = vsel %vm1198, %v1888, 0
        %1895 = vmatprep.subr.bf16.mxu0 0
        %1896 = vmatpush1.bf16.xpose.msra.mxu0 %v1893
        %1897 = vmatprep.subr.bf16.mxu0 0
        %1898 = vmatpush1.bf16.xpose.msra.mxu0 0
        %1899 = vmatprep.subr.bf16.mxu0 0
        %1900 = vmatpush1.bf16.xpose.msra.mxu0 0
        %1901 = vmatprep.subr.bf16.mxu0 0
        %1902 = vmatpush1.bf16.xpose.msra.mxu0 0
        %1903 = vmatprep.subr.bf16.mxu0 0
        %1904 = vmatpush1.bf16.xpose.msra.mxu0 0
        %1905 = vmatprep.subr.bf16.mxu0 0
        %1906 = vmatpush1.bf16.xpose.msra.mxu0 0
        %1907 = vmatprep.subr.bf16.mxu0 0
        %1908 = vmatpush1.bf16.xpose.msra.mxu0 0
        %1909 = vmatprep.subr.bf16.mxu0 0
        %1910 = vmatpush1.bf16.xpose.msra.mxu0 0
        %1911 = vmatprep.subr.bf16.mxu0 0
        %1912 = vmatpush1.bf16.xpose.msra.mxu0 0
        %1913 = vmatprep.subr.bf16.mxu0 0
        %1914 = vmatpush1.bf16.xpose.msra.mxu0 0
        %1915 = vmatprep.subr.bf16.mxu0 0
        %1916 = vmatpush1.bf16.xpose.msra.mxu0 0
        %1917 = vmatprep.subr.bf16.mxu0 0
        %1918 = vmatpush1.bf16.xpose.msra.mxu0 0
        %1919 = vmatprep.subr.bf16.mxu0 0
        %1920 = vmatpush1.bf16.xpose.msra.mxu0 0
        %1921 = vmatprep.subr.bf16.mxu0 0
        %1922 = vmatpush1.bf16.xpose.msra.mxu0 0
        %1923 = vmatprep.subr.bf16.mxu0 0
        %1924 = vmatpush1.bf16.xpose.msra.mxu0 0
        %1925 = vmatprep.subr.bf16.mxu0 0
        %1926 = vmatpush1.bf16.xpose.msra.mxu0 0
        %1927 = vmatprep.mubr.bf16.mxu0 0
        %1928 = vmatmul.mubr.bf16.gmra.mrb[0].mxu0 %v1890
        %v1929 = vpop.f32.mrb[0].mxu0
        %v1930 = vadd.f32 0.0, %v1929
        %v1931 = vpop.f32.mrb[0].mxu0
        %v1932 = vpop.f32.mrb[0].mxu0
        %v1933 = vpop.f32.mrb[0].mxu0
        %1934 = vdwg.mxu0
        %v1935 = vsel %vm1198, %v1930, -inf
        %1936 = vmax.xlane.f32.xlu0 %v1935
        %v1937 = vpop.xlane.xlu0 %1936
        %v1938 = vsub.f32 %v1930, %v1937
        %v1939 = vmul.f32 %v1938, 1.442695
        %v1940 = vpow.pop %v1939
        %v1941 = vsel %vm1198, %v1940, 0.0
        %1942 = vadd.xlane.f32.xlu0 %v1941
        %v1943 = vpop.xlane.xlu0 %1942
        %v1944 = vrcp.pop %v1943
        %v1945 = vmul.f32 %v1940, %v1944
        %v1946 = vpack.c.bf16 %v1945, %v1945
        %1948 = vrot.lane.b32.xlu0 %v1888, 96
        %v1949 = vpop.permute.xlu0 %1948
        %v1951 = vsel %vm1198, %v1946, 0
        %v1954 = vsel %vm1262, %v1949, 0
        %1956 = vmatprep.subr.bf16.mxu0 0
        %1957 = vmatpush1.bf16.msra.mxu0 %v1954
        %1958 = vmatprep.subr.bf16.mxu0 0
        %1959 = vmatpush1.bf16.msra.mxu0 0
        %1960 = vmatprep.subr.bf16.mxu0 0
        %1961 = vmatpush1.bf16.msra.mxu0 0
        %1962 = vmatprep.subr.bf16.mxu0 0
        %1963 = vmatpush1.bf16.msra.mxu0 0
        %1964 = vmatprep.subr.bf16.mxu0 0
        %1965 = vmatpush1.bf16.msra.mxu0 0
        %1966 = vmatprep.subr.bf16.mxu0 0
        %1967 = vmatpush1.bf16.msra.mxu0 0
        %1968 = vmatprep.subr.bf16.mxu0 0
        %1969 = vmatpush1.bf16.msra.mxu0 0
        %1970 = vmatprep.subr.bf16.mxu0 0
        %1971 = vmatpush1.bf16.msra.mxu0 0
        %1972 = vmatprep.subr.bf16.mxu0 0
        %1973 = vmatpush1.bf16.msra.mxu0 0
        %1974 = vmatprep.subr.bf16.mxu0 0
        %1975 = vmatpush1.bf16.msra.mxu0 0
        %1976 = vmatprep.subr.bf16.mxu0 0
        %1977 = vmatpush1.bf16.msra.mxu0 0
        %1978 = vmatprep.subr.bf16.mxu0 0
        %1979 = vmatpush1.bf16.msra.mxu0 0
        %1980 = vmatprep.subr.bf16.mxu0 0
        %1981 = vmatpush1.bf16.msra.mxu0 0
        %1982 = vmatprep.subr.bf16.mxu0 0
        %1983 = vmatpush1.bf16.msra.mxu0 0
        %1984 = vmatprep.subr.bf16.mxu0 0
        %1985 = vmatpush1.bf16.msra.mxu0 0
        %1986 = vmatprep.subr.bf16.mxu0 0
        %1987 = vmatpush1.bf16.msra.mxu0 0
        %1988 = vmatprep.mubr.bf16.mxu0 0
        %1989 = vmatmul.mubr.bf16.gmra.mrb[0].mxu0 %v1951
        %v1990 = vpop.f32.mrb[0].mxu0
        %v1991 = vadd.f32 0.0, %v1990
        %v1992 = vpop.f32.mrb[0].mxu0
        %v1993 = vpop.f32.mrb[0].mxu0
        %v1994 = vpop.f32.mrb[0].mxu0
        %1995 = vdwg.mxu0
        %1997 = vrot.lane.b32.xlu0 %v1887, 120
        %v1998 = vpop.permute.xlu0 %1997
        %1999 = vrot.lane.b32.xlu0 %v1888, 120
        %v2000 = vpop.permute.xlu0 %1999
        %v2002 = vsel %vm1198, %v1998, 0
        %v2005 = vsel %vm1198, %v2000, 0
        %2007 = vmatprep.subr.bf16.mxu0 0
        %2008 = vmatpush1.bf16.xpose.msra.mxu0 %v2005
        %2009 = vmatprep.subr.bf16.mxu0 0
        %2010 = vmatpush1.bf16.xpose.msra.mxu0 0
        %2011 = vmatprep.subr.bf16.mxu0 0
        %2012 = vmatpush1.bf16.xpose.msra.mxu0 0
        %2013 = vmatprep.subr.bf16.mxu0 0
        %2014 = vmatpush1.bf16.xpose.msra.mxu0 0
        %2015 = vmatprep.subr.bf16.mxu0 0
        %2016 = vmatpush1.bf16.xpose.msra.mxu0 0
        %2017 = vmatprep.subr.bf16.mxu0 0
        %2018 = vmatpush1.bf16.xpose.msra.mxu0 0
        %2019 = vmatprep.subr.bf16.mxu0 0
        %2020 = vmatpush1.bf16.xpose.msra.mxu0 0
        %2021 = vmatprep.subr.bf16.mxu0 0
        %2022 = vmatpush1.bf16.xpose.msra.mxu0 0
        %2023 = vmatprep.subr.bf16.mxu0 0
        %2024 = vmatpush1.bf16.xpose.msra.mxu0 0
        %2025 = vmatprep.subr.bf16.mxu0 0
        %2026 = vmatpush1.bf16.xpose.msra.mxu0 0
        %2027 = vmatprep.subr.bf16.mxu0 0
        %2028 = vmatpush1.bf16.xpose.msra.mxu0 0
        %2029 = vmatprep.subr.bf16.mxu0 0
        %2030 = vmatpush1.bf16.xpose.msra.mxu0 0
        %2031 = vmatprep.subr.bf16.mxu0 0
        %2032 = vmatpush1.bf16.xpose.msra.mxu0 0
        %2033 = vmatprep.subr.bf16.mxu0 0
        %2034 = vmatpush1.bf16.xpose.msra.mxu0 0
        %2035 = vmatprep.subr.bf16.mxu0 0
        %2036 = vmatpush1.bf16.xpose.msra.mxu0 0
        %2037 = vmatprep.subr.bf16.mxu0 0
        %2038 = vmatpush1.bf16.xpose.msra.mxu0 0
        %2039 = vmatprep.mubr.bf16.mxu0 0
        %2040 = vmatmul.mubr.bf16.gmra.mrb[0].mxu0 %v2002
        %v2041 = vpop.f32.mrb[0].mxu0
        %v2042 = vadd.f32 0.0, %v2041
        %v2043 = vpop.f32.mrb[0].mxu0
        %v2044 = vpop.f32.mrb[0].mxu0
        %v2045 = vpop.f32.mrb[0].mxu0
        %2046 = vdwg.mxu0
        %v2047 = vsel %vm1198, %v2042, -inf
        %2048 = vmax.xlane.f32.xlu0 %v2047
        %v2049 = vpop.xlane.xlu0 %2048
        %v2050 = vsub.f32 %v2042, %v2049
        %v2051 = vmul.f32 %v2050, 1.442695
        %v2052 = vpow.pop %v2051
        %v2053 = vsel %vm1198, %v2052, 0.0
        %2054 = vadd.xlane.f32.xlu0 %v2053
        %v2055 = vpop.xlane.xlu0 %2054
        %v2056 = vrcp.pop %v2055
        %v2057 = vmul.f32 %v2052, %v2056
        %v2058 = vpack.c.bf16 %v2057, %v2057
        %2059 = vrot.lane.b32.xlu0 %v1888, 88
        %v2060 = vpop.permute.xlu0 %2059
        %v2062 = vsel %vm1198, %v2058, 0
        %v2065 = vsel %vm1262, %v2060, 0
        %2067 = vmatprep.subr.bf16.mxu0 0
        %2068 = vmatpush1.bf16.msra.mxu0 %v2065
        %2069 = vmatprep.subr.bf16.mxu0 0
        %2070 = vmatpush1.bf16.msra.mxu0 0
        %2071 = vmatprep.subr.bf16.mxu0 0
        %2072 = vmatpush1.bf16.msra.mxu0 0
        %2073 = vmatprep.subr.bf16.mxu0 0
        %2074 = vmatpush1.bf16.msra.mxu0 0
        %2075 = vmatprep.subr.bf16.mxu0 0
        %2076 = vmatpush1.bf16.msra.mxu0 0
        %2077 = vmatprep.subr.bf16.mxu0 0
        %2078 = vmatpush1.bf16.msra.mxu0 0
        %2079 = vmatprep.subr.bf16.mxu0 0
        %2080 = vmatpush1.bf16.msra.mxu0 0
        %2081 = vmatprep.subr.bf16.mxu0 0
        %2082 = vmatpush1.bf16.msra.mxu0 0
        %2083 = vmatprep.subr.bf16.mxu0 0
        %2084 = vmatpush1.bf16.msra.mxu0 0
        %2085 = vmatprep.subr.bf16.mxu0 0
        %2086 = vmatpush1.bf16.msra.mxu0 0
        %2087 = vmatprep.subr.bf16.mxu0 0
        %2088 = vmatpush1.bf16.msra.mxu0 0
        %2089 = vmatprep.subr.bf16.mxu0 0
        %2090 = vmatpush1.bf16.msra.mxu0 0
        %2091 = vmatprep.subr.bf16.mxu0 0
        %2092 = vmatpush1.bf16.msra.mxu0 0
        %2093 = vmatprep.subr.bf16.mxu0 0
        %2094 = vmatpush1.bf16.msra.mxu0 0
        %2095 = vmatprep.subr.bf16.mxu0 0
        %2096 = vmatpush1.bf16.msra.mxu0 0
        %2097 = vmatprep.subr.bf16.mxu0 0
        %2098 = vmatpush1.bf16.msra.mxu0 0
        %2099 = vmatprep.mubr.bf16.mxu0 0
        %2100 = vmatmul.mubr.bf16.gmra.mrb[0].mxu0 %v2062
        %v2101 = vpop.f32.mrb[0].mxu0
        %v2102 = vadd.f32 0.0, %v2101
        %v2103 = vpop.f32.mrb[0].mxu0
        %v2104 = vpop.f32.mrb[0].mxu0
        %v2105 = vpop.f32.mrb[0].mxu0
        %2106 = vdwg.mxu0
        %2107 = vrot.lane.b32.xlu0 %v1887, 112
        %v2108 = vpop.permute.xlu0 %2107
        %2109 = vrot.lane.b32.xlu0 %v1888, 112
        %v2110 = vpop.permute.xlu0 %2109
        %v2112 = vsel %vm1198, %v2108, 0
        %v2115 = vsel %vm1198, %v2110, 0
        %2117 = vmatprep.subr.bf16.mxu0 0
        %2118 = vmatpush1.bf16.xpose.msra.mxu0 %v2115
        %2119 = vmatprep.subr.bf16.mxu0 0
        %2120 = vmatpush1.bf16.xpose.msra.mxu0 0
        %2121 = vmatprep.subr.bf16.mxu0 0
        %2122 = vmatpush1.bf16.xpose.msra.mxu0 0
        %2123 = vmatprep.subr.bf16.mxu0 0
        %2124 = vmatpush1.bf16.xpose.msra.mxu0 0
        %2125 = vmatprep.subr.bf16.mxu0 0
        %2126 = vmatpush1.bf16.xpose.msra.mxu0 0
        %2127 = vmatprep.subr.bf16.mxu0 0
        %2128 = vmatpush1.bf16.xpose.msra.mxu0 0
        %2129 = vmatprep.subr.bf16.mxu0 0
        %2130 = vmatpush1.bf16.xpose.msra.mxu0 0
        %2131 = vmatprep.subr.bf16.mxu0 0
        %2132 = vmatpush1.bf16.xpose.msra.mxu0 0
        %2133 = vmatprep.subr.bf16.mxu0 0
        %2134 = vmatpush1.bf16.xpose.msra.mxu0 0
        %2135 = vmatprep.subr.bf16.mxu0 0
        %2136 = vmatpush1.bf16.xpose.msra.mxu0 0
        %2137 = vmatprep.subr.bf16.mxu0 0
        %2138 = vmatpush1.bf16.xpose.msra.mxu0 0
        %2139 = vmatprep.subr.bf16.mxu0 0
        %2140 = vmatpush1.bf16.xpose.msra.mxu0 0
        %2141 = vmatprep.subr.bf16.mxu0 0
        %2142 = vmatpush1.bf16.xpose.msra.mxu0 0
        %2143 = vmatprep.subr.bf16.mxu0 0
        %2144 = vmatpush1.bf16.xpose.msra.mxu0 0
        %2145 = vmatprep.subr.bf16.mxu0 0
        %2146 = vmatpush1.bf16.xpose.msra.mxu0 0
        %2147 = vmatprep.subr.bf16.mxu0 0
        %2148 = vmatpush1.bf16.xpose.msra.mxu0 0
        %2149 = vmatprep.mubr.bf16.mxu0 0
        %2150 = vmatmul.mubr.bf16.gmra.mrb[0].mxu0 %v2112
        %v2151 = vpop.f32.mrb[0].mxu0
        %v2152 = vadd.f32 0.0, %v2151
        %v2153 = vpop.f32.mrb[0].mxu0
        %v2154 = vpop.f32.mrb[0].mxu0
        %v2155 = vpop.f32.mrb[0].mxu0
        %2156 = vdwg.mxu0
        %v2157 = vsel %vm1198, %v2152, -inf
        %2158 = vmax.xlane.f32.xlu0 %v2157
        %v2159 = vpop.xlane.xlu0 %2158
        %v2160 = vsub.f32 %v2152, %v2159
        %v2161 = vmul.f32 %v2160, 1.442695
        %v2162 = vpow.pop %v2161
        %v2163 = vsel %vm1198, %v2162, 0.0
        %2164 = vadd.xlane.f32.xlu0 %v2163
        %v2165 = vpop.xlane.xlu0 %2164
        %v2166 = vrcp.pop %v2165
        %v2167 = vmul.f32 %v2162, %v2166
        %v2168 = vpack.c.bf16 %v2167, %v2167
        %2169 = vrot.lane.b32.xlu0 %v1888, 80
        %v2170 = vpop.permute.xlu0 %2169
        %v2172 = vsel %vm1198, %v2168, 0
        %v2175 = vsel %vm1262, %v2170, 0
        %2177 = vmatprep.subr.bf16.mxu0 0
        %2178 = vmatpush1.bf16.msra.mxu0 %v2175
        %2179 = vmatprep.subr.bf16.mxu0 0
        %2180 = vmatpush1.bf16.msra.mxu0 0
        %2181 = vmatprep.subr.bf16.mxu0 0
        %2182 = vmatpush1.bf16.msra.mxu0 0
        %2183 = vmatprep.subr.bf16.mxu0 0
        %2184 = vmatpush1.bf16.msra.mxu0 0
        %2185 = vmatprep.subr.bf16.mxu0 0
        %2186 = vmatpush1.bf16.msra.mxu0 0
        %2187 = vmatprep.subr.bf16.mxu0 0
        %2188 = vmatpush1.bf16.msra.mxu0 0
        %2189 = vmatprep.subr.bf16.mxu0 0
        %2190 = vmatpush1.bf16.msra.mxu0 0
        %2191 = vmatprep.subr.bf16.mxu0 0
        %2192 = vmatpush1.bf16.msra.mxu0 0
        %2193 = vmatprep.subr.bf16.mxu0 0
        %2194 = vmatpush1.bf16.msra.mxu0 0
        %2195 = vmatprep.subr.bf16.mxu0 0
        %2196 = vmatpush1.bf16.msra.mxu0 0
        %2197 = vmatprep.subr.bf16.mxu0 0
        %2198 = vmatpush1.bf16.msra.mxu0 0
        %2199 = vmatprep.subr.bf16.mxu0 0
        %2200 = vmatpush1.bf16.msra.mxu0 0
        %2201 = vmatprep.subr.bf16.mxu0 0
        %2202 = vmatpush1.bf16.msra.mxu0 0
        %2203 = vmatprep.subr.bf16.mxu0 0
        %2204 = vmatpush1.bf16.msra.mxu0 0
        %2205 = vmatprep.subr.bf16.mxu0 0
        %2206 = vmatpush1.bf16.msra.mxu0 0
        %2207 = vmatprep.subr.bf16.mxu0 0
        %2208 = vmatpush1.bf16.msra.mxu0 0
        %2209 = vmatprep.mubr.bf16.mxu0 0
        %2210 = vmatmul.mubr.bf16.gmra.mrb[0].mxu0 %v2172
        %v2211 = vpop.f32.mrb[0].mxu0
        %v2212 = vadd.f32 0.0, %v2211
        %v2213 = vpop.f32.mrb[0].mxu0
        %v2214 = vpop.f32.mrb[0].mxu0
        %v2215 = vpop.f32.mrb[0].mxu0
        %2216 = vdwg.mxu0
        %2217 = vrot.lane.b32.xlu0 %v1887, 104
        %v2218 = vpop.permute.xlu0 %2217
        %2219 = vrot.lane.b32.xlu0 %v1888, 104
        %v2220 = vpop.permute.xlu0 %2219
        %v2222 = vsel %vm1198, %v2218, 0
        %v2225 = vsel %vm1198, %v2220, 0
        %2227 = vmatprep.subr.bf16.mxu0 0
        %2228 = vmatpush1.bf16.xpose.msra.mxu0 %v2225
        %2229 = vmatprep.subr.bf16.mxu0 0
        %2230 = vmatpush1.bf16.xpose.msra.mxu0 0
        %2231 = vmatprep.subr.bf16.mxu0 0
        %2232 = vmatpush1.bf16.xpose.msra.mxu0 0
        %2233 = vmatprep.subr.bf16.mxu0 0
        %2234 = vmatpush1.bf16.xpose.msra.mxu0 0
        %2235 = vmatprep.subr.bf16.mxu0 0
        %2236 = vmatpush1.bf16.xpose.msra.mxu0 0
        %2237 = vmatprep.subr.bf16.mxu0 0
        %2238 = vmatpush1.bf16.xpose.msra.mxu0 0
        %2239 = vmatprep.subr.bf16.mxu0 0
        %2240 = vmatpush1.bf16.xpose.msra.mxu0 0
        %2241 = vmatprep.subr.bf16.mxu0 0
        %2242 = vmatpush1.bf16.xpose.msra.mxu0 0
        %2243 = vmatprep.subr.bf16.mxu0 0
        %2244 = vmatpush1.bf16.xpose.msra.mxu0 0
        %2245 = vmatprep.subr.bf16.mxu0 0
        %2246 = vmatpush1.bf16.xpose.msra.mxu0 0
        %2247 = vmatprep.subr.bf16.mxu0 0
        %2248 = vmatpush1.bf16.xpose.msra.mxu0 0
        %2249 = vmatprep.subr.bf16.mxu0 0
        %2250 = vmatpush1.bf16.xpose.msra.mxu0 0
        %2251 = vmatprep.subr.bf16.mxu0 0
        %2252 = vmatpush1.bf16.xpose.msra.mxu0 0
        %2253 = vmatprep.subr.bf16.mxu0 0
        %2254 = vmatpush1.bf16.xpose.msra.mxu0 0
        %2255 = vmatprep.subr.bf16.mxu0 0
        %2256 = vmatpush1.bf16.xpose.msra.mxu0 0
        %2257 = vmatprep.subr.bf16.mxu0 0
        %2258 = vmatpush1.bf16.xpose.msra.mxu0 0
        %2259 = vmatprep.mubr.bf16.mxu0 0
        %2260 = vmatmul.mubr.bf16.gmra.mrb[0].mxu0 %v2222
        %v2261 = vpop.f32.mrb[0].mxu0
        %v2262 = vadd.f32 0.0, %v2261
        %v2263 = vpop.f32.mrb[0].mxu0
        %v2264 = vpop.f32.mrb[0].mxu0
        %v2265 = vpop.f32.mrb[0].mxu0
        %2266 = vdwg.mxu0
        %v2267 = vsel %vm1198, %v2262, -inf
        %2268 = vmax.xlane.f32.xlu0 %v2267
        %v2269 = vpop.xlane.xlu0 %2268
        %v2270 = vsub.f32 %v2262, %v2269
        %v2271 = vmul.f32 %v2270, 1.442695
        %v2272 = vpow.pop %v2271
        %v2273 = vsel %vm1198, %v2272, 0.0
        %2274 = vadd.xlane.f32.xlu0 %v2273
        %v2275 = vpop.xlane.xlu0 %2274
        %v2276 = vrcp.pop %v2275
        %v2277 = vmul.f32 %v2272, %v2276
        %v2278 = vpack.c.bf16 %v2277, %v2277
        %2279 = vrot.lane.b32.xlu0 %v1888, 72
        %v2280 = vpop.permute.xlu0 %2279
        %v2282 = vsel %vm1198, %v2278, 0
        %v2285 = vsel %vm1262, %v2280, 0
        %2287 = vmatprep.subr.bf16.mxu0 0
        %2288 = vmatpush1.bf16.msra.mxu0 %v2285
        %2289 = vmatprep.subr.bf16.mxu0 0
        %2290 = vmatpush1.bf16.msra.mxu0 0
        %2291 = vmatprep.subr.bf16.mxu0 0
        %2292 = vmatpush1.bf16.msra.mxu0 0
        %2293 = vmatprep.subr.bf16.mxu0 0
        %2294 = vmatpush1.bf16.msra.mxu0 0
        %2295 = vmatprep.subr.bf16.mxu0 0
        %2296 = vmatpush1.bf16.msra.mxu0 0
        %2297 = vmatprep.subr.bf16.mxu0 0
        %2298 = vmatpush1.bf16.msra.mxu0 0
        %2299 = vmatprep.subr.bf16.mxu0 0
        %2300 = vmatpush1.bf16.msra.mxu0 0
        %2301 = vmatprep.subr.bf16.mxu0 0
        %2302 = vmatpush1.bf16.msra.mxu0 0
        %2303 = vmatprep.subr.bf16.mxu0 0
        %2304 = vmatpush1.bf16.msra.mxu0 0
        %2305 = vmatprep.subr.bf16.mxu0 0
        %2306 = vmatpush1.bf16.msra.mxu0 0
        %2307 = vmatprep.subr.bf16.mxu0 0
        %2308 = vmatpush1.bf16.msra.mxu0 0
        %2309 = vmatprep.subr.bf16.mxu0 0
        %2310 = vmatpush1.bf16.msra.mxu0 0
        %2311 = vmatprep.subr.bf16.mxu0 0
        %2312 = vmatpush1.bf16.msra.mxu0 0
        %2313 = vmatprep.subr.bf16.mxu0 0
        %2314 = vmatpush1.bf16.msra.mxu0 0
        %2315 = vmatprep.subr.bf16.mxu0 0
        %2316 = vmatpush1.bf16.msra.mxu0 0
        %2317 = vmatprep.subr.bf16.mxu0 0
        %2318 = vmatpush1.bf16.msra.mxu0 0
        %2319 = vmatprep.mubr.bf16.mxu0 0
        %2320 = vmatmul.mubr.bf16.gmra.mrb[0].mxu0 %v2282
        %v2321 = vpop.f32.mrb[0].mxu0
        %v2322 = vadd.f32 0.0, %v2321
        %v2323 = vpop.f32.mrb[0].mxu0
        %v2324 = vpop.f32.mrb[0].mxu0
        %v2325 = vpop.f32.mrb[0].mxu0
        %2326 = vdwg.mxu0
        %2328 = vrot.lane.b32.xlu0 %v2102, 8
        %v2329 = vpop.permute.xlu0 %2328
        %2332 = vrot.lane.b32.xlu0 %v2212, 16
        %v2333 = vpop.permute.xlu0 %2332
        %2336 = vrot.lane.b32.xlu0 %v2322, 24
        %v2337 = vpop.permute.xlu0 %2336
        %v2339 = vsel %vm1198, %v1991, %v2329
        %v2340 = vsel %vm1650, %v2339, %v2333
        %v2341 = vsel %vm1652, %v2340, %v2337
        %v2342 = vld [vmem:[%s31] sm:$0xf]
        %v2343 = vld [vmem:[%s31 + $0x4] sm:$0xf]
        %v2344 = vld [vmem:[%s31 + $0x8] sm:$0xf]
        %v2345 = vld [vmem:[%s31 + $0xc] sm:$0xf]
        %v2346 = vpack.c.bf16 %v2341, %v2341
        %v2347 = vld [vmem:[%s33] sm:$0x1]
        %v2349 = vlaneseq
        %v2350 = vshrl.u32 %v2349, 7
        %v2351 = vsub.s32 0, %v2350
        %v2352 = vrot.slane %v2347, %v2351
        %v2358 = vunpack.c.l.b16 %v2342
        %v2359 = vunpack.c.l.b16 %v2343
        %v2360 = vunpack.c.l.b16 %v2344
        %v2361 = vunpack.c.l.b16 %v2345
        %v2362 = vpack.c.b16 %v2359, %v2358
        %v2363 = vpack.c.b16 %v2361, %v2360
        %v2367 = vsel %vm1148, %v2346, 0
        %2369 = vmatprep.subr.bf16.mxu0 0
        %2370 = vmatpush1.bf16.msra.mxu0 %v2362
        %2371 = vmatprep.subr.bf16.mxu0 0
        %2372 = vmatpush1.bf16.msra.mxu0 %v2363
        %2373 = vmatprep.subr.bf16.mxu0 0
        %2374 = vmatpush1.bf16.msra.mxu0 0
        %2375 = vmatprep.subr.bf16.mxu0 0
        %2376 = vmatpush1.bf16.msra.mxu0 0
        %2377 = vmatprep.subr.bf16.mxu0 0
        %2378 = vmatpush1.bf16.msra.mxu0 0
        %2379 = vmatprep.subr.bf16.mxu0 0
        %2380 = vmatpush1.bf16.msra.mxu0 0
        %2381 = vmatprep.subr.bf16.mxu0 0
        %2382 = vmatpush1.bf16.msra.mxu0 0
        %2383 = vmatprep.subr.bf16.mxu0 0
        %2384 = vmatpush1.bf16.msra.mxu0 0
        %2385 = vmatprep.subr.bf16.mxu0 0
        %2386 = vmatpush1.bf16.msra.mxu0 0
        %2387 = vmatprep.subr.bf16.mxu0 0
        %2388 = vmatpush1.bf16.msra.mxu0 0
        %2389 = vmatprep.subr.bf16.mxu0 0
        %2390 = vmatpush1.bf16.msra.mxu0 0
        %2391 = vmatprep.subr.bf16.mxu0 0
        %2392 = vmatpush1.bf16.msra.mxu0 0
        %2393 = vmatprep.subr.bf16.mxu0 0
        %2394 = vmatpush1.bf16.msra.mxu0 0
        %2395 = vmatprep.subr.bf16.mxu0 0
        %2396 = vmatpush1.bf16.msra.mxu0 0
        %2397 = vmatprep.subr.bf16.mxu0 0
        %2398 = vmatpush1.bf16.msra.mxu0 0
        %2399 = vmatprep.subr.bf16.mxu0 0
        %2400 = vmatpush1.bf16.msra.mxu0 0
        %2401 = vmatprep.mubr.bf16.mxu0 0
        %2402 = vmatmul.mubr.bf16.gmra.mrb[0].mxu0 %v2367
        %v2403 = vpop.f32.mrb[0].mxu0
        %v2404 = vadd.f32 %v2352, %v2403
        %v2405 = vpop.f32.mrb[0].mxu0
        %v2406 = vpop.f32.mrb[0].mxu0
        %v2407 = vpop.f32.mrb[0].mxu0
        %2408 = vdwg.mxu0
        %v2409 = vadd.f32 %v2404, %v1751
        %v2410 = vsel %vm1148, %v2409, 0.0
        %2411 = vadd.xlane.f32.xlu0 %v2410
        %v2412 = vpop.xlane.xlu0 %2411
        %v2413 = vmul.f32 %v2412, %v1725
        %v2414 = vsub.f32 %v2409, %v2413
        %v2415 = vmul.f32 %v2414, %v2414
        %v2416 = vsel %vm1148, %v2415, 0.0
        %2417 = vadd.xlane.f32.xlu0 %v2416
        %v2418 = vpop.xlane.xlu0 %2417
        %v2419 = vmul.f32 %v2418, %v1725
        %v2420 = vadd.f32 %v2419, 1e-06
        %v2421 = vrsqrt.pop %v2420
        %v2422 = vmul.f32 %v2414, %v2421
        %v2423 = vld [vmem:[%s35] sm:$0x1]
        %v2425 = vlaneseq
        %v2426 = vshrl.u32 %v2425, 7
        %v2427 = vsub.s32 0, %v2426
        %v2428 = vrot.slane %v2423, %v2427
        %v2430 = vmul.f32 %v2422, %v2428
        %v2431 = vld [vmem:[%s37] sm:$0x1]
        %v2433 = vlaneseq
        %v2434 = vshrl.u32 %v2433, 7
        %v2435 = vsub.s32 0, %v2434
        %v2436 = vrot.slane %v2431, %v2435
        %v2438 = vadd.f32 %v2430, %v2436
        %v2439 = vld [vmem:[%s39] sm:$0xf]
        %v2440 = vld [vmem:[%s39 + $0x4] sm:$0xf]
        %v2441 = vld [vmem:[%s39 + $0x8] sm:$0xf]
        %v2442 = vld [vmem:[%s39 + $0xc] sm:$0xf]
        %v2443 = vpack.c.bf16 %v2438, %v2438
        %v2444 = vld [vmem:[%s41] sm:$0x1]
        %v2446 = vlaneseq
        %v2447 = vshrl.u32 %v2446, 7
        %v2448 = vsub.s32 0, %v2447
        %v2449 = vrot.slane %v2444, %v2448
        %v2455 = vunpack.c.l.b16 %v2439
        %v2456 = vunpack.c.l.b16 %v2440
        %v2457 = vunpack.c.l.b16 %v2441
        %v2458 = vunpack.c.l.b16 %v2442
        %v2459 = vpack.c.b16 %v2456, %v2455
        %v2460 = vpack.c.b16 %v2458, %v2457
        %v2464 = vsel %vm1148, %v2443, 0
        %2466 = vmatprep.subr.bf16.mxu0 0
        %2467 = vmatpush1.bf16.msra.mxu0 %v2459
        %2468 = vmatprep.subr.bf16.mxu0 0
        %2469 = vmatpush1.bf16.msra.mxu0 %v2460
        %2470 = vmatprep.subr.bf16.mxu0 0
        %2471 = vmatpush1.bf16.msra.mxu0 0
        %2472 = vmatprep.subr.bf16.mxu0 0
        %2473 = vmatpush1.bf16.msra.mxu0 0
        %2474 = vmatprep.subr.bf16.mxu0 0
        %2475 = vmatpush1.bf16.msra.mxu0 0
        %2476 = vmatprep.subr.bf16.mxu0 0
        %2477 = vmatpush1.bf16.msra.mxu0 0
        %2478 = vmatprep.subr.bf16.mxu0 0
        %2479 = vmatpush1.bf16.msra.mxu0 0
        %2480 = vmatprep.subr.bf16.mxu0 0
        %2481 = vmatpush1.bf16.msra.mxu0 0
        %2482 = vmatprep.subr.bf16.mxu0 0
        %2483 = vmatpush1.bf16.msra.mxu0 0
        %2484 = vmatprep.subr.bf16.mxu0 0
        %2485 = vmatpush1.bf16.msra.mxu0 0
        %2486 = vmatprep.subr.bf16.mxu0 0
        %2487 = vmatpush1.bf16.msra.mxu0 0
        %2488 = vmatprep.subr.bf16.mxu0 0
        %2489 = vmatpush1.bf16.msra.mxu0 0
        %2490 = vmatprep.subr.bf16.mxu0 0
        %2491 = vmatpush1.bf16.msra.mxu0 0
        %2492 = vmatprep.subr.bf16.mxu0 0
        %2493 = vmatpush1.bf16.msra.mxu0 0
        %2494 = vmatprep.subr.bf16.mxu0 0
        %2495 = vmatpush1.bf16.msra.mxu0 0
        %2496 = vmatprep.subr.bf16.mxu0 0
        %2497 = vmatpush1.bf16.msra.mxu0 0
        %2498 = vmatprep.mubr.bf16.mxu0 0
        %2499 = vmatmul.mubr.bf16.gmra.mrb[0].mxu0 %v2464
        %v2500 = vpop.f32.mrb[0].mxu0
        %v2501 = vadd.f32 %v2449, %v2500
        %v2502 = vpop.f32.mrb[0].mxu0
        %v2503 = vpop.f32.mrb[0].mxu0
        %v2504 = vpop.f32.mrb[0].mxu0
        %2505 = vdwg.mxu0
        %v2506 = vld [vmem:[%s43] sm:$0xf]
        %v2507 = vld [vmem:[%s43 + $0x4] sm:$0xf]
        %v2508 = vld [vmem:[%s43 + $0x8] sm:$0xf]
        %v2509 = vld [vmem:[%s43 + $0xc] sm:$0xf]
        %v2510 = vpack.c.bf16 %v1120, %v1119
        %v2511 = vld [vmem:[%s45] sm:$0x1]
        %v2513 = vlaneseq
        %v2514 = vshrl.u32 %v2513, 7
        %v2515 = vsub.s32 0, %v2514
        %v2516 = vrot.slane %v2511, %v2515
        %v2522 = vunpack.c.l.b16 %v2506
        %v2523 = vunpack.c.l.b16 %v2507
        %v2524 = vunpack.c.l.b16 %v2508
        %v2525 = vunpack.c.l.b16 %v2509
        %v2526 = vpack.c.b16 %v2523, %v2522
        %v2527 = vpack.c.b16 %v2525, %v2524
        %v2531 = vsel %vm1148, %v2510, 0
        %2533 = vmatprep.subr.bf16.mxu0 0
        %2534 = vmatpush1.bf16.msra.mxu0 %v2526
        %2535 = vmatprep.subr.bf16.mxu0 0
        %2536 = vmatpush1.bf16.msra.mxu0 %v2527
        %2537 = vmatprep.subr.bf16.mxu0 0
        %2538 = vmatpush1.bf16.msra.mxu0 0
        %2539 = vmatprep.subr.bf16.mxu0 0
        %2540 = vmatpush1.bf16.msra.mxu0 0
        %2541 = vmatprep.subr.bf16.mxu0 0
        %2542 = vmatpush1.bf16.msra.mxu0 0
        %2543 = vmatprep.subr.bf16.mxu0 0
        %2544 = vmatpush1.bf16.msra.mxu0 0
        %2545 = vmatprep.subr.bf16.mxu0 0
        %2546 = vmatpush1.bf16.msra.mxu0 0
        %2547 = vmatprep.subr.bf16.mxu0 0
        %2548 = vmatpush1.bf16.msra.mxu0 0
        %2549 = vmatprep.subr.bf16.mxu0 0
        %2550 = vmatpush1.bf16.msra.mxu0 0
        %2551 = vmatprep.subr.bf16.mxu0 0
        %2552 = vmatpush1.bf16.msra.mxu0 0
        %2553 = vmatprep.subr.bf16.mxu0 0
        %2554 = vmatpush1.bf16.msra.mxu0 0
        %2555 = vmatprep.subr.bf16.mxu0 0
        %2556 = vmatpush1.bf16.msra.mxu0 0
        %2557 = vmatprep.subr.bf16.mxu0 0
        %2558 = vmatpush1.bf16.msra.mxu0 0
        %2559 = vmatprep.subr.bf16.mxu0 0
        %2560 = vmatpush1.bf16.msra.mxu0 0
        %2561 = vmatprep.subr.bf16.mxu0 0
        %2562 = vmatpush1.bf16.msra.mxu0 0
        %2563 = vmatprep.subr.bf16.mxu0 0
        %2564 = vmatpush1.bf16.msra.mxu0 0
        %2565 = vmatprep.mubr.bf16.mxu0 0
        %2566 = vmatmul.mubr.bf16.gmra.mrb[0].mxu0 %v2531
        %v2567 = vpop.f32.mrb[0].mxu0
        %v2568 = vadd.f32 %v2516, %v2567
        %v2569 = vpop.f32.mrb[0].mxu0
        %v2570 = vpop.f32.mrb[0].mxu0
        %v2571 = vadd.f32 %v2516, %v2570
        %v2572 = vpop.f32.mrb[0].mxu0
        %2573 = vdwg.mxu0
        %v2574 = vmul.f32 %v2501, 0.35355338
        %v2575 = vpack.c.bf16 %v2574, %v2574
        %v2576 = vpack.c.bf16 %v2571, %v2568
        %v2578 = vlaneseq
        %v2579 = vshrl.u32 %v2578, 7
        %v2580 = vsub.s32 0, %v2579
        %v2581 = vrot.slane %v1123, %v2580
        %v2584 = vsel %vm1198, %v2575, 0
        %v2587 = vsel %vm1198, %v2576, 0
        %2589 = vmatprep.subr.bf16.mxu0 0
        %2590 = vmatpush1.bf16.xpose.msra.mxu0 %v2587
        %2591 = vmatprep.subr.bf16.mxu0 0
        %2592 = vmatpush1.bf16.xpose.msra.mxu0 0
        %2593 = vmatprep.subr.bf16.mxu0 0
        %2594 = vmatpush1.bf16.xpose.msra.mxu0 0
        %2595 = vmatprep.subr.bf16.mxu0 0
        %2596 = vmatpush1.bf16.xpose.msra.mxu0 0
        %2597 = vmatprep.subr.bf16.mxu0 0
        %2598 = vmatpush1.bf16.xpose.msra.mxu0 0
        %2599 = vmatprep.subr.bf16.mxu0 0
        %2600 = vmatpush1.bf16.xpose.msra.mxu0 0
        %2601 = vmatprep.subr.bf16.mxu0 0
        %2602 = vmatpush1.bf16.xpose.msra.mxu0 0
        %2603 = vmatprep.subr.bf16.mxu0 0
        %2604 = vmatpush1.bf16.xpose.msra.mxu0 0
        %2605 = vmatprep.subr.bf16.mxu0 0
        %2606 = vmatpush1.bf16.xpose.msra.mxu0 0
        %2607 = vmatprep.subr.bf16.mxu0 0
        %2608 = vmatpush1.bf16.xpose.msra.mxu0 0
        %2609 = vmatprep.subr.bf16.mxu0 0
        %2610 = vmatpush1.bf16.xpose.msra.mxu0 0
        %2611 = vmatprep.subr.bf16.mxu0 0
        %2612 = vmatpush1.bf16.xpose.msra.mxu0 0
        %2613 = vmatprep.subr.bf16.mxu0 0
        %2614 = vmatpush1.bf16.xpose.msra.mxu0 0
        %2615 = vmatprep.subr.bf16.mxu0 0
        %2616 = vmatpush1.bf16.xpose.msra.mxu0 0
        %2617 = vmatprep.subr.bf16.mxu0 0
        %2618 = vmatpush1.bf16.xpose.msra.mxu0 0
        %2619 = vmatprep.subr.bf16.mxu0 0
        %2620 = vmatpush1.bf16.xpose.msra.mxu0 0
        %2621 = vmatprep.mubr.bf16.mxu0 0
        %2622 = vmatmul.mubr.bf16.gmra.mrb[0].mxu0 %v2584
        %v2623 = vpop.f32.mrb[0].mxu0
        %v2624 = vadd.f32 %v2581, %v2623
        %v2625 = vpop.f32.mrb[0].mxu0
        %v2626 = vpop.f32.mrb[0].mxu0
        %v2627 = vpop.f32.mrb[0].mxu0
        %2628 = vdwg.mxu0
        %v2629 = vsel %vm1650, %v2624, -inf
        %2630 = vmax.xlane.f32.xlu0 %v2629
        %v2631 = vpop.xlane.xlu0 %2630
        %v2632 = vsub.f32 %v2624, %v2631
        %v2633 = vmul.f32 %v2632, 1.442695
        %v2634 = vpow.pop %v2633
        %v2635 = vsel %vm1650, %v2634, 0.0
        %2636 = vadd.xlane.f32.xlu0 %v2635
        %v2637 = vpop.xlane.xlu0 %2636
        %v2638 = vrcp.pop %v2637
        %v2639 = vmul.f32 %v2634, %v2638
        %v2640 = vpack.c.bf16 %v2639, %v2639
        %2642 = vrot.lane.b32.xlu0 %v2576, 96
        %v2643 = vpop.permute.xlu0 %2642
        %v2646 = vsel %vm1650, %v2640, 0
        %2648 = vmatprep.subr.bf16.mxu0 0
        %2649 = vmatpush1.bf16.msra.mxu0 %v2643
        %2650 = vmatprep.subr.bf16.mxu0 0
        %2651 = vmatpush1.bf16.msra.mxu0 0
        %2652 = vmatprep.subr.bf16.mxu0 0
        %2653 = vmatpush1.bf16.msra.mxu0 0
        %2654 = vmatprep.subr.bf16.mxu0 0
        %2655 = vmatpush1.bf16.msra.mxu0 0
        %2656 = vmatprep.subr.bf16.mxu0 0
        %2657 = vmatpush1.bf16.msra.mxu0 0
        %2658 = vmatprep.subr.bf16.mxu0 0
        %2659 = vmatpush1.bf16.msra.mxu0 0
        %2660 = vmatprep.subr.bf16.mxu0 0
        %2661 = vmatpush1.bf16.msra.mxu0 0
        %2662 = vmatprep.subr.bf16.mxu0 0
        %2663 = vmatpush1.bf16.msra.mxu0 0
        %2664 = vmatprep.subr.bf16.mxu0 0
        %2665 = vmatpush1.bf16.msra.mxu0 0
        %2666 = vmatprep.subr.bf16.mxu0 0
        %2667 = vmatpush1.bf16.msra.mxu0 0
        %2668 = vmatprep.subr.bf16.mxu0 0
        %2669 = vmatpush1.bf16.msra.mxu0 0
        %2670 = vmatprep.subr.bf16.mxu0 0
        %2671 = vmatpush1.bf16.msra.mxu0 0
        %2672 = vmatprep.subr.bf16.mxu0 0
        %2673 = vmatpush1.bf16.msra.mxu0 0
        %2674 = vmatprep.subr.bf16.mxu0 0
        %2675 = vmatpush1.bf16.msra.mxu0 0
        %2676 = vmatprep.subr.bf16.mxu0 0
        %2677 = vmatpush1.bf16.msra.mxu0 0
        %2678 = vmatprep.subr.bf16.mxu0 0
        %2679 = vmatpush1.bf16.msra.mxu0 0
        %2680 = vmatprep.mubr.bf16.mxu0 0
        %2681 = vmatmul.mubr.bf16.gmra.mrb[0].mxu0 %v2646
        %v2682 = vpop.f32.mrb[0].mxu0
        %v2683 = vadd.f32 0.0, %v2682
        %v2684 = vpop.f32.mrb[0].mxu0
        %v2685 = vpop.f32.mrb[0].mxu0
        %v2686 = vpop.f32.mrb[0].mxu0
        %2687 = vdwg.mxu0
        %2689 = vrot.lane.b32.xlu0 %v2575, 120
        %v2690 = vpop.permute.xlu0 %2689
        %2691 = vrot.lane.b32.xlu0 %v2576, 120
        %v2692 = vpop.permute.xlu0 %2691
        %v2694 = vsel %vm1198, %v2690, 0
        %v2697 = vsel %vm1198, %v2692, 0
        %2699 = vmatprep.subr.bf16.mxu0 0
        %2700 = vmatpush1.bf16.xpose.msra.mxu0 %v2697
        %2701 = vmatprep.subr.bf16.mxu0 0
        %2702 = vmatpush1.bf16.xpose.msra.mxu0 0
        %2703 = vmatprep.subr.bf16.mxu0 0
        %2704 = vmatpush1.bf16.xpose.msra.mxu0 0
        %2705 = vmatprep.subr.bf16.mxu0 0
        %2706 = vmatpush1.bf16.xpose.msra.mxu0 0
        %2707 = vmatprep.subr.bf16.mxu0 0
        %2708 = vmatpush1.bf16.xpose.msra.mxu0 0
        %2709 = vmatprep.subr.bf16.mxu0 0
        %2710 = vmatpush1.bf16.xpose.msra.mxu0 0
        %2711 = vmatprep.subr.bf16.mxu0 0
        %2712 = vmatpush1.bf16.xpose.msra.mxu0 0
        %2713 = vmatprep.subr.bf16.mxu0 0
        %2714 = vmatpush1.bf16.xpose.msra.mxu0 0
        %2715 = vmatprep.subr.bf16.mxu0 0
        %2716 = vmatpush1.bf16.xpose.msra.mxu0 0
        %2717 = vmatprep.subr.bf16.mxu0 0
        %2718 = vmatpush1.bf16.xpose.msra.mxu0 0
        %2719 = vmatprep.subr.bf16.mxu0 0
        %2720 = vmatpush1.bf16.xpose.msra.mxu0 0
        %2721 = vmatprep.subr.bf16.mxu0 0
        %2722 = vmatpush1.bf16.xpose.msra.mxu0 0
        %2723 = vmatprep.subr.bf16.mxu0 0
        %2724 = vmatpush1.bf16.xpose.msra.mxu0 0
        %2725 = vmatprep.subr.bf16.mxu0 0
        %2726 = vmatpush1.bf16.xpose.msra.mxu0 0
        %2727 = vmatprep.subr.bf16.mxu0 0
        %2728 = vmatpush1.bf16.xpose.msra.mxu0 0
        %2729 = vmatprep.subr.bf16.mxu0 0
        %2730 = vmatpush1.bf16.xpose.msra.mxu0 0
        %2731 = vmatprep.mubr.bf16.mxu0 0
        %2732 = vmatmul.mubr.bf16.gmra.mrb[0].mxu0 %v2694
        %v2733 = vpop.f32.mrb[0].mxu0
        %v2734 = vadd.f32 %v2581, %v2733
        %v2735 = vpop.f32.mrb[0].mxu0
        %v2736 = vpop.f32.mrb[0].mxu0
        %v2737 = vpop.f32.mrb[0].mxu0
        %2738 = vdwg.mxu0
        %v2739 = vsel %vm1650, %v2734, -inf
        %2740 = vmax.xlane.f32.xlu0 %v2739
        %v2741 = vpop.xlane.xlu0 %2740
        %v2742 = vsub.f32 %v2734, %v2741
        %v2743 = vmul.f32 %v2742, 1.442695
        %v2744 = vpow.pop %v2743
        %v2745 = vsel %vm1650, %v2744, 0.0
        %2746 = vadd.xlane.f32.xlu0 %v2745
        %v2747 = vpop.xlane.xlu0 %2746
        %v2748 = vrcp.pop %v2747
        %v2749 = vmul.f32 %v2744, %v2748
        %v2750 = vpack.c.bf16 %v2749, %v2749
        %2751 = vrot.lane.b32.xlu0 %v2576, 88
        %v2752 = vpop.permute.xlu0 %2751
        %v2755 = vsel %vm1650, %v2750, 0
        %2757 = vmatprep.subr.bf16.mxu0 0
        %2758 = vmatpush1.bf16.msra.mxu0 %v2752
        %2759 = vmatprep.subr.bf16.mxu0 0
        %2760 = vmatpush1.bf16.msra.mxu0 0
        %2761 = vmatprep.subr.bf16.mxu0 0
        %2762 = vmatpush1.bf16.msra.mxu0 0
        %2763 = vmatprep.subr.bf16.mxu0 0
        %2764 = vmatpush1.bf16.msra.mxu0 0
        %2765 = vmatprep.subr.bf16.mxu0 0
        %2766 = vmatpush1.bf16.msra.mxu0 0
        %2767 = vmatprep.subr.bf16.mxu0 0
        %2768 = vmatpush1.bf16.msra.mxu0 0
        %2769 = vmatprep.subr.bf16.mxu0 0
        %2770 = vmatpush1.bf16.msra.mxu0 0
        %2771 = vmatprep.subr.bf16.mxu0 0
        %2772 = vmatpush1.bf16.msra.mxu0 0
        %2773 = vmatprep.subr.bf16.mxu0 0
        %2774 = vmatpush1.bf16.msra.mxu0 0
        %2775 = vmatprep.subr.bf16.mxu0 0
        %2776 = vmatpush1.bf16.msra.mxu0 0
        %2777 = vmatprep.subr.bf16.mxu0 0
        %2778 = vmatpush1.bf16.msra.mxu0 0
        %2779 = vmatprep.subr.bf16.mxu0 0
        %2780 = vmatpush1.bf16.msra.mxu0 0
        %2781 = vmatprep.subr.bf16.mxu0 0
        %2782 = vmatpush1.bf16.msra.mxu0 0
        %2783 = vmatprep.subr.bf16.mxu0 0
        %2784 = vmatpush1.bf16.msra.mxu0 0
        %2785 = vmatprep.subr.bf16.mxu0 0
        %2786 = vmatpush1.bf16.msra.mxu0 0
        %2787 = vmatprep.subr.bf16.mxu0 0
        %2788 = vmatpush1.bf16.msra.mxu0 0
        %2789 = vmatprep.mubr.bf16.mxu0 0
        %2790 = vmatmul.mubr.bf16.gmra.mrb[0].mxu0 %v2755
        %v2791 = vpop.f32.mrb[0].mxu0
        %v2792 = vadd.f32 0.0, %v2791
        %v2793 = vpop.f32.mrb[0].mxu0
        %v2794 = vpop.f32.mrb[0].mxu0
        %v2795 = vpop.f32.mrb[0].mxu0
        %2796 = vdwg.mxu0
        %v2797 = vadd.f32 %v2639, %v2749
        %2798 = vrot.lane.b32.xlu0 %v2575, 112
        %v2799 = vpop.permute.xlu0 %2798
        %2800 = vrot.lane.b32.xlu0 %v2576, 112
        %v2801 = vpop.permute.xlu0 %2800
        %v2803 = vsel %vm1198, %v2799, 0
        %v2806 = vsel %vm1198, %v2801, 0
        %2808 = vmatprep.subr.bf16.mxu0 0
        %2809 = vmatpush1.bf16.xpose.msra.mxu0 %v2806
        %2810 = vmatprep.subr.bf16.mxu0 0
        %2811 = vmatpush1.bf16.xpose.msra.mxu0 0
        %2812 = vmatprep.subr.bf16.mxu0 0
        %2813 = vmatpush1.bf16.xpose.msra.mxu0 0
        %2814 = vmatprep.subr.bf16.mxu0 0
        %2815 = vmatpush1.bf16.xpose.msra.mxu0 0
        %2816 = vmatprep.subr.bf16.mxu0 0
        %2817 = vmatpush1.bf16.xpose.msra.mxu0 0
        %2818 = vmatprep.subr.bf16.mxu0 0
        %2819 = vmatpush1.bf16.xpose.msra.mxu0 0
        %2820 = vmatprep.subr.bf16.mxu0 0
        %2821 = vmatpush1.bf16.xpose.msra.mxu0 0
        %2822 = vmatprep.subr.bf16.mxu0 0
        %2823 = vmatpush1.bf16.xpose.msra.mxu0 0
        %2824 = vmatprep.subr.bf16.mxu0 0
        %2825 = vmatpush1.bf16.xpose.msra.mxu0 0
        %2826 = vmatprep.subr.bf16.mxu0 0
        %2827 = vmatpush1.bf16.xpose.msra.mxu0 0
        %2828 = vmatprep.subr.bf16.mxu0 0
        %2829 = vmatpush1.bf16.xpose.msra.mxu0 0
        %2830 = vmatprep.subr.bf16.mxu0 0
        %2831 = vmatpush1.bf16.xpose.msra.mxu0 0
        %2832 = vmatprep.subr.bf16.mxu0 0
        %2833 = vmatpush1.bf16.xpose.msra.mxu0 0
        %2834 = vmatprep.subr.bf16.mxu0 0
        %2835 = vmatpush1.bf16.xpose.msra.mxu0 0
        %2836 = vmatprep.subr.bf16.mxu0 0
        %2837 = vmatpush1.bf16.xpose.msra.mxu0 0
        %2838 = vmatprep.subr.bf16.mxu0 0
        %2839 = vmatpush1.bf16.xpose.msra.mxu0 0
        %2840 = vmatprep.mubr.bf16.mxu0 0
        %2841 = vmatmul.mubr.bf16.gmra.mrb[0].mxu0 %v2803
        %v2842 = vpop.f32.mrb[0].mxu0
        %v2843 = vadd.f32 %v2581, %v2842
        %v2844 = vpop.f32.mrb[0].mxu0
        %v2845 = vpop.f32.mrb[0].mxu0
        %v2846 = vpop.f32.mrb[0].mxu0
        %2847 = vdwg.mxu0
        %v2848 = vsel %vm1650, %v2843, -inf
        %2849 = vmax.xlane.f32.xlu0 %v2848
        %v2850 = vpop.xlane.xlu0 %2849
        %v2851 = vsub.f32 %v2843, %v2850
        %v2852 = vmul.f32 %v2851, 1.442695
        %v2853 = vpow.pop %v2852
        %v2854 = vsel %vm1650, %v2853, 0.0
        %2855 = vadd.xlane.f32.xlu0 %v2854
        %v2856 = vpop.xlane.xlu0 %2855
        %v2857 = vrcp.pop %v2856
        %v2858 = vmul.f32 %v2853, %v2857
        %v2859 = vpack.c.bf16 %v2858, %v2858
        %2860 = vrot.lane.b32.xlu0 %v2576, 80
        %v2861 = vpop.permute.xlu0 %2860
        %v2864 = vsel %vm1650, %v2859, 0
        %2866 = vmatprep.subr.bf16.mxu0 0
        %2867 = vmatpush1.bf16.msra.mxu0 %v2861
        %2868 = vmatprep.subr.bf16.mxu0 0
        %2869 = vmatpush1.bf16.msra.mxu0 0
        %2870 = vmatprep.subr.bf16.mxu0 0
        %2871 = vmatpush1.bf16.msra.mxu0 0
        %2872 = vmatprep.subr.bf16.mxu0 0
        %2873 = vmatpush1.bf16.msra.mxu0 0
        %2874 = vmatprep.subr.bf16.mxu0 0
        %2875 = vmatpush1.bf16.msra.mxu0 0
        %2876 = vmatprep.subr.bf16.mxu0 0
        %2877 = vmatpush1.bf16.msra.mxu0 0
        %2878 = vmatprep.subr.bf16.mxu0 0
        %2879 = vmatpush1.bf16.msra.mxu0 0
        %2880 = vmatprep.subr.bf16.mxu0 0
        %2881 = vmatpush1.bf16.msra.mxu0 0
        %2882 = vmatprep.subr.bf16.mxu0 0
        %2883 = vmatpush1.bf16.msra.mxu0 0
        %2884 = vmatprep.subr.bf16.mxu0 0
        %2885 = vmatpush1.bf16.msra.mxu0 0
        %2886 = vmatprep.subr.bf16.mxu0 0
        %2887 = vmatpush1.bf16.msra.mxu0 0
        %2888 = vmatprep.subr.bf16.mxu0 0
        %2889 = vmatpush1.bf16.msra.mxu0 0
        %2890 = vmatprep.subr.bf16.mxu0 0
        %2891 = vmatpush1.bf16.msra.mxu0 0
        %2892 = vmatprep.subr.bf16.mxu0 0
        %2893 = vmatpush1.bf16.msra.mxu0 0
        %2894 = vmatprep.subr.bf16.mxu0 0
        %2895 = vmatpush1.bf16.msra.mxu0 0
        %2896 = vmatprep.subr.bf16.mxu0 0
        %2897 = vmatpush1.bf16.msra.mxu0 0
        %2898 = vmatprep.mubr.bf16.mxu0 0
        %2899 = vmatmul.mubr.bf16.gmra.mrb[0].mxu0 %v2864
        %v2900 = vpop.f32.mrb[0].mxu0
        %v2901 = vadd.f32 0.0, %v2900
        %v2902 = vpop.f32.mrb[0].mxu0
        %v2903 = vpop.f32.mrb[0].mxu0
        %v2904 = vpop.f32.mrb[0].mxu0
        %2905 = vdwg.mxu0
        %v2906 = vadd.f32 %v2797, %v2858
        %2907 = vrot.lane.b32.xlu0 %v2575, 104
        %v2908 = vpop.permute.xlu0 %2907
        %2909 = vrot.lane.b32.xlu0 %v2576, 104
        %v2910 = vpop.permute.xlu0 %2909
        %v2912 = vsel %vm1198, %v2908, 0
        %v2915 = vsel %vm1198, %v2910, 0
        %2917 = vmatprep.subr.bf16.mxu0 0
        %2918 = vmatpush1.bf16.xpose.msra.mxu0 %v2915
        %2919 = vmatprep.subr.bf16.mxu0 0
        %2920 = vmatpush1.bf16.xpose.msra.mxu0 0
        %2921 = vmatprep.subr.bf16.mxu0 0
        %2922 = vmatpush1.bf16.xpose.msra.mxu0 0
        %2923 = vmatprep.subr.bf16.mxu0 0
        %2924 = vmatpush1.bf16.xpose.msra.mxu0 0
        %2925 = vmatprep.subr.bf16.mxu0 0
        %2926 = vmatpush1.bf16.xpose.msra.mxu0 0
        %2927 = vmatprep.subr.bf16.mxu0 0
        %2928 = vmatpush1.bf16.xpose.msra.mxu0 0
        %2929 = vmatprep.subr.bf16.mxu0 0
        %2930 = vmatpush1.bf16.xpose.msra.mxu0 0
        %2931 = vmatprep.subr.bf16.mxu0 0
        %2932 = vmatpush1.bf16.xpose.msra.mxu0 0
        %2933 = vmatprep.subr.bf16.mxu0 0
        %2934 = vmatpush1.bf16.xpose.msra.mxu0 0
        %2935 = vmatprep.subr.bf16.mxu0 0
        %2936 = vmatpush1.bf16.xpose.msra.mxu0 0
        %2937 = vmatprep.subr.bf16.mxu0 0
        %2938 = vmatpush1.bf16.xpose.msra.mxu0 0
        %2939 = vmatprep.subr.bf16.mxu0 0
        %2940 = vmatpush1.bf16.xpose.msra.mxu0 0
        %2941 = vmatprep.subr.bf16.mxu0 0
        %2942 = vmatpush1.bf16.xpose.msra.mxu0 0
        %2943 = vmatprep.subr.bf16.mxu0 0
        %2944 = vmatpush1.bf16.xpose.msra.mxu0 0
        %2945 = vmatprep.subr.bf16.mxu0 0
        %2946 = vmatpush1.bf16.xpose.msra.mxu0 0
        %2947 = vmatprep.subr.bf16.mxu0 0
        %2948 = vmatpush1.bf16.xpose.msra.mxu0 0
        %2949 = vmatprep.mubr.bf16.mxu0 0
        %2950 = vmatmul.mubr.bf16.gmra.mrb[0].mxu0 %v2912
        %v2951 = vpop.f32.mrb[0].mxu0
        %v2952 = vadd.f32 %v2581, %v2951
        %v2953 = vpop.f32.mrb[0].mxu0
        %v2954 = vpop.f32.mrb[0].mxu0
        %v2955 = vpop.f32.mrb[0].mxu0
        %2956 = vdwg.mxu0
        %v2957 = vsel %vm1650, %v2952, -inf
        %2958 = vmax.xlane.f32.xlu0 %v2957
        %v2959 = vpop.xlane.xlu0 %2958
        %v2960 = vsub.f32 %v2952, %v2959
        %v2961 = vmul.f32 %v2960, 1.442695
        %v2962 = vpow.pop %v2961
        %v2963 = vsel %vm1650, %v2962, 0.0
        %2964 = vadd.xlane.f32.xlu0 %v2963
        %v2965 = vpop.xlane.xlu0 %2964
        %v2966 = vrcp.pop %v2965
        %v2967 = vmul.f32 %v2962, %v2966
        %v2968 = vpack.c.bf16 %v2967, %v2967
        %2969 = vrot.lane.b32.xlu0 %v2576, 72
        %v2970 = vpop.permute.xlu0 %2969
        %v2973 = vsel %vm1650, %v2968, 0
        %2975 = vmatprep.subr.bf16.mxu0 0
        %2976 = vmatpush1.bf16.msra.mxu0 %v2970
        %2977 = vmatprep.subr.bf16.mxu0 0
        %2978 = vmatpush1.bf16.msra.mxu0 0
        %2979 = vmatprep.subr.bf16.mxu0 0
        %2980 = vmatpush1.bf16.msra.mxu0 0
        %2981 = vmatprep.subr.bf16.mxu0 0
        %2982 = vmatpush1.bf16.msra.mxu0 0
        %2983 = vmatprep.subr.bf16.mxu0 0
        %2984 = vmatpush1.bf16.msra.mxu0 0
        %2985 = vmatprep.subr.bf16.mxu0 0
        %2986 = vmatpush1.bf16.msra.mxu0 0
        %2987 = vmatprep.subr.bf16.mxu0 0
        %2988 = vmatpush1.bf16.msra.mxu0 0
        %2989 = vmatprep.subr.bf16.mxu0 0
        %2990 = vmatpush1.bf16.msra.mxu0 0
        %2991 = vmatprep.subr.bf16.mxu0 0
        %2992 = vmatpush1.bf16.msra.mxu0 0
        %2993 = vmatprep.subr.bf16.mxu0 0
        %2994 = vmatpush1.bf16.msra.mxu0 0
        %2995 = vmatprep.subr.bf16.mxu0 0
        %2996 = vmatpush1.bf16.msra.mxu0 0
        %2997 = vmatprep.subr.bf16.mxu0 0
        %2998 = vmatpush1.bf16.msra.mxu0 0
        %2999 = vmatprep.subr.bf16.mxu0 0
        %3000 = vmatpush1.bf16.msra.mxu0 0
        %3001 = vmatprep.subr.bf16.mxu0 0
        %3002 = vmatpush1.bf16.msra.mxu0 0
        %3003 = vmatprep.subr.bf16.mxu0 0
        %3004 = vmatpush1.bf16.msra.mxu0 0
        %3005 = vmatprep.subr.bf16.mxu0 0
        %3006 = vmatpush1.bf16.msra.mxu0 0
        %3007 = vmatprep.mubr.bf16.mxu0 0
        %3008 = vmatmul.mubr.bf16.gmra.mrb[0].mxu0 %v2973
        %v3009 = vpop.f32.mrb[0].mxu0
        %v3010 = vadd.f32 0.0, %v3009
        %v3011 = vpop.f32.mrb[0].mxu0
        %v3012 = vpop.f32.mrb[0].mxu0
        %v3013 = vpop.f32.mrb[0].mxu0
        %3014 = vdwg.mxu0
        %v3015 = vadd.f32 %v2906, %v2967
        %3017 = vrot.lane.b32.xlu0 %v2792, 8
        %v3018 = vpop.permute.xlu0 %3017
        %3021 = vrot.lane.b32.xlu0 %v2901, 16
        %v3022 = vpop.permute.xlu0 %3021
        %3025 = vrot.lane.b32.xlu0 %v3010, 24
        %v3026 = vpop.permute.xlu0 %3025
        %v3028 = vsel %vm1198, %v2683, %v3018
        %v3029 = vsel %vm1650, %v3028, %v3022
        %v3030 = vsel %vm1652, %v3029, %v3026
        %v3031 = vmul.f32 %v3015, 0.25
        %v3032 = vld [vmem:[%s47] sm:$0xf]
        %v3033 = vld [vmem:[%s47 + $0x4] sm:$0xf]
        %v3034 = vld [vmem:[%s47 + $0x8] sm:$0xf]
        %v3035 = vld [vmem:[%s47 + $0xc] sm:$0xf]
        %v3036 = vpack.c.bf16 %v3030, %v3030
        %v3037 = vld [vmem:[%s49] sm:$0x1]
        %v3039 = vlaneseq
        %v3040 = vshrl.u32 %v3039, 7
        %v3041 = vsub.s32 0, %v3040
        %v3042 = vrot.slane %v3037, %v3041
        %v3048 = vunpack.c.l.b16 %v3032
        %v3049 = vunpack.c.l.b16 %v3033
        %v3050 = vunpack.c.l.b16 %v3034
        %v3051 = vunpack.c.l.b16 %v3035
        %v3052 = vpack.c.b16 %v3049, %v3048
        %v3053 = vpack.c.b16 %v3051, %v3050
        %v3057 = vsel %vm1148, %v3036, 0
        %3059 = vmatprep.subr.bf16.mxu0 0
        %3060 = vmatpush1.bf16.msra.mxu0 %v3052
        %3061 = vmatprep.subr.bf16.mxu0 0
        %3062 = vmatpush1.bf16.msra.mxu0 %v3053
        %3063 = vmatprep.subr.bf16.mxu0 0
        %3064 = vmatpush1.bf16.msra.mxu0 0
        %3065 = vmatprep.subr.bf16.mxu0 0
        %3066 = vmatpush1.bf16.msra.mxu0 0
        %3067 = vmatprep.subr.bf16.mxu0 0
        %3068 = vmatpush1.bf16.msra.mxu0 0
        %3069 = vmatprep.subr.bf16.mxu0 0
        %3070 = vmatpush1.bf16.msra.mxu0 0
        %3071 = vmatprep.subr.bf16.mxu0 0
        %3072 = vmatpush1.bf16.msra.mxu0 0
        %3073 = vmatprep.subr.bf16.mxu0 0
        %3074 = vmatpush1.bf16.msra.mxu0 0
        %3075 = vmatprep.subr.bf16.mxu0 0
        %3076 = vmatpush1.bf16.msra.mxu0 0
        %3077 = vmatprep.subr.bf16.mxu0 0
        %3078 = vmatpush1.bf16.msra.mxu0 0
        %3079 = vmatprep.subr.bf16.mxu0 0
        %3080 = vmatpush1.bf16.msra.mxu0 0
        %3081 = vmatprep.subr.bf16.mxu0 0
        %3082 = vmatpush1.bf16.msra.mxu0 0
        %3083 = vmatprep.subr.bf16.mxu0 0
        %3084 = vmatpush1.bf16.msra.mxu0 0
        %3085 = vmatprep.subr.bf16.mxu0 0
        %3086 = vmatpush1.bf16.msra.mxu0 0
        %3087 = vmatprep.subr.bf16.mxu0 0
        %3088 = vmatpush1.bf16.msra.mxu0 0
        %3089 = vmatprep.subr.bf16.mxu0 0
        %3090 = vmatpush1.bf16.msra.mxu0 0
        %3091 = vmatprep.mubr.bf16.mxu0 0
        %3092 = vmatmul.mubr.bf16.gmra.mrb[0].mxu0 %v3057
        %v3093 = vpop.f32.mrb[0].mxu0
        %v3094 = vadd.f32 %v3042, %v3093
        %v3095 = vpop.f32.mrb[0].mxu0
        %v3096 = vpop.f32.mrb[0].mxu0
        %v3097 = vpop.f32.mrb[0].mxu0
        %3098 = vdwg.mxu0
        %v3099 = vadd.f32 %v3094, %v2438
        %v3100 = vsel %vm1148, %v3099, 0.0
        %3101 = vadd.xlane.f32.xlu0 %v3100
        %v3102 = vpop.xlane.xlu0 %3101
        %v3103 = vmul.f32 %v3102, %v1725
        %v3104 = vsub.f32 %v3099, %v3103
        %v3105 = vmul.f32 %v3104, %v3104
        %v3106 = vsel %vm1148, %v3105, 0.0
        %3107 = vadd.xlane.f32.xlu0 %v3106
        %v3108 = vpop.xlane.xlu0 %3107
        %v3109 = vmul.f32 %v3108, %v1725
        %v3110 = vadd.f32 %v3109, 1e-06
        %v3111 = vrsqrt.pop %v3110
        %v3112 = vmul.f32 %v3104, %v3111
        %v3113 = vld [vmem:[%s51] sm:$0x1]
        %v3115 = vlaneseq
        %v3116 = vshrl.u32 %v3115, 7
        %v3117 = vsub.s32 0, %v3116
        %v3118 = vrot.slane %v3113, %v3117
        %v3120 = vmul.f32 %v3112, %v3118
        %v3121 = vld [vmem:[%s53] sm:$0x1]
        %v3123 = vlaneseq
        %v3124 = vshrl.u32 %v3123, 7
        %v3125 = vsub.s32 0, %v3124
        %v3126 = vrot.slane %v3121, %v3125
        %v3128 = vadd.f32 %v3120, %v3126
        %v3129 = vsel %vm1148, %v3128, 0.0
        %3130 = vadd.xlane.f32.xlu0 %v3129
        %v3131 = vpop.xlane.xlu0 %3130
        %v3132 = vmul.f32 %v3131, %v1725
        %v3133 = vsub.f32 %v3128, %v3132
        %v3134 = vmul.f32 %v3133, %v3133
        %v3135 = vsel %vm1148, %v3134, 0.0
        %3136 = vadd.xlane.f32.xlu0 %v3135
        %v3137 = vpop.xlane.xlu0 %3136
        %v3138 = vmul.f32 %v3137, %v1725
        %v3139 = vadd.f32 %v3138, 1e-06
        %v3140 = vrsqrt.pop %v3139
        %v3141 = vmul.f32 %v3133, %v3140
        %v3142 = vld [vmem:[%s55] sm:$0x1]
        %v3144 = vlaneseq
        %v3145 = vshrl.u32 %v3144, 7
        %v3146 = vsub.s32 0, %v3145
        %v3147 = vrot.slane %v3142, %v3146
        %v3149 = vmul.f32 %v3141, %v3147
        %v3150 = vld [vmem:[%s57] sm:$0x1]
        %v3152 = vlaneseq
        %v3153 = vshrl.u32 %v3152, 7
        %v3154 = vsub.s32 0, %v3153
        %v3155 = vrot.slane %v3150, %v3154
        %v3157 = vadd.f32 %v3149, %v3155
        %v3158 = vld [vmem:[%s59] sm:$0xf]
        %v3159 = vld [vmem:[%s59 + $0x4] sm:$0xf]
        %v3160 = vld [vmem:[%s59 + $0x8] sm:$0xf]
        %v3161 = vld [vmem:[%s59 + $0xc] sm:$0xf]
        %v3162 = vpack.c.bf16 %v3157, %v3157
        %v3163 = vld [vmem:[%s61] sm:$0x1]
        %v3165 = vlaneseq
        %v3166 = vshrl.u32 %v3165, 7
        %v3167 = vsub.s32 0, %v3166
        %v3168 = vrot.slane %v3163, %v3167
        %v3174 = vunpack.c.l.b16 %v3158
        %v3175 = vunpack.c.l.b16 %v3159
        %v3176 = vunpack.c.l.b16 %v3160
        %v3177 = vunpack.c.l.b16 %v3161
        %v3178 = vpack.c.b16 %v3175, %v3174
        %v3179 = vpack.c.b16 %v3177, %v3176
        %v3183 = vsel %vm1148, %v3162, 0
        %3185 = vmatprep.subr.bf16.mxu0 0
        %3186 = vmatpush1.bf16.msra.mxu0 %v3178
        %3187 = vmatprep.subr.bf16.mxu0 0
        %3188 = vmatpush1.bf16.msra.mxu0 %v3179
        %3189 = vmatprep.subr.bf16.mxu0 0
        %3190 = vmatpush1.bf16.msra.mxu0 0
        %3191 = vmatprep.subr.bf16.mxu0 0
        %3192 = vmatpush1.bf16.msra.mxu0 0
        %3193 = vmatprep.subr.bf16.mxu0 0
        %3194 = vmatpush1.bf16.msra.mxu0 0
        %3195 = vmatprep.subr.bf16.mxu0 0
        %3196 = vmatpush1.bf16.msra.mxu0 0
        %3197 = vmatprep.subr.bf16.mxu0 0
        %3198 = vmatpush1.bf16.msra.mxu0 0
        %3199 = vmatprep.subr.bf16.mxu0 0
        %3200 = vmatpush1.bf16.msra.mxu0 0
        %3201 = vmatprep.subr.bf16.mxu0 0
        %3202 = vmatpush1.bf16.msra.mxu0 0
        %3203 = vmatprep.subr.bf16.mxu0 0
        %3204 = vmatpush1.bf16.msra.mxu0 0
        %3205 = vmatprep.subr.bf16.mxu0 0
        %3206 = vmatpush1.bf16.msra.mxu0 0
        %3207 = vmatprep.subr.bf16.mxu0 0
        %3208 = vmatpush1.bf16.msra.mxu0 0
        %3209 = vmatprep.subr.bf16.mxu0 0
        %3210 = vmatpush1.bf16.msra.mxu0 0
        %3211 = vmatprep.subr.bf16.mxu0 0
        %3212 = vmatpush1.bf16.msra.mxu0 0
        %3213 = vmatprep.subr.bf16.mxu0 0
        %3214 = vmatpush1.bf16.msra.mxu0 0
        %3215 = vmatprep.subr.bf16.mxu0 0
        %3216 = vmatpush1.bf16.msra.mxu0 0
        %3217 = vmatprep.mubr.bf16.mxu0 0
        %3218 = vmatmul.mubr.bf16.gmra.mrb[0].mxu0 %v3183
        %v3219 = vpop.f32.mrb[0].mxu0
        %v3220 = vadd.f32 %v3168, %v3219
        %v3221 = vpop.f32.mrb[0].mxu0
        %v3222 = vpop.f32.mrb[0].mxu0
        %v3223 = vpop.f32.mrb[0].mxu0
        %3224 = vdwg.mxu0
        %v3225 = vmax.f32 %v3220, 0.0
        %v3226 = vld [vmem:[%s63] sm:$0xf]
        %v3227 = vld [vmem:[%s63 + $0x4] sm:$0xf]
        %v3228 = vld [vmem:[%s63 + $0x8] sm:$0xf]
        %v3229 = vld [vmem:[%s63 + $0xc] sm:$0xf]
        %v3230 = vld [vmem:[%s63 + $0x10] sm:$0xf]
        %v3231 = vld [vmem:[%s63 + $0x14] sm:$0xf]
        %v3232 = vld [vmem:[%s63 + $0x18] sm:$0xf]
        %v3233 = vld [vmem:[%s63 + $0x1c] sm:$0xf]
        %v3234 = vpack.c.bf16 %v3225, %v3225
        %v3235 = vld [vmem:[%s65] sm:$0x1]
        %v3237 = vlaneseq
        %v3238 = vshrl.u32 %v3237, 7
        %v3239 = vsub.s32 0, %v3238
        %v3240 = vrot.slane %v3235, %v3239
        %v3250 = vunpack.c.l.b16 %v3226
        %v3251 = vunpack.c.l.b16 %v3227
        %v3252 = vunpack.c.l.b16 %v3228
        %v3253 = vunpack.c.l.b16 %v3229
        %v3254 = vunpack.c.l.b16 %v3230
        %v3255 = vunpack.c.l.b16 %v3231
        %v3256 = vunpack.c.l.b16 %v3232
        %v3257 = vunpack.c.l.b16 %v3233
        %v3258 = vpack.c.b16 %v3251, %v3250
        %v3259 = vpack.c.b16 %v3253, %v3252
        %v3260 = vpack.c.b16 %v3255, %v3254
        %v3261 = vpack.c.b16 %v3257, %v3256
        %vm3266 = vcmask 523264
        %v3268 = vsel %vm3266, %v3234, 0
        %3270 = vmatprep.subr.bf16.mxu0 0
        %3271 = vmatpush1.bf16.msra.mxu0 %v3258
        %3272 = vmatprep.subr.bf16.mxu0 0
        %3273 = vmatpush1.bf16.msra.mxu0 %v3259
        %3274 = vmatprep.subr.bf16.mxu0 0
        %3275 = vmatpush1.bf16.msra.mxu0 %v3260
        %3276 = vmatprep.subr.bf16.mxu0 0
        %3277 = vmatpush1.bf16.msra.mxu0 %v3261
        %3278 = vmatprep.subr.bf16.mxu0 0
        %3279 = vmatpush1.bf16.msra.mxu0 0
        %3280 = vmatprep.subr.bf16.mxu0 0
        %3281 = vmatpush1.bf16.msra.mxu0 0
        %3282 = vmatprep.subr.bf16.mxu0 0
        %3283 = vmatpush1.bf16.msra.mxu0 0
        %3284 = vmatprep.subr.bf16.mxu0 0
        %3285 = vmatpush1.bf16.msra.mxu0 0
        %3286 = vmatprep.subr.bf16.mxu0 0
        %3287 = vmatpush1.bf16.msra.mxu0 0
        %3288 = vmatprep.subr.bf16.mxu0 0
        %3289 = vmatpush1.bf16.msra.mxu0 0
        %3290 = vmatprep.subr.bf16.mxu0 0
        %3291 = vmatpush1.bf16.msra.mxu0 0
        %3292 = vmatprep.subr.bf16.mxu0 0
        %3293 = vmatpush1.bf16.msra.mxu0 0
        %3294 = vmatprep.subr.bf16.mxu0 0
        %3295 = vmatpush1.bf16.msra.mxu0 0
        %3296 = vmatprep.subr.bf16.mxu0 0
        %3297 = vmatpush1.bf16.msra.mxu0 0
        %3298 = vmatprep.subr.bf16.mxu0 0
        %3299 = vmatpush1.bf16.msra.mxu0 0
        %3300 = vmatprep.subr.bf16.mxu0 0
        %3301 = vmatpush1.bf16.msra.mxu0 0
        %3302 = vmatprep.mubr.bf16.mxu0 0
        %3303 = vmatmul.mubr.bf16.gmra.mrb[0].mxu0 %v3268
        %v3304 = vpop.f32.mrb[0].mxu0
        %v3305 = vadd.f32 %v3240, %v3304
        %v3306 = vpop.f32.mrb[0].mxu0
        %v3307 = vpop.f32.mrb[0].mxu0
        %v3308 = vpop.f32.mrb[0].mxu0
        %3309 = vdwg.mxu0
        %v3310 = vadd.f32 %v3128, %v3305
        %3311 = vst.msk [vmem:[%s1089] sm:$0xff] %vm1148, %v3310
        %3312 = vst.msk [vmem:[%s1096] sm:$0xff] %vm1650, %v3031
        %s3313 = sand.u32 %s813, 1
        %s3314 = scalar_lea.sflag [#allocation3], %s3313
        %s3315 = sand.u32 %s813, 1
        %s3316 = smul.addr %s3315, 8
        %s3317 = scalar_lea.vmem [#allocation2], %s3316
        %s3318 = sand.u32 %s839, 1
        %s3319 = scalar_lea.sflag [#allocation5], %s3318
        %s3320 = sand.u32 %s839, 1
        %s3321 = smul.addr %s3320, 8
        %s3322 = scalar_lea.vmem [#allocation4], %s3321
        // Predicated region
        $region153: #{decoder_forward.3} parent=151 // pred_check
          %p3323 = pneg %p823
        $region154: #{decoder_forward.3} parent=151 // pred_check_branch
          %3325 = sbr.rel (%p3323) target = $region156
        $region155: #{decoder_forward.3} parent=151 // pred_region
          %s3327 = ssub.s32 128, 128
          %3328 = vsyncadd %s3314, %s3327
          %s3329 = smul.addr %s87, 128
          %s3330 = scalar_lea.hbm %s67, %s3329
          %s3332 = sshll.u32 %s3317, 4
          %s3333 = int_to_ptr.vmem [resolvable:$true] %s3332
          %3335 = dma.vmem_to_hbm [thread:$0]  %s3333, 128, %s3330, %s3314
        $region156: #{decoder_forward.3} parent=151 // pred_fallthru
          _
        // Predicated region
        $region157: #{decoder_forward.3} parent=151 // pred_check
          %p3336 = pneg %p849
        $region158: #{decoder_forward.3} parent=151 // pred_check_branch
          %3338 = sbr.rel (%p3336) target = $region160
        $region159: #{decoder_forward.3} parent=151 // pred_region
          %s3340 = ssub.s32 128, 128
          %3341 = vsyncadd %s3319, %s3340
          %s3342 = smul.addr %s87, 128
          %s3343 = scalar_lea.hbm %s69, %s3342
          %s3345 = sshll.u32 %s3322, 4
          %s3346 = int_to_ptr.vmem [resolvable:$true] %s3345
          %3348 = dma.vmem_to_hbm [thread:$0]  %s3346, 128, %s3343, %s3319
        $region160: #{decoder_forward.3} parent=151 // pred_fallthru
          _
      $region152: #{decoder_forward.3} parent=5 // pred_fallthru
        _
      %p3349 = scmp.le.s32.totalorder 2, %s82
      // Predicated region
      $region161: #{decoder_forward.3} parent=5 // pred_check
        %p3350 = pneg %p3349
      $region162: #{decoder_forward.3} parent=5 // pred_check_branch
        %3352 = sbr.rel (%p3350) target = $region164
      $region163: #{decoder_forward.3} parent=5 // pred_region
        %s3353 = ssub.s32 %s82, 2
        // Predicated region
        $region165: #{decoder_forward.3} parent=163 // pred_check
          %p3354 = pneg %p829
        $region166: #{decoder_forward.3} parent=163 // pred_check_branch
          %3356 = sbr.rel (%p3354) target = $region168
        $region167: #{decoder_forward.3} parent=163 // pred_region
          %s3357 = sand.u32 %s814, 1
          %s3358 = scalar_lea.sflag [#allocation3], %s3357
          %s3359 = sand.u32 %s814, 1
          %s3360 = smul.addr %s3359, 8
          %s3361 = scalar_lea.vmem [#allocation2], %s3360
          %3362 = dma.done %s3358, 128
        $region168: #{decoder_forward.3} parent=163 // pred_fallthru
          _
        // Predicated region
        $region169: #{decoder_forward.3} parent=163 // pred_check
          %p3363 = pneg %p855
        $region170: #{decoder_forward.3} parent=163 // pred_check_branch
          %3365 = sbr.rel (%p3363) target = $region172
        $region171: #{decoder_forward.3} parent=163 // pred_region
          %s3366 = sand.u32 %s840, 1
          %s3367 = scalar_lea.sflag [#allocation5], %s3366
          %s3368 = sand.u32 %s840, 1
          %s3369 = smul.addr %s3368, 8
          %s3370 = scalar_lea.vmem [#allocation4], %s3369
          %3371 = dma.done %s3367, 128
        $region172: #{decoder_forward.3} parent=163 // pred_fallthru
          _
      $region164: #{decoder_forward.3} parent=5 // pred_fallthru
        _
    $region6: #{decoder_forward.3} parent=1 // loop_footer
      %s86 = sadd.s32 1, %s82
    $region7: #{decoder_forward.3} parent=1 // loop_footer_branch
      %81 = sbr.rel target = $region3
    $region8: #{decoder_forward.3} parent=1 // loop_exit
      _
    %3372 = vsyncpa [#allocation3], 1
    %s3373 = scalar_lea.sflag [#allocation3], 1
    %3374 = vsyncpa %s3373, 1
    %3375 = vsyncpa [#allocation5], 1
    %s3376 = scalar_lea.sflag [#allocation5], 1
    %3377 = vsyncpa %s3376, 1

</llo_original>
